<compile_context>
chip_gen: v6e
topology: v6e:2x2x1
jax: 0.10.0
libtpu: 0.0.40
codegen_flags: <defaults>
</compile_context>

<pallas_src>
import jax
import jax.numpy as jnp
from jax.experimental import pallas as pl
from jax.experimental.pallas import tpu as pltpu

F32 = jnp.float32
BF16 = jnp.bfloat16
VMEM = pltpu.MemorySpace.VMEM

# model dimensions (hidden_dim=32, heads=4 -> fused width D=128, lane-dense)
HEADS = 4
HEAD_DIM = 32
D = HEADS * HEAD_DIM
OUT_DIM = 3
IN_DIM = 7

# packed 128x128 weight-slab block indices (wbig has 9 blocks of D rows each)
GE_W1, GE_W2, SK_W, C1_W, C2_W, C3_W, W_VO, W_P, AD_BLK = range(9)

# packed (VEC_ROWS, 128) parameter-vector slab row indices
R_HMASK = 0                              # 4 rows: head lane masks
R_C1AS, R_C2AS, R_C3AS = 8, 16, 24       # 4 rows each: att_src in row-per-head form
(R_C1B, R_C2B, R_C3B,
 R_GE_B1, R_GE_G1, R_GE_BE1, R_GE_B2, R_GE_G2, R_GE_BE2,
 R_SK_B, R_BVO, R_LNG, R_LNB, R_BP, R_FB3, R_RB3, R_XYZ) = range(32, 49)
VEC_ROWS = 56


# ----------------------------------------------------------------------------- fused kernel
def fused_forward_kernel(x_in_ref, addmask_ref, norm_ref,
                         wbig_ref, vecs_ref, dw1_ref, dw2_ref, dw3_ref, dvec32_ref,
                         fwd_out_ref, rev_out_ref):
    x_in = x_in_ref[...]                 # (N, D) f32  [xyz | norm_params | zeros]
    addmask = addmask_ref[...]           # (N, N) f32  0 on edges/self-loops, -1e30 elsewhere

    def w128(k):                         # (D, D) bf16 weight block from the packed slab
        return wbig_ref[k * D:(k + 1) * D, :]

    def vrow(i):                         # (1, D) f32 parameter row
        return vecs_ref[i:i + 1, :]

    def mm(a, w_bf16):                   # bf16 MXU operands, f32 accumulation
        return jnp.dot(a.astype(BF16), w_bf16, preferred_element_type=F32)

    def layernorm(z, g, b, eps=1e-5):    # f32 (v5e: no bf16 VPU/EUP)
        mu = jnp.mean(z, axis=-1, keepdims=True)
        var = jnp.mean((z - mu) ** 2, axis=-1, keepdims=True)
        return (z - mu) * jax.lax.rsqrt(var + eps) * g + b

    # seq-len-1 MHA == out_proj(v_proj(kv)); Wv/Wo folded offline into W_VO / R_BVO (exact).
    w_vo = w128(W_VO)
    b_vo = vrow(R_BVO)

    def attn_fuse(kv):
        return mm(kv, w_vo) + b_vo

    hmask = vecs_ref[R_HMASK:R_HMASK + HEADS, :]      # (H, D): 1.0 on head h's lanes
    ln_g, ln_b = vrow(R_LNG), vrow(R_LNB)

    def gat(x, w_idx, as_row, ad_col, b_row, res, apply_relu):
        """GATConv (PyG semantics, concat heads, self-loops via addmask) + optional relu + residual."""
        xw = mm(x, w128(w_idx))                                            # (N, D) f32
        xw_b = xw.astype(BF16)
        # logits: e[h, i, j] = <att_dst_h, xw_i> + <att_src_h, xw_j>
        as_rows = vecs_ref[as_row:as_row + HEADS, :].astype(BF16)          # (H, D)
        a_src = jax.lax.dot_general(as_rows, xw_b, (((1,), (1,)), ((), ())),
                                    preferred_element_type=F32)            # (H, N)
        ad_cols = wbig_ref[AD_BLK * D:(AD_BLK + 1) * D, ad_col:ad_col + HEADS]   # (D, H) bf16
        a_dst = jnp.dot(xw_b, ad_cols, preferred_element_type=F32)         # (N, H)

        # stack heads on the leading axis: softmax issued once, ONE batched MXU aggregation
        e_parts, xw_parts = [], []
        for h in range(HEADS):
            e_parts.append((a_dst[:, h:h + 1] + a_src[h:h + 1, :])[None])  # (1, N, N)
            xw_parts.append((xw * hmask[h:h + 1, :])[None])                # (1, N, D)
        e = jnp.concatenate(e_parts, axis=0)                               # (H, N, N) f32
        xw_stack = jnp.concatenate(xw_parts, axis=0).astype(BF16)          # (H, N, D) bf16

        e = jnp.maximum(e, 0.2 * e) + addmask[None]       # LeakyReLU(0.2) + edge mask (f32)
        e = e - jnp.max(e, axis=-1, keepdims=True)
        p = jnp.exp(e)
        # approx reciprocal: ~2^-12 relative error vs exact softmax (EUP slot; fine for inference)
        alpha = p * pl.reciprocal(jnp.sum(p, axis=-1, keepdims=True), approx=True)
        agg = jnp.einsum('hnm,hmd->hnd', alpha.astype(BF16), xw_stack,
                         preferred_element_type=F32)                       # (H, N, D)
        out = agg[0]
        for h in range(1, HEADS):
            out = out + agg[h]                     # heads occupy disjoint lanes -> exact concat
        out = out + vrow(b_row)
        if apply_relu:
            out = jnp.maximum(out, 0.0)
        return out + res

    # ---- hoisted: global encoder + its seq-len-1 attention (depend only on norm_params) ----
    z = mm(norm_ref[...], w128(GE_W1)) + vrow(R_GE_B1)
    z = jnp.maximum(layernorm(z, vrow(R_GE_G1), vrow(R_GE_BE1)), 0.0)
    z = mm(z, w128(GE_W2)) + vrow(R_GE_B2)
    gf = layernorm(z, vrow(R_GE_G2), vrow(R_GE_BE2))                       # (1, D)
    gf_attn = attn_fuse(gf)                                                # reused by both passes

    def encode(xi):
        x_skip = mm(xi, w128(SK_W)) + vrow(R_SK_B)
        x1 = gat(xi, C1_W, R_C1AS, 0 * HEADS, R_C1B, x_skip, True)
        x2 = gat(x1, C2_W, R_C2AS, 1 * HEADS, R_C2B, x1, True)
        x3 = gat(x2, C3_W, R_C3AS, 2 * HEADS, R_C3B, x2, False)
        fused1 = layernorm(gf_attn + x3, ln_g, ln_b)
        gs = jnp.mean(x3, axis=0, keepdims=True)                           # global_mean_pool
        fused2 = layernorm(attn_fuse(gs) + fused1, ln_g, ln_b)
        return mm(fused2, w128(W_P)) + vrow(R_BP)

    def decode(zenc, sel, b3_row):
        w1 = dw1_ref[sel * D:(sel + 1) * D, :]                             # (D, 32)  bf16
        w2 = dw2_ref[sel * HEAD_DIM:(sel + 1) * HEAD_DIM, :]               # (32, 32) bf16
        w3 = dw3_ref[sel * HEAD_DIM:(sel + 1) * HEAD_DIM, :]               # (32, D)  bf16 (cols>=3 zero)
        dv = lambda i: dvec32_ref[sel * 6 + i:sel * 6 + i + 1, :]          # (1, 32) f32
        h1 = mm(zenc, w1) + dv(0)
        h1 = jnp.maximum(layernorm(h1, dv(1), dv(2)), 0.0)
        # Dropout(0.1) is identity in eval mode.
        h2 = mm(h1, w2) + dv(3)
        h2 = jnp.maximum(layernorm(h2, dv(4), dv(5)), 0.0)
        return mm(h2, w3) + vrow(b3_row)                                   # (N, D) lane-dense slab

    enc1 = encode(x_in)
    fwd_pad = decode(enc1, 0, R_FB3)
    fwd_out_ref[...] = fwd_pad
    # deformed coords: xyz lives in lanes [0:3]; explicit xyz lane mask guards the norm-param lanes
    # even if loaded w3/b3 are not zero-padded.
    x_in2 = x_in + fwd_pad * vrow(R_XYZ)
    enc2 = encode(x_in2)
    rev_out_ref[...] = decode(enc2, 1, R_RB3)
    # TODO(synk): at realistic mesh sizes (N >~ 1-2K, esp. v7x's 64 MiB VMEM) the dense (N,N) mask
    # and per-head logits need a destination-node-tile grid (flash-style online softmax,
    # dimension_semantics=("parallel","arbitrary")) or a roll-based sparse aggregation if the graph
    # stays a ring; irrelevant at N=16.


# ----------------------------------------------------------------------------- parameters
def _glorot(key, shape):
    fan_in, fan_out = shape
    lim = (6.0 / (fan_in + fan_out)) ** 0.5
    return jax.random.uniform(key, shape, F32, -lim, lim)


def _pad_rows(w, rows):
    return jnp.zeros((rows, w.shape[1]), F32).at[:w.shape[0], :].set(w)


def _pad_cols(w, cols):
    return jnp.zeros((w.shape[0], cols), F32).at[:, :w.shape[1]].set(w)


def _vec_d(v):
    v = jnp.asarray(v, F32).reshape(-1)
    return jnp.zeros((D,), F32).at[:v.shape[0]].set(v)


def init_raw_params(key):
    ks = iter(jax.random.split(key, 64))

    def lin(i, o):
        return _glorot(next(ks), (i, o)), jax.random.normal(next(ks), (o,), F32) * 0.01

    def gat_p(in_d):
        return dict(w=_glorot(next(ks), (in_d, D)),
                    att_src=jax.random.normal(next(ks), (HEADS, HEAD_DIM), F32) * 0.1,
                    att_dst=jax.random.normal(next(ks), (HEADS, HEAD_DIM), F32) * 0.1,
                    b=jnp.zeros((D,), F32))

    p = {}
    p['ge_w1'], p['ge_b1'] = lin(4, D)
    p['ge_g1'], p['ge_be1'] = jnp.ones((D,), F32), jnp.zeros((D,), F32)
    p['ge_w2'], p['ge_b2'] = lin(D, D)
    p['ge_g2'], p['ge_be2'] = jnp.ones((D,), F32), jnp.zeros((D,), F32)
    p['sk_w'], p['sk_b'] = lin(IN_DIM, D)
    p['c1'], p['c2'], p['c3'] = gat_p(IN_DIM), gat_p(D), gat_p(D)
    p['wv'], p['bv'] = lin(D, D)
    p['wo'], p['bo'] = lin(D, D)
    p['ln_g'], p['ln_b'] = jnp.ones((D,), F32), jnp.zeros((D,), F32)
    p['wp'], p['bp'] = lin(D, D)

    def dec():
        w1, b1 = lin(D, HEAD_DIM)
        w2, b2 = lin(HEAD_DIM, HEAD_DIM)
        w3, b3 = lin(HEAD_DIM, OUT_DIM)
        return dict(w1=w1, b1=b1, g1=jnp.ones((HEAD_DIM,), F32), be1=jnp.zeros((HEAD_DIM,), F32),
                    w2=w2, b2=b2, g2=jnp.ones((HEAD_DIM,), F32), be2=jnp.zeros((HEAD_DIM,), F32),
                    w3=w3, b3=b3)

    p['fdec'], p['rdec'] = dec(), dec()
    return p


def pack_params(p):
    """Pack raw parameters into a few VMEM-friendly slabs (bf16 matmul weights, f32 vectors)."""
    def att_src_rows(att):                       # (H, C) -> (H, D) rows on head lanes
        rows = jnp.zeros((HEADS, D), F32)
        for h in range(HEADS):
            rows = rows.at[h, h * HEAD_DIM:(h + 1) * HEAD_DIM].set(att[h])
        return rows

    ad_block = jnp.zeros((D, D), F32)            # att_dst as columns; layer l -> cols [l*H, l*H+H)
    for l, c in enumerate(['c1', 'c2', 'c3']):
        att = p[c]['att_dst']
        for h in range(HEADS):
            ad_block = ad_block.at[h * HEAD_DIM:(h + 1) * HEAD_DIM, l * HEADS + h].set(att[h])

    w_vo = p['wv'] @ p['wo']                     # exact fold of seq-len-1 MHA (v_proj then out_proj)
    b_vo = p['bv'] @ p['wo'] + p['bo']

    wbig = jnp.concatenate([
        _pad_rows(p['ge_w1'], D), p['ge_w2'], _pad_rows(p['sk_w'], D),
        _pad_rows(p['c1']['w'], D), p['c2']['w'], p['c3']['w'],
        w_vo, p['wp'], ad_block], axis=0).astype(BF16)                     # (9*D, D) bf16

    hmask = jnp.zeros((HEADS, D), F32)
    for h in range(HEADS):
        hmask = hmask.at[h, h * HEAD_DIM:(h + 1) * HEAD_DIM].set(1.0)

    vecs = jnp.zeros((VEC_ROWS, D), F32)
    vecs = vecs.at[R_HMASK:R_HMASK + HEADS].set(hmask)
    vecs = vecs.at[R_C1AS:R_C1AS + HEADS].set(att_src_rows(p['c1']['att_src']))
    vecs = vecs.at[R_C2AS:R_C2AS + HEADS].set(att_src_rows(p['c2']['att_src']))
    vecs = vecs.at[R_C3AS:R_C3AS + HEADS].set(att_src_rows(p['c3']['att_src']))
    singles = {R_C1B: p['c1']['b'], R_C2B: p['c2']['b'], R_C3B: p['c3']['b'],
               R_GE_B1: p['ge_b1'], R_GE_G1: p['ge_g1'], R_GE_BE1: p['ge_be1'],
               R_GE_B2: p['ge_b2'], R_GE_G2: p['ge_g2'], R_GE_BE2: p['ge_be2'],
               R_SK_B: p['sk_b'], R_BVO: b_vo, R_LNG: p['ln_g'], R_LNB: p['ln_b'],
               R_BP: p['bp'], R_FB3: p['fdec']['b3'], R_RB3: p['rdec']['b3'],
               R_XYZ: jnp.ones((OUT_DIM,), F32)}
    for r, v in singles.items():
        vecs = vecs.at[r].set(_vec_d(v))

    dvec32 = jnp.stack([p['fdec']['b1'], p['fdec']['g1'], p['fdec']['be1'],
                        p['fdec']['b2'], p['fdec']['g2'], p['fdec']['be2'],
                        p['rdec']['b1'], p['rdec']['g1'], p['rdec']['be1'],
                        p['rdec']['b2'], p['rdec']['g2'], p['rdec']['be2']], axis=0)  # (12, 32)
    dw1 = jnp.concatenate([p['fdec']['w1'], p['rdec']['w1']], axis=0).astype(BF16)    # (2D, 32)
    dw2 = jnp.concatenate([p['fdec']['w2'], p['rdec']['w2']], axis=0).astype(BF16)    # (64, 32)
    dw3 = jnp.concatenate([_pad_cols(p['fdec']['w3'], D),
                           _pad_cols(p['rdec']['w3'], D)], axis=0).astype(BF16)       # (64, D)
    return dict(wbig=wbig, vecs=vecs, dw1=dw1, dw2=dw2, dw3=dw3, dvec32=dvec32)


# ----------------------------------------------------------------------------- model wrapper
def normalize_parameters(gp):
    p = (gp[:, 0] - 4.0) / (14.0 - 4.0)
    s = (gp[:, 1] - 50.0) / (300.0 - 50.0)
    e = (gp[:, 2] - 60.0) / (70.0 - 60.0)
    ep = (gp[:, 3] - 60.0) / (70.0 - 60.0)
    return jnp.stack([p, s, e, ep], axis=1)                   # (1, 4)


def model_forward(x, global_params, packed, addmask):
    n = x.shape[0]
    norm = normalize_parameters(global_params)                # (1, 4)

    # lane-dense node-feature slab: [xyz | norm_params | zeros]
    x_in = jnp.zeros((n, D), F32)
    x_in = x_in.at[:, :3].set(x)
    x_in = x_in.at[:, 3:7].set(jnp.broadcast_to(norm, (n, 4)))
    norm_pad = jnp.zeros((1, D), F32).at[:, :4].set(norm)

    args = [x_in, addmask.astype(F32), norm_pad,
            packed['wbig'], packed['vecs'], packed['dw1'], packed['dw2'],
            packed['dw3'], packed['dvec32']]
    fwd_pad, rev_pad = pl.pallas_call(
        fused_forward_kernel,
        out_shape=(jax.ShapeDtypeStruct((n, D), F32),
                   jax.ShapeDtypeStruct((n, D), F32)),
        in_specs=[pl.BlockSpec(memory_space=VMEM)] * len(args),
        out_specs=(pl.BlockSpec(memory_space=VMEM),
                   pl.BlockSpec(memory_space=VMEM)),
    )(*args)
    return fwd_pad[:, :OUT_DIM], rev_pad[:, :OUT_DIM]


def build_adjacency(n):
    """Dense adjacency adj[target, source] for a bidirectional ring graph + self loops."""
    adj = jnp.eye(n, dtype=F32)                               # self loops (add_self_loops=True)
    src = jnp.arange(n)
    dst = (src + 1) % n
    adj = adj.at[dst, src].set(1.0)
    adj = adj.at[src, dst].set(1.0)
    return adj


# ----------------------------------------------------------------------------- main
if __name__ == "__main__":
    N_NODES = 16

    key = jax.random.PRNGKey(0)
    kp, kx = jax.random.split(key)
    packed = pack_params(init_raw_params(kp))

    x = jax.random.normal(kx, (N_NODES, 3), F32)                          # node coordinates
    global_params = jnp.array([[9.0, 150.0, 65.0, 62.0]], F32)            # pressure, stiffness, helices
    adj = build_adjacency(N_NODES)
    addmask = jnp.where(adj > 0, 0.0, -1e30).astype(F32)                  # additive edge mask (f32)

    run = jax.jit(lambda xx, gp: model_forward(xx, gp, packed, addmask))
    fwd_def, rev_def = run(x, global_params)
    jax.block_until_ready((fwd_def, rev_def))
    assert fwd_def.shape == (N_NODES, OUT_DIM) and rev_def.shape == (N_NODES, OUT_DIM)
    assert bool(jnp.all(jnp.isfinite(fwd_def))) and bool(jnp.all(jnp.isfinite(rev_def)))
    print("KERNEL_OK")
</pallas_src>

<mosaic_0001>
module attributes {stable_mosaic.version = 11 : i64} {
  func.func @fused_forward_kernel(%arg0: memref<16x128xf32, #tpu.memory_space<vmem>>, %arg1: memref<16x16xf32, #tpu.memory_space<vmem>>, %arg2: memref<1x128xf32, #tpu.memory_space<vmem>>, %arg3: memref<1152x128xbf16, #tpu.memory_space<vmem>>, %arg4: memref<56x128xf32, #tpu.memory_space<vmem>>, %arg5: memref<256x32xbf16, #tpu.memory_space<vmem>>, %arg6: memref<64x32xbf16, #tpu.memory_space<vmem>>, %arg7: memref<64x128xbf16, #tpu.memory_space<vmem>>, %arg8: memref<12x32xf32, #tpu.memory_space<vmem>>, %arg9: memref<16x128xf32, #tpu.memory_space<vmem>>, %arg10: memref<16x128xf32, #tpu.memory_space<vmem>>) attributes {dimension_semantics = [], scalar_prefetch = 0 : i64, scratch_operands = 0 : i64, tpu.core_type = #tpu.core_type<tc>} {
    %c0 = arith.constant 0 : index
    %c0_0 = arith.constant 0 : index
    %0 = vector.load %arg0[%c0, %c0_0] : memref<16x128xf32, #tpu.memory_space<vmem>>, vector<16x128xf32>
    %c0_1 = arith.constant 0 : index
    %c0_2 = arith.constant 0 : index
    %1 = vector.load %arg1[%c0_1, %c0_2] : memref<16x16xf32, #tpu.memory_space<vmem>>, vector<16x16xf32>
    %c768 = arith.constant 768 : index
    %c0_3 = arith.constant 0 : index
    %2 = vector.load %arg3[%c768, %c0_3] : memref<1152x128xbf16, #tpu.memory_space<vmem>>, vector<128x128xbf16>
    %c42 = arith.constant 42 : index
    %c0_4 = arith.constant 0 : index
    %3 = vector.load %arg4[%c42, %c0_4] : memref<56x128xf32, #tpu.memory_space<vmem>>, vector<1x128xf32>
    %c0_5 = arith.constant 0 : index
    %c0_6 = arith.constant 0 : index
    %4 = vector.load %arg4[%c0_5, %c0_6] : memref<56x128xf32, #tpu.memory_space<vmem>>, vector<4x128xf32>
    %c43 = arith.constant 43 : index
    %c0_7 = arith.constant 0 : index
    %5 = vector.load %arg4[%c43, %c0_7] : memref<56x128xf32, #tpu.memory_space<vmem>>, vector<1x128xf32>
    %c44 = arith.constant 44 : index
    %c0_8 = arith.constant 0 : index
    %6 = vector.load %arg4[%c44, %c0_8] : memref<56x128xf32, #tpu.memory_space<vmem>>, vector<1x128xf32>
    %c0_9 = arith.constant 0 : index
    %c0_10 = arith.constant 0 : index
    %7 = vector.load %arg2[%c0_9, %c0_10] : memref<1x128xf32, #tpu.memory_space<vmem>>, vector<1x128xf32>
    %c0_11 = arith.constant 0 : index
    %c0_12 = arith.constant 0 : index
    %8 = vector.load %arg3[%c0_11, %c0_12] : memref<1152x128xbf16, #tpu.memory_space<vmem>>, vector<128x128xbf16>
    %9 = arith.truncf %7 : vector<1x128xf32> to vector<1x128xbf16>
    %cst = arith.constant dense<0.000000e+00> : vector<1x128xf32>
    %10 = tpu.matmul %9, %8, %cst {dimension_numbers = #tpu.dot_dimension_numbers<[1], [0], [0], [1], [0, 0, 1, 1], [], []>} : vector<1x128xbf16>, vector<128x128xbf16>, vector<1x128xf32> -> vector<1x128xf32>
    %c35 = arith.constant 35 : index
    %c0_13 = arith.constant 0 : index
    %11 = vector.load %arg4[%c35, %c0_13] : memref<56x128xf32, #tpu.memory_space<vmem>>, vector<1x128xf32>
    %12 = arith.addf %10, %11 : vector<1x128xf32>
    %c36 = arith.constant 36 : index
    %c0_14 = arith.constant 0 : index
    %13 = vector.load %arg4[%c36, %c0_14] : memref<56x128xf32, #tpu.memory_space<vmem>>, vector<1x128xf32>
    %c37 = arith.constant 37 : index
    %c0_15 = arith.constant 0 : index
    %14 = vector.load %arg4[%c37, %c0_15] : memref<56x128xf32, #tpu.memory_space<vmem>>, vector<1x128xf32>
    %cst_16 = arith.constant dense<0.000000e+00> : vector<1xf32>
    %15 = vector.multi_reduction <add>, %12, %cst_16 [1] : vector<1x128xf32> to vector<1xf32>
    %16 = vector.shape_cast %15 : vector<1xf32> to vector<1x1xf32>
    %cst_17 = arith.constant 1.280000e+02 : f32
    %17 = vector.broadcast %cst_17 : f32 to vector<1x1xf32>
    %18 = arith.divf %16, %17 : vector<1x1xf32>
    %19 = vector.broadcast %18 : vector<1x1xf32> to vector<1x128xf32>
    %20 = arith.subf %12, %19 : vector<1x128xf32>
    %21 = arith.mulf %20, %20 : vector<1x128xf32>
    %cst_18 = arith.constant dense<0.000000e+00> : vector<1xf32>
    %22 = vector.multi_reduction <add>, %21, %cst_18 [1] : vector<1x128xf32> to vector<1xf32>
    %23 = vector.shape_cast %22 : vector<1xf32> to vector<1x1xf32>
    %cst_19 = arith.constant 1.280000e+02 : f32
    %24 = vector.broadcast %cst_19 : f32 to vector<1x1xf32>
    %25 = arith.divf %23, %24 : vector<1x1xf32>
    %26 = vector.broadcast %18 : vector<1x1xf32> to vector<1x128xf32>
    %27 = arith.subf %12, %26 : vector<1x128xf32>
    %cst_20 = arith.constant 9.99999974E-6 : f32
    %28 = vector.broadcast %cst_20 : f32 to vector<1x1xf32>
    %29 = arith.addf %25, %28 : vector<1x1xf32>
    %30 = math.rsqrt %29 : vector<1x1xf32>
    %31 = vector.broadcast %30 : vector<1x1xf32> to vector<1x128xf32>
    %32 = arith.mulf %27, %31 : vector<1x128xf32>
    %33 = arith.mulf %32, %13 : vector<1x128xf32>
    %34 = arith.addf %33, %14 : vector<1x128xf32>
    %cst_21 = arith.constant 0.000000e+00 : f32
    %35 = vector.broadcast %cst_21 : f32 to vector<1x128xf32>
    %36 = arith.maximumf %34, %35 : vector<1x128xf32>
    %c128 = arith.constant 128 : index
    %c0_22 = arith.constant 0 : index
    %37 = vector.load %arg3[%c128, %c0_22] : memref<1152x128xbf16, #tpu.memory_space<vmem>>, vector<128x128xbf16>
    %38 = arith.truncf %36 : vector<1x128xf32> to vector<1x128xbf16>
    %cst_23 = arith.constant dense<0.000000e+00> : vector<1x128xf32>
    %39 = tpu.matmul %38, %37, %cst_23 {dimension_numbers = #tpu.dot_dimension_numbers<[1], [0], [0], [1], [0, 0, 1, 1], [], []>} : vector<1x128xbf16>, vector<128x128xbf16>, vector<1x128xf32> -> vector<1x128xf32>
    %c38 = arith.constant 38 : index
    %c0_24 = arith.constant 0 : index
    %40 = vector.load %arg4[%c38, %c0_24] : memref<56x128xf32, #tpu.memory_space<vmem>>, vector<1x128xf32>
    %41 = arith.addf %39, %40 : vector<1x128xf32>
    %c39 = arith.constant 39 : index
    %c0_25 = arith.constant 0 : index
    %42 = vector.load %arg4[%c39, %c0_25] : memref<56x128xf32, #tpu.memory_space<vmem>>, vector<1x128xf32>
    %c40 = arith.constant 40 : index
    %c0_26 = arith.constant 0 : index
    %43 = vector.load %arg4[%c40, %c0_26] : memref<56x128xf32, #tpu.memory_space<vmem>>, vector<1x128xf32>
    %cst_27 = arith.constant dense<0.000000e+00> : vector<1xf32>
    %44 = vector.multi_reduction <add>, %41, %cst_27 [1] : vector<1x128xf32> to vector<1xf32>
    %45 = vector.shape_cast %44 : vector<1xf32> to vector<1x1xf32>
    %cst_28 = arith.constant 1.280000e+02 : f32
    %46 = vector.broadcast %cst_28 : f32 to vector<1x1xf32>
    %47 = arith.divf %45, %46 : vector<1x1xf32>
    %48 = vector.broadcast %47 : vector<1x1xf32> to vector<1x128xf32>
    %49 = arith.subf %41, %48 : vector<1x128xf32>
    %50 = arith.mulf %49, %49 : vector<1x128xf32>
    %cst_29 = arith.constant dense<0.000000e+00> : vector<1xf32>
    %51 = vector.multi_reduction <add>, %50, %cst_29 [1] : vector<1x128xf32> to vector<1xf32>
    %52 = vector.shape_cast %51 : vector<1xf32> to vector<1x1xf32>
    %cst_30 = arith.constant 1.280000e+02 : f32
    %53 = vector.broadcast %cst_30 : f32 to vector<1x1xf32>
    %54 = arith.divf %52, %53 : vector<1x1xf32>
    %55 = vector.broadcast %47 : vector<1x1xf32> to vector<1x128xf32>
    %56 = arith.subf %41, %55 : vector<1x128xf32>
    %cst_31 = arith.constant 9.99999974E-6 : f32
    %57 = vector.broadcast %cst_31 : f32 to vector<1x1xf32>
    %58 = arith.addf %54, %57 : vector<1x1xf32>
    %59 = math.rsqrt %58 : vector<1x1xf32>
    %60 = vector.broadcast %59 : vector<1x1xf32> to vector<1x128xf32>
    %61 = arith.mulf %56, %60 : vector<1x128xf32>
    %62 = arith.mulf %61, %42 : vector<1x128xf32>
    %63 = arith.addf %62, %43 : vector<1x128xf32>
    %64 = arith.truncf %63 : vector<1x128xf32> to vector<1x128xbf16>
    %cst_32 = arith.constant dense<0.000000e+00> : vector<1x128xf32>
    %65 = tpu.matmul %64, %2, %cst_32 {dimension_numbers = #tpu.dot_dimension_numbers<[1], [0], [0], [1], [0, 0, 1, 1], [], []>} : vector<1x128xbf16>, vector<128x128xbf16>, vector<1x128xf32> -> vector<1x128xf32>
    %66 = arith.addf %65, %3 : vector<1x128xf32>
    %c256 = arith.constant 256 : index
    %c0_33 = arith.constant 0 : index
    %67 = vector.load %arg3[%c256, %c0_33] : memref<1152x128xbf16, #tpu.memory_space<vmem>>, vector<128x128xbf16>
    %68 = arith.truncf %0 : vector<16x128xf32> to vector<16x128xbf16>
    %cst_34 = arith.constant dense<0.000000e+00> : vector<16x128xf32>
    %69 = tpu.matmul %68, %67, %cst_34 {dimension_numbers = #tpu.dot_dimension_numbers<[1], [0], [0], [1], [0, 0, 1, 1], [], []>} : vector<16x128xbf16>, vector<128x128xbf16>, vector<16x128xf32> -> vector<16x128xf32>
    %c41 = arith.constant 41 : index
    %c0_35 = arith.constant 0 : index
    %70 = vector.load %arg4[%c41, %c0_35] : memref<56x128xf32, #tpu.memory_space<vmem>>, vector<1x128xf32>
    %71 = vector.broadcast %70 : vector<1x128xf32> to vector<16x128xf32>
    %72 = arith.addf %69, %71 : vector<16x128xf32>
    %c384 = arith.constant 384 : index
    %c0_36 = arith.constant 0 : index
    %73 = vector.load %arg3[%c384, %c0_36] : memref<1152x128xbf16, #tpu.memory_space<vmem>>, vector<128x128xbf16>
    %74 = arith.truncf %0 : vector<16x128xf32> to vector<16x128xbf16>
    %cst_37 = arith.constant dense<0.000000e+00> : vector<16x128xf32>
    %75 = tpu.matmul %74, %73, %cst_37 {dimension_numbers = #tpu.dot_dimension_numbers<[1], [0], [0], [1], [0, 0, 1, 1], [], []>} : vector<16x128xbf16>, vector<128x128xbf16>, vector<16x128xf32> -> vector<16x128xf32>
    %76 = arith.truncf %75 : vector<16x128xf32> to vector<16x128xbf16>
    %c8 = arith.constant 8 : index
    %c0_38 = arith.constant 0 : index
    %77 = vector.load %arg4[%c8, %c0_38] : memref<56x128xf32, #tpu.memory_space<vmem>>, vector<4x128xf32>
    %78 = arith.truncf %77 : vector<4x128xf32> to vector<4x128xbf16>
    %cst_39 = arith.constant dense<0.000000e+00> : vector<4x16xf32>
    %79 = tpu.matmul %78, %76, %cst_39 {dimension_numbers = #tpu.dot_dimension_numbers<[1], [1], [0], [0], [0, 0, 1, 0], [], []>} : vector<4x128xbf16>, vector<16x128xbf16>, vector<4x16xf32> -> vector<4x16xf32>
    %c1024 = arith.constant 1024 : index
    %c0_40 = arith.constant 0 : index
    %80 = vector.load %arg3[%c1024, %c0_40] : memref<1152x128xbf16, #tpu.memory_space<vmem>>, vector<128x4xbf16>
    %cst_41 = arith.constant dense<0.000000e+00> : vector<16x4xf32>
    %81 = tpu.matmul %76, %80, %cst_41 {dimension_numbers = #tpu.dot_dimension_numbers<[1], [0], [0], [1], [0, 0, 1, 1], [], []>} : vector<16x128xbf16>, vector<128x4xbf16>, vector<16x4xf32> -> vector<16x4xf32>
    %82 = vector.extract_strided_slice %81 {offsets = [0, 0], sizes = [16, 1], strides = [1, 1]} : vector<16x4xf32> to vector<16x1xf32>
    %83 = vector.extract_strided_slice %79 {offsets = [0, 0], sizes = [1, 16], strides = [1, 1]} : vector<4x16xf32> to vector<1x16xf32>
    %84 = vector.broadcast %82 : vector<16x1xf32> to vector<16x16xf32>
    %85 = vector.broadcast %83 : vector<1x16xf32> to vector<16x16xf32>
    %86 = arith.addf %84, %85 : vector<16x16xf32>
    %87 = vector.shape_cast %86 : vector<16x16xf32> to vector<1x16x16xf32>
    %88 = vector.extract_strided_slice %4 {offsets = [0, 0], sizes = [1, 128], strides = [1, 1]} : vector<4x128xf32> to vector<1x128xf32>
    %89 = vector.broadcast %88 : vector<1x128xf32> to vector<16x128xf32>
    %90 = arith.mulf %75, %89 : vector<16x128xf32>
    %91 = vector.shape_cast %90 : vector<16x128xf32> to vector<1x16x128xf32>
    %92 = vector.extract_strided_slice %81 {offsets = [0, 1], sizes = [16, 1], strides = [1, 1]} : vector<16x4xf32> to vector<16x1xf32>
    %93 = vector.extract_strided_slice %79 {offsets = [1, 0], sizes = [1, 16], strides = [1, 1]} : vector<4x16xf32> to vector<1x16xf32>
    %94 = vector.broadcast %92 : vector<16x1xf32> to vector<16x16xf32>
    %95 = vector.broadcast %93 : vector<1x16xf32> to vector<16x16xf32>
    %96 = arith.addf %94, %95 : vector<16x16xf32>
    %97 = vector.shape_cast %96 : vector<16x16xf32> to vector<1x16x16xf32>
    %98 = vector.extract_strided_slice %4 {offsets = [1, 0], sizes = [1, 128], strides = [1, 1]} : vector<4x128xf32> to vector<1x128xf32>
    %99 = vector.broadcast %98 : vector<1x128xf32> to vector<16x128xf32>
    %100 = arith.mulf %75, %99 : vector<16x128xf32>
    %101 = vector.shape_cast %100 : vector<16x128xf32> to vector<1x16x128xf32>
    %102 = vector.extract_strided_slice %81 {offsets = [0, 2], sizes = [16, 1], strides = [1, 1]} : vector<16x4xf32> to vector<16x1xf32>
    %103 = vector.extract_strided_slice %79 {offsets = [2, 0], sizes = [1, 16], strides = [1, 1]} : vector<4x16xf32> to vector<1x16xf32>
    %104 = vector.broadcast %102 : vector<16x1xf32> to vector<16x16xf32>
    %105 = vector.broadcast %103 : vector<1x16xf32> to vector<16x16xf32>
    %106 = arith.addf %104, %105 : vector<16x16xf32>
    %107 = vector.shape_cast %106 : vector<16x16xf32> to vector<1x16x16xf32>
    %108 = vector.extract_strided_slice %4 {offsets = [2, 0], sizes = [1, 128], strides = [1, 1]} : vector<4x128xf32> to vector<1x128xf32>
    %109 = vector.broadcast %108 : vector<1x128xf32> to vector<16x128xf32>
    %110 = arith.mulf %75, %109 : vector<16x128xf32>
    %111 = vector.shape_cast %110 : vector<16x128xf32> to vector<1x16x128xf32>
    %112 = vector.extract_strided_slice %81 {offsets = [0, 3], sizes = [16, 1], strides = [1, 1]} : vector<16x4xf32> to vector<16x1xf32>
    %113 = vector.extract_strided_slice %79 {offsets = [3, 0], sizes = [1, 16], strides = [1, 1]} : vector<4x16xf32> to vector<1x16xf32>
    %114 = vector.broadcast %112 : vector<16x1xf32> to vector<16x16xf32>
    %115 = vector.broadcast %113 : vector<1x16xf32> to vector<16x16xf32>
    %116 = arith.addf %114, %115 : vector<16x16xf32>
    %117 = vector.shape_cast %116 : vector<16x16xf32> to vector<1x16x16xf32>
    %118 = vector.extract_strided_slice %4 {offsets = [3, 0], sizes = [1, 128], strides = [1, 1]} : vector<4x128xf32> to vector<1x128xf32>
    %119 = vector.broadcast %118 : vector<1x128xf32> to vector<16x128xf32>
    %120 = arith.mulf %75, %119 : vector<16x128xf32>
    %121 = vector.shape_cast %120 : vector<16x128xf32> to vector<1x16x128xf32>
    %122 = tpu.concatenate %87, %97, %107, %117 in 0 : vector<1x16x16xf32>, vector<1x16x16xf32>, vector<1x16x16xf32>, vector<1x16x16xf32> -> vector<4x16x16xf32>
    %123 = tpu.concatenate %91, %101, %111, %121 in 0 : vector<1x16x128xf32>, vector<1x16x128xf32>, vector<1x16x128xf32>, vector<1x16x128xf32> -> vector<4x16x128xf32>
    %124 = arith.truncf %123 : vector<4x16x128xf32> to vector<4x16x128xbf16>
    %cst_42 = arith.constant 2.000000e-01 : f32
    %125 = vector.broadcast %cst_42 : f32 to vector<4x16x16xf32>
    %126 = arith.mulf %125, %122 : vector<4x16x16xf32>
    %127 = arith.maximumf %122, %126 : vector<4x16x16xf32>
    %128 = vector.shape_cast %1 : vector<16x16xf32> to vector<1x16x16xf32>
    %129 = vector.broadcast %128 : vector<1x16x16xf32> to vector<4x16x16xf32>
    %130 = arith.addf %127, %129 : vector<4x16x16xf32>
    %cst_43 = arith.constant dense<0xFF800000> : vector<4x16xf32>
    %131 = vector.multi_reduction <maximumf>, %130, %cst_43 [2] : vector<4x16x16xf32> to vector<4x16xf32>
    %132 = vector.shape_cast %131 : vector<4x16xf32> to vector<4x16x1xf32>
    %133 = vector.broadcast %132 : vector<4x16x1xf32> to vector<4x16x16xf32>
    %134 = arith.subf %130, %133 : vector<4x16x16xf32>
    %135 = math.exp %134 : vector<4x16x16xf32>
    %cst_44 = arith.constant dense<0.000000e+00> : vector<4x16xf32>
    %136 = vector.multi_reduction <add>, %135, %cst_44 [2] : vector<4x16x16xf32> to vector<4x16xf32>
    %137 = vector.shape_cast %136 : vector<4x16xf32> to vector<4x16x1xf32>
    %138 = tpu.reciprocal %137 {approx = true} : vector<4x16x1xf32> -> vector<4x16x1xf32>
    %139 = vector.broadcast %138 : vector<4x16x1xf32> to vector<4x16x16xf32>
    %140 = arith.mulf %135, %139 : vector<4x16x16xf32>
    %141 = arith.truncf %140 : vector<4x16x16xf32> to vector<4x16x16xbf16>
    "tpu.trace_start"() <{level = 10 : i32, message = "hnm,hmd->hnd"}> : () -> ()
    %cst_45 = arith.constant dense<0.000000e+00> : vector<4x16x128xf32>
    %142 = tpu.matmul %141, %124, %cst_45 {dimension_numbers = #tpu.dot_dimension_numbers<[2], [1], [1], [2], [0, 0, 0, 1, 1, 2], [0], [0]>} : vector<4x16x16xbf16>, vector<4x16x128xbf16>, vector<4x16x128xf32> -> vector<4x16x128xf32>
    "tpu.trace_stop"() : () -> ()
    %143 = vector.extract_strided_slice %142 {offsets = [0, 0, 0], sizes = [1, 16, 128], strides = [1, 1, 1]} : vector<4x16x128xf32> to vector<1x16x128xf32>
    %144 = vector.shape_cast %143 : vector<1x16x128xf32> to vector<16x128xf32>
    %145 = vector.extract_strided_slice %142 {offsets = [1, 0, 0], sizes = [1, 16, 128], strides = [1, 1, 1]} : vector<4x16x128xf32> to vector<1x16x128xf32>
    %146 = vector.shape_cast %145 : vector<1x16x128xf32> to vector<16x128xf32>
    %147 = arith.addf %144, %146 : vector<16x128xf32>
    %148 = vector.extract_strided_slice %142 {offsets = [2, 0, 0], sizes = [1, 16, 128], strides = [1, 1, 1]} : vector<4x16x128xf32> to vector<1x16x128xf32>
    %149 = vector.shape_cast %148 : vector<1x16x128xf32> to vector<16x128xf32>
    %150 = arith.addf %147, %149 : vector<16x128xf32>
    %151 = vector.extract_strided_slice %142 {offsets = [3, 0, 0], sizes = [1, 16, 128], strides = [1, 1, 1]} : vector<4x16x128xf32> to vector<1x16x128xf32>
    %152 = vector.shape_cast %151 : vector<1x16x128xf32> to vector<16x128xf32>
    %153 = arith.addf %150, %152 : vector<16x128xf32>
    %c32 = arith.constant 32 : index
    %c0_46 = arith.constant 0 : index
    %154 = vector.load %arg4[%c32, %c0_46] : memref<56x128xf32, #tpu.memory_space<vmem>>, vector<1x128xf32>
    %155 = vector.broadcast %154 : vector<1x128xf32> to vector<16x128xf32>
    %156 = arith.addf %153, %155 : vector<16x128xf32>
    %cst_47 = arith.constant 0.000000e+00 : f32
    %157 = vector.broadcast %cst_47 : f32 to vector<16x128xf32>
    %158 = arith.maximumf %156, %157 : vector<16x128xf32>
    %159 = arith.addf %158, %72 : vector<16x128xf32>
    %c512 = arith.constant 512 : index
    %c0_48 = arith.constant 0 : index
    %160 = vector.load %arg3[%c512, %c0_48] : memref<1152x128xbf16, #tpu.memory_space<vmem>>, vector<128x128xbf16>
    %161 = arith.truncf %159 : vector<16x128xf32> to vector<16x128xbf16>
    %cst_49 = arith.constant dense<0.000000e+00> : vector<16x128xf32>
    %162 = tpu.matmul %161, %160, %cst_49 {dimension_numbers = #tpu.dot_dimension_numbers<[1], [0], [0], [1], [0, 0, 1, 1], [], []>} : vector<16x128xbf16>, vector<128x128xbf16>, vector<16x128xf32> -> vector<16x128xf32>
    %163 = arith.truncf %162 : vector<16x128xf32> to vector<16x128xbf16>
    %c16 = arith.constant 16 : index
    %c0_50 = arith.constant 0 : index
    %164 = vector.load %arg4[%c16, %c0_50] : memref<56x128xf32, #tpu.memory_space<vmem>>, vector<4x128xf32>
    %165 = arith.truncf %164 : vector<4x128xf32> to vector<4x128xbf16>
    %cst_51 = arith.constant dense<0.000000e+00> : vector<4x16xf32>
    %166 = tpu.matmul %165, %163, %cst_51 {dimension_numbers = #tpu.dot_dimension_numbers<[1], [1], [0], [0], [0, 0, 1, 0], [], []>} : vector<4x128xbf16>, vector<16x128xbf16>, vector<4x16xf32> -> vector<4x16xf32>
    %c1024_52 = arith.constant 1024 : index
    %c4 = arith.constant 4 : index
    %167 = vector.load %arg3[%c1024_52, %c4] : memref<1152x128xbf16, #tpu.memory_space<vmem>>, vector<128x4xbf16>
    %cst_53 = arith.constant dense<0.000000e+00> : vector<16x4xf32>
    %168 = tpu.matmul %163, %167, %cst_53 {dimension_numbers = #tpu.dot_dimension_numbers<[1], [0], [0], [1], [0, 0, 1, 1], [], []>} : vector<16x128xbf16>, vector<128x4xbf16>, vector<16x4xf32> -> vector<16x4xf32>
    %169 = vector.extract_strided_slice %168 {offsets = [0, 0], sizes = [16, 1], strides = [1, 1]} : vector<16x4xf32> to vector<16x1xf32>
    %170 = vector.extract_strided_slice %166 {offsets = [0, 0], sizes = [1, 16], strides = [1, 1]} : vector<4x16xf32> to vector<1x16xf32>
    %171 = vector.broadcast %169 : vector<16x1xf32> to vector<16x16xf32>
    %172 = vector.broadcast %170 : vector<1x16xf32> to vector<16x16xf32>
    %173 = arith.addf %171, %172 : vector<16x16xf32>
    %174 = vector.shape_cast %173 : vector<16x16xf32> to vector<1x16x16xf32>
    %175 = vector.extract_strided_slice %4 {offsets = [0, 0], sizes = [1, 128], strides = [1, 1]} : vector<4x128xf32> to vector<1x128xf32>
    %176 = vector.broadcast %175 : vector<1x128xf32> to vector<16x128xf32>
    %177 = arith.mulf %162, %176 : vector<16x128xf32>
    %178 = vector.shape_cast %177 : vector<16x128xf32> to vector<1x16x128xf32>
    %179 = vector.extract_strided_slice %168 {offsets = [0, 1], sizes = [16, 1], strides = [1, 1]} : vector<16x4xf32> to vector<16x1xf32>
    %180 = vector.extract_strided_slice %166 {offsets = [1, 0], sizes = [1, 16], strides = [1, 1]} : vector<4x16xf32> to vector<1x16xf32>
    %181 = vector.broadcast %179 : vector<16x1xf32> to vector<16x16xf32>
    %182 = vector.broadcast %180 : vector<1x16xf32> to vector<16x16xf32>
    %183 = arith.addf %181, %182 : vector<16x16xf32>
    %184 = vector.shape_cast %183 : vector<16x16xf32> to vector<1x16x16xf32>
    %185 = vector.extract_strided_slice %4 {offsets = [1, 0], sizes = [1, 128], strides = [1, 1]} : vector<4x128xf32> to vector<1x128xf32>
    %186 = vector.broadcast %185 : vector<1x128xf32> to vector<16x128xf32>
    %187 = arith.mulf %162, %186 : vector<16x128xf32>
    %188 = vector.shape_cast %187 : vector<16x128xf32> to vector<1x16x128xf32>
    %189 = vector.extract_strided_slice %168 {offsets = [0, 2], sizes = [16, 1], strides = [1, 1]} : vector<16x4xf32> to vector<16x1xf32>
    %190 = vector.extract_strided_slice %166 {offsets = [2, 0], sizes = [1, 16], strides = [1, 1]} : vector<4x16xf32> to vector<1x16xf32>
    %191 = vector.broadcast %189 : vector<16x1xf32> to vector<16x16xf32>
    %192 = vector.broadcast %190 : vector<1x16xf32> to vector<16x16xf32>
    %193 = arith.addf %191, %192 : vector<16x16xf32>
    %194 = vector.shape_cast %193 : vector<16x16xf32> to vector<1x16x16xf32>
    %195 = vector.extract_strided_slice %4 {offsets = [2, 0], sizes = [1, 128], strides = [1, 1]} : vector<4x128xf32> to vector<1x128xf32>
    %196 = vector.broadcast %195 : vector<1x128xf32> to vector<16x128xf32>
    %197 = arith.mulf %162, %196 : vector<16x128xf32>
    %198 = vector.shape_cast %197 : vector<16x128xf32> to vector<1x16x128xf32>
    %199 = vector.extract_strided_slice %168 {offsets = [0, 3], sizes = [16, 1], strides = [1, 1]} : vector<16x4xf32> to vector<16x1xf32>
    %200 = vector.extract_strided_slice %166 {offsets = [3, 0], sizes = [1, 16], strides = [1, 1]} : vector<4x16xf32> to vector<1x16xf32>
    %201 = vector.broadcast %199 : vector<16x1xf32> to vector<16x16xf32>
    %202 = vector.broadcast %200 : vector<1x16xf32> to vector<16x16xf32>
    %203 = arith.addf %201, %202 : vector<16x16xf32>
    %204 = vector.shape_cast %203 : vector<16x16xf32> to vector<1x16x16xf32>
    %205 = vector.extract_strided_slice %4 {offsets = [3, 0], sizes = [1, 128], strides = [1, 1]} : vector<4x128xf32> to vector<1x128xf32>
    %206 = vector.broadcast %205 : vector<1x128xf32> to vector<16x128xf32>
    %207 = arith.mulf %162, %206 : vector<16x128xf32>
    %208 = vector.shape_cast %207 : vector<16x128xf32> to vector<1x16x128xf32>
    %209 = tpu.concatenate %174, %184, %194, %204 in 0 : vector<1x16x16xf32>, vector<1x16x16xf32>, vector<1x16x16xf32>, vector<1x16x16xf32> -> vector<4x16x16xf32>
    %210 = tpu.concatenate %178, %188, %198, %208 in 0 : vector<1x16x128xf32>, vector<1x16x128xf32>, vector<1x16x128xf32>, vector<1x16x128xf32> -> vector<4x16x128xf32>
    %211 = arith.truncf %210 : vector<4x16x128xf32> to vector<4x16x128xbf16>
    %cst_54 = arith.constant 2.000000e-01 : f32
    %212 = vector.broadcast %cst_54 : f32 to vector<4x16x16xf32>
    %213 = arith.mulf %212, %209 : vector<4x16x16xf32>
    %214 = arith.maximumf %209, %213 : vector<4x16x16xf32>
    %215 = vector.shape_cast %1 : vector<16x16xf32> to vector<1x16x16xf32>
    %216 = vector.broadcast %215 : vector<1x16x16xf32> to vector<4x16x16xf32>
    %217 = arith.addf %214, %216 : vector<4x16x16xf32>
    %cst_55 = arith.constant dense<0xFF800000> : vector<4x16xf32>
    %218 = vector.multi_reduction <maximumf>, %217, %cst_55 [2] : vector<4x16x16xf32> to vector<4x16xf32>
    %219 = vector.shape_cast %218 : vector<4x16xf32> to vector<4x16x1xf32>
    %220 = vector.broadcast %219 : vector<4x16x1xf32> to vector<4x16x16xf32>
    %221 = arith.subf %217, %220 : vector<4x16x16xf32>
    %222 = math.exp %221 : vector<4x16x16xf32>
    %cst_56 = arith.constant dense<0.000000e+00> : vector<4x16xf32>
    %223 = vector.multi_reduction <add>, %222, %cst_56 [2] : vector<4x16x16xf32> to vector<4x16xf32>
    %224 = vector.shape_cast %223 : vector<4x16xf32> to vector<4x16x1xf32>
    %225 = tpu.reciprocal %224 {approx = true} : vector<4x16x1xf32> -> vector<4x16x1xf32>
    %226 = vector.broadcast %225 : vector<4x16x1xf32> to vector<4x16x16xf32>
    %227 = arith.mulf %222, %226 : vector<4x16x16xf32>
    %228 = arith.truncf %227 : vector<4x16x16xf32> to vector<4x16x16xbf16>
    "tpu.trace_start"() <{level = 10 : i32, message = "hnm,hmd->hnd"}> : () -> ()
    %cst_57 = arith.constant dense<0.000000e+00> : vector<4x16x128xf32>
    %229 = tpu.matmul %228, %211, %cst_57 {dimension_numbers = #tpu.dot_dimension_numbers<[2], [1], [1], [2], [0, 0, 0, 1, 1, 2], [0], [0]>} : vector<4x16x16xbf16>, vector<4x16x128xbf16>, vector<4x16x128xf32> -> vector<4x16x128xf32>
    "tpu.trace_stop"() : () -> ()
    %230 = vector.extract_strided_slice %229 {offsets = [0, 0, 0], sizes = [1, 16, 128], strides = [1, 1, 1]} : vector<4x16x128xf32> to vector<1x16x128xf32>
    %231 = vector.shape_cast %230 : vector<1x16x128xf32> to vector<16x128xf32>
    %232 = vector.extract_strided_slice %229 {offsets = [1, 0, 0], sizes = [1, 16, 128], strides = [1, 1, 1]} : vector<4x16x128xf32> to vector<1x16x128xf32>
    %233 = vector.shape_cast %232 : vector<1x16x128xf32> to vector<16x128xf32>
    %234 = arith.addf %231, %233 : vector<16x128xf32>
    %235 = vector.extract_strided_slice %229 {offsets = [2, 0, 0], sizes = [1, 16, 128], strides = [1, 1, 1]} : vector<4x16x128xf32> to vector<1x16x128xf32>
    %236 = vector.shape_cast %235 : vector<1x16x128xf32> to vector<16x128xf32>
    %237 = arith.addf %234, %236 : vector<16x128xf32>
    %238 = vector.extract_strided_slice %229 {offsets = [3, 0, 0], sizes = [1, 16, 128], strides = [1, 1, 1]} : vector<4x16x128xf32> to vector<1x16x128xf32>
    %239 = vector.shape_cast %238 : vector<1x16x128xf32> to vector<16x128xf32>
    %240 = arith.addf %237, %239 : vector<16x128xf32>
    %c33 = arith.constant 33 : index
    %c0_58 = arith.constant 0 : index
    %241 = vector.load %arg4[%c33, %c0_58] : memref<56x128xf32, #tpu.memory_space<vmem>>, vector<1x128xf32>
    %242 = vector.broadcast %241 : vector<1x128xf32> to vector<16x128xf32>
    %243 = arith.addf %240, %242 : vector<16x128xf32>
    %cst_59 = arith.constant 0.000000e+00 : f32
    %244 = vector.broadcast %cst_59 : f32 to vector<16x128xf32>
    %245 = arith.maximumf %243, %244 : vector<16x128xf32>
    %246 = arith.addf %245, %159 : vector<16x128xf32>
    %c640 = arith.constant 640 : index
    %c0_60 = arith.constant 0 : index
    %247 = vector.load %arg3[%c640, %c0_60] : memref<1152x128xbf16, #tpu.memory_space<vmem>>, vector<128x128xbf16>
    %248 = arith.truncf %246 : vector<16x128xf32> to vector<16x128xbf16>
    %cst_61 = arith.constant dense<0.000000e+00> : vector<16x128xf32>
    %249 = tpu.matmul %248, %247, %cst_61 {dimension_numbers = #tpu.dot_dimension_numbers<[1], [0], [0], [1], [0, 0, 1, 1], [], []>} : vector<16x128xbf16>, vector<128x128xbf16>, vector<16x128xf32> -> vector<16x128xf32>
    %250 = arith.truncf %249 : vector<16x128xf32> to vector<16x128xbf16>
    %c24 = arith.constant 24 : index
    %c0_62 = arith.constant 0 : index
    %251 = vector.load %arg4[%c24, %c0_62] : memref<56x128xf32, #tpu.memory_space<vmem>>, vector<4x128xf32>
    %252 = arith.truncf %251 : vector<4x128xf32> to vector<4x128xbf16>
    %cst_63 = arith.constant dense<0.000000e+00> : vector<4x16xf32>
    %253 = tpu.matmul %252, %250, %cst_63 {dimension_numbers = #tpu.dot_dimension_numbers<[1], [1], [0], [0], [0, 0, 1, 0], [], []>} : vector<4x128xbf16>, vector<16x128xbf16>, vector<4x16xf32> -> vector<4x16xf32>
    %c1024_64 = arith.constant 1024 : index
    %c8_65 = arith.constant 8 : index
    %254 = vector.load %arg3[%c1024_64, %c8_65] : memref<1152x128xbf16, #tpu.memory_space<vmem>>, vector<128x4xbf16>
    %cst_66 = arith.constant dense<0.000000e+00> : vector<16x4xf32>
    %255 = tpu.matmul %250, %254, %cst_66 {dimension_numbers = #tpu.dot_dimension_numbers<[1], [0], [0], [1], [0, 0, 1, 1], [], []>} : vector<16x128xbf16>, vector<128x4xbf16>, vector<16x4xf32> -> vector<16x4xf32>
    %256 = vector.extract_strided_slice %255 {offsets = [0, 0], sizes = [16, 1], strides = [1, 1]} : vector<16x4xf32> to vector<16x1xf32>
    %257 = vector.extract_strided_slice %253 {offsets = [0, 0], sizes = [1, 16], strides = [1, 1]} : vector<4x16xf32> to vector<1x16xf32>
    %258 = vector.broadcast %256 : vector<16x1xf32> to vector<16x16xf32>
    %259 = vector.broadcast %257 : vector<1x16xf32> to vector<16x16xf32>
    %260 = arith.addf %258, %259 : vector<16x16xf32>
    %261 = vector.shape_cast %260 : vector<16x16xf32> to vector<1x16x16xf32>
    %262 = vector.extract_strided_slice %4 {offsets = [0, 0], sizes = [1, 128], strides = [1, 1]} : vector<4x128xf32> to vector<1x128xf32>
    %263 = vector.broadcast %262 : vector<1x128xf32> to vector<16x128xf32>
    %264 = arith.mulf %249, %263 : vector<16x128xf32>
    %265 = vector.shape_cast %264 : vector<16x128xf32> to vector<1x16x128xf32>
    %266 = vector.extract_strided_slice %255 {offsets = [0, 1], sizes = [16, 1], strides = [1, 1]} : vector<16x4xf32> to vector<16x1xf32>
    %267 = vector.extract_strided_slice %253 {offsets = [1, 0], sizes = [1, 16], strides = [1, 1]} : vector<4x16xf32> to vector<1x16xf32>
    %268 = vector.broadcast %266 : vector<16x1xf32> to vector<16x16xf32>
    %269 = vector.broadcast %267 : vector<1x16xf32> to vector<16x16xf32>
    %270 = arith.addf %268, %269 : vector<16x16xf32>
    %271 = vector.shape_cast %270 : vector<16x16xf32> to vector<1x16x16xf32>
    %272 = vector.extract_strided_slice %4 {offsets = [1, 0], sizes = [1, 128], strides = [1, 1]} : vector<4x128xf32> to vector<1x128xf32>
    %273 = vector.broadcast %272 : vector<1x128xf32> to vector<16x128xf32>
    %274 = arith.mulf %249, %273 : vector<16x128xf32>
    %275 = vector.shape_cast %274 : vector<16x128xf32> to vector<1x16x128xf32>
    %276 = vector.extract_strided_slice %255 {offsets = [0, 2], sizes = [16, 1], strides = [1, 1]} : vector<16x4xf32> to vector<16x1xf32>
    %277 = vector.extract_strided_slice %253 {offsets = [2, 0], sizes = [1, 16], strides = [1, 1]} : vector<4x16xf32> to vector<1x16xf32>
    %278 = vector.broadcast %276 : vector<16x1xf32> to vector<16x16xf32>
    %279 = vector.broadcast %277 : vector<1x16xf32> to vector<16x16xf32>
    %280 = arith.addf %278, %279 : vector<16x16xf32>
    %281 = vector.shape_cast %280 : vector<16x16xf32> to vector<1x16x16xf32>
    %282 = vector.extract_strided_slice %4 {offsets = [2, 0], sizes = [1, 128], strides = [1, 1]} : vector<4x128xf32> to vector<1x128xf32>
    %283 = vector.broadcast %282 : vector<1x128xf32> to vector<16x128xf32>
    %284 = arith.mulf %249, %283 : vector<16x128xf32>
    %285 = vector.shape_cast %284 : vector<16x128xf32> to vector<1x16x128xf32>
    %286 = vector.extract_strided_slice %255 {offsets = [0, 3], sizes = [16, 1], strides = [1, 1]} : vector<16x4xf32> to vector<16x1xf32>
    %287 = vector.extract_strided_slice %253 {offsets = [3, 0], sizes = [1, 16], strides = [1, 1]} : vector<4x16xf32> to vector<1x16xf32>
    %288 = vector.broadcast %286 : vector<16x1xf32> to vector<16x16xf32>
    %289 = vector.broadcast %287 : vector<1x16xf32> to vector<16x16xf32>
    %290 = arith.addf %288, %289 : vector<16x16xf32>
    %291 = vector.shape_cast %290 : vector<16x16xf32> to vector<1x16x16xf32>
    %292 = vector.extract_strided_slice %4 {offsets = [3, 0], sizes = [1, 128], strides = [1, 1]} : vector<4x128xf32> to vector<1x128xf32>
    %293 = vector.broadcast %292 : vector<1x128xf32> to vector<16x128xf32>
    %294 = arith.mulf %249, %293 : vector<16x128xf32>
    %295 = vector.shape_cast %294 : vector<16x128xf32> to vector<1x16x128xf32>
    %296 = tpu.concatenate %261, %271, %281, %291 in 0 : vector<1x16x16xf32>, vector<1x16x16xf32>, vector<1x16x16xf32>, vector<1x16x16xf32> -> vector<4x16x16xf32>
    %297 = tpu.concatenate %265, %275, %285, %295 in 0 : vector<1x16x128xf32>, vector<1x16x128xf32>, vector<1x16x128xf32>, vector<1x16x128xf32> -> vector<4x16x128xf32>
    %298 = arith.truncf %297 : vector<4x16x128xf32> to vector<4x16x128xbf16>
    %cst_67 = arith.constant 2.000000e-01 : f32
    %299 = vector.broadcast %cst_67 : f32 to vector<4x16x16xf32>
    %300 = arith.mulf %299, %296 : vector<4x16x16xf32>
    %301 = arith.maximumf %296, %300 : vector<4x16x16xf32>
    %302 = vector.shape_cast %1 : vector<16x16xf32> to vector<1x16x16xf32>
    %303 = vector.broadcast %302 : vector<1x16x16xf32> to vector<4x16x16xf32>
    %304 = arith.addf %301, %303 : vector<4x16x16xf32>
    %cst_68 = arith.constant dense<0xFF800000> : vector<4x16xf32>
    %305 = vector.multi_reduction <maximumf>, %304, %cst_68 [2] : vector<4x16x16xf32> to vector<4x16xf32>
    %306 = vector.shape_cast %305 : vector<4x16xf32> to vector<4x16x1xf32>
    %307 = vector.broadcast %306 : vector<4x16x1xf32> to vector<4x16x16xf32>
    %308 = arith.subf %304, %307 : vector<4x16x16xf32>
    %309 = math.exp %308 : vector<4x16x16xf32>
    %cst_69 = arith.constant dense<0.000000e+00> : vector<4x16xf32>
    %310 = vector.multi_reduction <add>, %309, %cst_69 [2] : vector<4x16x16xf32> to vector<4x16xf32>
    %311 = vector.shape_cast %310 : vector<4x16xf32> to vector<4x16x1xf32>
    %312 = tpu.reciprocal %311 {approx = true} : vector<4x16x1xf32> -> vector<4x16x1xf32>
    %313 = vector.broadcast %312 : vector<4x16x1xf32> to vector<4x16x16xf32>
    %314 = arith.mulf %309, %313 : vector<4x16x16xf32>
    %315 = arith.truncf %314 : vector<4x16x16xf32> to vector<4x16x16xbf16>
    "tpu.trace_start"() <{level = 10 : i32, message = "hnm,hmd->hnd"}> : () -> ()
    %cst_70 = arith.constant dense<0.000000e+00> : vector<4x16x128xf32>
    %316 = tpu.matmul %315, %298, %cst_70 {dimension_numbers = #tpu.dot_dimension_numbers<[2], [1], [1], [2], [0, 0, 0, 1, 1, 2], [0], [0]>} : vector<4x16x16xbf16>, vector<4x16x128xbf16>, vector<4x16x128xf32> -> vector<4x16x128xf32>
    "tpu.trace_stop"() : () -> ()
    %317 = vector.extract_strided_slice %316 {offsets = [0, 0, 0], sizes = [1, 16, 128], strides = [1, 1, 1]} : vector<4x16x128xf32> to vector<1x16x128xf32>
    %318 = vector.shape_cast %317 : vector<1x16x128xf32> to vector<16x128xf32>
    %319 = vector.extract_strided_slice %316 {offsets = [1, 0, 0], sizes = [1, 16, 128], strides = [1, 1, 1]} : vector<4x16x128xf32> to vector<1x16x128xf32>
    %320 = vector.shape_cast %319 : vector<1x16x128xf32> to vector<16x128xf32>
    %321 = arith.addf %318, %320 : vector<16x128xf32>
    %322 = vector.extract_strided_slice %316 {offsets = [2, 0, 0], sizes = [1, 16, 128], strides = [1, 1, 1]} : vector<4x16x128xf32> to vector<1x16x128xf32>
    %323 = vector.shape_cast %322 : vector<1x16x128xf32> to vector<16x128xf32>
    %324 = arith.addf %321, %323 : vector<16x128xf32>
    %325 = vector.extract_strided_slice %316 {offsets = [3, 0, 0], sizes = [1, 16, 128], strides = [1, 1, 1]} : vector<4x16x128xf32> to vector<1x16x128xf32>
    %326 = vector.shape_cast %325 : vector<1x16x128xf32> to vector<16x128xf32>
    %327 = arith.addf %324, %326 : vector<16x128xf32>
    %c34 = arith.constant 34 : index
    %c0_71 = arith.constant 0 : index
    %328 = vector.load %arg4[%c34, %c0_71] : memref<56x128xf32, #tpu.memory_space<vmem>>, vector<1x128xf32>
    %329 = vector.broadcast %328 : vector<1x128xf32> to vector<16x128xf32>
    %330 = arith.addf %327, %329 : vector<16x128xf32>
    %331 = arith.addf %330, %246 : vector<16x128xf32>
    %332 = vector.broadcast %66 : vector<1x128xf32> to vector<16x128xf32>
    %333 = arith.addf %332, %331 : vector<16x128xf32>
    %cst_72 = arith.constant dense<0.000000e+00> : vector<16xf32>
    %334 = vector.multi_reduction <add>, %333, %cst_72 [1] : vector<16x128xf32> to vector<16xf32>
    %335 = vector.shape_cast %334 : vector<16xf32> to vector<16x1xf32>
    %cst_73 = arith.constant 1.280000e+02 : f32
    %336 = vector.broadcast %cst_73 : f32 to vector<16x1xf32>
    %337 = arith.divf %335, %336 : vector<16x1xf32>
    %338 = vector.broadcast %337 : vector<16x1xf32> to vector<16x128xf32>
    %339 = arith.subf %333, %338 : vector<16x128xf32>
    %340 = arith.mulf %339, %339 : vector<16x128xf32>
    %cst_74 = arith.constant dense<0.000000e+00> : vector<16xf32>
    %341 = vector.multi_reduction <add>, %340, %cst_74 [1] : vector<16x128xf32> to vector<16xf32>
    %342 = vector.shape_cast %341 : vector<16xf32> to vector<16x1xf32>
    %cst_75 = arith.constant 1.280000e+02 : f32
    %343 = vector.broadcast %cst_75 : f32 to vector<16x1xf32>
    %344 = arith.divf %342, %343 : vector<16x1xf32>
    %345 = vector.broadcast %337 : vector<16x1xf32> to vector<16x128xf32>
    %346 = arith.subf %333, %345 : vector<16x128xf32>
    %cst_76 = arith.constant 9.99999974E-6 : f32
    %347 = vector.broadcast %cst_76 : f32 to vector<16x1xf32>
    %348 = arith.addf %344, %347 : vector<16x1xf32>
    %349 = math.rsqrt %348 : vector<16x1xf32>
    %350 = vector.broadcast %349 : vector<16x1xf32> to vector<16x128xf32>
    %351 = arith.mulf %346, %350 : vector<16x128xf32>
    %352 = vector.broadcast %5 : vector<1x128xf32> to vector<16x128xf32>
    %353 = arith.mulf %351, %352 : vector<16x128xf32>
    %354 = vector.broadcast %6 : vector<1x128xf32> to vector<16x128xf32>
    %355 = arith.addf %353, %354 : vector<16x128xf32>
    %cst_77 = arith.constant dense<0.000000e+00> : vector<128xf32>
    %356 = vector.multi_reduction <add>, %331, %cst_77 [0] : vector<16x128xf32> to vector<128xf32>
    %357 = vector.shape_cast %356 : vector<128xf32> to vector<1x128xf32>
    %cst_78 = arith.constant 1.600000e+01 : f32
    %358 = vector.broadcast %cst_78 : f32 to vector<1x128xf32>
    %359 = arith.divf %357, %358 : vector<1x128xf32>
    %360 = arith.truncf %359 : vector<1x128xf32> to vector<1x128xbf16>
    %cst_79 = arith.constant dense<0.000000e+00> : vector<1x128xf32>
    %361 = tpu.matmul %360, %2, %cst_79 {dimension_numbers = #tpu.dot_dimension_numbers<[1], [0], [0], [1], [0, 0, 1, 1], [], []>} : vector<1x128xbf16>, vector<128x128xbf16>, vector<1x128xf32> -> vector<1x128xf32>
    %362 = arith.addf %361, %3 : vector<1x128xf32>
    %363 = vector.broadcast %362 : vector<1x128xf32> to vector<16x128xf32>
    %364 = arith.addf %363, %355 : vector<16x128xf32>
    %cst_80 = arith.constant dense<0.000000e+00> : vector<16xf32>
    %365 = vector.multi_reduction <add>, %364, %cst_80 [1] : vector<16x128xf32> to vector<16xf32>
    %366 = vector.shape_cast %365 : vector<16xf32> to vector<16x1xf32>
    %cst_81 = arith.constant 1.280000e+02 : f32
    %367 = vector.broadcast %cst_81 : f32 to vector<16x1xf32>
    %368 = arith.divf %366, %367 : vector<16x1xf32>
    %369 = vector.broadcast %368 : vector<16x1xf32> to vector<16x128xf32>
    %370 = arith.subf %364, %369 : vector<16x128xf32>
    %371 = arith.mulf %370, %370 : vector<16x128xf32>
    %cst_82 = arith.constant dense<0.000000e+00> : vector<16xf32>
    %372 = vector.multi_reduction <add>, %371, %cst_82 [1] : vector<16x128xf32> to vector<16xf32>
    %373 = vector.shape_cast %372 : vector<16xf32> to vector<16x1xf32>
    %cst_83 = arith.constant 1.280000e+02 : f32
    %374 = vector.broadcast %cst_83 : f32 to vector<16x1xf32>
    %375 = arith.divf %373, %374 : vector<16x1xf32>
    %376 = vector.broadcast %368 : vector<16x1xf32> to vector<16x128xf32>
    %377 = arith.subf %364, %376 : vector<16x128xf32>
    %cst_84 = arith.constant 9.99999974E-6 : f32
    %378 = vector.broadcast %cst_84 : f32 to vector<16x1xf32>
    %379 = arith.addf %375, %378 : vector<16x1xf32>
    %380 = math.rsqrt %379 : vector<16x1xf32>
    %381 = vector.broadcast %380 : vector<16x1xf32> to vector<16x128xf32>
    %382 = arith.mulf %377, %381 : vector<16x128xf32>
    %383 = vector.broadcast %5 : vector<1x128xf32> to vector<16x128xf32>
    %384 = arith.mulf %382, %383 : vector<16x128xf32>
    %385 = vector.broadcast %6 : vector<1x128xf32> to vector<16x128xf32>
    %386 = arith.addf %384, %385 : vector<16x128xf32>
    %c896 = arith.constant 896 : index
    %c0_85 = arith.constant 0 : index
    %387 = vector.load %arg3[%c896, %c0_85] : memref<1152x128xbf16, #tpu.memory_space<vmem>>, vector<128x128xbf16>
    %388 = arith.truncf %386 : vector<16x128xf32> to vector<16x128xbf16>
    %cst_86 = arith.constant dense<0.000000e+00> : vector<16x128xf32>
    %389 = tpu.matmul %388, %387, %cst_86 {dimension_numbers = #tpu.dot_dimension_numbers<[1], [0], [0], [1], [0, 0, 1, 1], [], []>} : vector<16x128xbf16>, vector<128x128xbf16>, vector<16x128xf32> -> vector<16x128xf32>
    %c45 = arith.constant 45 : index
    %c0_87 = arith.constant 0 : index
    %390 = vector.load %arg4[%c45, %c0_87] : memref<56x128xf32, #tpu.memory_space<vmem>>, vector<1x128xf32>
    %391 = vector.broadcast %390 : vector<1x128xf32> to vector<16x128xf32>
    %392 = arith.addf %389, %391 : vector<16x128xf32>
    %c0_88 = arith.constant 0 : index
    %c0_89 = arith.constant 0 : index
    %393 = vector.load %arg5[%c0_88, %c0_89] : memref<256x32xbf16, #tpu.memory_space<vmem>>, vector<128x32xbf16>
    %c0_90 = arith.constant 0 : index
    %c0_91 = arith.constant 0 : index
    %394 = vector.load %arg6[%c0_90, %c0_91] : memref<64x32xbf16, #tpu.memory_space<vmem>>, vector<32x32xbf16>
    %c0_92 = arith.constant 0 : index
    %c0_93 = arith.constant 0 : index
    %395 = vector.load %arg7[%c0_92, %c0_93] : memref<64x128xbf16, #tpu.memory_space<vmem>>, vector<32x128xbf16>
    %396 = arith.truncf %392 : vector<16x128xf32> to vector<16x128xbf16>
    %cst_94 = arith.constant dense<0.000000e+00> : vector<16x32xf32>
    %397 = tpu.matmul %396, %393, %cst_94 {dimension_numbers = #tpu.dot_dimension_numbers<[1], [0], [0], [1], [0, 0, 1, 1], [], []>} : vector<16x128xbf16>, vector<128x32xbf16>, vector<16x32xf32> -> vector<16x32xf32>
    %c0_95 = arith.constant 0 : index
    %c0_96 = arith.constant 0 : index
    %398 = vector.load %arg8[%c0_95, %c0_96] : memref<12x32xf32, #tpu.memory_space<vmem>>, vector<1x32xf32>
    %399 = vector.broadcast %398 : vector<1x32xf32> to vector<16x32xf32>
    %400 = arith.addf %397, %399 : vector<16x32xf32>
    %c1 = arith.constant 1 : index
    %c0_97 = arith.constant 0 : index
    %401 = vector.load %arg8[%c1, %c0_97] : memref<12x32xf32, #tpu.memory_space<vmem>>, vector<1x32xf32>
    %c2 = arith.constant 2 : index
    %c0_98 = arith.constant 0 : index
    %402 = vector.load %arg8[%c2, %c0_98] : memref<12x32xf32, #tpu.memory_space<vmem>>, vector<1x32xf32>
    %cst_99 = arith.constant dense<0.000000e+00> : vector<16xf32>
    %403 = vector.multi_reduction <add>, %400, %cst_99 [1] : vector<16x32xf32> to vector<16xf32>
    %404 = vector.shape_cast %403 : vector<16xf32> to vector<16x1xf32>
    %cst_100 = arith.constant 3.200000e+01 : f32
    %405 = vector.broadcast %cst_100 : f32 to vector<16x1xf32>
    %406 = arith.divf %404, %405 : vector<16x1xf32>
    %407 = vector.broadcast %406 : vector<16x1xf32> to vector<16x32xf32>
    %408 = arith.subf %400, %407 : vector<16x32xf32>
    %409 = arith.mulf %408, %408 : vector<16x32xf32>
    %cst_101 = arith.constant dense<0.000000e+00> : vector<16xf32>
    %410 = vector.multi_reduction <add>, %409, %cst_101 [1] : vector<16x32xf32> to vector<16xf32>
    %411 = vector.shape_cast %410 : vector<16xf32> to vector<16x1xf32>
    %cst_102 = arith.constant 3.200000e+01 : f32
    %412 = vector.broadcast %cst_102 : f32 to vector<16x1xf32>
    %413 = arith.divf %411, %412 : vector<16x1xf32>
    %414 = vector.broadcast %406 : vector<16x1xf32> to vector<16x32xf32>
    %415 = arith.subf %400, %414 : vector<16x32xf32>
    %cst_103 = arith.constant 9.99999974E-6 : f32
    %416 = vector.broadcast %cst_103 : f32 to vector<16x1xf32>
    %417 = arith.addf %413, %416 : vector<16x1xf32>
    %418 = math.rsqrt %417 : vector<16x1xf32>
    %419 = vector.broadcast %418 : vector<16x1xf32> to vector<16x32xf32>
    %420 = arith.mulf %415, %419 : vector<16x32xf32>
    %421 = vector.broadcast %401 : vector<1x32xf32> to vector<16x32xf32>
    %422 = arith.mulf %420, %421 : vector<16x32xf32>
    %423 = vector.broadcast %402 : vector<1x32xf32> to vector<16x32xf32>
    %424 = arith.addf %422, %423 : vector<16x32xf32>
    %cst_104 = arith.constant 0.000000e+00 : f32
    %425 = vector.broadcast %cst_104 : f32 to vector<16x32xf32>
    %426 = arith.maximumf %424, %425 : vector<16x32xf32>
    %427 = arith.truncf %426 : vector<16x32xf32> to vector<16x32xbf16>
    %cst_105 = arith.constant dense<0.000000e+00> : vector<16x32xf32>
    %428 = tpu.matmul %427, %394, %cst_105 {dimension_numbers = #tpu.dot_dimension_numbers<[1], [0], [0], [1], [0, 0, 1, 1], [], []>} : vector<16x32xbf16>, vector<32x32xbf16>, vector<16x32xf32> -> vector<16x32xf32>
    %c3 = arith.constant 3 : index
    %c0_106 = arith.constant 0 : index
    %429 = vector.load %arg8[%c3, %c0_106] : memref<12x32xf32, #tpu.memory_space<vmem>>, vector<1x32xf32>
    %430 = vector.broadcast %429 : vector<1x32xf32> to vector<16x32xf32>
    %431 = arith.addf %428, %430 : vector<16x32xf32>
    %c4_107 = arith.constant 4 : index
    %c0_108 = arith.constant 0 : index
    %432 = vector.load %arg8[%c4_107, %c0_108] : memref<12x32xf32, #tpu.memory_space<vmem>>, vector<1x32xf32>
    %c5 = arith.constant 5 : index
    %c0_109 = arith.constant 0 : index
    %433 = vector.load %arg8[%c5, %c0_109] : memref<12x32xf32, #tpu.memory_space<vmem>>, vector<1x32xf32>
    %cst_110 = arith.constant dense<0.000000e+00> : vector<16xf32>
    %434 = vector.multi_reduction <add>, %431, %cst_110 [1] : vector<16x32xf32> to vector<16xf32>
    %435 = vector.shape_cast %434 : vector<16xf32> to vector<16x1xf32>
    %cst_111 = arith.constant 3.200000e+01 : f32
    %436 = vector.broadcast %cst_111 : f32 to vector<16x1xf32>
    %437 = arith.divf %435, %436 : vector<16x1xf32>
    %438 = vector.broadcast %437 : vector<16x1xf32> to vector<16x32xf32>
    %439 = arith.subf %431, %438 : vector<16x32xf32>
    %440 = arith.mulf %439, %439 : vector<16x32xf32>
    %cst_112 = arith.constant dense<0.000000e+00> : vector<16xf32>
    %441 = vector.multi_reduction <add>, %440, %cst_112 [1] : vector<16x32xf32> to vector<16xf32>
    %442 = vector.shape_cast %441 : vector<16xf32> to vector<16x1xf32>
    %cst_113 = arith.constant 3.200000e+01 : f32
    %443 = vector.broadcast %cst_113 : f32 to vector<16x1xf32>
    %444 = arith.divf %442, %443 : vector<16x1xf32>
    %445 = vector.broadcast %437 : vector<16x1xf32> to vector<16x32xf32>
    %446 = arith.subf %431, %445 : vector<16x32xf32>
    %cst_114 = arith.constant 9.99999974E-6 : f32
    %447 = vector.broadcast %cst_114 : f32 to vector<16x1xf32>
    %448 = arith.addf %444, %447 : vector<16x1xf32>
    %449 = math.rsqrt %448 : vector<16x1xf32>
    %450 = vector.broadcast %449 : vector<16x1xf32> to vector<16x32xf32>
    %451 = arith.mulf %446, %450 : vector<16x32xf32>
    %452 = vector.broadcast %432 : vector<1x32xf32> to vector<16x32xf32>
    %453 = arith.mulf %451, %452 : vector<16x32xf32>
    %454 = vector.broadcast %433 : vector<1x32xf32> to vector<16x32xf32>
    %455 = arith.addf %453, %454 : vector<16x32xf32>
    %cst_115 = arith.constant 0.000000e+00 : f32
    %456 = vector.broadcast %cst_115 : f32 to vector<16x32xf32>
    %457 = arith.maximumf %455, %456 : vector<16x32xf32>
    %458 = arith.truncf %457 : vector<16x32xf32> to vector<16x32xbf16>
    %cst_116 = arith.constant dense<0.000000e+00> : vector<16x128xf32>
    %459 = tpu.matmul %458, %395, %cst_116 {dimension_numbers = #tpu.dot_dimension_numbers<[1], [0], [0], [1], [0, 0, 1, 1], [], []>} : vector<16x32xbf16>, vector<32x128xbf16>, vector<16x128xf32> -> vector<16x128xf32>
    %c46 = arith.constant 46 : index
    %c0_117 = arith.constant 0 : index
    %460 = vector.load %arg4[%c46, %c0_117] : memref<56x128xf32, #tpu.memory_space<vmem>>, vector<1x128xf32>
    %461 = vector.broadcast %460 : vector<1x128xf32> to vector<16x128xf32>
    %462 = arith.addf %459, %461 : vector<16x128xf32>
    %c0_118 = arith.constant 0 : index
    %c0_119 = arith.constant 0 : index
    %463 = vector.load %arg9[%c0_118, %c0_119] : memref<16x128xf32, #tpu.memory_space<vmem>>, vector<16x128xf32>
    tpu.vector_store %arg9[%c0_118, %c0_119], %462 {strides = array<i32>} : memref<16x128xf32, #tpu.memory_space<vmem>>, vector<16x128xf32>,
    %c48 = arith.constant 48 : index
    %c0_120 = arith.constant 0 : index
    %464 = vector.load %arg4[%c48, %c0_120] : memref<56x128xf32, #tpu.memory_space<vmem>>, vector<1x128xf32>
    %465 = vector.broadcast %464 : vector<1x128xf32> to vector<16x128xf32>
    %466 = arith.mulf %462, %465 : vector<16x128xf32>
    %467 = arith.addf %0, %466 : vector<16x128xf32>
    %c256_121 = arith.constant 256 : index
    %c0_122 = arith.constant 0 : index
    %468 = vector.load %arg3[%c256_121, %c0_122] : memref<1152x128xbf16, #tpu.memory_space<vmem>>, vector<128x128xbf16>
    %469 = arith.truncf %467 : vector<16x128xf32> to vector<16x128xbf16>
    %cst_123 = arith.constant dense<0.000000e+00> : vector<16x128xf32>
    %470 = tpu.matmul %469, %468, %cst_123 {dimension_numbers = #tpu.dot_dimension_numbers<[1], [0], [0], [1], [0, 0, 1, 1], [], []>} : vector<16x128xbf16>, vector<128x128xbf16>, vector<16x128xf32> -> vector<16x128xf32>
    %c41_124 = arith.constant 41 : index
    %c0_125 = arith.constant 0 : index
    %471 = vector.load %arg4[%c41_124, %c0_125] : memref<56x128xf32, #tpu.memory_space<vmem>>, vector<1x128xf32>
    %472 = vector.broadcast %471 : vector<1x128xf32> to vector<16x128xf32>
    %473 = arith.addf %470, %472 : vector<16x128xf32>
    %c384_126 = arith.constant 384 : index
    %c0_127 = arith.constant 0 : index
    %474 = vector.load %arg3[%c384_126, %c0_127] : memref<1152x128xbf16, #tpu.memory_space<vmem>>, vector<128x128xbf16>
    %475 = arith.truncf %467 : vector<16x128xf32> to vector<16x128xbf16>
    %cst_128 = arith.constant dense<0.000000e+00> : vector<16x128xf32>
    %476 = tpu.matmul %475, %474, %cst_128 {dimension_numbers = #tpu.dot_dimension_numbers<[1], [0], [0], [1], [0, 0, 1, 1], [], []>} : vector<16x128xbf16>, vector<128x128xbf16>, vector<16x128xf32> -> vector<16x128xf32>
    %477 = arith.truncf %476 : vector<16x128xf32> to vector<16x128xbf16>
    %c8_129 = arith.constant 8 : index
    %c0_130 = arith.constant 0 : index
    %478 = vector.load %arg4[%c8_129, %c0_130] : memref<56x128xf32, #tpu.memory_space<vmem>>, vector<4x128xf32>
    %479 = arith.truncf %478 : vector<4x128xf32> to vector<4x128xbf16>
    %cst_131 = arith.constant dense<0.000000e+00> : vector<4x16xf32>
    %480 = tpu.matmul %479, %477, %cst_131 {dimension_numbers = #tpu.dot_dimension_numbers<[1], [1], [0], [0], [0, 0, 1, 0], [], []>} : vector<4x128xbf16>, vector<16x128xbf16>, vector<4x16xf32> -> vector<4x16xf32>
    %c1024_132 = arith.constant 1024 : index
    %c0_133 = arith.constant 0 : index
    %481 = vector.load %arg3[%c1024_132, %c0_133] : memref<1152x128xbf16, #tpu.memory_space<vmem>>, vector<128x4xbf16>
    %cst_134 = arith.constant dense<0.000000e+00> : vector<16x4xf32>
    %482 = tpu.matmul %477, %481, %cst_134 {dimension_numbers = #tpu.dot_dimension_numbers<[1], [0], [0], [1], [0, 0, 1, 1], [], []>} : vector<16x128xbf16>, vector<128x4xbf16>, vector<16x4xf32> -> vector<16x4xf32>
    %483 = vector.extract_strided_slice %482 {offsets = [0, 0], sizes = [16, 1], strides = [1, 1]} : vector<16x4xf32> to vector<16x1xf32>
    %484 = vector.extract_strided_slice %480 {offsets = [0, 0], sizes = [1, 16], strides = [1, 1]} : vector<4x16xf32> to vector<1x16xf32>
    %485 = vector.broadcast %483 : vector<16x1xf32> to vector<16x16xf32>
    %486 = vector.broadcast %484 : vector<1x16xf32> to vector<16x16xf32>
    %487 = arith.addf %485, %486 : vector<16x16xf32>
    %488 = vector.shape_cast %487 : vector<16x16xf32> to vector<1x16x16xf32>
    %489 = vector.extract_strided_slice %4 {offsets = [0, 0], sizes = [1, 128], strides = [1, 1]} : vector<4x128xf32> to vector<1x128xf32>
    %490 = vector.broadcast %489 : vector<1x128xf32> to vector<16x128xf32>
    %491 = arith.mulf %476, %490 : vector<16x128xf32>
    %492 = vector.shape_cast %491 : vector<16x128xf32> to vector<1x16x128xf32>
    %493 = vector.extract_strided_slice %482 {offsets = [0, 1], sizes = [16, 1], strides = [1, 1]} : vector<16x4xf32> to vector<16x1xf32>
    %494 = vector.extract_strided_slice %480 {offsets = [1, 0], sizes = [1, 16], strides = [1, 1]} : vector<4x16xf32> to vector<1x16xf32>
    %495 = vector.broadcast %493 : vector<16x1xf32> to vector<16x16xf32>
    %496 = vector.broadcast %494 : vector<1x16xf32> to vector<16x16xf32>
    %497 = arith.addf %495, %496 : vector<16x16xf32>
    %498 = vector.shape_cast %497 : vector<16x16xf32> to vector<1x16x16xf32>
    %499 = vector.extract_strided_slice %4 {offsets = [1, 0], sizes = [1, 128], strides = [1, 1]} : vector<4x128xf32> to vector<1x128xf32>
    %500 = vector.broadcast %499 : vector<1x128xf32> to vector<16x128xf32>
    %501 = arith.mulf %476, %500 : vector<16x128xf32>
    %502 = vector.shape_cast %501 : vector<16x128xf32> to vector<1x16x128xf32>
    %503 = vector.extract_strided_slice %482 {offsets = [0, 2], sizes = [16, 1], strides = [1, 1]} : vector<16x4xf32> to vector<16x1xf32>
    %504 = vector.extract_strided_slice %480 {offsets = [2, 0], sizes = [1, 16], strides = [1, 1]} : vector<4x16xf32> to vector<1x16xf32>
    %505 = vector.broadcast %503 : vector<16x1xf32> to vector<16x16xf32>
    %506 = vector.broadcast %504 : vector<1x16xf32> to vector<16x16xf32>
    %507 = arith.addf %505, %506 : vector<16x16xf32>
    %508 = vector.shape_cast %507 : vector<16x16xf32> to vector<1x16x16xf32>
    %509 = vector.extract_strided_slice %4 {offsets = [2, 0], sizes = [1, 128], strides = [1, 1]} : vector<4x128xf32> to vector<1x128xf32>
    %510 = vector.broadcast %509 : vector<1x128xf32> to vector<16x128xf32>
    %511 = arith.mulf %476, %510 : vector<16x128xf32>
    %512 = vector.shape_cast %511 : vector<16x128xf32> to vector<1x16x128xf32>
    %513 = vector.extract_strided_slice %482 {offsets = [0, 3], sizes = [16, 1], strides = [1, 1]} : vector<16x4xf32> to vector<16x1xf32>
    %514 = vector.extract_strided_slice %480 {offsets = [3, 0], sizes = [1, 16], strides = [1, 1]} : vector<4x16xf32> to vector<1x16xf32>
    %515 = vector.broadcast %513 : vector<16x1xf32> to vector<16x16xf32>
    %516 = vector.broadcast %514 : vector<1x16xf32> to vector<16x16xf32>
    %517 = arith.addf %515, %516 : vector<16x16xf32>
    %518 = vector.shape_cast %517 : vector<16x16xf32> to vector<1x16x16xf32>
    %519 = vector.extract_strided_slice %4 {offsets = [3, 0], sizes = [1, 128], strides = [1, 1]} : vector<4x128xf32> to vector<1x128xf32>
    %520 = vector.broadcast %519 : vector<1x128xf32> to vector<16x128xf32>
    %521 = arith.mulf %476, %520 : vector<16x128xf32>
    %522 = vector.shape_cast %521 : vector<16x128xf32> to vector<1x16x128xf32>
    %523 = tpu.concatenate %488, %498, %508, %518 in 0 : vector<1x16x16xf32>, vector<1x16x16xf32>, vector<1x16x16xf32>, vector<1x16x16xf32> -> vector<4x16x16xf32>
    %524 = tpu.concatenate %492, %502, %512, %522 in 0 : vector<1x16x128xf32>, vector<1x16x128xf32>, vector<1x16x128xf32>, vector<1x16x128xf32> -> vector<4x16x128xf32>
    %525 = arith.truncf %524 : vector<4x16x128xf32> to vector<4x16x128xbf16>
    %cst_135 = arith.constant 2.000000e-01 : f32
    %526 = vector.broadcast %cst_135 : f32 to vector<4x16x16xf32>
    %527 = arith.mulf %526, %523 : vector<4x16x16xf32>
    %528 = arith.maximumf %523, %527 : vector<4x16x16xf32>
    %529 = vector.shape_cast %1 : vector<16x16xf32> to vector<1x16x16xf32>
    %530 = vector.broadcast %529 : vector<1x16x16xf32> to vector<4x16x16xf32>
    %531 = arith.addf %528, %530 : vector<4x16x16xf32>
    %cst_136 = arith.constant dense<0xFF800000> : vector<4x16xf32>
    %532 = vector.multi_reduction <maximumf>, %531, %cst_136 [2] : vector<4x16x16xf32> to vector<4x16xf32>
    %533 = vector.shape_cast %532 : vector<4x16xf32> to vector<4x16x1xf32>
    %534 = vector.broadcast %533 : vector<4x16x1xf32> to vector<4x16x16xf32>
    %535 = arith.subf %531, %534 : vector<4x16x16xf32>
    %536 = math.exp %535 : vector<4x16x16xf32>
    %cst_137 = arith.constant dense<0.000000e+00> : vector<4x16xf32>
    %537 = vector.multi_reduction <add>, %536, %cst_137 [2] : vector<4x16x16xf32> to vector<4x16xf32>
    %538 = vector.shape_cast %537 : vector<4x16xf32> to vector<4x16x1xf32>
    %539 = tpu.reciprocal %538 {approx = true} : vector<4x16x1xf32> -> vector<4x16x1xf32>
    %540 = vector.broadcast %539 : vector<4x16x1xf32> to vector<4x16x16xf32>
    %541 = arith.mulf %536, %540 : vector<4x16x16xf32>
    %542 = arith.truncf %541 : vector<4x16x16xf32> to vector<4x16x16xbf16>
    "tpu.trace_start"() <{level = 10 : i32, message = "hnm,hmd->hnd"}> : () -> ()
    %cst_138 = arith.constant dense<0.000000e+00> : vector<4x16x128xf32>
    %543 = tpu.matmul %542, %525, %cst_138 {dimension_numbers = #tpu.dot_dimension_numbers<[2], [1], [1], [2], [0, 0, 0, 1, 1, 2], [0], [0]>} : vector<4x16x16xbf16>, vector<4x16x128xbf16>, vector<4x16x128xf32> -> vector<4x16x128xf32>
    "tpu.trace_stop"() : () -> ()
    %544 = vector.extract_strided_slice %543 {offsets = [0, 0, 0], sizes = [1, 16, 128], strides = [1, 1, 1]} : vector<4x16x128xf32> to vector<1x16x128xf32>
    %545 = vector.shape_cast %544 : vector<1x16x128xf32> to vector<16x128xf32>
    %546 = vector.extract_strided_slice %543 {offsets = [1, 0, 0], sizes = [1, 16, 128], strides = [1, 1, 1]} : vector<4x16x128xf32> to vector<1x16x128xf32>
    %547 = vector.shape_cast %546 : vector<1x16x128xf32> to vector<16x128xf32>
    %548 = arith.addf %545, %547 : vector<16x128xf32>
    %549 = vector.extract_strided_slice %543 {offsets = [2, 0, 0], sizes = [1, 16, 128], strides = [1, 1, 1]} : vector<4x16x128xf32> to vector<1x16x128xf32>
    %550 = vector.shape_cast %549 : vector<1x16x128xf32> to vector<16x128xf32>
    %551 = arith.addf %548, %550 : vector<16x128xf32>
    %552 = vector.extract_strided_slice %543 {offsets = [3, 0, 0], sizes = [1, 16, 128], strides = [1, 1, 1]} : vector<4x16x128xf32> to vector<1x16x128xf32>
    %553 = vector.shape_cast %552 : vector<1x16x128xf32> to vector<16x128xf32>
    %554 = arith.addf %551, %553 : vector<16x128xf32>
    %c32_139 = arith.constant 32 : index
    %c0_140 = arith.constant 0 : index
    %555 = vector.load %arg4[%c32_139, %c0_140] : memref<56x128xf32, #tpu.memory_space<vmem>>, vector<1x128xf32>
    %556 = vector.broadcast %555 : vector<1x128xf32> to vector<16x128xf32>
    %557 = arith.addf %554, %556 : vector<16x128xf32>
    %cst_141 = arith.constant 0.000000e+00 : f32
    %558 = vector.broadcast %cst_141 : f32 to vector<16x128xf32>
    %559 = arith.maximumf %557, %558 : vector<16x128xf32>
    %560 = arith.addf %559, %473 : vector<16x128xf32>
    %c512_142 = arith.constant 512 : index
    %c0_143 = arith.constant 0 : index
    %561 = vector.load %arg3[%c512_142, %c0_143] : memref<1152x128xbf16, #tpu.memory_space<vmem>>, vector<128x128xbf16>
    %562 = arith.truncf %560 : vector<16x128xf32> to vector<16x128xbf16>
    %cst_144 = arith.constant dense<0.000000e+00> : vector<16x128xf32>
    %563 = tpu.matmul %562, %561, %cst_144 {dimension_numbers = #tpu.dot_dimension_numbers<[1], [0], [0], [1], [0, 0, 1, 1], [], []>} : vector<16x128xbf16>, vector<128x128xbf16>, vector<16x128xf32> -> vector<16x128xf32>
    %564 = arith.truncf %563 : vector<16x128xf32> to vector<16x128xbf16>
    %c16_145 = arith.constant 16 : index
    %c0_146 = arith.constant 0 : index
    %565 = vector.load %arg4[%c16_145, %c0_146] : memref<56x128xf32, #tpu.memory_space<vmem>>, vector<4x128xf32>
    %566 = arith.truncf %565 : vector<4x128xf32> to vector<4x128xbf16>
    %cst_147 = arith.constant dense<0.000000e+00> : vector<4x16xf32>
    %567 = tpu.matmul %566, %564, %cst_147 {dimension_numbers = #tpu.dot_dimension_numbers<[1], [1], [0], [0], [0, 0, 1, 0], [], []>} : vector<4x128xbf16>, vector<16x128xbf16>, vector<4x16xf32> -> vector<4x16xf32>
    %c1024_148 = arith.constant 1024 : index
    %c4_149 = arith.constant 4 : index
    %568 = vector.load %arg3[%c1024_148, %c4_149] : memref<1152x128xbf16, #tpu.memory_space<vmem>>, vector<128x4xbf16>
    %cst_150 = arith.constant dense<0.000000e+00> : vector<16x4xf32>
    %569 = tpu.matmul %564, %568, %cst_150 {dimension_numbers = #tpu.dot_dimension_numbers<[1], [0], [0], [1], [0, 0, 1, 1], [], []>} : vector<16x128xbf16>, vector<128x4xbf16>, vector<16x4xf32> -> vector<16x4xf32>
    %570 = vector.extract_strided_slice %569 {offsets = [0, 0], sizes = [16, 1], strides = [1, 1]} : vector<16x4xf32> to vector<16x1xf32>
    %571 = vector.extract_strided_slice %567 {offsets = [0, 0], sizes = [1, 16], strides = [1, 1]} : vector<4x16xf32> to vector<1x16xf32>
    %572 = vector.broadcast %570 : vector<16x1xf32> to vector<16x16xf32>
    %573 = vector.broadcast %571 : vector<1x16xf32> to vector<16x16xf32>
    %574 = arith.addf %572, %573 : vector<16x16xf32>
    %575 = vector.shape_cast %574 : vector<16x16xf32> to vector<1x16x16xf32>
    %576 = vector.extract_strided_slice %4 {offsets = [0, 0], sizes = [1, 128], strides = [1, 1]} : vector<4x128xf32> to vector<1x128xf32>
    %577 = vector.broadcast %576 : vector<1x128xf32> to vector<16x128xf32>
    %578 = arith.mulf %563, %577 : vector<16x128xf32>
    %579 = vector.shape_cast %578 : vector<16x128xf32> to vector<1x16x128xf32>
    %580 = vector.extract_strided_slice %569 {offsets = [0, 1], sizes = [16, 1], strides = [1, 1]} : vector<16x4xf32> to vector<16x1xf32>
    %581 = vector.extract_strided_slice %567 {offsets = [1, 0], sizes = [1, 16], strides = [1, 1]} : vector<4x16xf32> to vector<1x16xf32>
    %582 = vector.broadcast %580 : vector<16x1xf32> to vector<16x16xf32>
    %583 = vector.broadcast %581 : vector<1x16xf32> to vector<16x16xf32>
    %584 = arith.addf %582, %583 : vector<16x16xf32>
    %585 = vector.shape_cast %584 : vector<16x16xf32> to vector<1x16x16xf32>
    %586 = vector.extract_strided_slice %4 {offsets = [1, 0], sizes = [1, 128], strides = [1, 1]} : vector<4x128xf32> to vector<1x128xf32>
    %587 = vector.broadcast %586 : vector<1x128xf32> to vector<16x128xf32>
    %588 = arith.mulf %563, %587 : vector<16x128xf32>
    %589 = vector.shape_cast %588 : vector<16x128xf32> to vector<1x16x128xf32>
    %590 = vector.extract_strided_slice %569 {offsets = [0, 2], sizes = [16, 1], strides = [1, 1]} : vector<16x4xf32> to vector<16x1xf32>
    %591 = vector.extract_strided_slice %567 {offsets = [2, 0], sizes = [1, 16], strides = [1, 1]} : vector<4x16xf32> to vector<1x16xf32>
    %592 = vector.broadcast %590 : vector<16x1xf32> to vector<16x16xf32>
    %593 = vector.broadcast %591 : vector<1x16xf32> to vector<16x16xf32>
    %594 = arith.addf %592, %593 : vector<16x16xf32>
    %595 = vector.shape_cast %594 : vector<16x16xf32> to vector<1x16x16xf32>
    %596 = vector.extract_strided_slice %4 {offsets = [2, 0], sizes = [1, 128], strides = [1, 1]} : vector<4x128xf32> to vector<1x128xf32>
    %597 = vector.broadcast %596 : vector<1x128xf32> to vector<16x128xf32>
    %598 = arith.mulf %563, %597 : vector<16x128xf32>
    %599 = vector.shape_cast %598 : vector<16x128xf32> to vector<1x16x128xf32>
    %600 = vector.extract_strided_slice %569 {offsets = [0, 3], sizes = [16, 1], strides = [1, 1]} : vector<16x4xf32> to vector<16x1xf32>
    %601 = vector.extract_strided_slice %567 {offsets = [3, 0], sizes = [1, 16], strides = [1, 1]} : vector<4x16xf32> to vector<1x16xf32>
    %602 = vector.broadcast %600 : vector<16x1xf32> to vector<16x16xf32>
    %603 = vector.broadcast %601 : vector<1x16xf32> to vector<16x16xf32>
    %604 = arith.addf %602, %603 : vector<16x16xf32>
    %605 = vector.shape_cast %604 : vector<16x16xf32> to vector<1x16x16xf32>
    %606 = vector.extract_strided_slice %4 {offsets = [3, 0], sizes = [1, 128], strides = [1, 1]} : vector<4x128xf32> to vector<1x128xf32>
    %607 = vector.broadcast %606 : vector<1x128xf32> to vector<16x128xf32>
    %608 = arith.mulf %563, %607 : vector<16x128xf32>
    %609 = vector.shape_cast %608 : vector<16x128xf32> to vector<1x16x128xf32>
    %610 = tpu.concatenate %575, %585, %595, %605 in 0 : vector<1x16x16xf32>, vector<1x16x16xf32>, vector<1x16x16xf32>, vector<1x16x16xf32> -> vector<4x16x16xf32>
    %611 = tpu.concatenate %579, %589, %599, %609 in 0 : vector<1x16x128xf32>, vector<1x16x128xf32>, vector<1x16x128xf32>, vector<1x16x128xf32> -> vector<4x16x128xf32>
    %612 = arith.truncf %611 : vector<4x16x128xf32> to vector<4x16x128xbf16>
    %cst_151 = arith.constant 2.000000e-01 : f32
    %613 = vector.broadcast %cst_151 : f32 to vector<4x16x16xf32>
    %614 = arith.mulf %613, %610 : vector<4x16x16xf32>
    %615 = arith.maximumf %610, %614 : vector<4x16x16xf32>
    %616 = vector.shape_cast %1 : vector<16x16xf32> to vector<1x16x16xf32>
    %617 = vector.broadcast %616 : vector<1x16x16xf32> to vector<4x16x16xf32>
    %618 = arith.addf %615, %617 : vector<4x16x16xf32>
    %cst_152 = arith.constant dense<0xFF800000> : vector<4x16xf32>
    %619 = vector.multi_reduction <maximumf>, %618, %cst_152 [2] : vector<4x16x16xf32> to vector<4x16xf32>
    %620 = vector.shape_cast %619 : vector<4x16xf32> to vector<4x16x1xf32>
    %621 = vector.broadcast %620 : vector<4x16x1xf32> to vector<4x16x16xf32>
    %622 = arith.subf %618, %621 : vector<4x16x16xf32>
    %623 = math.exp %622 : vector<4x16x16xf32>
    %cst_153 = arith.constant dense<0.000000e+00> : vector<4x16xf32>
    %624 = vector.multi_reduction <add>, %623, %cst_153 [2] : vector<4x16x16xf32> to vector<4x16xf32>
    %625 = vector.shape_cast %624 : vector<4x16xf32> to vector<4x16x1xf32>
    %626 = tpu.reciprocal %625 {approx = true} : vector<4x16x1xf32> -> vector<4x16x1xf32>
    %627 = vector.broadcast %626 : vector<4x16x1xf32> to vector<4x16x16xf32>
    %628 = arith.mulf %623, %627 : vector<4x16x16xf32>
    %629 = arith.truncf %628 : vector<4x16x16xf32> to vector<4x16x16xbf16>
    "tpu.trace_start"() <{level = 10 : i32, message = "hnm,hmd->hnd"}> : () -> ()
    %cst_154 = arith.constant dense<0.000000e+00> : vector<4x16x128xf32>
    %630 = tpu.matmul %629, %612, %cst_154 {dimension_numbers = #tpu.dot_dimension_numbers<[2], [1], [1], [2], [0, 0, 0, 1, 1, 2], [0], [0]>} : vector<4x16x16xbf16>, vector<4x16x128xbf16>, vector<4x16x128xf32> -> vector<4x16x128xf32>
    "tpu.trace_stop"() : () -> ()
    %631 = vector.extract_strided_slice %630 {offsets = [0, 0, 0], sizes = [1, 16, 128], strides = [1, 1, 1]} : vector<4x16x128xf32> to vector<1x16x128xf32>
    %632 = vector.shape_cast %631 : vector<1x16x128xf32> to vector<16x128xf32>
    %633 = vector.extract_strided_slice %630 {offsets = [1, 0, 0], sizes = [1, 16, 128], strides = [1, 1, 1]} : vector<4x16x128xf32> to vector<1x16x128xf32>
    %634 = vector.shape_cast %633 : vector<1x16x128xf32> to vector<16x128xf32>
    %635 = arith.addf %632, %634 : vector<16x128xf32>
    %636 = vector.extract_strided_slice %630 {offsets = [2, 0, 0], sizes = [1, 16, 128], strides = [1, 1, 1]} : vector<4x16x128xf32> to vector<1x16x128xf32>
    %637 = vector.shape_cast %636 : vector<1x16x128xf32> to vector<16x128xf32>
    %638 = arith.addf %635, %637 : vector<16x128xf32>
    %639 = vector.extract_strided_slice %630 {offsets = [3, 0, 0], sizes = [1, 16, 128], strides = [1, 1, 1]} : vector<4x16x128xf32> to vector<1x16x128xf32>
    %640 = vector.shape_cast %639 : vector<1x16x128xf32> to vector<16x128xf32>
    %641 = arith.addf %638, %640 : vector<16x128xf32>
    %c33_155 = arith.constant 33 : index
    %c0_156 = arith.constant 0 : index
    %642 = vector.load %arg4[%c33_155, %c0_156] : memref<56x128xf32, #tpu.memory_space<vmem>>, vector<1x128xf32>
    %643 = vector.broadcast %642 : vector<1x128xf32> to vector<16x128xf32>
    %644 = arith.addf %641, %643 : vector<16x128xf32>
    %cst_157 = arith.constant 0.000000e+00 : f32
    %645 = vector.broadcast %cst_157 : f32 to vector<16x128xf32>
    %646 = arith.maximumf %644, %645 : vector<16x128xf32>
    %647 = arith.addf %646, %560 : vector<16x128xf32>
    %c640_158 = arith.constant 640 : index
    %c0_159 = arith.constant 0 : index
    %648 = vector.load %arg3[%c640_158, %c0_159] : memref<1152x128xbf16, #tpu.memory_space<vmem>>, vector<128x128xbf16>
    %649 = arith.truncf %647 : vector<16x128xf32> to vector<16x128xbf16>
    %cst_160 = arith.constant dense<0.000000e+00> : vector<16x128xf32>
    %650 = tpu.matmul %649, %648, %cst_160 {dimension_numbers = #tpu.dot_dimension_numbers<[1], [0], [0], [1], [0, 0, 1, 1], [], []>} : vector<16x128xbf16>, vector<128x128xbf16>, vector<16x128xf32> -> vector<16x128xf32>
    %651 = arith.truncf %650 : vector<16x128xf32> to vector<16x128xbf16>
    %c24_161 = arith.constant 24 : index
    %c0_162 = arith.constant 0 : index
    %652 = vector.load %arg4[%c24_161, %c0_162] : memref<56x128xf32, #tpu.memory_space<vmem>>, vector<4x128xf32>
    %653 = arith.truncf %652 : vector<4x128xf32> to vector<4x128xbf16>
    %cst_163 = arith.constant dense<0.000000e+00> : vector<4x16xf32>
    %654 = tpu.matmul %653, %651, %cst_163 {dimension_numbers = #tpu.dot_dimension_numbers<[1], [1], [0], [0], [0, 0, 1, 0], [], []>} : vector<4x128xbf16>, vector<16x128xbf16>, vector<4x16xf32> -> vector<4x16xf32>
    %c1024_164 = arith.constant 1024 : index
    %c8_165 = arith.constant 8 : index
    %655 = vector.load %arg3[%c1024_164, %c8_165] : memref<1152x128xbf16, #tpu.memory_space<vmem>>, vector<128x4xbf16>
    %cst_166 = arith.constant dense<0.000000e+00> : vector<16x4xf32>
    %656 = tpu.matmul %651, %655, %cst_166 {dimension_numbers = #tpu.dot_dimension_numbers<[1], [0], [0], [1], [0, 0, 1, 1], [], []>} : vector<16x128xbf16>, vector<128x4xbf16>, vector<16x4xf32> -> vector<16x4xf32>
    %657 = vector.extract_strided_slice %656 {offsets = [0, 0], sizes = [16, 1], strides = [1, 1]} : vector<16x4xf32> to vector<16x1xf32>
    %658 = vector.extract_strided_slice %654 {offsets = [0, 0], sizes = [1, 16], strides = [1, 1]} : vector<4x16xf32> to vector<1x16xf32>
    %659 = vector.broadcast %657 : vector<16x1xf32> to vector<16x16xf32>
    %660 = vector.broadcast %658 : vector<1x16xf32> to vector<16x16xf32>
    %661 = arith.addf %659, %660 : vector<16x16xf32>
    %662 = vector.shape_cast %661 : vector<16x16xf32> to vector<1x16x16xf32>
    %663 = vector.extract_strided_slice %4 {offsets = [0, 0], sizes = [1, 128], strides = [1, 1]} : vector<4x128xf32> to vector<1x128xf32>
    %664 = vector.broadcast %663 : vector<1x128xf32> to vector<16x128xf32>
    %665 = arith.mulf %650, %664 : vector<16x128xf32>
    %666 = vector.shape_cast %665 : vector<16x128xf32> to vector<1x16x128xf32>
    %667 = vector.extract_strided_slice %656 {offsets = [0, 1], sizes = [16, 1], strides = [1, 1]} : vector<16x4xf32> to vector<16x1xf32>
    %668 = vector.extract_strided_slice %654 {offsets = [1, 0], sizes = [1, 16], strides = [1, 1]} : vector<4x16xf32> to vector<1x16xf32>
    %669 = vector.broadcast %667 : vector<16x1xf32> to vector<16x16xf32>
    %670 = vector.broadcast %668 : vector<1x16xf32> to vector<16x16xf32>
    %671 = arith.addf %669, %670 : vector<16x16xf32>
    %672 = vector.shape_cast %671 : vector<16x16xf32> to vector<1x16x16xf32>
    %673 = vector.extract_strided_slice %4 {offsets = [1, 0], sizes = [1, 128], strides = [1, 1]} : vector<4x128xf32> to vector<1x128xf32>
    %674 = vector.broadcast %673 : vector<1x128xf32> to vector<16x128xf32>
    %675 = arith.mulf %650, %674 : vector<16x128xf32>
    %676 = vector.shape_cast %675 : vector<16x128xf32> to vector<1x16x128xf32>
    %677 = vector.extract_strided_slice %656 {offsets = [0, 2], sizes = [16, 1], strides = [1, 1]} : vector<16x4xf32> to vector<16x1xf32>
    %678 = vector.extract_strided_slice %654 {offsets = [2, 0], sizes = [1, 16], strides = [1, 1]} : vector<4x16xf32> to vector<1x16xf32>
    %679 = vector.broadcast %677 : vector<16x1xf32> to vector<16x16xf32>
    %680 = vector.broadcast %678 : vector<1x16xf32> to vector<16x16xf32>
    %681 = arith.addf %679, %680 : vector<16x16xf32>
    %682 = vector.shape_cast %681 : vector<16x16xf32> to vector<1x16x16xf32>
    %683 = vector.extract_strided_slice %4 {offsets = [2, 0], sizes = [1, 128], strides = [1, 1]} : vector<4x128xf32> to vector<1x128xf32>
    %684 = vector.broadcast %683 : vector<1x128xf32> to vector<16x128xf32>
    %685 = arith.mulf %650, %684 : vector<16x128xf32>
    %686 = vector.shape_cast %685 : vector<16x128xf32> to vector<1x16x128xf32>
    %687 = vector.extract_strided_slice %656 {offsets = [0, 3], sizes = [16, 1], strides = [1, 1]} : vector<16x4xf32> to vector<16x1xf32>
    %688 = vector.extract_strided_slice %654 {offsets = [3, 0], sizes = [1, 16], strides = [1, 1]} : vector<4x16xf32> to vector<1x16xf32>
    %689 = vector.broadcast %687 : vector<16x1xf32> to vector<16x16xf32>
    %690 = vector.broadcast %688 : vector<1x16xf32> to vector<16x16xf32>
    %691 = arith.addf %689, %690 : vector<16x16xf32>
    %692 = vector.shape_cast %691 : vector<16x16xf32> to vector<1x16x16xf32>
    %693 = vector.extract_strided_slice %4 {offsets = [3, 0], sizes = [1, 128], strides = [1, 1]} : vector<4x128xf32> to vector<1x128xf32>
    %694 = vector.broadcast %693 : vector<1x128xf32> to vector<16x128xf32>
    %695 = arith.mulf %650, %694 : vector<16x128xf32>
    %696 = vector.shape_cast %695 : vector<16x128xf32> to vector<1x16x128xf32>
    %697 = tpu.concatenate %662, %672, %682, %692 in 0 : vector<1x16x16xf32>, vector<1x16x16xf32>, vector<1x16x16xf32>, vector<1x16x16xf32> -> vector<4x16x16xf32>
    %698 = tpu.concatenate %666, %676, %686, %696 in 0 : vector<1x16x128xf32>, vector<1x16x128xf32>, vector<1x16x128xf32>, vector<1x16x128xf32> -> vector<4x16x128xf32>
    %699 = arith.truncf %698 : vector<4x16x128xf32> to vector<4x16x128xbf16>
    %cst_167 = arith.constant 2.000000e-01 : f32
    %700 = vector.broadcast %cst_167 : f32 to vector<4x16x16xf32>
    %701 = arith.mulf %700, %697 : vector<4x16x16xf32>
    %702 = arith.maximumf %697, %701 : vector<4x16x16xf32>
    %703 = vector.shape_cast %1 : vector<16x16xf32> to vector<1x16x16xf32>
    %704 = vector.broadcast %703 : vector<1x16x16xf32> to vector<4x16x16xf32>
    %705 = arith.addf %702, %704 : vector<4x16x16xf32>
    %cst_168 = arith.constant dense<0xFF800000> : vector<4x16xf32>
    %706 = vector.multi_reduction <maximumf>, %705, %cst_168 [2] : vector<4x16x16xf32> to vector<4x16xf32>
    %707 = vector.shape_cast %706 : vector<4x16xf32> to vector<4x16x1xf32>
    %708 = vector.broadcast %707 : vector<4x16x1xf32> to vector<4x16x16xf32>
    %709 = arith.subf %705, %708 : vector<4x16x16xf32>
    %710 = math.exp %709 : vector<4x16x16xf32>
    %cst_169 = arith.constant dense<0.000000e+00> : vector<4x16xf32>
    %711 = vector.multi_reduction <add>, %710, %cst_169 [2] : vector<4x16x16xf32> to vector<4x16xf32>
    %712 = vector.shape_cast %711 : vector<4x16xf32> to vector<4x16x1xf32>
    %713 = tpu.reciprocal %712 {approx = true} : vector<4x16x1xf32> -> vector<4x16x1xf32>
    %714 = vector.broadcast %713 : vector<4x16x1xf32> to vector<4x16x16xf32>
    %715 = arith.mulf %710, %714 : vector<4x16x16xf32>
    %716 = arith.truncf %715 : vector<4x16x16xf32> to vector<4x16x16xbf16>
    "tpu.trace_start"() <{level = 10 : i32, message = "hnm,hmd->hnd"}> : () -> ()
    %cst_170 = arith.constant dense<0.000000e+00> : vector<4x16x128xf32>
    %717 = tpu.matmul %716, %699, %cst_170 {dimension_numbers = #tpu.dot_dimension_numbers<[2], [1], [1], [2], [0, 0, 0, 1, 1, 2], [0], [0]>} : vector<4x16x16xbf16>, vector<4x16x128xbf16>, vector<4x16x128xf32> -> vector<4x16x128xf32>
    "tpu.trace_stop"() : () -> ()
    %718 = vector.extract_strided_slice %717 {offsets = [0, 0, 0], sizes = [1, 16, 128], strides = [1, 1, 1]} : vector<4x16x128xf32> to vector<1x16x128xf32>
    %719 = vector.shape_cast %718 : vector<1x16x128xf32> to vector<16x128xf32>
    %720 = vector.extract_strided_slice %717 {offsets = [1, 0, 0], sizes = [1, 16, 128], strides = [1, 1, 1]} : vector<4x16x128xf32> to vector<1x16x128xf32>
    %721 = vector.shape_cast %720 : vector<1x16x128xf32> to vector<16x128xf32>
    %722 = arith.addf %719, %721 : vector<16x128xf32>
    %723 = vector.extract_strided_slice %717 {offsets = [2, 0, 0], sizes = [1, 16, 128], strides = [1, 1, 1]} : vector<4x16x128xf32> to vector<1x16x128xf32>
    %724 = vector.shape_cast %723 : vector<1x16x128xf32> to vector<16x128xf32>
    %725 = arith.addf %722, %724 : vector<16x128xf32>
    %726 = vector.extract_strided_slice %717 {offsets = [3, 0, 0], sizes = [1, 16, 128], strides = [1, 1, 1]} : vector<4x16x128xf32> to vector<1x16x128xf32>
    %727 = vector.shape_cast %726 : vector<1x16x128xf32> to vector<16x128xf32>
    %728 = arith.addf %725, %727 : vector<16x128xf32>
    %c34_171 = arith.constant 34 : index
    %c0_172 = arith.constant 0 : index
    %729 = vector.load %arg4[%c34_171, %c0_172] : memref<56x128xf32, #tpu.memory_space<vmem>>, vector<1x128xf32>
    %730 = vector.broadcast %729 : vector<1x128xf32> to vector<16x128xf32>
    %731 = arith.addf %728, %730 : vector<16x128xf32>
    %732 = arith.addf %731, %647 : vector<16x128xf32>
    %733 = vector.broadcast %66 : vector<1x128xf32> to vector<16x128xf32>
    %734 = arith.addf %733, %732 : vector<16x128xf32>
    %cst_173 = arith.constant dense<0.000000e+00> : vector<16xf32>
    %735 = vector.multi_reduction <add>, %734, %cst_173 [1] : vector<16x128xf32> to vector<16xf32>
    %736 = vector.shape_cast %735 : vector<16xf32> to vector<16x1xf32>
    %cst_174 = arith.constant 1.280000e+02 : f32
    %737 = vector.broadcast %cst_174 : f32 to vector<16x1xf32>
    %738 = arith.divf %736, %737 : vector<16x1xf32>
    %739 = vector.broadcast %738 : vector<16x1xf32> to vector<16x128xf32>
    %740 = arith.subf %734, %739 : vector<16x128xf32>
    %741 = arith.mulf %740, %740 : vector<16x128xf32>
    %cst_175 = arith.constant dense<0.000000e+00> : vector<16xf32>
    %742 = vector.multi_reduction <add>, %741, %cst_175 [1] : vector<16x128xf32> to vector<16xf32>
    %743 = vector.shape_cast %742 : vector<16xf32> to vector<16x1xf32>
    %cst_176 = arith.constant 1.280000e+02 : f32
    %744 = vector.broadcast %cst_176 : f32 to vector<16x1xf32>
    %745 = arith.divf %743, %744 : vector<16x1xf32>
    %746 = vector.broadcast %738 : vector<16x1xf32> to vector<16x128xf32>
    %747 = arith.subf %734, %746 : vector<16x128xf32>
    %cst_177 = arith.constant 9.99999974E-6 : f32
    %748 = vector.broadcast %cst_177 : f32 to vector<16x1xf32>
    %749 = arith.addf %745, %748 : vector<16x1xf32>
    %750 = math.rsqrt %749 : vector<16x1xf32>
    %751 = vector.broadcast %750 : vector<16x1xf32> to vector<16x128xf32>
    %752 = arith.mulf %747, %751 : vector<16x128xf32>
    %753 = vector.broadcast %5 : vector<1x128xf32> to vector<16x128xf32>
    %754 = arith.mulf %752, %753 : vector<16x128xf32>
    %755 = vector.broadcast %6 : vector<1x128xf32> to vector<16x128xf32>
    %756 = arith.addf %754, %755 : vector<16x128xf32>
    %cst_178 = arith.constant dense<0.000000e+00> : vector<128xf32>
    %757 = vector.multi_reduction <add>, %732, %cst_178 [0] : vector<16x128xf32> to vector<128xf32>
    %758 = vector.shape_cast %757 : vector<128xf32> to vector<1x128xf32>
    %cst_179 = arith.constant 1.600000e+01 : f32
    %759 = vector.broadcast %cst_179 : f32 to vector<1x128xf32>
    %760 = arith.divf %758, %759 : vector<1x128xf32>
    %761 = arith.truncf %760 : vector<1x128xf32> to vector<1x128xbf16>
    %cst_180 = arith.constant dense<0.000000e+00> : vector<1x128xf32>
    %762 = tpu.matmul %761, %2, %cst_180 {dimension_numbers = #tpu.dot_dimension_numbers<[1], [0], [0], [1], [0, 0, 1, 1], [], []>} : vector<1x128xbf16>, vector<128x128xbf16>, vector<1x128xf32> -> vector<1x128xf32>
    %763 = arith.addf %762, %3 : vector<1x128xf32>
    %764 = vector.broadcast %763 : vector<1x128xf32> to vector<16x128xf32>
    %765 = arith.addf %764, %756 : vector<16x128xf32>
    %cst_181 = arith.constant dense<0.000000e+00> : vector<16xf32>
    %766 = vector.multi_reduction <add>, %765, %cst_181 [1] : vector<16x128xf32> to vector<16xf32>
    %767 = vector.shape_cast %766 : vector<16xf32> to vector<16x1xf32>
    %cst_182 = arith.constant 1.280000e+02 : f32
    %768 = vector.broadcast %cst_182 : f32 to vector<16x1xf32>
    %769 = arith.divf %767, %768 : vector<16x1xf32>
    %770 = vector.broadcast %769 : vector<16x1xf32> to vector<16x128xf32>
    %771 = arith.subf %765, %770 : vector<16x128xf32>
    %772 = arith.mulf %771, %771 : vector<16x128xf32>
    %cst_183 = arith.constant dense<0.000000e+00> : vector<16xf32>
    %773 = vector.multi_reduction <add>, %772, %cst_183 [1] : vector<16x128xf32> to vector<16xf32>
    %774 = vector.shape_cast %773 : vector<16xf32> to vector<16x1xf32>
    %cst_184 = arith.constant 1.280000e+02 : f32
    %775 = vector.broadcast %cst_184 : f32 to vector<16x1xf32>
    %776 = arith.divf %774, %775 : vector<16x1xf32>
    %777 = vector.broadcast %769 : vector<16x1xf32> to vector<16x128xf32>
    %778 = arith.subf %765, %777 : vector<16x128xf32>
    %cst_185 = arith.constant 9.99999974E-6 : f32
    %779 = vector.broadcast %cst_185 : f32 to vector<16x1xf32>
    %780 = arith.addf %776, %779 : vector<16x1xf32>
    %781 = math.rsqrt %780 : vector<16x1xf32>
    %782 = vector.broadcast %781 : vector<16x1xf32> to vector<16x128xf32>
    %783 = arith.mulf %778, %782 : vector<16x128xf32>
    %784 = vector.broadcast %5 : vector<1x128xf32> to vector<16x128xf32>
    %785 = arith.mulf %783, %784 : vector<16x128xf32>
    %786 = vector.broadcast %6 : vector<1x128xf32> to vector<16x128xf32>
    %787 = arith.addf %785, %786 : vector<16x128xf32>
    %c896_186 = arith.constant 896 : index
    %c0_187 = arith.constant 0 : index
    %788 = vector.load %arg3[%c896_186, %c0_187] : memref<1152x128xbf16, #tpu.memory_space<vmem>>, vector<128x128xbf16>
    %789 = arith.truncf %787 : vector<16x128xf32> to vector<16x128xbf16>
    %cst_188 = arith.constant dense<0.000000e+00> : vector<16x128xf32>
    %790 = tpu.matmul %789, %788, %cst_188 {dimension_numbers = #tpu.dot_dimension_numbers<[1], [0], [0], [1], [0, 0, 1, 1], [], []>} : vector<16x128xbf16>, vector<128x128xbf16>, vector<16x128xf32> -> vector<16x128xf32>
    %c45_189 = arith.constant 45 : index
    %c0_190 = arith.constant 0 : index
    %791 = vector.load %arg4[%c45_189, %c0_190] : memref<56x128xf32, #tpu.memory_space<vmem>>, vector<1x128xf32>
    %792 = vector.broadcast %791 : vector<1x128xf32> to vector<16x128xf32>
    %793 = arith.addf %790, %792 : vector<16x128xf32>
    %c128_191 = arith.constant 128 : index
    %c0_192 = arith.constant 0 : index
    %794 = vector.load %arg5[%c128_191, %c0_192] : memref<256x32xbf16, #tpu.memory_space<vmem>>, vector<128x32xbf16>
    %c32_193 = arith.constant 32 : index
    %c0_194 = arith.constant 0 : index
    %795 = vector.load %arg6[%c32_193, %c0_194] : memref<64x32xbf16, #tpu.memory_space<vmem>>, vector<32x32xbf16>
    %c32_195 = arith.constant 32 : index
    %c0_196 = arith.constant 0 : index
    %796 = vector.load %arg7[%c32_195, %c0_196] : memref<64x128xbf16, #tpu.memory_space<vmem>>, vector<32x128xbf16>
    %797 = arith.truncf %793 : vector<16x128xf32> to vector<16x128xbf16>
    %cst_197 = arith.constant dense<0.000000e+00> : vector<16x32xf32>
    %798 = tpu.matmul %797, %794, %cst_197 {dimension_numbers = #tpu.dot_dimension_numbers<[1], [0], [0], [1], [0, 0, 1, 1], [], []>} : vector<16x128xbf16>, vector<128x32xbf16>, vector<16x32xf32> -> vector<16x32xf32>
    %c6 = arith.constant 6 : index
    %c0_198 = arith.constant 0 : index
    %799 = vector.load %arg8[%c6, %c0_198] : memref<12x32xf32, #tpu.memory_space<vmem>>, vector<1x32xf32>
    %800 = vector.broadcast %799 : vector<1x32xf32> to vector<16x32xf32>
    %801 = arith.addf %798, %800 : vector<16x32xf32>
    %c7 = arith.constant 7 : index
    %c0_199 = arith.constant 0 : index
    %802 = vector.load %arg8[%c7, %c0_199] : memref<12x32xf32, #tpu.memory_space<vmem>>, vector<1x32xf32>
    %c8_200 = arith.constant 8 : index
    %c0_201 = arith.constant 0 : index
    %803 = vector.load %arg8[%c8_200, %c0_201] : memref<12x32xf32, #tpu.memory_space<vmem>>, vector<1x32xf32>
    %cst_202 = arith.constant dense<0.000000e+00> : vector<16xf32>
    %804 = vector.multi_reduction <add>, %801, %cst_202 [1] : vector<16x32xf32> to vector<16xf32>
    %805 = vector.shape_cast %804 : vector<16xf32> to vector<16x1xf32>
    %cst_203 = arith.constant 3.200000e+01 : f32
    %806 = vector.broadcast %cst_203 : f32 to vector<16x1xf32>
    %807 = arith.divf %805, %806 : vector<16x1xf32>
    %808 = vector.broadcast %807 : vector<16x1xf32> to vector<16x32xf32>
    %809 = arith.subf %801, %808 : vector<16x32xf32>
    %810 = arith.mulf %809, %809 : vector<16x32xf32>
    %cst_204 = arith.constant dense<0.000000e+00> : vector<16xf32>
    %811 = vector.multi_reduction <add>, %810, %cst_204 [1] : vector<16x32xf32> to vector<16xf32>
    %812 = vector.shape_cast %811 : vector<16xf32> to vector<16x1xf32>
    %cst_205 = arith.constant 3.200000e+01 : f32
    %813 = vector.broadcast %cst_205 : f32 to vector<16x1xf32>
    %814 = arith.divf %812, %813 : vector<16x1xf32>
    %815 = vector.broadcast %807 : vector<16x1xf32> to vector<16x32xf32>
    %816 = arith.subf %801, %815 : vector<16x32xf32>
    %cst_206 = arith.constant 9.99999974E-6 : f32
    %817 = vector.broadcast %cst_206 : f32 to vector<16x1xf32>
    %818 = arith.addf %814, %817 : vector<16x1xf32>
    %819 = math.rsqrt %818 : vector<16x1xf32>
    %820 = vector.broadcast %819 : vector<16x1xf32> to vector<16x32xf32>
    %821 = arith.mulf %816, %820 : vector<16x32xf32>
    %822 = vector.broadcast %802 : vector<1x32xf32> to vector<16x32xf32>
    %823 = arith.mulf %821, %822 : vector<16x32xf32>
    %824 = vector.broadcast %803 : vector<1x32xf32> to vector<16x32xf32>
    %825 = arith.addf %823, %824 : vector<16x32xf32>
    %cst_207 = arith.constant 0.000000e+00 : f32
    %826 = vector.broadcast %cst_207 : f32 to vector<16x32xf32>
    %827 = arith.maximumf %825, %826 : vector<16x32xf32>
    %828 = arith.truncf %827 : vector<16x32xf32> to vector<16x32xbf16>
    %cst_208 = arith.constant dense<0.000000e+00> : vector<16x32xf32>
    %829 = tpu.matmul %828, %795, %cst_208 {dimension_numbers = #tpu.dot_dimension_numbers<[1], [0], [0], [1], [0, 0, 1, 1], [], []>} : vector<16x32xbf16>, vector<32x32xbf16>, vector<16x32xf32> -> vector<16x32xf32>
    %c9 = arith.constant 9 : index
    %c0_209 = arith.constant 0 : index
    %830 = vector.load %arg8[%c9, %c0_209] : memref<12x32xf32, #tpu.memory_space<vmem>>, vector<1x32xf32>
    %831 = vector.broadcast %830 : vector<1x32xf32> to vector<16x32xf32>
    %832 = arith.addf %829, %831 : vector<16x32xf32>
    %c10 = arith.constant 10 : index
    %c0_210 = arith.constant 0 : index
    %833 = vector.load %arg8[%c10, %c0_210] : memref<12x32xf32, #tpu.memory_space<vmem>>, vector<1x32xf32>
    %c11 = arith.constant 11 : index
    %c0_211 = arith.constant 0 : index
    %834 = vector.load %arg8[%c11, %c0_211] : memref<12x32xf32, #tpu.memory_space<vmem>>, vector<1x32xf32>
    %cst_212 = arith.constant dense<0.000000e+00> : vector<16xf32>
    %835 = vector.multi_reduction <add>, %832, %cst_212 [1] : vector<16x32xf32> to vector<16xf32>
    %836 = vector.shape_cast %835 : vector<16xf32> to vector<16x1xf32>
    %cst_213 = arith.constant 3.200000e+01 : f32
    %837 = vector.broadcast %cst_213 : f32 to vector<16x1xf32>
    %838 = arith.divf %836, %837 : vector<16x1xf32>
    %839 = vector.broadcast %838 : vector<16x1xf32> to vector<16x32xf32>
    %840 = arith.subf %832, %839 : vector<16x32xf32>
    %841 = arith.mulf %840, %840 : vector<16x32xf32>
    %cst_214 = arith.constant dense<0.000000e+00> : vector<16xf32>
    %842 = vector.multi_reduction <add>, %841, %cst_214 [1] : vector<16x32xf32> to vector<16xf32>
    %843 = vector.shape_cast %842 : vector<16xf32> to vector<16x1xf32>
    %cst_215 = arith.constant 3.200000e+01 : f32
    %844 = vector.broadcast %cst_215 : f32 to vector<16x1xf32>
    %845 = arith.divf %843, %844 : vector<16x1xf32>
    %846 = vector.broadcast %838 : vector<16x1xf32> to vector<16x32xf32>
    %847 = arith.subf %832, %846 : vector<16x32xf32>
    %cst_216 = arith.constant 9.99999974E-6 : f32
    %848 = vector.broadcast %cst_216 : f32 to vector<16x1xf32>
    %849 = arith.addf %845, %848 : vector<16x1xf32>
    %850 = math.rsqrt %849 : vector<16x1xf32>
    %851 = vector.broadcast %850 : vector<16x1xf32> to vector<16x32xf32>
    %852 = arith.mulf %847, %851 : vector<16x32xf32>
    %853 = vector.broadcast %833 : vector<1x32xf32> to vector<16x32xf32>
    %854 = arith.mulf %852, %853 : vector<16x32xf32>
    %855 = vector.broadcast %834 : vector<1x32xf32> to vector<16x32xf32>
    %856 = arith.addf %854, %855 : vector<16x32xf32>
    %cst_217 = arith.constant 0.000000e+00 : f32
    %857 = vector.broadcast %cst_217 : f32 to vector<16x32xf32>
    %858 = arith.maximumf %856, %857 : vector<16x32xf32>
    %859 = arith.truncf %858 : vector<16x32xf32> to vector<16x32xbf16>
    %cst_218 = arith.constant dense<0.000000e+00> : vector<16x128xf32>
    %860 = tpu.matmul %859, %796, %cst_218 {dimension_numbers = #tpu.dot_dimension_numbers<[1], [0], [0], [1], [0, 0, 1, 1], [], []>} : vector<16x32xbf16>, vector<32x128xbf16>, vector<16x128xf32> -> vector<16x128xf32>
    %c47 = arith.constant 47 : index
    %c0_219 = arith.constant 0 : index
    %861 = vector.load %arg4[%c47, %c0_219] : memref<56x128xf32, #tpu.memory_space<vmem>>, vector<1x128xf32>
    %862 = vector.broadcast %861 : vector<1x128xf32> to vector<16x128xf32>
    %863 = arith.addf %860, %862 : vector<16x128xf32>
    %c0_220 = arith.constant 0 : index
    %c0_221 = arith.constant 0 : index
    %864 = vector.load %arg10[%c0_220, %c0_221] : memref<16x128xf32, #tpu.memory_space<vmem>>, vector<16x128xf32>
    tpu.vector_store %arg10[%c0_220, %c0_221], %863 {strides = array<i32>} : memref<16x128xf32, #tpu.memory_space<vmem>>, vector<16x128xf32>,
    return
  }
}

</mosaic_0001>

<llo_original>
// kernel: _lambda_.1
$region0: #{_lambda_.1}
  #allocation0 [shape = 'u32[]', space=smem, size = 0x4, offset = 0x4, fixed_abs, tag = 'smem constant byte address 0x4 - core index']
  #allocation1 [shape = 'u32[144,128]{1,0:T(1,128)}', space=vmem, size = 0x12000, scoped, tag = 'internal scratch']
  %s0 = inlined_call_operand.vmem [shape: f32[16,128], index: 0, kind: input, shape index: {}]
  %s1 = inlined_call_operand.hbm [shape: f32[16,16], index: 1, kind: input, shape index: {}]
  %s2 = inlined_call_operand.vmem [shape: f32[1,128], index: 2, kind: input, shape index: {}]
  %s3 = inlined_call_operand.hbm [shape: bf16[1152,128], index: 3, kind: input, shape index: {}]
  %s4 = inlined_call_operand.vmem [shape: f32[56,128], index: 4, kind: input, shape index: {}]
  %s5 = inlined_call_operand.vmem [shape: bf16[256,32], index: 5, kind: input, shape index: {}]
  %s6 = inlined_call_operand.hbm [shape: bf16[64,32], index: 6, kind: input, shape index: {}]
  %s7 = inlined_call_operand.hbm [shape: bf16[64,128], index: 7, kind: input, shape index: {}]
  %s8 = inlined_call_operand.vmem [shape: f32[12,32], index: 8, kind: input, shape index: {}]
  %s9 = inlined_call_operand.vmem [shape: f32[16,128], index: 9, kind: output, shape index: {0}]
  %s10 = inlined_call_operand.vmem [shape: f32[16,128], index: 10, kind: output, shape index: {1}]
  %11 = xla_tuple %s9, %s10
  %s12 = sld [smem:[#allocation0]]
  $region70: #{_lambda_.1} parent=0
    _
  %s14 = ssub.s32 1, %s12
  %s15 = scalar_select 0, %s14, %s12
  $region1: #{_lambda_.1} parent=0
    #allocation2 [shape = 'u8[8192]{0}', space=vmem, size = 0x2000, scoped, tag = 'input window, operand 1, single buffered']
    #allocation3 [shape = 's32[1]{0}', space=sflag, size = 0x4, scoped, tag = 'scoped memory for _lambda_.1']
    #allocation4 [shape = 'u8[294912]{0}', space=vmem, size = 0x48000, scoped, tag = 'input window, operand 3, single buffered']
    #allocation5 [shape = 's32[1]{0}', space=sflag, size = 0x4, scoped, tag = 'scoped memory for _lambda_.1']
    #allocation6 [shape = 'u8[16384]{0}', space=vmem, size = 0x4000, scoped, tag = 'input window, operand 6, single buffered']
    #allocation7 [shape = 'u8[16384]{0}', space=vmem, size = 0x4000, scoped, tag = 'input window, operand 7, single buffered']
    #allocation8 [shape = 's32[1]{0}', space=sflag, size = 0x4, scoped, tag = 'scoped memory for _lambda_.1']
    %16 = vsyncpa [#allocation3], 0
    %17 = vsyncpa [#allocation5], 0
    %18 = vsyncpa [#allocation8], 0
    // Predicated region
    $region2: #{_lambda_.1} parent=1 // pred_check
      _
    $region3: #{_lambda_.1} parent=1 // pred_check_branch
      %20 = sbr.rel (0) target = $region5
    $region4: #{_lambda_.1} parent=1 // pred_region
      _
    $region5: #{_lambda_.1} parent=1 // pred_fallthru
      _
    // Predicated region
    $region6: #{_lambda_.1} parent=1 // pred_check
      _
    $region7: #{_lambda_.1} parent=1 // pred_check_branch
      %22 = sbr.rel (0) target = $region9
    $region8: #{_lambda_.1} parent=1 // pred_region
      %s24 = ssub.s32 256, 256
      %25 = vsyncadd [#allocation3], %s24
      %s26 = sshll.u32 [#allocation2], 4
      %s27 = int_to_ptr.vmem [resolvable:$true] %s26
      %32 = dma.hbm_to_vmem [thread:$0]  %s1, 256, %s27, [#allocation3], 128, 128, 8
    $region9: #{_lambda_.1} parent=1 // pred_fallthru
      _
    // Predicated region
    $region10: #{_lambda_.1} parent=1 // pred_check
      _
    $region11: #{_lambda_.1} parent=1 // pred_check_branch
      %34 = sbr.rel (0) target = $region13
    $region12: #{_lambda_.1} parent=1 // pred_region
      _
    $region13: #{_lambda_.1} parent=1 // pred_fallthru
      _
    // Predicated region
    $region14: #{_lambda_.1} parent=1 // pred_check
      _
    $region15: #{_lambda_.1} parent=1 // pred_check_branch
      %36 = sbr.rel (0) target = $region17
    $region16: #{_lambda_.1} parent=1 // pred_region
      %s38 = ssub.s32 9216, 9216
      %39 = vsyncadd [#allocation5], %s38
      %s40 = sshll.u32 [#allocation4], 4
      %s41 = int_to_ptr.vmem [resolvable:$true] %s40
      %46 = dma.hbm_to_vmem [thread:$0]  %s3, 9216, %s41, [#allocation5], 64, 64, 4
    $region17: #{_lambda_.1} parent=1 // pred_fallthru
      _
    // Predicated region
    $region18: #{_lambda_.1} parent=1 // pred_check
      _
    $region19: #{_lambda_.1} parent=1 // pred_check_branch
      %48 = sbr.rel (0) target = $region21
    $region20: #{_lambda_.1} parent=1 // pred_region
      _
    $region21: #{_lambda_.1} parent=1 // pred_fallthru
      _
    // Predicated region
    $region22: #{_lambda_.1} parent=1 // pred_check
      _
    $region23: #{_lambda_.1} parent=1 // pred_check_branch
      %50 = sbr.rel (0) target = $region25
    $region24: #{_lambda_.1} parent=1 // pred_region
      _
    $region25: #{_lambda_.1} parent=1 // pred_fallthru
      _
    // Predicated region
    $region26: #{_lambda_.1} parent=1 // pred_check
      _
    $region27: #{_lambda_.1} parent=1 // pred_check_branch
      %52 = sbr.rel (0) target = $region29
    $region28: #{_lambda_.1} parent=1 // pred_region
      %s54 = ssub.s32 512, 512
      %55 = vsyncadd [#allocation5], %s54
      %s56 = sshll.u32 [#allocation6], 4
      %s57 = int_to_ptr.vmem [resolvable:$true] %s56
      %62 = dma.hbm_to_vmem [thread:$0]  %s6, 512, %s57, [#allocation5], 64, 64, 4
    $region29: #{_lambda_.1} parent=1 // pred_fallthru
      _
    // Predicated region
    $region30: #{_lambda_.1} parent=1 // pred_check
      _
    $region31: #{_lambda_.1} parent=1 // pred_check_branch
      %64 = sbr.rel (0) target = $region33
    $region32: #{_lambda_.1} parent=1 // pred_region
      %s66 = ssub.s32 512, 512
      %67 = vsyncadd [#allocation8], %s66
      %s68 = sshll.u32 [#allocation7], 4
      %s69 = int_to_ptr.vmem [resolvable:$true] %s68
      %74 = dma.hbm_to_vmem [thread:$0]  %s7, 512, %s69, [#allocation8], 64, 64, 4
    $region33: #{_lambda_.1} parent=1 // pred_fallthru
      _
    // Predicated region
    $region34: #{_lambda_.1} parent=1 // pred_check
      _
    $region35: #{_lambda_.1} parent=1 // pred_check_branch
      %76 = sbr.rel (0) target = $region37
    $region36: #{_lambda_.1} parent=1 // pred_region
      _
    $region37: #{_lambda_.1} parent=1 // pred_fallthru
      _
    // Predicated region
    $region38: #{_lambda_.1} parent=1 // pred_check
      _
    $region39: #{_lambda_.1} parent=1 // pred_check_branch
      %78 = sbr.rel (0) target = $region41
    $region40: #{_lambda_.1} parent=1 // pred_region
      %79 = dma.done [#allocation3], 256
    $region41: #{_lambda_.1} parent=1 // pred_fallthru
      _
    // Predicated region
    $region42: #{_lambda_.1} parent=1 // pred_check
      _
    $region43: #{_lambda_.1} parent=1 // pred_check_branch
      %81 = sbr.rel (0) target = $region45
    $region44: #{_lambda_.1} parent=1 // pred_region
      %82 = dma.done [#allocation5], 9216
    $region45: #{_lambda_.1} parent=1 // pred_fallthru
      _
    // Predicated region
    $region46: #{_lambda_.1} parent=1 // pred_check
      _
    $region47: #{_lambda_.1} parent=1 // pred_check_branch
      %84 = sbr.rel (0) target = $region49
    $region48: #{_lambda_.1} parent=1 // pred_region
      %85 = dma.done [#allocation5], 512
    $region49: #{_lambda_.1} parent=1 // pred_fallthru
      _
    // Predicated region
    $region50: #{_lambda_.1} parent=1 // pred_check
      _
    $region51: #{_lambda_.1} parent=1 // pred_check_branch
      %87 = sbr.rel (0) target = $region53
    $region52: #{_lambda_.1} parent=1 // pred_region
      %88 = dma.done [#allocation8], 512
    $region53: #{_lambda_.1} parent=1 // pred_fallthru
      _
    %v90 = vld [vmem:[%s0] sm:$0xff]
    %v91 = vld [vmem:[%s0 + $0x8] sm:$0xff]
    %v92 = vld [vmem:[#allocation2] sm:$0xff]
    %v93 = vld [vmem:[#allocation2 + $0x8] sm:$0xff]
    %v94 = vld [vmem:[#allocation4 + $0x180] sm:$0xf]
    %v95 = vld [vmem:[#allocation4 + $0x184] sm:$0xf]
    %v96 = vld [vmem:[#allocation4 + $0x188] sm:$0xf]
    %v97 = vld [vmem:[#allocation4 + $0x18c] sm:$0xf]
    %v98 = vld [vmem:[#allocation4 + $0x190] sm:$0xf]
    %v99 = vld [vmem:[#allocation4 + $0x194] sm:$0xf]
    %v100 = vld [vmem:[#allocation4 + $0x198] sm:$0xf]
    %v101 = vld [vmem:[#allocation4 + $0x19c] sm:$0xf]
    %v102 = vld [vmem:[#allocation4 + $0x1a0] sm:$0xf]
    %v103 = vld [vmem:[#allocation4 + $0x1a4] sm:$0xf]
    %v104 = vld [vmem:[#allocation4 + $0x1a8] sm:$0xf]
    %v105 = vld [vmem:[#allocation4 + $0x1ac] sm:$0xf]
    %v106 = vld [vmem:[#allocation4 + $0x1b0] sm:$0xf]
    %v107 = vld [vmem:[#allocation4 + $0x1b4] sm:$0xf]
    %v108 = vld [vmem:[#allocation4 + $0x1b8] sm:$0xf]
    %v109 = vld [vmem:[#allocation4 + $0x1bc] sm:$0xf]
    %v110 = vld [vmem:[%s4 + $0x2a] sm:$0x1]
    %v111 = vld [vmem:[%s4] sm:$0xf]
    %v112 = vld [vmem:[%s4 + $0x2b] sm:$0x1]
    %v113 = vld [vmem:[%s4 + $0x2c] sm:$0x1]
    %v114 = vld [vmem:[%s2] sm:$0x1]
    %v115 = vld [vmem:[#allocation4] sm:$0xf]
    %v116 = vld [vmem:[#allocation4 + $0x4] sm:$0xf]
    %v117 = vld [vmem:[#allocation4 + $0x8] sm:$0xf]
    %v118 = vld [vmem:[#allocation4 + $0xc] sm:$0xf]
    %v119 = vld [vmem:[#allocation4 + $0x10] sm:$0xf]
    %v120 = vld [vmem:[#allocation4 + $0x14] sm:$0xf]
    %v121 = vld [vmem:[#allocation4 + $0x18] sm:$0xf]
    %v122 = vld [vmem:[#allocation4 + $0x1c] sm:$0xf]
    %v123 = vld [vmem:[#allocation4 + $0x20] sm:$0xf]
    %v124 = vld [vmem:[#allocation4 + $0x24] sm:$0xf]
    %v125 = vld [vmem:[#allocation4 + $0x28] sm:$0xf]
    %v126 = vld [vmem:[#allocation4 + $0x2c] sm:$0xf]
    %v127 = vld [vmem:[#allocation4 + $0x30] sm:$0xf]
    %v128 = vld [vmem:[#allocation4 + $0x34] sm:$0xf]
    %v129 = vld [vmem:[#allocation4 + $0x38] sm:$0xf]
    %v130 = vld [vmem:[#allocation4 + $0x3c] sm:$0xf]
    %v131 = vpack.c.bf16 %v114, %v114
    %v132 = vld [vmem:[%s4 + $0x23] sm:$0x1]
    %v149 = vunpack.c.l.b16 %v115
    %v150 = vunpack.c.l.b16 %v116
    %v151 = vunpack.c.l.b16 %v117
    %v152 = vunpack.c.l.b16 %v118
    %v153 = vunpack.c.l.b16 %v119
    %v154 = vunpack.c.l.b16 %v120
    %v155 = vunpack.c.l.b16 %v121
    %v156 = vunpack.c.l.b16 %v122
    %v157 = vunpack.c.l.b16 %v123
    %v158 = vunpack.c.l.b16 %v124
    %v159 = vunpack.c.l.b16 %v125
    %v160 = vunpack.c.l.b16 %v126
    %v161 = vunpack.c.l.b16 %v127
    %v162 = vunpack.c.l.b16 %v128
    %v163 = vunpack.c.l.b16 %v129
    %v164 = vunpack.c.l.b16 %v130
    %v165 = vpack.c.b16 %v150, %v149
    %v166 = vpack.c.b16 %v152, %v151
    %v167 = vpack.c.b16 %v154, %v153
    %v168 = vpack.c.b16 %v156, %v155
    %v169 = vpack.c.b16 %v158, %v157
    %v170 = vpack.c.b16 %v160, %v159
    %v171 = vpack.c.b16 %v162, %v161
    %v172 = vpack.c.b16 %v164, %v163
    %181 = vmatprep.subr.bf16.mxu0 0
    %182 = vmatpush1.bf16.msra.mxu0 %v172
    %183 = vmatprep.subr.bf16.mxu0 0
    %184 = vmatpush1.bf16.msra.mxu0 %v171
    %185 = vmatprep.subr.bf16.mxu0 0
    %186 = vmatpush1.bf16.msra.mxu0 %v170
    %187 = vmatprep.subr.bf16.mxu0 0
    %188 = vmatpush1.bf16.msra.mxu0 %v169
    %189 = vmatprep.subr.bf16.mxu0 0
    %190 = vmatpush1.bf16.msra.mxu0 %v168
    %191 = vmatprep.subr.bf16.mxu0 0
    %192 = vmatpush1.bf16.msra.mxu0 %v167
    %193 = vmatprep.subr.bf16.mxu0 0
    %194 = vmatpush1.bf16.msra.mxu0 %v166
    %195 = vmatprep.subr.bf16.mxu0 0
    %196 = vmatpush1.bf16.msra.mxu0 %v165
    %197 = vmatprep.subr.bf16.mxu0 0
    %198 = vmatpush2.bf16.msra.mxu0 0
    %199 = vmatprep.subr.bf16.mxu0 0
    %200 = vmatpush2.bf16.msra.mxu0 0
    %201 = vmatprep.subr.bf16.mxu0 0
    %202 = vmatpush2.bf16.msra.mxu0 0
    %203 = vmatprep.subr.bf16.mxu0 0
    %204 = vmatpush2.bf16.msra.mxu0 0
    %205 = vmatprep.subr.bf16.mxu0 0
    %206 = vmatpush2.bf16.msra.mxu0 0
    %207 = vmatprep.subr.bf16.mxu0 0
    %208 = vmatpush2.bf16.msra.mxu0 0
    %209 = vmatprep.subr.bf16.mxu0 0
    %210 = vmatpush2.bf16.msra.mxu0 0
    %211 = vmatprep.subr.bf16.mxu0 0
    %212 = vmatpush2.bf16.msra.mxu0 0
    %213 = vmatprep.mubr.bf16.mxu0 0
    %214 = vmatmul.mubr.bf16.gmra.mxu0 %v131
    %v215 = vpop.f32.mrf.mxu0
    %v216 = vadd.f32 %v132, %v215
    %v217 = vpop.f32.mrf.mxu0
    %v218 = vpop.f32.mrf.mxu0
    %v219 = vpop.f32.mrf.mxu0
    %220 = vdwg.mxu0
    %v221 = vld [vmem:[%s4 + $0x24] sm:$0x1]
    %v222 = vld [vmem:[%s4 + $0x25] sm:$0x1]
    %vm223 = vcmask 1040384
    %v224 = vsel %vm223, %v216, 0.0
    %225 = vadd.xlane.f32.xlu0 %v224
    %v226 = vpop.xlane.xlu0 %225
    %v227 = vrcp.pop 128.0
    %v228 = vmul.f32 %v226, %v227
    %v229 = vsub.f32 %v216, %v228
    %v230 = vmul.f32 %v229, %v229
    %v231 = vsel %vm223, %v230, 0.0
    %232 = vadd.xlane.f32.xlu0 %v231
    %v233 = vpop.xlane.xlu0 %232
    %v234 = vmul.f32 %v233, %v227
    %v235 = vadd.f32 %v234, 1e-05
    %v236 = vrsqrt.pop %v235
    %v237 = vmul.f32 %v229, %v236
    %v238 = vmul.f32 %v237, %v221
    %v239 = vadd.f32 %v238, %v222
    %v240 = vmax.f32 %v239, 0.0
    %v241 = vld [vmem:[#allocation4 + $0x40] sm:$0xf]
    %v242 = vld [vmem:[#allocation4 + $0x44] sm:$0xf]
    %v243 = vld [vmem:[#allocation4 + $0x48] sm:$0xf]
    %v244 = vld [vmem:[#allocation4 + $0x4c] sm:$0xf]
    %v245 = vld [vmem:[#allocation4 + $0x50] sm:$0xf]
    %v246 = vld [vmem:[#allocation4 + $0x54] sm:$0xf]
    %v247 = vld [vmem:[#allocation4 + $0x58] sm:$0xf]
    %v248 = vld [vmem:[#allocation4 + $0x5c] sm:$0xf]
    %v249 = vld [vmem:[#allocation4 + $0x60] sm:$0xf]
    %v250 = vld [vmem:[#allocation4 + $0x64] sm:$0xf]
    %v251 = vld [vmem:[#allocation4 + $0x68] sm:$0xf]
    %v252 = vld [vmem:[#allocation4 + $0x6c] sm:$0xf]
    %v253 = vld [vmem:[#allocation4 + $0x70] sm:$0xf]
    %v254 = vld [vmem:[#allocation4 + $0x74] sm:$0xf]
    %v255 = vld [vmem:[#allocation4 + $0x78] sm:$0xf]
    %v256 = vld [vmem:[#allocation4 + $0x7c] sm:$0xf]
    %v257 = vpack.c.bf16 %v240, %v240
    %v258 = vld [vmem:[%s4 + $0x26] sm:$0x1]
    %v275 = vunpack.c.l.b16 %v241
    %v276 = vunpack.c.l.b16 %v242
    %v277 = vunpack.c.l.b16 %v243
    %v278 = vunpack.c.l.b16 %v244
    %v279 = vunpack.c.l.b16 %v245
    %v280 = vunpack.c.l.b16 %v246
    %v281 = vunpack.c.l.b16 %v247
    %v282 = vunpack.c.l.b16 %v248
    %v283 = vunpack.c.l.b16 %v249
    %v284 = vunpack.c.l.b16 %v250
    %v285 = vunpack.c.l.b16 %v251
    %v286 = vunpack.c.l.b16 %v252
    %v287 = vunpack.c.l.b16 %v253
    %v288 = vunpack.c.l.b16 %v254
    %v289 = vunpack.c.l.b16 %v255
    %v290 = vunpack.c.l.b16 %v256
    %v291 = vpack.c.b16 %v276, %v275
    %v292 = vpack.c.b16 %v278, %v277
    %v293 = vpack.c.b16 %v280, %v279
    %v294 = vpack.c.b16 %v282, %v281
    %v295 = vpack.c.b16 %v284, %v283
    %v296 = vpack.c.b16 %v286, %v285
    %v297 = vpack.c.b16 %v288, %v287
    %v298 = vpack.c.b16 %v290, %v289
    %307 = vmatprep.subr.bf16.mxu0 0
    %308 = vmatpush1.bf16.msra.mxu0 %v298
    %309 = vmatprep.subr.bf16.mxu0 0
    %310 = vmatpush1.bf16.msra.mxu0 %v297
    %311 = vmatprep.subr.bf16.mxu0 0
    %312 = vmatpush1.bf16.msra.mxu0 %v296
    %313 = vmatprep.subr.bf16.mxu0 0
    %314 = vmatpush1.bf16.msra.mxu0 %v295
    %315 = vmatprep.subr.bf16.mxu0 0
    %316 = vmatpush1.bf16.msra.mxu0 %v294
    %317 = vmatprep.subr.bf16.mxu0 0
    %318 = vmatpush1.bf16.msra.mxu0 %v293
    %319 = vmatprep.subr.bf16.mxu0 0
    %320 = vmatpush1.bf16.msra.mxu0 %v292
    %321 = vmatprep.subr.bf16.mxu0 0
    %322 = vmatpush1.bf16.msra.mxu0 %v291
    %323 = vmatprep.subr.bf16.mxu0 0
    %324 = vmatpush2.bf16.msra.mxu0 0
    %325 = vmatprep.subr.bf16.mxu0 0
    %326 = vmatpush2.bf16.msra.mxu0 0
    %327 = vmatprep.subr.bf16.mxu0 0
    %328 = vmatpush2.bf16.msra.mxu0 0
    %329 = vmatprep.subr.bf16.mxu0 0
    %330 = vmatpush2.bf16.msra.mxu0 0
    %331 = vmatprep.subr.bf16.mxu0 0
    %332 = vmatpush2.bf16.msra.mxu0 0
    %333 = vmatprep.subr.bf16.mxu0 0
    %334 = vmatpush2.bf16.msra.mxu0 0
    %335 = vmatprep.subr.bf16.mxu0 0
    %336 = vmatpush2.bf16.msra.mxu0 0
    %337 = vmatprep.subr.bf16.mxu0 0
    %338 = vmatpush2.bf16.msra.mxu0 0
    %339 = vmatprep.mubr.bf16.mxu0 0
    %340 = vmatmul.mubr.bf16.gmra.mxu0 %v257
    %v341 = vpop.f32.mrf.mxu0
    %v342 = vadd.f32 %v258, %v341
    %v343 = vpop.f32.mrf.mxu0
    %v344 = vpop.f32.mrf.mxu0
    %v345 = vpop.f32.mrf.mxu0
    %346 = vdwg.mxu0
    %v347 = vld [vmem:[%s4 + $0x27] sm:$0x1]
    %v348 = vld [vmem:[%s4 + $0x28] sm:$0x1]
    %v349 = vsel %vm223, %v342, 0.0
    %350 = vadd.xlane.f32.xlu0 %v349
    %v351 = vpop.xlane.xlu0 %350
    %v352 = vmul.f32 %v351, %v227
    %v353 = vsub.f32 %v342, %v352
    %v354 = vmul.f32 %v353, %v353
    %v355 = vsel %vm223, %v354, 0.0
    %356 = vadd.xlane.f32.xlu0 %v355
    %v357 = vpop.xlane.xlu0 %356
    %v358 = vmul.f32 %v357, %v227
    %v359 = vadd.f32 %v358, 1e-05
    %v360 = vrsqrt.pop %v359
    %v361 = vmul.f32 %v353, %v360
    %v362 = vmul.f32 %v361, %v347
    %v363 = vadd.f32 %v362, %v348
    %v364 = vpack.c.bf16 %v363, %v363
    %v381 = vunpack.c.l.b16 %v94
    %v382 = vunpack.c.l.b16 %v95
    %v383 = vunpack.c.l.b16 %v96
    %v384 = vunpack.c.l.b16 %v97
    %v385 = vunpack.c.l.b16 %v98
    %v386 = vunpack.c.l.b16 %v99
    %v387 = vunpack.c.l.b16 %v100
    %v388 = vunpack.c.l.b16 %v101
    %v389 = vunpack.c.l.b16 %v102
    %v390 = vunpack.c.l.b16 %v103
    %v391 = vunpack.c.l.b16 %v104
    %v392 = vunpack.c.l.b16 %v105
    %v393 = vunpack.c.l.b16 %v106
    %v394 = vunpack.c.l.b16 %v107
    %v395 = vunpack.c.l.b16 %v108
    %v396 = vunpack.c.l.b16 %v109
    %v397 = vpack.c.b16 %v382, %v381
    %v398 = vpack.c.b16 %v384, %v383
    %v399 = vpack.c.b16 %v386, %v385
    %v400 = vpack.c.b16 %v388, %v387
    %v401 = vpack.c.b16 %v390, %v389
    %v402 = vpack.c.b16 %v392, %v391
    %v403 = vpack.c.b16 %v394, %v393
    %v404 = vpack.c.b16 %v396, %v395
    %413 = vmatprep.subr.bf16.mxu0 0
    %414 = vmatpush1.bf16.msra.mxu0 %v404
    %415 = vmatprep.subr.bf16.mxu0 0
    %416 = vmatpush1.bf16.msra.mxu0 %v403
    %417 = vmatprep.subr.bf16.mxu0 0
    %418 = vmatpush1.bf16.msra.mxu0 %v402
    %419 = vmatprep.subr.bf16.mxu0 0
    %420 = vmatpush1.bf16.msra.mxu0 %v401
    %421 = vmatprep.subr.bf16.mxu0 0
    %422 = vmatpush1.bf16.msra.mxu0 %v400
    %423 = vmatprep.subr.bf16.mxu0 0
    %424 = vmatpush1.bf16.msra.mxu0 %v399
    %425 = vmatprep.subr.bf16.mxu0 0
    %426 = vmatpush1.bf16.msra.mxu0 %v398
    %427 = vmatprep.subr.bf16.mxu0 0
    %428 = vmatpush1.bf16.msra.mxu0 %v397
    %429 = vmatprep.subr.bf16.mxu0 0
    %430 = vmatpush2.bf16.msra.mxu0 0
    %431 = vmatprep.subr.bf16.mxu0 0
    %432 = vmatpush2.bf16.msra.mxu0 0
    %433 = vmatprep.subr.bf16.mxu0 0
    %434 = vmatpush2.bf16.msra.mxu0 0
    %435 = vmatprep.subr.bf16.mxu0 0
    %436 = vmatpush2.bf16.msra.mxu0 0
    %437 = vmatprep.subr.bf16.mxu0 0
    %438 = vmatpush2.bf16.msra.mxu0 0
    %439 = vmatprep.subr.bf16.mxu0 0
    %440 = vmatpush2.bf16.msra.mxu0 0
    %441 = vmatprep.subr.bf16.mxu0 0
    %442 = vmatpush2.bf16.msra.mxu0 0
    %443 = vmatprep.subr.bf16.mxu0 0
    %444 = vmatpush2.bf16.msra.mxu0 0
    %445 = vmatprep.mubr.bf16.mxu0 0
    %446 = vmatmul.mubr.bf16.gmra.mxu0 %v364
    %v447 = vpop.f32.mrf.mxu0
    %v448 = vadd.f32 %v110, %v447
    %v449 = vpop.f32.mrf.mxu0
    %v450 = vpop.f32.mrf.mxu0
    %v451 = vpop.f32.mrf.mxu0
    %452 = vdwg.mxu0
    %v453 = vld [vmem:[#allocation4 + $0x80] sm:$0xf]
    %v454 = vld [vmem:[#allocation4 + $0x84] sm:$0xf]
    %v455 = vld [vmem:[#allocation4 + $0x88] sm:$0xf]
    %v456 = vld [vmem:[#allocation4 + $0x8c] sm:$0xf]
    %v457 = vld [vmem:[#allocation4 + $0x90] sm:$0xf]
    %v458 = vld [vmem:[#allocation4 + $0x94] sm:$0xf]
    %v459 = vld [vmem:[#allocation4 + $0x98] sm:$0xf]
    %v460 = vld [vmem:[#allocation4 + $0x9c] sm:$0xf]
    %v461 = vld [vmem:[#allocation4 + $0xa0] sm:$0xf]
    %v462 = vld [vmem:[#allocation4 + $0xa4] sm:$0xf]
    %v463 = vld [vmem:[#allocation4 + $0xa8] sm:$0xf]
    %v464 = vld [vmem:[#allocation4 + $0xac] sm:$0xf]
    %v465 = vld [vmem:[#allocation4 + $0xb0] sm:$0xf]
    %v466 = vld [vmem:[#allocation4 + $0xb4] sm:$0xf]
    %v467 = vld [vmem:[#allocation4 + $0xb8] sm:$0xf]
    %v468 = vld [vmem:[#allocation4 + $0xbc] sm:$0xf]
    %v469 = vpack.c.bf16 %v91, %v90
    %v470 = vld [vmem:[%s4 + $0x29] sm:$0x1]
    %v471 = vlaneseq
    %v472 = vshrl.u32 %v471, 7
    %v473 = vsub.s32 0, %v472
    %v474 = vrot.slane %v470, %v473
    %v491 = vunpack.c.l.b16 %v453
    %v492 = vunpack.c.l.b16 %v454
    %v493 = vunpack.c.l.b16 %v455
    %v494 = vunpack.c.l.b16 %v456
    %v495 = vunpack.c.l.b16 %v457
    %v496 = vunpack.c.l.b16 %v458
    %v497 = vunpack.c.l.b16 %v459
    %v498 = vunpack.c.l.b16 %v460
    %v499 = vunpack.c.l.b16 %v461
    %v500 = vunpack.c.l.b16 %v462
    %v501 = vunpack.c.l.b16 %v463
    %v502 = vunpack.c.l.b16 %v464
    %v503 = vunpack.c.l.b16 %v465
    %v504 = vunpack.c.l.b16 %v466
    %v505 = vunpack.c.l.b16 %v467
    %v506 = vunpack.c.l.b16 %v468
    %v507 = vpack.c.b16 %v492, %v491
    %v508 = vpack.c.b16 %v494, %v493
    %v509 = vpack.c.b16 %v496, %v495
    %v510 = vpack.c.b16 %v498, %v497
    %v511 = vpack.c.b16 %v500, %v499
    %v512 = vpack.c.b16 %v502, %v501
    %v513 = vpack.c.b16 %v504, %v503
    %v514 = vpack.c.b16 %v506, %v505
    %523 = vmatprep.subr.bf16.mxu0 0
    %524 = vmatpush1.bf16.msra.mxu0 %v514
    %525 = vmatprep.subr.bf16.mxu0 0
    %526 = vmatpush1.bf16.msra.mxu0 %v513
    %527 = vmatprep.subr.bf16.mxu0 0
    %528 = vmatpush1.bf16.msra.mxu0 %v512
    %529 = vmatprep.subr.bf16.mxu0 0
    %530 = vmatpush1.bf16.msra.mxu0 %v511
    %531 = vmatprep.subr.bf16.mxu0 0
    %532 = vmatpush1.bf16.msra.mxu0 %v510
    %533 = vmatprep.subr.bf16.mxu0 0
    %534 = vmatpush1.bf16.msra.mxu0 %v509
    %535 = vmatprep.subr.bf16.mxu0 0
    %536 = vmatpush1.bf16.msra.mxu0 %v508
    %537 = vmatprep.subr.bf16.mxu0 0
    %538 = vmatpush1.bf16.msra.mxu0 %v507
    %539 = vmatprep.subr.bf16.mxu0 0
    %540 = vmatpush2.bf16.msra.mxu0 0
    %541 = vmatprep.subr.bf16.mxu0 0
    %542 = vmatpush2.bf16.msra.mxu0 0
    %543 = vmatprep.subr.bf16.mxu0 0
    %544 = vmatpush2.bf16.msra.mxu0 0
    %545 = vmatprep.subr.bf16.mxu0 0
    %546 = vmatpush2.bf16.msra.mxu0 0
    %547 = vmatprep.subr.bf16.mxu0 0
    %548 = vmatpush2.bf16.msra.mxu0 0
    %549 = vmatprep.subr.bf16.mxu0 0
    %550 = vmatpush2.bf16.msra.mxu0 0
    %551 = vmatprep.subr.bf16.mxu0 0
    %552 = vmatpush2.bf16.msra.mxu0 0
    %553 = vmatprep.subr.bf16.mxu0 0
    %554 = vmatpush2.bf16.msra.mxu0 0
    %555 = vmatprep.mubr.bf16.mxu0 0
    %556 = vmatmul.mubr.bf16.gmra.mxu0 %v469
    %v557 = vpop.f32.mrf.mxu0
    %v558 = vadd.f32 %v474, %v557
    %v559 = vpop.f32.mrf.mxu0
    %v560 = vpop.f32.mrf.mxu0
    %v561 = vadd.f32 %v474, %v560
    %v562 = vpop.f32.mrf.mxu0
    %563 = vdwg.mxu0
    %v564 = vld [vmem:[#allocation4 + $0xc0] sm:$0xf]
    %v565 = vld [vmem:[#allocation4 + $0xc4] sm:$0xf]
    %v566 = vld [vmem:[#allocation4 + $0xc8] sm:$0xf]
    %v567 = vld [vmem:[#allocation4 + $0xcc] sm:$0xf]
    %v568 = vld [vmem:[#allocation4 + $0xd0] sm:$0xf]
    %v569 = vld [vmem:[#allocation4 + $0xd4] sm:$0xf]
    %v570 = vld [vmem:[#allocation4 + $0xd8] sm:$0xf]
    %v571 = vld [vmem:[#allocation4 + $0xdc] sm:$0xf]
    %v572 = vld [vmem:[#allocation4 + $0xe0] sm:$0xf]
    %v573 = vld [vmem:[#allocation4 + $0xe4] sm:$0xf]
    %v574 = vld [vmem:[#allocation4 + $0xe8] sm:$0xf]
    %v575 = vld [vmem:[#allocation4 + $0xec] sm:$0xf]
    %v576 = vld [vmem:[#allocation4 + $0xf0] sm:$0xf]
    %v577 = vld [vmem:[#allocation4 + $0xf4] sm:$0xf]
    %v578 = vld [vmem:[#allocation4 + $0xf8] sm:$0xf]
    %v579 = vld [vmem:[#allocation4 + $0xfc] sm:$0xf]
    %v596 = vunpack.c.l.b16 %v564
    %v597 = vunpack.c.l.b16 %v565
    %v598 = vunpack.c.l.b16 %v566
    %v599 = vunpack.c.l.b16 %v567
    %v600 = vunpack.c.l.b16 %v568
    %v601 = vunpack.c.l.b16 %v569
    %v602 = vunpack.c.l.b16 %v570
    %v603 = vunpack.c.l.b16 %v571
    %v604 = vunpack.c.l.b16 %v572
    %v605 = vunpack.c.l.b16 %v573
    %v606 = vunpack.c.l.b16 %v574
    %v607 = vunpack.c.l.b16 %v575
    %v608 = vunpack.c.l.b16 %v576
    %v609 = vunpack.c.l.b16 %v577
    %v610 = vunpack.c.l.b16 %v578
    %v611 = vunpack.c.l.b16 %v579
    %v612 = vpack.c.b16 %v597, %v596
    %v613 = vpack.c.b16 %v599, %v598
    %v614 = vpack.c.b16 %v601, %v600
    %v615 = vpack.c.b16 %v603, %v602
    %v616 = vpack.c.b16 %v605, %v604
    %v617 = vpack.c.b16 %v607, %v606
    %v618 = vpack.c.b16 %v609, %v608
    %v619 = vpack.c.b16 %v611, %v610
    %628 = vmatprep.subr.bf16.mxu0 0
    %629 = vmatpush1.bf16.msra.mxu0 %v619
    %630 = vmatprep.subr.bf16.mxu0 0
    %631 = vmatpush1.bf16.msra.mxu0 %v618
    %632 = vmatprep.subr.bf16.mxu0 0
    %633 = vmatpush1.bf16.msra.mxu0 %v617
    %634 = vmatprep.subr.bf16.mxu0 0
    %635 = vmatpush1.bf16.msra.mxu0 %v616
    %636 = vmatprep.subr.bf16.mxu0 0
    %637 = vmatpush1.bf16.msra.mxu0 %v615
    %638 = vmatprep.subr.bf16.mxu0 0
    %639 = vmatpush1.bf16.msra.mxu0 %v614
    %640 = vmatprep.subr.bf16.mxu0 0
    %641 = vmatpush1.bf16.msra.mxu0 %v613
    %642 = vmatprep.subr.bf16.mxu0 0
    %643 = vmatpush1.bf16.msra.mxu0 %v612
    %644 = vmatprep.subr.bf16.mxu0 0
    %645 = vmatpush2.bf16.msra.mxu0 0
    %646 = vmatprep.subr.bf16.mxu0 0
    %647 = vmatpush2.bf16.msra.mxu0 0
    %648 = vmatprep.subr.bf16.mxu0 0
    %649 = vmatpush2.bf16.msra.mxu0 0
    %650 = vmatprep.subr.bf16.mxu0 0
    %651 = vmatpush2.bf16.msra.mxu0 0
    %652 = vmatprep.subr.bf16.mxu0 0
    %653 = vmatpush2.bf16.msra.mxu0 0
    %654 = vmatprep.subr.bf16.mxu0 0
    %655 = vmatpush2.bf16.msra.mxu0 0
    %656 = vmatprep.subr.bf16.mxu0 0
    %657 = vmatpush2.bf16.msra.mxu0 0
    %658 = vmatprep.subr.bf16.mxu0 0
    %659 = vmatpush2.bf16.msra.mxu0 0
    %660 = vmatprep.mubr.bf16.mxu0 0
    %661 = vmatmul.mubr.bf16.gmra.mxu0 %v469
    %v662 = vpop.f32.mrf.mxu0
    %v663 = vadd.f32 0.0, %v662
    %v664 = vpop.f32.mrf.mxu0
    %v665 = vpop.f32.mrf.mxu0
    %v666 = vadd.f32 0.0, %v665
    %v667 = vpop.f32.mrf.mxu0
    %668 = vdwg.mxu0
    %v669 = vpack.c.bf16 %v666, %v663
    %v670 = vld [vmem:[%s4 + $0x8] sm:$0xf]
    %v671 = vpack.c.bf16 %v670, %v670
    %672 = vmatprep.subr.bf16.mxu0 0
    %673 = vmatpush1.bf16.xpose.msra.mxu0 0
    %674 = vmatprep.subr.bf16.mxu0 0
    %675 = vmatpush1.bf16.xpose.msra.mxu0 0
    %676 = vmatprep.subr.bf16.mxu0 0
    %677 = vmatpush1.bf16.xpose.msra.mxu0 0
    %678 = vmatprep.subr.bf16.mxu0 0
    %679 = vmatpush1.bf16.xpose.msra.mxu0 0
    %680 = vmatprep.subr.bf16.mxu0 0
    %681 = vmatpush1.bf16.xpose.msra.mxu0 0
    %682 = vmatprep.subr.bf16.mxu0 0
    %683 = vmatpush1.bf16.xpose.msra.mxu0 0
    %684 = vmatprep.subr.bf16.mxu0 0
    %685 = vmatpush1.bf16.xpose.msra.mxu0 0
    %686 = vmatprep.subr.bf16.mxu0 0
    %687 = vmatpush1.bf16.xpose.msra.mxu0 %v669
    %688 = vmatprep.subr.bf16.mxu0 0
    %689 = vmatpush2.bf16.xpose.msra.mxu0 0
    %690 = vmatprep.subr.bf16.mxu0 0
    %691 = vmatpush2.bf16.xpose.msra.mxu0 0
    %692 = vmatprep.subr.bf16.mxu0 0
    %693 = vmatpush2.bf16.xpose.msra.mxu0 0
    %694 = vmatprep.subr.bf16.mxu0 0
    %695 = vmatpush2.bf16.xpose.msra.mxu0 0
    %696 = vmatprep.subr.bf16.mxu0 0
    %697 = vmatpush2.bf16.xpose.msra.mxu0 0
    %698 = vmatprep.subr.bf16.mxu0 0
    %699 = vmatpush2.bf16.xpose.msra.mxu0 0
    %700 = vmatprep.subr.bf16.mxu0 0
    %701 = vmatpush2.bf16.xpose.msra.mxu0 0
    %702 = vmatprep.subr.bf16.mxu0 0
    %703 = vmatpush2.bf16.xpose.msra.mxu0 0
    %704 = vmatprep.mubr.bf16.mxu0 0
    %705 = vmatmul.mubr.bf16.gmra.mxu0 %v671
    %v706 = vpop.f32.mrf.mxu0
    %v707 = vadd.f32 0.0, %v706
    %v708 = vpop.f32.mrf.mxu0
    %v709 = vpop.f32.mrf.mxu0
    %v710 = vpop.f32.mrf.mxu0
    %711 = vdwg.mxu0
    %v712 = vld [vmem:[#allocation4 + $0x200] sm:$0xf]
    %v713 = vld [vmem:[#allocation4 + $0x204] sm:$0xf]
    %v714 = vld [vmem:[#allocation4 + $0x208] sm:$0xf]
    %v715 = vld [vmem:[#allocation4 + $0x20c] sm:$0xf]
    %v716 = vld [vmem:[#allocation4 + $0x210] sm:$0xf]
    %v717 = vld [vmem:[#allocation4 + $0x214] sm:$0xf]
    %v718 = vld [vmem:[#allocation4 + $0x218] sm:$0xf]
    %v719 = vld [vmem:[#allocation4 + $0x21c] sm:$0xf]
    %v720 = vld [vmem:[#allocation4 + $0x220] sm:$0xf]
    %v721 = vld [vmem:[#allocation4 + $0x224] sm:$0xf]
    %v722 = vld [vmem:[#allocation4 + $0x228] sm:$0xf]
    %v723 = vld [vmem:[#allocation4 + $0x22c] sm:$0xf]
    %v724 = vld [vmem:[#allocation4 + $0x230] sm:$0xf]
    %v725 = vld [vmem:[#allocation4 + $0x234] sm:$0xf]
    %v726 = vld [vmem:[#allocation4 + $0x238] sm:$0xf]
    %v727 = vld [vmem:[#allocation4 + $0x23c] sm:$0xf]
    %v744 = vunpack.c.l.b16 %v712
    %v745 = vunpack.c.l.b16 %v713
    %v746 = vunpack.c.l.b16 %v714
    %v747 = vunpack.c.l.b16 %v715
    %v748 = vunpack.c.l.b16 %v716
    %v749 = vunpack.c.l.b16 %v717
    %v750 = vunpack.c.l.b16 %v718
    %v751 = vunpack.c.l.b16 %v719
    %v752 = vunpack.c.l.b16 %v720
    %v753 = vunpack.c.l.b16 %v721
    %v754 = vunpack.c.l.b16 %v722
    %v755 = vunpack.c.l.b16 %v723
    %v756 = vunpack.c.l.b16 %v724
    %v757 = vunpack.c.l.b16 %v725
    %v758 = vunpack.c.l.b16 %v726
    %v759 = vunpack.c.l.b16 %v727
    %v760 = vpack.c.b16 %v745, %v744
    %v761 = vpack.c.b16 %v747, %v746
    %v762 = vpack.c.b16 %v749, %v748
    %v763 = vpack.c.b16 %v751, %v750
    %v764 = vpack.c.b16 %v753, %v752
    %v765 = vpack.c.b16 %v755, %v754
    %v766 = vpack.c.b16 %v757, %v756
    %v767 = vpack.c.b16 %v759, %v758
    %776 = vmatprep.subr.bf16.mxu0 0
    %777 = vmatpush1.bf16.msra.mxu0 %v767
    %778 = vmatprep.subr.bf16.mxu0 0
    %779 = vmatpush1.bf16.msra.mxu0 %v766
    %780 = vmatprep.subr.bf16.mxu0 0
    %781 = vmatpush1.bf16.msra.mxu0 %v765
    %782 = vmatprep.subr.bf16.mxu0 0
    %783 = vmatpush1.bf16.msra.mxu0 %v764
    %784 = vmatprep.subr.bf16.mxu0 0
    %785 = vmatpush1.bf16.msra.mxu0 %v763
    %786 = vmatprep.subr.bf16.mxu0 0
    %787 = vmatpush1.bf16.msra.mxu0 %v762
    %788 = vmatprep.subr.bf16.mxu0 0
    %789 = vmatpush1.bf16.msra.mxu0 %v761
    %790 = vmatprep.subr.bf16.mxu0 0
    %791 = vmatpush1.bf16.msra.mxu0 %v760
    %792 = vmatprep.subr.bf16.mxu0 0
    %793 = vmatpush2.bf16.msra.mxu0 0
    %794 = vmatprep.subr.bf16.mxu0 0
    %795 = vmatpush2.bf16.msra.mxu0 0
    %796 = vmatprep.subr.bf16.mxu0 0
    %797 = vmatpush2.bf16.msra.mxu0 0
    %798 = vmatprep.subr.bf16.mxu0 0
    %799 = vmatpush2.bf16.msra.mxu0 0
    %800 = vmatprep.subr.bf16.mxu0 0
    %801 = vmatpush2.bf16.msra.mxu0 0
    %802 = vmatprep.subr.bf16.mxu0 0
    %803 = vmatpush2.bf16.msra.mxu0 0
    %804 = vmatprep.subr.bf16.mxu0 0
    %805 = vmatpush2.bf16.msra.mxu0 0
    %806 = vmatprep.subr.bf16.mxu0 0
    %807 = vmatpush2.bf16.msra.mxu0 0
    %808 = vmatprep.mubr.bf16.mxu0 0
    %809 = vmatmul.mubr.bf16.gmra.mxu0 %v669
    %v810 = vpop.f32.mrf.mxu0
    %v811 = vadd.f32 0.0, %v810
    %v812 = vpop.f32.mrf.mxu0
    %v813 = vpop.f32.mrf.mxu0
    %v814 = vadd.f32 0.0, %v813
    %v815 = vpop.f32.mrf.mxu0
    %816 = vdwg.mxu0
    %818 = vset.pattern.permute.xlu0 0
    %819 = vperm.xlu0 %818, %v811
    %v820 = vpop.permute.xlu0 %819
    %823 = vset.pattern.permute.xlu0 0
    %824 = vperm.xlu0 %823, %v814
    %v825 = vpop.permute.xlu0 %824
    %v827 = vlaneseq
    %v828 = vshrl.u32 %v827, 7
    %v829 = vsub.s32 0, %v828
    %v830 = vrot.slane %v707, %v829
    %v831 = vadd.f32 %v820, %v830
    %v832 = vadd.f32 %v825, %v830
    %v833 = vlaneseq
    %v834 = vshrl.u32 %v833, 7
    %v835 = vsub.s32 0, %v834
    %v836 = vrot.slane %v111, %v835
    %v837 = vmul.f32 %v663, %v836
    %v838 = vmul.f32 %v666, %v836
    %839 = vset.pattern.permute.xlu0 1
    %840 = vperm.xlu0 %839, %v811
    %v841 = vpop.permute.xlu0 %840
    %843 = vset.pattern.permute.xlu0 1
    %844 = vperm.xlu0 %843, %v814
    %v845 = vpop.permute.xlu0 %844
    %v847 = vlaneseq
    %v848 = vshrl.u32 %v847, 7
    %v849 = vsub.s32 1, %v848
    %v850 = vrot.slane %v707, %v849
    %v851 = vadd.f32 %v841, %v850
    %v852 = vadd.f32 %v845, %v850
    %v853 = vlaneseq
    %v854 = vshrl.u32 %v853, 7
    %v855 = vsub.s32 1, %v854
    %v856 = vrot.slane %v111, %v855
    %v857 = vmul.f32 %v663, %v856
    %v858 = vmul.f32 %v666, %v856
    %859 = vset.pattern.permute.xlu0 2
    %860 = vperm.xlu0 %859, %v811
    %v861 = vpop.permute.xlu0 %860
    %863 = vset.pattern.permute.xlu0 2
    %864 = vperm.xlu0 %863, %v814
    %v865 = vpop.permute.xlu0 %864
    %v867 = vlaneseq
    %v868 = vshrl.u32 %v867, 7
    %v869 = vsub.s32 2, %v868
    %v870 = vrot.slane %v707, %v869
    %v871 = vadd.f32 %v861, %v870
    %v872 = vadd.f32 %v865, %v870
    %v873 = vlaneseq
    %v874 = vshrl.u32 %v873, 7
    %v875 = vsub.s32 2, %v874
    %v876 = vrot.slane %v111, %v875
    %v877 = vmul.f32 %v663, %v876
    %v878 = vmul.f32 %v666, %v876
    %879 = vset.pattern.permute.xlu0 3
    %880 = vperm.xlu0 %879, %v811
    %v881 = vpop.permute.xlu0 %880
    %883 = vset.pattern.permute.xlu0 3
    %884 = vperm.xlu0 %883, %v814
    %v885 = vpop.permute.xlu0 %884
    %v887 = vlaneseq
    %v888 = vshrl.u32 %v887, 7
    %v889 = vsub.s32 3, %v888
    %v890 = vrot.slane %v707, %v889
    %v891 = vadd.f32 %v881, %v890
    %v892 = vadd.f32 %v885, %v890
    %v893 = vlaneseq
    %v894 = vshrl.u32 %v893, 7
    %v895 = vsub.s32 3, %v894
    %v896 = vrot.slane %v111, %v895
    %v897 = vmul.f32 %v663, %v896
    %v898 = vmul.f32 %v666, %v896
    %v899 = vpack.c.bf16 %v838, %v837
    %v900 = vpack.c.bf16 %v858, %v857
    %v901 = vpack.c.bf16 %v878, %v877
    %v902 = vpack.c.bf16 %v898, %v897
    %v903 = vmul.f32 %v831, 0.2
    %v904 = vmul.f32 %v832, 0.2
    %v905 = vmul.f32 %v851, 0.2
    %v906 = vmul.f32 %v852, 0.2
    %v907 = vmul.f32 %v871, 0.2
    %v908 = vmul.f32 %v872, 0.2
    %v909 = vmul.f32 %v891, 0.2
    %v910 = vmul.f32 %v892, 0.2
    %v911 = vmax.f32 %v831, %v903
    %v912 = vmax.f32 %v832, %v904
    %v913 = vmax.f32 %v851, %v905
    %v914 = vmax.f32 %v852, %v906
    %v915 = vmax.f32 %v871, %v907
    %v916 = vmax.f32 %v872, %v908
    %v917 = vmax.f32 %v891, %v909
    %v918 = vmax.f32 %v892, %v910
    %v919 = vadd.f32 %v911, %v92
    %v920 = vadd.f32 %v912, %v93
    %v921 = vadd.f32 %v913, %v92
    %v922 = vadd.f32 %v914, %v93
    %v923 = vadd.f32 %v915, %v92
    %v924 = vadd.f32 %v916, %v93
    %v925 = vadd.f32 %v917, %v92
    %v926 = vadd.f32 %v918, %v93
    %vm927 = vcmask 130048
    %v928 = vsel %vm927, %v919, -inf
    %929 = vmax.xlane.f32.xlu0 %v928
    %v930 = vpop.xlane.xlu0 %929
    %v931 = vsel %vm927, %v920, -inf
    %932 = vmax.xlane.f32.xlu0 %v931
    %v933 = vpop.xlane.xlu0 %932
    %v934 = vsel %vm927, %v921, -inf
    %935 = vmax.xlane.f32.xlu0 %v934
    %v936 = vpop.xlane.xlu0 %935
    %v937 = vsel %vm927, %v922, -inf
    %938 = vmax.xlane.f32.xlu0 %v937
    %v939 = vpop.xlane.xlu0 %938
    %v940 = vsel %vm927, %v923, -inf
    %941 = vmax.xlane.f32.xlu0 %v940
    %v942 = vpop.xlane.xlu0 %941
    %v943 = vsel %vm927, %v924, -inf
    %944 = vmax.xlane.f32.xlu0 %v943
    %v945 = vpop.xlane.xlu0 %944
    %v946 = vsel %vm927, %v925, -inf
    %947 = vmax.xlane.f32.xlu0 %v946
    %v948 = vpop.xlane.xlu0 %947
    %v949 = vsel %vm927, %v926, -inf
    %950 = vmax.xlane.f32.xlu0 %v949
    %v951 = vpop.xlane.xlu0 %950
    %v952 = vsub.f32 %v919, %v930
    %v953 = vsub.f32 %v920, %v933
    %v954 = vsub.f32 %v921, %v936
    %v955 = vsub.f32 %v922, %v939
    %v956 = vsub.f32 %v923, %v942
    %v957 = vsub.f32 %v924, %v945
    %v958 = vsub.f32 %v925, %v948
    %v959 = vsub.f32 %v926, %v951
    %v960 = vmul.f32 %v952, 1.442695
    %v961 = vpow.pop %v960
    %v962 = vmul.f32 %v953, 1.442695
    %v963 = vpow.pop %v962
    %v964 = vmul.f32 %v954, 1.442695
    %v965 = vpow.pop %v964
    %v966 = vmul.f32 %v955, 1.442695
    %v967 = vpow.pop %v966
    %v968 = vmul.f32 %v956, 1.442695
    %v969 = vpow.pop %v968
    %v970 = vmul.f32 %v957, 1.442695
    %v971 = vpow.pop %v970
    %v972 = vmul.f32 %v958, 1.442695
    %v973 = vpow.pop %v972
    %v974 = vmul.f32 %v959, 1.442695
    %v975 = vpow.pop %v974
    %v976 = vsel %vm927, %v961, 0.0
    %977 = vadd.xlane.f32.xlu0 %v976
    %v978 = vpop.xlane.xlu0 %977
    %v979 = vsel %vm927, %v963, 0.0
    %980 = vadd.xlane.f32.xlu0 %v979
    %v981 = vpop.xlane.xlu0 %980
    %v982 = vsel %vm927, %v965, 0.0
    %983 = vadd.xlane.f32.xlu0 %v982
    %v984 = vpop.xlane.xlu0 %983
    %v985 = vsel %vm927, %v967, 0.0
    %986 = vadd.xlane.f32.xlu0 %v985
    %v987 = vpop.xlane.xlu0 %986
    %v988 = vsel %vm927, %v969, 0.0
    %989 = vadd.xlane.f32.xlu0 %v988
    %v990 = vpop.xlane.xlu0 %989
    %v991 = vsel %vm927, %v971, 0.0
    %992 = vadd.xlane.f32.xlu0 %v991
    %v993 = vpop.xlane.xlu0 %992
    %v994 = vsel %vm927, %v973, 0.0
    %995 = vadd.xlane.f32.xlu0 %v994
    %v996 = vpop.xlane.xlu0 %995
    %v997 = vsel %vm927, %v975, 0.0
    %998 = vadd.xlane.f32.xlu0 %v997
    %v999 = vpop.xlane.xlu0 %998
    %v1000 = vrcp.pop %v978
    %v1001 = vrcp.pop %v981
    %v1002 = vrcp.pop %v984
    %v1003 = vrcp.pop %v987
    %v1004 = vrcp.pop %v990
    %v1005 = vrcp.pop %v993
    %v1006 = vrcp.pop %v996
    %v1007 = vrcp.pop %v999
    %v1008 = vmul.f32 %v961, %v1000
    %v1009 = vmul.f32 %v963, %v1001
    %v1010 = vmul.f32 %v965, %v1002
    %v1011 = vmul.f32 %v967, %v1003
    %v1012 = vmul.f32 %v969, %v1004
    %v1013 = vmul.f32 %v971, %v1005
    %v1014 = vmul.f32 %v973, %v1006
    %v1015 = vmul.f32 %v975, %v1007
    %v1016 = vpack.c.bf16 %v1009, %v1008
    %v1017 = vpack.c.bf16 %v1011, %v1010
    %v1018 = vpack.c.bf16 %v1013, %v1012
    %v1019 = vpack.c.bf16 %v1015, %v1014
    %v1021 = vsel %vm927, %v1016, 0
    %1023 = vmatprep.subr.bf16.mxu0 0
    %1024 = vmatpush1.bf16.msra.mxu0 0
    %1025 = vmatprep.subr.bf16.mxu0 0
    %1026 = vmatpush1.bf16.msra.mxu0 0
    %1027 = vmatprep.subr.bf16.mxu0 0
    %1028 = vmatpush1.bf16.msra.mxu0 0
    %1029 = vmatprep.subr.bf16.mxu0 0
    %1030 = vmatpush1.bf16.msra.mxu0 0
    %1031 = vmatprep.subr.bf16.mxu0 0
    %1032 = vmatpush1.bf16.msra.mxu0 0
    %1033 = vmatprep.subr.bf16.mxu0 0
    %1034 = vmatpush1.bf16.msra.mxu0 0
    %1035 = vmatprep.subr.bf16.mxu0 0
    %1036 = vmatpush1.bf16.msra.mxu0 0
    %1037 = vmatprep.subr.bf16.mxu0 0
    %1038 = vmatpush1.bf16.msra.mxu0 %v899
    %1039 = vmatprep.subr.bf16.mxu0 0
    %1040 = vmatpush2.bf16.msra.mxu0 0
    %1041 = vmatprep.subr.bf16.mxu0 0
    %1042 = vmatpush2.bf16.msra.mxu0 0
    %1043 = vmatprep.subr.bf16.mxu0 0
    %1044 = vmatpush2.bf16.msra.mxu0 0
    %1045 = vmatprep.subr.bf16.mxu0 0
    %1046 = vmatpush2.bf16.msra.mxu0 0
    %1047 = vmatprep.subr.bf16.mxu0 0
    %1048 = vmatpush2.bf16.msra.mxu0 0
    %1049 = vmatprep.subr.bf16.mxu0 0
    %1050 = vmatpush2.bf16.msra.mxu0 0
    %1051 = vmatprep.subr.bf16.mxu0 0
    %1052 = vmatpush2.bf16.msra.mxu0 0
    %1053 = vmatprep.subr.bf16.mxu0 0
    %1054 = vmatpush2.bf16.msra.mxu0 0
    %1055 = vmatprep.mubr.bf16.mxu0 0
    %1056 = vmatmul.mubr.bf16.gmra.mxu0 %v1021
    %v1057 = vpop.f32.mrf.mxu0
    %v1058 = vadd.f32 0.0, %v1057
    %v1059 = vpop.f32.mrf.mxu0
    %v1060 = vpop.f32.mrf.mxu0
    %v1061 = vadd.f32 0.0, %v1060
    %v1062 = vpop.f32.mrf.mxu0
    %1063 = vdwg.mxu0
    %v1065 = vsel %vm927, %v1017, 0
    %1067 = vmatprep.subr.bf16.mxu0 0
    %1068 = vmatpush1.bf16.msra.mxu0 0
    %1069 = vmatprep.subr.bf16.mxu0 0
    %1070 = vmatpush1.bf16.msra.mxu0 0
    %1071 = vmatprep.subr.bf16.mxu0 0
    %1072 = vmatpush1.bf16.msra.mxu0 0
    %1073 = vmatprep.subr.bf16.mxu0 0
    %1074 = vmatpush1.bf16.msra.mxu0 0
    %1075 = vmatprep.subr.bf16.mxu0 0
    %1076 = vmatpush1.bf16.msra.mxu0 0
    %1077 = vmatprep.subr.bf16.mxu0 0
    %1078 = vmatpush1.bf16.msra.mxu0 0
    %1079 = vmatprep.subr.bf16.mxu0 0
    %1080 = vmatpush1.bf16.msra.mxu0 0
    %1081 = vmatprep.subr.bf16.mxu0 0
    %1082 = vmatpush1.bf16.msra.mxu0 %v900
    %1083 = vmatprep.subr.bf16.mxu0 0
    %1084 = vmatpush2.bf16.msra.mxu0 0
    %1085 = vmatprep.subr.bf16.mxu0 0
    %1086 = vmatpush2.bf16.msra.mxu0 0
    %1087 = vmatprep.subr.bf16.mxu0 0
    %1088 = vmatpush2.bf16.msra.mxu0 0
    %1089 = vmatprep.subr.bf16.mxu0 0
    %1090 = vmatpush2.bf16.msra.mxu0 0
    %1091 = vmatprep.subr.bf16.mxu0 0
    %1092 = vmatpush2.bf16.msra.mxu0 0
    %1093 = vmatprep.subr.bf16.mxu0 0
    %1094 = vmatpush2.bf16.msra.mxu0 0
    %1095 = vmatprep.subr.bf16.mxu0 0
    %1096 = vmatpush2.bf16.msra.mxu0 0
    %1097 = vmatprep.subr.bf16.mxu0 0
    %1098 = vmatpush2.bf16.msra.mxu0 0
    %1099 = vmatprep.mubr.bf16.mxu0 0
    %1100 = vmatmul.mubr.bf16.gmra.mxu0 %v1065
    %v1101 = vpop.f32.mrf.mxu0
    %v1102 = vadd.f32 0.0, %v1101
    %v1103 = vpop.f32.mrf.mxu0
    %v1104 = vpop.f32.mrf.mxu0
    %v1105 = vadd.f32 0.0, %v1104
    %v1106 = vpop.f32.mrf.mxu0
    %1107 = vdwg.mxu0
    %v1109 = vsel %vm927, %v1018, 0
    %1111 = vmatprep.subr.bf16.mxu0 0
    %1112 = vmatpush1.bf16.msra.mxu0 0
    %1113 = vmatprep.subr.bf16.mxu0 0
    %1114 = vmatpush1.bf16.msra.mxu0 0
    %1115 = vmatprep.subr.bf16.mxu0 0
    %1116 = vmatpush1.bf16.msra.mxu0 0
    %1117 = vmatprep.subr.bf16.mxu0 0
    %1118 = vmatpush1.bf16.msra.mxu0 0
    %1119 = vmatprep.subr.bf16.mxu0 0
    %1120 = vmatpush1.bf16.msra.mxu0 0
    %1121 = vmatprep.subr.bf16.mxu0 0
    %1122 = vmatpush1.bf16.msra.mxu0 0
    %1123 = vmatprep.subr.bf16.mxu0 0
    %1124 = vmatpush1.bf16.msra.mxu0 0
    %1125 = vmatprep.subr.bf16.mxu0 0
    %1126 = vmatpush1.bf16.msra.mxu0 %v901
    %1127 = vmatprep.subr.bf16.mxu0 0
    %1128 = vmatpush2.bf16.msra.mxu0 0
    %1129 = vmatprep.subr.bf16.mxu0 0
    %1130 = vmatpush2.bf16.msra.mxu0 0
    %1131 = vmatprep.subr.bf16.mxu0 0
    %1132 = vmatpush2.bf16.msra.mxu0 0
    %1133 = vmatprep.subr.bf16.mxu0 0
    %1134 = vmatpush2.bf16.msra.mxu0 0
    %1135 = vmatprep.subr.bf16.mxu0 0
    %1136 = vmatpush2.bf16.msra.mxu0 0
    %1137 = vmatprep.subr.bf16.mxu0 0
    %1138 = vmatpush2.bf16.msra.mxu0 0
    %1139 = vmatprep.subr.bf16.mxu0 0
    %1140 = vmatpush2.bf16.msra.mxu0 0
    %1141 = vmatprep.subr.bf16.mxu0 0
    %1142 = vmatpush2.bf16.msra.mxu0 0
    %1143 = vmatprep.mubr.bf16.mxu0 0
    %1144 = vmatmul.mubr.bf16.gmra.mxu0 %v1109
    %v1145 = vpop.f32.mrf.mxu0
    %v1146 = vadd.f32 0.0, %v1145
    %v1147 = vpop.f32.mrf.mxu0
    %v1148 = vpop.f32.mrf.mxu0
    %v1149 = vadd.f32 0.0, %v1148
    %v1150 = vpop.f32.mrf.mxu0
    %1151 = vdwg.mxu0
    %v1153 = vsel %vm927, %v1019, 0
    %1155 = vmatprep.subr.bf16.mxu0 0
    %1156 = vmatpush1.bf16.msra.mxu0 0
    %1157 = vmatprep.subr.bf16.mxu0 0
    %1158 = vmatpush1.bf16.msra.mxu0 0
    %1159 = vmatprep.subr.bf16.mxu0 0
    %1160 = vmatpush1.bf16.msra.mxu0 0
    %1161 = vmatprep.subr.bf16.mxu0 0
    %1162 = vmatpush1.bf16.msra.mxu0 0
    %1163 = vmatprep.subr.bf16.mxu0 0
    %1164 = vmatpush1.bf16.msra.mxu0 0
    %1165 = vmatprep.subr.bf16.mxu0 0
    %1166 = vmatpush1.bf16.msra.mxu0 0
    %1167 = vmatprep.subr.bf16.mxu0 0
    %1168 = vmatpush1.bf16.msra.mxu0 0
    %1169 = vmatprep.subr.bf16.mxu0 0
    %1170 = vmatpush1.bf16.msra.mxu0 %v902
    %1171 = vmatprep.subr.bf16.mxu0 0
    %1172 = vmatpush2.bf16.msra.mxu0 0
    %1173 = vmatprep.subr.bf16.mxu0 0
    %1174 = vmatpush2.bf16.msra.mxu0 0
    %1175 = vmatprep.subr.bf16.mxu0 0
    %1176 = vmatpush2.bf16.msra.mxu0 0
    %1177 = vmatprep.subr.bf16.mxu0 0
    %1178 = vmatpush2.bf16.msra.mxu0 0
    %1179 = vmatprep.subr.bf16.mxu0 0
    %1180 = vmatpush2.bf16.msra.mxu0 0
    %1181 = vmatprep.subr.bf16.mxu0 0
    %1182 = vmatpush2.bf16.msra.mxu0 0
    %1183 = vmatprep.subr.bf16.mxu0 0
    %1184 = vmatpush2.bf16.msra.mxu0 0
    %1185 = vmatprep.subr.bf16.mxu0 0
    %1186 = vmatpush2.bf16.msra.mxu0 0
    %1187 = vmatprep.mubr.bf16.mxu0 0
    %1188 = vmatmul.mubr.bf16.gmra.mxu0 %v1153
    %v1189 = vpop.f32.mrf.mxu0
    %v1190 = vadd.f32 0.0, %v1189
    %v1191 = vpop.f32.mrf.mxu0
    %v1192 = vpop.f32.mrf.mxu0
    %v1193 = vadd.f32 0.0, %v1192
    %v1194 = vpop.f32.mrf.mxu0
    %1195 = vdwg.mxu0
    %v1196 = vadd.f32 %v1058, %v1102
    %v1197 = vadd.f32 %v1061, %v1105
    %v1198 = vadd.f32 %v1196, %v1146
    %v1199 = vadd.f32 %v1197, %v1149
    %v1200 = vadd.f32 %v1198, %v1190
    %v1201 = vadd.f32 %v1199, %v1193
    %v1202 = vld [vmem:[%s4 + $0x20] sm:$0x1]
    %v1203 = vlaneseq
    %v1204 = vshrl.u32 %v1203, 7
    %v1205 = vsub.s32 0, %v1204
    %v1206 = vrot.slane %v1202, %v1205
    %v1207 = vadd.f32 %v1200, %v1206
    %v1208 = vadd.f32 %v1201, %v1206
    %v1209 = vmax.f32 %v1207, 0.0
    %v1210 = vmax.f32 %v1208, 0.0
    %v1211 = vadd.f32 %v1209, %v558
    %v1212 = vadd.f32 %v1210, %v561
    %v1213 = vld [vmem:[#allocation4 + $0x100] sm:$0xf]
    %v1214 = vld [vmem:[#allocation4 + $0x104] sm:$0xf]
    %v1215 = vld [vmem:[#allocation4 + $0x108] sm:$0xf]
    %v1216 = vld [vmem:[#allocation4 + $0x10c] sm:$0xf]
    %v1217 = vld [vmem:[#allocation4 + $0x110] sm:$0xf]
    %v1218 = vld [vmem:[#allocation4 + $0x114] sm:$0xf]
    %v1219 = vld [vmem:[#allocation4 + $0x118] sm:$0xf]
    %v1220 = vld [vmem:[#allocation4 + $0x11c] sm:$0xf]
    %v1221 = vld [vmem:[#allocation4 + $0x120] sm:$0xf]
    %v1222 = vld [vmem:[#allocation4 + $0x124] sm:$0xf]
    %v1223 = vld [vmem:[#allocation4 + $0x128] sm:$0xf]
    %v1224 = vld [vmem:[#allocation4 + $0x12c] sm:$0xf]
    %v1225 = vld [vmem:[#allocation4 + $0x130] sm:$0xf]
    %v1226 = vld [vmem:[#allocation4 + $0x134] sm:$0xf]
    %v1227 = vld [vmem:[#allocation4 + $0x138] sm:$0xf]
    %v1228 = vld [vmem:[#allocation4 + $0x13c] sm:$0xf]
    %v1229 = vpack.c.bf16 %v1212, %v1211
    %v1246 = vunpack.c.l.b16 %v1213
    %v1247 = vunpack.c.l.b16 %v1214
    %v1248 = vunpack.c.l.b16 %v1215
    %v1249 = vunpack.c.l.b16 %v1216
    %v1250 = vunpack.c.l.b16 %v1217
    %v1251 = vunpack.c.l.b16 %v1218
    %v1252 = vunpack.c.l.b16 %v1219
    %v1253 = vunpack.c.l.b16 %v1220
    %v1254 = vunpack.c.l.b16 %v1221
    %v1255 = vunpack.c.l.b16 %v1222
    %v1256 = vunpack.c.l.b16 %v1223
    %v1257 = vunpack.c.l.b16 %v1224
    %v1258 = vunpack.c.l.b16 %v1225
    %v1259 = vunpack.c.l.b16 %v1226
    %v1260 = vunpack.c.l.b16 %v1227
    %v1261 = vunpack.c.l.b16 %v1228
    %v1262 = vpack.c.b16 %v1247, %v1246
    %v1263 = vpack.c.b16 %v1249, %v1248
    %v1264 = vpack.c.b16 %v1251, %v1250
    %v1265 = vpack.c.b16 %v1253, %v1252
    %v1266 = vpack.c.b16 %v1255, %v1254
    %v1267 = vpack.c.b16 %v1257, %v1256
    %v1268 = vpack.c.b16 %v1259, %v1258
    %v1269 = vpack.c.b16 %v1261, %v1260
    %1278 = vmatprep.subr.bf16.mxu0 0
    %1279 = vmatpush1.bf16.msra.mxu0 %v1269
    %1280 = vmatprep.subr.bf16.mxu0 0
    %1281 = vmatpush1.bf16.msra.mxu0 %v1268
    %1282 = vmatprep.subr.bf16.mxu0 0
    %1283 = vmatpush1.bf16.msra.mxu0 %v1267
    %1284 = vmatprep.subr.bf16.mxu0 0
    %1285 = vmatpush1.bf16.msra.mxu0 %v1266
    %1286 = vmatprep.subr.bf16.mxu0 0
    %1287 = vmatpush1.bf16.msra.mxu0 %v1265
    %1288 = vmatprep.subr.bf16.mxu0 0
    %1289 = vmatpush1.bf16.msra.mxu0 %v1264
    %1290 = vmatprep.subr.bf16.mxu0 0
    %1291 = vmatpush1.bf16.msra.mxu0 %v1263
    %1292 = vmatprep.subr.bf16.mxu0 0
    %1293 = vmatpush1.bf16.msra.mxu0 %v1262
    %1294 = vmatprep.subr.bf16.mxu0 0
    %1295 = vmatpush2.bf16.msra.mxu0 0
    %1296 = vmatprep.subr.bf16.mxu0 0
    %1297 = vmatpush2.bf16.msra.mxu0 0
    %1298 = vmatprep.subr.bf16.mxu0 0
    %1299 = vmatpush2.bf16.msra.mxu0 0
    %1300 = vmatprep.subr.bf16.mxu0 0
    %1301 = vmatpush2.bf16.msra.mxu0 0
    %1302 = vmatprep.subr.bf16.mxu0 0
    %1303 = vmatpush2.bf16.msra.mxu0 0
    %1304 = vmatprep.subr.bf16.mxu0 0
    %1305 = vmatpush2.bf16.msra.mxu0 0
    %1306 = vmatprep.subr.bf16.mxu0 0
    %1307 = vmatpush2.bf16.msra.mxu0 0
    %1308 = vmatprep.subr.bf16.mxu0 0
    %1309 = vmatpush2.bf16.msra.mxu0 0
    %1310 = vmatprep.mubr.bf16.mxu0 0
    %1311 = vmatmul.mubr.bf16.gmra.mxu0 %v1229
    %v1312 = vpop.f32.mrf.mxu0
    %v1313 = vadd.f32 0.0, %v1312
    %v1314 = vpop.f32.mrf.mxu0
    %v1315 = vpop.f32.mrf.mxu0
    %v1316 = vadd.f32 0.0, %v1315
    %v1317 = vpop.f32.mrf.mxu0
    %1318 = vdwg.mxu0
    %v1319 = vpack.c.bf16 %v1316, %v1313
    %v1320 = vld [vmem:[%s4 + $0x10] sm:$0xf]
    %v1321 = vpack.c.bf16 %v1320, %v1320
    %1322 = vmatprep.subr.bf16.mxu0 0
    %1323 = vmatpush1.bf16.xpose.msra.mxu0 0
    %1324 = vmatprep.subr.bf16.mxu0 0
    %1325 = vmatpush1.bf16.xpose.msra.mxu0 0
    %1326 = vmatprep.subr.bf16.mxu0 0
    %1327 = vmatpush1.bf16.xpose.msra.mxu0 0
    %1328 = vmatprep.subr.bf16.mxu0 0
    %1329 = vmatpush1.bf16.xpose.msra.mxu0 0
    %1330 = vmatprep.subr.bf16.mxu0 0
    %1331 = vmatpush1.bf16.xpose.msra.mxu0 0
    %1332 = vmatprep.subr.bf16.mxu0 0
    %1333 = vmatpush1.bf16.xpose.msra.mxu0 0
    %1334 = vmatprep.subr.bf16.mxu0 0
    %1335 = vmatpush1.bf16.xpose.msra.mxu0 0
    %1336 = vmatprep.subr.bf16.mxu0 0
    %1337 = vmatpush1.bf16.xpose.msra.mxu0 %v1319
    %1338 = vmatprep.subr.bf16.mxu0 0
    %1339 = vmatpush2.bf16.xpose.msra.mxu0 0
    %1340 = vmatprep.subr.bf16.mxu0 0
    %1341 = vmatpush2.bf16.xpose.msra.mxu0 0
    %1342 = vmatprep.subr.bf16.mxu0 0
    %1343 = vmatpush2.bf16.xpose.msra.mxu0 0
    %1344 = vmatprep.subr.bf16.mxu0 0
    %1345 = vmatpush2.bf16.xpose.msra.mxu0 0
    %1346 = vmatprep.subr.bf16.mxu0 0
    %1347 = vmatpush2.bf16.xpose.msra.mxu0 0
    %1348 = vmatprep.subr.bf16.mxu0 0
    %1349 = vmatpush2.bf16.xpose.msra.mxu0 0
    %1350 = vmatprep.subr.bf16.mxu0 0
    %1351 = vmatpush2.bf16.xpose.msra.mxu0 0
    %1352 = vmatprep.subr.bf16.mxu0 0
    %1353 = vmatpush2.bf16.xpose.msra.mxu0 0
    %1354 = vmatprep.mubr.bf16.mxu0 0
    %1355 = vmatmul.mubr.bf16.gmra.mxu0 %v1321
    %v1356 = vpop.f32.mrf.mxu0
    %v1357 = vadd.f32 0.0, %v1356
    %v1358 = vpop.f32.mrf.mxu0
    %v1359 = vpop.f32.mrf.mxu0
    %v1360 = vpop.f32.mrf.mxu0
    %1361 = vdwg.mxu0
    %v1362 = vld [vmem:[#allocation4 + $0x200] sm:$0xf]
    %v1363 = vld [vmem:[#allocation4 + $0x204] sm:$0xf]
    %v1364 = vld [vmem:[#allocation4 + $0x208] sm:$0xf]
    %v1365 = vld [vmem:[#allocation4 + $0x20c] sm:$0xf]
    %v1366 = vld [vmem:[#allocation4 + $0x210] sm:$0xf]
    %v1367 = vld [vmem:[#allocation4 + $0x214] sm:$0xf]
    %v1368 = vld [vmem:[#allocation4 + $0x218] sm:$0xf]
    %v1369 = vld [vmem:[#allocation4 + $0x21c] sm:$0xf]
    %v1370 = vld [vmem:[#allocation4 + $0x220] sm:$0xf]
    %v1371 = vld [vmem:[#allocation4 + $0x224] sm:$0xf]
    %v1372 = vld [vmem:[#allocation4 + $0x228] sm:$0xf]
    %v1373 = vld [vmem:[#allocation4 + $0x22c] sm:$0xf]
    %v1374 = vld [vmem:[#allocation4 + $0x230] sm:$0xf]
    %v1375 = vld [vmem:[#allocation4 + $0x234] sm:$0xf]
    %v1376 = vld [vmem:[#allocation4 + $0x238] sm:$0xf]
    %v1377 = vld [vmem:[#allocation4 + $0x23c] sm:$0xf]
    %v1394 = vunpack.c.l.b16 %v1362
    %v1395 = vunpack.c.l.b16 %v1363
    %v1396 = vunpack.c.l.b16 %v1364
    %v1397 = vunpack.c.l.b16 %v1365
    %v1398 = vunpack.c.l.b16 %v1366
    %v1399 = vunpack.c.l.b16 %v1367
    %v1400 = vunpack.c.l.b16 %v1368
    %v1401 = vunpack.c.l.b16 %v1369
    %v1402 = vunpack.c.l.b16 %v1370
    %v1403 = vunpack.c.l.b16 %v1371
    %v1404 = vunpack.c.l.b16 %v1372
    %v1405 = vunpack.c.l.b16 %v1373
    %v1406 = vunpack.c.l.b16 %v1374
    %v1407 = vunpack.c.l.b16 %v1375
    %v1408 = vunpack.c.l.b16 %v1376
    %v1409 = vunpack.c.l.b16 %v1377
    %v1410 = vpack.c.b16 %v1395, %v1394
    %v1411 = vpack.c.b16 %v1397, %v1396
    %v1412 = vpack.c.b16 %v1399, %v1398
    %v1413 = vpack.c.b16 %v1401, %v1400
    %v1414 = vpack.c.b16 %v1403, %v1402
    %v1415 = vpack.c.b16 %v1405, %v1404
    %v1416 = vpack.c.b16 %v1407, %v1406
    %v1417 = vpack.c.b16 %v1409, %v1408
    %1418 = vrot.lane.b32.xlu0 %v1410, 124
    %v1419 = vpop.permute.xlu0 %1418
    %1420 = vrot.lane.b32.xlu0 %v1411, 124
    %v1421 = vpop.permute.xlu0 %1420
    %1422 = vrot.lane.b32.xlu0 %v1412, 124
    %v1423 = vpop.permute.xlu0 %1422
    %1424 = vrot.lane.b32.xlu0 %v1413, 124
    %v1425 = vpop.permute.xlu0 %1424
    %1426 = vrot.lane.b32.xlu0 %v1414, 124
    %v1427 = vpop.permute.xlu0 %1426
    %1428 = vrot.lane.b32.xlu0 %v1415, 124
    %v1429 = vpop.permute.xlu0 %1428
    %1430 = vrot.lane.b32.xlu0 %v1416, 124
    %v1431 = vpop.permute.xlu0 %1430
    %1432 = vrot.lane.b32.xlu0 %v1417, 124
    %v1433 = vpop.permute.xlu0 %1432
    %1442 = vmatprep.subr.bf16.mxu0 0
    %1443 = vmatpush1.bf16.msra.mxu0 %v1433
    %1444 = vmatprep.subr.bf16.mxu0 0
    %1445 = vmatpush1.bf16.msra.mxu0 %v1431
    %1446 = vmatprep.subr.bf16.mxu0 0
    %1447 = vmatpush1.bf16.msra.mxu0 %v1429
    %1448 = vmatprep.subr.bf16.mxu0 0
    %1449 = vmatpush1.bf16.msra.mxu0 %v1427
    %1450 = vmatprep.subr.bf16.mxu0 0
    %1451 = vmatpush1.bf16.msra.mxu0 %v1425
    %1452 = vmatprep.subr.bf16.mxu0 0
    %1453 = vmatpush1.bf16.msra.mxu0 %v1423
    %1454 = vmatprep.subr.bf16.mxu0 0
    %1455 = vmatpush1.bf16.msra.mxu0 %v1421
    %1456 = vmatprep.subr.bf16.mxu0 0
    %1457 = vmatpush1.bf16.msra.mxu0 %v1419
    %1458 = vmatprep.subr.bf16.mxu0 0
    %1459 = vmatpush2.bf16.msra.mxu0 0
    %1460 = vmatprep.subr.bf16.mxu0 0
    %1461 = vmatpush2.bf16.msra.mxu0 0
    %1462 = vmatprep.subr.bf16.mxu0 0
    %1463 = vmatpush2.bf16.msra.mxu0 0
    %1464 = vmatprep.subr.bf16.mxu0 0
    %1465 = vmatpush2.bf16.msra.mxu0 0
    %1466 = vmatprep.subr.bf16.mxu0 0
    %1467 = vmatpush2.bf16.msra.mxu0 0
    %1468 = vmatprep.subr.bf16.mxu0 0
    %1469 = vmatpush2.bf16.msra.mxu0 0
    %1470 = vmatprep.subr.bf16.mxu0 0
    %1471 = vmatpush2.bf16.msra.mxu0 0
    %1472 = vmatprep.subr.bf16.mxu0 0
    %1473 = vmatpush2.bf16.msra.mxu0 0
    %1474 = vmatprep.mubr.bf16.mxu0 0
    %1475 = vmatmul.mubr.bf16.gmra.mxu0 %v1319
    %v1476 = vpop.f32.mrf.mxu0
    %v1477 = vadd.f32 0.0, %v1476
    %v1478 = vpop.f32.mrf.mxu0
    %v1479 = vpop.f32.mrf.mxu0
    %v1480 = vadd.f32 0.0, %v1479
    %v1481 = vpop.f32.mrf.mxu0
    %1482 = vdwg.mxu0
    %1484 = vset.pattern.permute.xlu0 0
    %1485 = vperm.xlu0 %1484, %v1477
    %v1486 = vpop.permute.xlu0 %1485
    %1489 = vset.pattern.permute.xlu0 0
    %1490 = vperm.xlu0 %1489, %v1480
    %v1491 = vpop.permute.xlu0 %1490
    %v1493 = vlaneseq
    %v1494 = vshrl.u32 %v1493, 7
    %v1495 = vsub.s32 0, %v1494
    %v1496 = vrot.slane %v1357, %v1495
    %v1497 = vadd.f32 %v1486, %v1496
    %v1498 = vadd.f32 %v1491, %v1496
    %v1499 = vmul.f32 %v1313, %v836
    %v1500 = vmul.f32 %v1316, %v836
    %1501 = vset.pattern.permute.xlu0 1
    %1502 = vperm.xlu0 %1501, %v1477
    %v1503 = vpop.permute.xlu0 %1502
    %1505 = vset.pattern.permute.xlu0 1
    %1506 = vperm.xlu0 %1505, %v1480
    %v1507 = vpop.permute.xlu0 %1506
    %v1509 = vlaneseq
    %v1510 = vshrl.u32 %v1509, 7
    %v1511 = vsub.s32 1, %v1510
    %v1512 = vrot.slane %v1357, %v1511
    %v1513 = vadd.f32 %v1503, %v1512
    %v1514 = vadd.f32 %v1507, %v1512
    %v1515 = vmul.f32 %v1313, %v856
    %v1516 = vmul.f32 %v1316, %v856
    %1517 = vset.pattern.permute.xlu0 2
    %1518 = vperm.xlu0 %1517, %v1477
    %v1519 = vpop.permute.xlu0 %1518
    %1521 = vset.pattern.permute.xlu0 2
    %1522 = vperm.xlu0 %1521, %v1480
    %v1523 = vpop.permute.xlu0 %1522
    %v1525 = vlaneseq
    %v1526 = vshrl.u32 %v1525, 7
    %v1527 = vsub.s32 2, %v1526
    %v1528 = vrot.slane %v1357, %v1527
    %v1529 = vadd.f32 %v1519, %v1528
    %v1530 = vadd.f32 %v1523, %v1528
    %v1531 = vmul.f32 %v1313, %v876
    %v1532 = vmul.f32 %v1316, %v876
    %1533 = vset.pattern.permute.xlu0 3
    %1534 = vperm.xlu0 %1533, %v1477
    %v1535 = vpop.permute.xlu0 %1534
    %1537 = vset.pattern.permute.xlu0 3
    %1538 = vperm.xlu0 %1537, %v1480
    %v1539 = vpop.permute.xlu0 %1538
    %v1541 = vlaneseq
    %v1542 = vshrl.u32 %v1541, 7
    %v1543 = vsub.s32 3, %v1542
    %v1544 = vrot.slane %v1357, %v1543
    %v1545 = vadd.f32 %v1535, %v1544
    %v1546 = vadd.f32 %v1539, %v1544
    %v1547 = vmul.f32 %v1313, %v896
    %v1548 = vmul.f32 %v1316, %v896
    %v1549 = vpack.c.bf16 %v1500, %v1499
    %v1550 = vpack.c.bf16 %v1516, %v1515
    %v1551 = vpack.c.bf16 %v1532, %v1531
    %v1552 = vpack.c.bf16 %v1548, %v1547
    %v1553 = vmul.f32 %v1497, 0.2
    %v1554 = vmul.f32 %v1498, 0.2
    %v1555 = vmul.f32 %v1513, 0.2
    %v1556 = vmul.f32 %v1514, 0.2
    %v1557 = vmul.f32 %v1529, 0.2
    %v1558 = vmul.f32 %v1530, 0.2
    %v1559 = vmul.f32 %v1545, 0.2
    %v1560 = vmul.f32 %v1546, 0.2
    %v1561 = vmax.f32 %v1497, %v1553
    %v1562 = vmax.f32 %v1498, %v1554
    %v1563 = vmax.f32 %v1513, %v1555
    %v1564 = vmax.f32 %v1514, %v1556
    %v1565 = vmax.f32 %v1529, %v1557
    %v1566 = vmax.f32 %v1530, %v1558
    %v1567 = vmax.f32 %v1545, %v1559
    %v1568 = vmax.f32 %v1546, %v1560
    %v1569 = vadd.f32 %v1561, %v92
    %v1570 = vadd.f32 %v1562, %v93
    %v1571 = vadd.f32 %v1563, %v92
    %v1572 = vadd.f32 %v1564, %v93
    %v1573 = vadd.f32 %v1565, %v92
    %v1574 = vadd.f32 %v1566, %v93
    %v1575 = vadd.f32 %v1567, %v92
    %v1576 = vadd.f32 %v1568, %v93
    %v1577 = vsel %vm927, %v1569, -inf
    %1578 = vmax.xlane.f32.xlu0 %v1577
    %v1579 = vpop.xlane.xlu0 %1578
    %v1580 = vsel %vm927, %v1570, -inf
    %1581 = vmax.xlane.f32.xlu0 %v1580
    %v1582 = vpop.xlane.xlu0 %1581
    %v1583 = vsel %vm927, %v1571, -inf
    %1584 = vmax.xlane.f32.xlu0 %v1583
    %v1585 = vpop.xlane.xlu0 %1584
    %v1586 = vsel %vm927, %v1572, -inf
    %1587 = vmax.xlane.f32.xlu0 %v1586
    %v1588 = vpop.xlane.xlu0 %1587
    %v1589 = vsel %vm927, %v1573, -inf
    %1590 = vmax.xlane.f32.xlu0 %v1589
    %v1591 = vpop.xlane.xlu0 %1590
    %v1592 = vsel %vm927, %v1574, -inf
    %1593 = vmax.xlane.f32.xlu0 %v1592
    %v1594 = vpop.xlane.xlu0 %1593
    %v1595 = vsel %vm927, %v1575, -inf
    %1596 = vmax.xlane.f32.xlu0 %v1595
    %v1597 = vpop.xlane.xlu0 %1596
    %v1598 = vsel %vm927, %v1576, -inf
    %1599 = vmax.xlane.f32.xlu0 %v1598
    %v1600 = vpop.xlane.xlu0 %1599
    %v1601 = vsub.f32 %v1569, %v1579
    %v1602 = vsub.f32 %v1570, %v1582
    %v1603 = vsub.f32 %v1571, %v1585
    %v1604 = vsub.f32 %v1572, %v1588
    %v1605 = vsub.f32 %v1573, %v1591
    %v1606 = vsub.f32 %v1574, %v1594
    %v1607 = vsub.f32 %v1575, %v1597
    %v1608 = vsub.f32 %v1576, %v1600
    %v1609 = vmul.f32 %v1601, 1.442695
    %v1610 = vpow.pop %v1609
    %v1611 = vmul.f32 %v1602, 1.442695
    %v1612 = vpow.pop %v1611
    %v1613 = vmul.f32 %v1603, 1.442695
    %v1614 = vpow.pop %v1613
    %v1615 = vmul.f32 %v1604, 1.442695
    %v1616 = vpow.pop %v1615
    %v1617 = vmul.f32 %v1605, 1.442695
    %v1618 = vpow.pop %v1617
    %v1619 = vmul.f32 %v1606, 1.442695
    %v1620 = vpow.pop %v1619
    %v1621 = vmul.f32 %v1607, 1.442695
    %v1622 = vpow.pop %v1621
    %v1623 = vmul.f32 %v1608, 1.442695
    %v1624 = vpow.pop %v1623
    %v1625 = vsel %vm927, %v1610, 0.0
    %1626 = vadd.xlane.f32.xlu0 %v1625
    %v1627 = vpop.xlane.xlu0 %1626
    %v1628 = vsel %vm927, %v1612, 0.0
    %1629 = vadd.xlane.f32.xlu0 %v1628
    %v1630 = vpop.xlane.xlu0 %1629
    %v1631 = vsel %vm927, %v1614, 0.0
    %1632 = vadd.xlane.f32.xlu0 %v1631
    %v1633 = vpop.xlane.xlu0 %1632
    %v1634 = vsel %vm927, %v1616, 0.0
    %1635 = vadd.xlane.f32.xlu0 %v1634
    %v1636 = vpop.xlane.xlu0 %1635
    %v1637 = vsel %vm927, %v1618, 0.0
    %1638 = vadd.xlane.f32.xlu0 %v1637
    %v1639 = vpop.xlane.xlu0 %1638
    %v1640 = vsel %vm927, %v1620, 0.0
    %1641 = vadd.xlane.f32.xlu0 %v1640
    %v1642 = vpop.xlane.xlu0 %1641
    %v1643 = vsel %vm927, %v1622, 0.0
    %1644 = vadd.xlane.f32.xlu0 %v1643
    %v1645 = vpop.xlane.xlu0 %1644
    %v1646 = vsel %vm927, %v1624, 0.0
    %1647 = vadd.xlane.f32.xlu0 %v1646
    %v1648 = vpop.xlane.xlu0 %1647
    %v1649 = vrcp.pop %v1627
    %v1650 = vrcp.pop %v1630
    %v1651 = vrcp.pop %v1633
    %v1652 = vrcp.pop %v1636
    %v1653 = vrcp.pop %v1639
    %v1654 = vrcp.pop %v1642
    %v1655 = vrcp.pop %v1645
    %v1656 = vrcp.pop %v1648
    %v1657 = vmul.f32 %v1610, %v1649
    %v1658 = vmul.f32 %v1612, %v1650
    %v1659 = vmul.f32 %v1614, %v1651
    %v1660 = vmul.f32 %v1616, %v1652
    %v1661 = vmul.f32 %v1618, %v1653
    %v1662 = vmul.f32 %v1620, %v1654
    %v1663 = vmul.f32 %v1622, %v1655
    %v1664 = vmul.f32 %v1624, %v1656
    %v1665 = vpack.c.bf16 %v1658, %v1657
    %v1666 = vpack.c.bf16 %v1660, %v1659
    %v1667 = vpack.c.bf16 %v1662, %v1661
    %v1668 = vpack.c.bf16 %v1664, %v1663
    %v1670 = vsel %vm927, %v1665, 0
    %1672 = vmatprep.subr.bf16.mxu0 0
    %1673 = vmatpush1.bf16.msra.mxu0 0
    %1674 = vmatprep.subr.bf16.mxu0 0
    %1675 = vmatpush1.bf16.msra.mxu0 0
    %1676 = vmatprep.subr.bf16.mxu0 0
    %1677 = vmatpush1.bf16.msra.mxu0 0
    %1678 = vmatprep.subr.bf16.mxu0 0
    %1679 = vmatpush1.bf16.msra.mxu0 0
    %1680 = vmatprep.subr.bf16.mxu0 0
    %1681 = vmatpush1.bf16.msra.mxu0 0
    %1682 = vmatprep.subr.bf16.mxu0 0
    %1683 = vmatpush1.bf16.msra.mxu0 0
    %1684 = vmatprep.subr.bf16.mxu0 0
    %1685 = vmatpush1.bf16.msra.mxu0 0
    %1686 = vmatprep.subr.bf16.mxu0 0
    %1687 = vmatpush1.bf16.msra.mxu0 %v1549
    %1688 = vmatprep.subr.bf16.mxu0 0
    %1689 = vmatpush2.bf16.msra.mxu0 0
    %1690 = vmatprep.subr.bf16.mxu0 0
    %1691 = vmatpush2.bf16.msra.mxu0 0
    %1692 = vmatprep.subr.bf16.mxu0 0
    %1693 = vmatpush2.bf16.msra.mxu0 0
    %1694 = vmatprep.subr.bf16.mxu0 0
    %1695 = vmatpush2.bf16.msra.mxu0 0
    %1696 = vmatprep.subr.bf16.mxu0 0
    %1697 = vmatpush2.bf16.msra.mxu0 0
    %1698 = vmatprep.subr.bf16.mxu0 0
    %1699 = vmatpush2.bf16.msra.mxu0 0
    %1700 = vmatprep.subr.bf16.mxu0 0
    %1701 = vmatpush2.bf16.msra.mxu0 0
    %1702 = vmatprep.subr.bf16.mxu0 0
    %1703 = vmatpush2.bf16.msra.mxu0 0
    %1704 = vmatprep.mubr.bf16.mxu0 0
    %1705 = vmatmul.mubr.bf16.gmra.mxu0 %v1670
    %v1706 = vpop.f32.mrf.mxu0
    %v1707 = vadd.f32 0.0, %v1706
    %v1708 = vpop.f32.mrf.mxu0
    %v1709 = vpop.f32.mrf.mxu0
    %v1710 = vadd.f32 0.0, %v1709
    %v1711 = vpop.f32.mrf.mxu0
    %1712 = vdwg.mxu0
    %v1714 = vsel %vm927, %v1666, 0
    %1716 = vmatprep.subr.bf16.mxu0 0
    %1717 = vmatpush1.bf16.msra.mxu0 0
    %1718 = vmatprep.subr.bf16.mxu0 0
    %1719 = vmatpush1.bf16.msra.mxu0 0
    %1720 = vmatprep.subr.bf16.mxu0 0
    %1721 = vmatpush1.bf16.msra.mxu0 0
    %1722 = vmatprep.subr.bf16.mxu0 0
    %1723 = vmatpush1.bf16.msra.mxu0 0
    %1724 = vmatprep.subr.bf16.mxu0 0
    %1725 = vmatpush1.bf16.msra.mxu0 0
    %1726 = vmatprep.subr.bf16.mxu0 0
    %1727 = vmatpush1.bf16.msra.mxu0 0
    %1728 = vmatprep.subr.bf16.mxu0 0
    %1729 = vmatpush1.bf16.msra.mxu0 0
    %1730 = vmatprep.subr.bf16.mxu0 0
    %1731 = vmatpush1.bf16.msra.mxu0 %v1550
    %1732 = vmatprep.subr.bf16.mxu0 0
    %1733 = vmatpush2.bf16.msra.mxu0 0
    %1734 = vmatprep.subr.bf16.mxu0 0
    %1735 = vmatpush2.bf16.msra.mxu0 0
    %1736 = vmatprep.subr.bf16.mxu0 0
    %1737 = vmatpush2.bf16.msra.mxu0 0
    %1738 = vmatprep.subr.bf16.mxu0 0
    %1739 = vmatpush2.bf16.msra.mxu0 0
    %1740 = vmatprep.subr.bf16.mxu0 0
    %1741 = vmatpush2.bf16.msra.mxu0 0
    %1742 = vmatprep.subr.bf16.mxu0 0
    %1743 = vmatpush2.bf16.msra.mxu0 0
    %1744 = vmatprep.subr.bf16.mxu0 0
    %1745 = vmatpush2.bf16.msra.mxu0 0
    %1746 = vmatprep.subr.bf16.mxu0 0
    %1747 = vmatpush2.bf16.msra.mxu0 0
    %1748 = vmatprep.mubr.bf16.mxu0 0
    %1749 = vmatmul.mubr.bf16.gmra.mxu0 %v1714
    %v1750 = vpop.f32.mrf.mxu0
    %v1751 = vadd.f32 0.0, %v1750
    %v1752 = vpop.f32.mrf.mxu0
    %v1753 = vpop.f32.mrf.mxu0
    %v1754 = vadd.f32 0.0, %v1753
    %v1755 = vpop.f32.mrf.mxu0
    %1756 = vdwg.mxu0
    %v1758 = vsel %vm927, %v1667, 0
    %1760 = vmatprep.subr.bf16.mxu0 0
    %1761 = vmatpush1.bf16.msra.mxu0 0
    %1762 = vmatprep.subr.bf16.mxu0 0
    %1763 = vmatpush1.bf16.msra.mxu0 0
    %1764 = vmatprep.subr.bf16.mxu0 0
    %1765 = vmatpush1.bf16.msra.mxu0 0
    %1766 = vmatprep.subr.bf16.mxu0 0
    %1767 = vmatpush1.bf16.msra.mxu0 0
    %1768 = vmatprep.subr.bf16.mxu0 0
    %1769 = vmatpush1.bf16.msra.mxu0 0
    %1770 = vmatprep.subr.bf16.mxu0 0
    %1771 = vmatpush1.bf16.msra.mxu0 0
    %1772 = vmatprep.subr.bf16.mxu0 0
    %1773 = vmatpush1.bf16.msra.mxu0 0
    %1774 = vmatprep.subr.bf16.mxu0 0
    %1775 = vmatpush1.bf16.msra.mxu0 %v1551
    %1776 = vmatprep.subr.bf16.mxu0 0
    %1777 = vmatpush2.bf16.msra.mxu0 0
    %1778 = vmatprep.subr.bf16.mxu0 0
    %1779 = vmatpush2.bf16.msra.mxu0 0
    %1780 = vmatprep.subr.bf16.mxu0 0
    %1781 = vmatpush2.bf16.msra.mxu0 0
    %1782 = vmatprep.subr.bf16.mxu0 0
    %1783 = vmatpush2.bf16.msra.mxu0 0
    %1784 = vmatprep.subr.bf16.mxu0 0
    %1785 = vmatpush2.bf16.msra.mxu0 0
    %1786 = vmatprep.subr.bf16.mxu0 0
    %1787 = vmatpush2.bf16.msra.mxu0 0
    %1788 = vmatprep.subr.bf16.mxu0 0
    %1789 = vmatpush2.bf16.msra.mxu0 0
    %1790 = vmatprep.subr.bf16.mxu0 0
    %1791 = vmatpush2.bf16.msra.mxu0 0
    %1792 = vmatprep.mubr.bf16.mxu0 0
    %1793 = vmatmul.mubr.bf16.gmra.mxu0 %v1758
    %v1794 = vpop.f32.mrf.mxu0
    %v1795 = vadd.f32 0.0, %v1794
    %v1796 = vpop.f32.mrf.mxu0
    %v1797 = vpop.f32.mrf.mxu0
    %v1798 = vadd.f32 0.0, %v1797
    %v1799 = vpop.f32.mrf.mxu0
    %1800 = vdwg.mxu0
    %v1802 = vsel %vm927, %v1668, 0
    %1804 = vmatprep.subr.bf16.mxu0 0
    %1805 = vmatpush1.bf16.msra.mxu0 0
    %1806 = vmatprep.subr.bf16.mxu0 0
    %1807 = vmatpush1.bf16.msra.mxu0 0
    %1808 = vmatprep.subr.bf16.mxu0 0
    %1809 = vmatpush1.bf16.msra.mxu0 0
    %1810 = vmatprep.subr.bf16.mxu0 0
    %1811 = vmatpush1.bf16.msra.mxu0 0
    %1812 = vmatprep.subr.bf16.mxu0 0
    %1813 = vmatpush1.bf16.msra.mxu0 0
    %1814 = vmatprep.subr.bf16.mxu0 0
    %1815 = vmatpush1.bf16.msra.mxu0 0
    %1816 = vmatprep.subr.bf16.mxu0 0
    %1817 = vmatpush1.bf16.msra.mxu0 0
    %1818 = vmatprep.subr.bf16.mxu0 0
    %1819 = vmatpush1.bf16.msra.mxu0 %v1552
    %1820 = vmatprep.subr.bf16.mxu0 0
    %1821 = vmatpush2.bf16.msra.mxu0 0
    %1822 = vmatprep.subr.bf16.mxu0 0
    %1823 = vmatpush2.bf16.msra.mxu0 0
    %1824 = vmatprep.subr.bf16.mxu0 0
    %1825 = vmatpush2.bf16.msra.mxu0 0
    %1826 = vmatprep.subr.bf16.mxu0 0
    %1827 = vmatpush2.bf16.msra.mxu0 0
    %1828 = vmatprep.subr.bf16.mxu0 0
    %1829 = vmatpush2.bf16.msra.mxu0 0
    %1830 = vmatprep.subr.bf16.mxu0 0
    %1831 = vmatpush2.bf16.msra.mxu0 0
    %1832 = vmatprep.subr.bf16.mxu0 0
    %1833 = vmatpush2.bf16.msra.mxu0 0
    %1834 = vmatprep.subr.bf16.mxu0 0
    %1835 = vmatpush2.bf16.msra.mxu0 0
    %1836 = vmatprep.mubr.bf16.mxu0 0
    %1837 = vmatmul.mubr.bf16.gmra.mxu0 %v1802
    %v1838 = vpop.f32.mrf.mxu0
    %v1839 = vadd.f32 0.0, %v1838
    %v1840 = vpop.f32.mrf.mxu0
    %v1841 = vpop.f32.mrf.mxu0
    %v1842 = vadd.f32 0.0, %v1841
    %v1843 = vpop.f32.mrf.mxu0
    %1844 = vdwg.mxu0
    %v1845 = vadd.f32 %v1707, %v1751
    %v1846 = vadd.f32 %v1710, %v1754
    %v1847 = vadd.f32 %v1845, %v1795
    %v1848 = vadd.f32 %v1846, %v1798
    %v1849 = vadd.f32 %v1847, %v1839
    %v1850 = vadd.f32 %v1848, %v1842
    %v1851 = vld [vmem:[%s4 + $0x21] sm:$0x1]
    %v1852 = vlaneseq
    %v1853 = vshrl.u32 %v1852, 7
    %v1854 = vsub.s32 0, %v1853
    %v1855 = vrot.slane %v1851, %v1854
    %v1856 = vadd.f32 %v1849, %v1855
    %v1857 = vadd.f32 %v1850, %v1855
    %v1858 = vmax.f32 %v1856, 0.0
    %v1859 = vmax.f32 %v1857, 0.0
    %v1860 = vadd.f32 %v1858, %v1211
    %v1861 = vadd.f32 %v1859, %v1212
    %v1862 = vld [vmem:[#allocation4 + $0x140] sm:$0xf]
    %v1863 = vld [vmem:[#allocation4 + $0x144] sm:$0xf]
    %v1864 = vld [vmem:[#allocation4 + $0x148] sm:$0xf]
    %v1865 = vld [vmem:[#allocation4 + $0x14c] sm:$0xf]
    %v1866 = vld [vmem:[#allocation4 + $0x150] sm:$0xf]
    %v1867 = vld [vmem:[#allocation4 + $0x154] sm:$0xf]
    %v1868 = vld [vmem:[#allocation4 + $0x158] sm:$0xf]
    %v1869 = vld [vmem:[#allocation4 + $0x15c] sm:$0xf]
    %v1870 = vld [vmem:[#allocation4 + $0x160] sm:$0xf]
    %v1871 = vld [vmem:[#allocation4 + $0x164] sm:$0xf]
    %v1872 = vld [vmem:[#allocation4 + $0x168] sm:$0xf]
    %v1873 = vld [vmem:[#allocation4 + $0x16c] sm:$0xf]
    %v1874 = vld [vmem:[#allocation4 + $0x170] sm:$0xf]
    %v1875 = vld [vmem:[#allocation4 + $0x174] sm:$0xf]
    %v1876 = vld [vmem:[#allocation4 + $0x178] sm:$0xf]
    %v1877 = vld [vmem:[#allocation4 + $0x17c] sm:$0xf]
    %v1878 = vpack.c.bf16 %v1861, %v1860
    %v1895 = vunpack.c.l.b16 %v1862
    %v1896 = vunpack.c.l.b16 %v1863
    %v1897 = vunpack.c.l.b16 %v1864
    %v1898 = vunpack.c.l.b16 %v1865
    %v1899 = vunpack.c.l.b16 %v1866
    %v1900 = vunpack.c.l.b16 %v1867
    %v1901 = vunpack.c.l.b16 %v1868
    %v1902 = vunpack.c.l.b16 %v1869
    %v1903 = vunpack.c.l.b16 %v1870
    %v1904 = vunpack.c.l.b16 %v1871
    %v1905 = vunpack.c.l.b16 %v1872
    %v1906 = vunpack.c.l.b16 %v1873
    %v1907 = vunpack.c.l.b16 %v1874
    %v1908 = vunpack.c.l.b16 %v1875
    %v1909 = vunpack.c.l.b16 %v1876
    %v1910 = vunpack.c.l.b16 %v1877
    %v1911 = vpack.c.b16 %v1896, %v1895
    %v1912 = vpack.c.b16 %v1898, %v1897
    %v1913 = vpack.c.b16 %v1900, %v1899
    %v1914 = vpack.c.b16 %v1902, %v1901
    %v1915 = vpack.c.b16 %v1904, %v1903
    %v1916 = vpack.c.b16 %v1906, %v1905
    %v1917 = vpack.c.b16 %v1908, %v1907
    %v1918 = vpack.c.b16 %v1910, %v1909
    %1927 = vmatprep.subr.bf16.mxu0 0
    %1928 = vmatpush1.bf16.msra.mxu0 %v1918
    %1929 = vmatprep.subr.bf16.mxu0 0
    %1930 = vmatpush1.bf16.msra.mxu0 %v1917
    %1931 = vmatprep.subr.bf16.mxu0 0
    %1932 = vmatpush1.bf16.msra.mxu0 %v1916
    %1933 = vmatprep.subr.bf16.mxu0 0
    %1934 = vmatpush1.bf16.msra.mxu0 %v1915
    %1935 = vmatprep.subr.bf16.mxu0 0
    %1936 = vmatpush1.bf16.msra.mxu0 %v1914
    %1937 = vmatprep.subr.bf16.mxu0 0
    %1938 = vmatpush1.bf16.msra.mxu0 %v1913
    %1939 = vmatprep.subr.bf16.mxu0 0
    %1940 = vmatpush1.bf16.msra.mxu0 %v1912
    %1941 = vmatprep.subr.bf16.mxu0 0
    %1942 = vmatpush1.bf16.msra.mxu0 %v1911
    %1943 = vmatprep.subr.bf16.mxu0 0
    %1944 = vmatpush2.bf16.msra.mxu0 0
    %1945 = vmatprep.subr.bf16.mxu0 0
    %1946 = vmatpush2.bf16.msra.mxu0 0
    %1947 = vmatprep.subr.bf16.mxu0 0
    %1948 = vmatpush2.bf16.msra.mxu0 0
    %1949 = vmatprep.subr.bf16.mxu0 0
    %1950 = vmatpush2.bf16.msra.mxu0 0
    %1951 = vmatprep.subr.bf16.mxu0 0
    %1952 = vmatpush2.bf16.msra.mxu0 0
    %1953 = vmatprep.subr.bf16.mxu0 0
    %1954 = vmatpush2.bf16.msra.mxu0 0
    %1955 = vmatprep.subr.bf16.mxu0 0
    %1956 = vmatpush2.bf16.msra.mxu0 0
    %1957 = vmatprep.subr.bf16.mxu0 0
    %1958 = vmatpush2.bf16.msra.mxu0 0
    %1959 = vmatprep.mubr.bf16.mxu0 0
    %1960 = vmatmul.mubr.bf16.gmra.mxu0 %v1878
    %v1961 = vpop.f32.mrf.mxu0
    %v1962 = vadd.f32 0.0, %v1961
    %v1963 = vpop.f32.mrf.mxu0
    %v1964 = vpop.f32.mrf.mxu0
    %v1965 = vadd.f32 0.0, %v1964
    %v1966 = vpop.f32.mrf.mxu0
    %1967 = vdwg.mxu0
    %v1968 = vpack.c.bf16 %v1965, %v1962
    %v1969 = vld [vmem:[%s4 + $0x18] sm:$0xf]
    %v1970 = vpack.c.bf16 %v1969, %v1969
    %1971 = vmatprep.subr.bf16.mxu0 0
    %1972 = vmatpush1.bf16.xpose.msra.mxu0 0
    %1973 = vmatprep.subr.bf16.mxu0 0
    %1974 = vmatpush1.bf16.xpose.msra.mxu0 0
    %1975 = vmatprep.subr.bf16.mxu0 0
    %1976 = vmatpush1.bf16.xpose.msra.mxu0 0
    %1977 = vmatprep.subr.bf16.mxu0 0
    %1978 = vmatpush1.bf16.xpose.msra.mxu0 0
    %1979 = vmatprep.subr.bf16.mxu0 0
    %1980 = vmatpush1.bf16.xpose.msra.mxu0 0
    %1981 = vmatprep.subr.bf16.mxu0 0
    %1982 = vmatpush1.bf16.xpose.msra.mxu0 0
    %1983 = vmatprep.subr.bf16.mxu0 0
    %1984 = vmatpush1.bf16.xpose.msra.mxu0 0
    %1985 = vmatprep.subr.bf16.mxu0 0
    %1986 = vmatpush1.bf16.xpose.msra.mxu0 %v1968
    %1987 = vmatprep.subr.bf16.mxu0 0
    %1988 = vmatpush2.bf16.xpose.msra.mxu0 0
    %1989 = vmatprep.subr.bf16.mxu0 0
    %1990 = vmatpush2.bf16.xpose.msra.mxu0 0
    %1991 = vmatprep.subr.bf16.mxu0 0
    %1992 = vmatpush2.bf16.xpose.msra.mxu0 0
    %1993 = vmatprep.subr.bf16.mxu0 0
    %1994 = vmatpush2.bf16.xpose.msra.mxu0 0
    %1995 = vmatprep.subr.bf16.mxu0 0
    %1996 = vmatpush2.bf16.xpose.msra.mxu0 0
    %1997 = vmatprep.subr.bf16.mxu0 0
    %1998 = vmatpush2.bf16.xpose.msra.mxu0 0
    %1999 = vmatprep.subr.bf16.mxu0 0
    %2000 = vmatpush2.bf16.xpose.msra.mxu0 0
    %2001 = vmatprep.subr.bf16.mxu0 0
    %2002 = vmatpush2.bf16.xpose.msra.mxu0 0
    %2003 = vmatprep.mubr.bf16.mxu0 0
    %2004 = vmatmul.mubr.bf16.gmra.mxu0 %v1970
    %v2005 = vpop.f32.mrf.mxu0
    %v2006 = vadd.f32 0.0, %v2005
    %v2007 = vpop.f32.mrf.mxu0
    %v2008 = vpop.f32.mrf.mxu0
    %v2009 = vpop.f32.mrf.mxu0
    %2010 = vdwg.mxu0
    %v2011 = vld [vmem:[#allocation4 + $0x200] sm:$0xf]
    %v2012 = vld [vmem:[#allocation4 + $0x204] sm:$0xf]
    %v2013 = vld [vmem:[#allocation4 + $0x208] sm:$0xf]
    %v2014 = vld [vmem:[#allocation4 + $0x20c] sm:$0xf]
    %v2015 = vld [vmem:[#allocation4 + $0x210] sm:$0xf]
    %v2016 = vld [vmem:[#allocation4 + $0x214] sm:$0xf]
    %v2017 = vld [vmem:[#allocation4 + $0x218] sm:$0xf]
    %v2018 = vld [vmem:[#allocation4 + $0x21c] sm:$0xf]
    %v2019 = vld [vmem:[#allocation4 + $0x220] sm:$0xf]
    %v2020 = vld [vmem:[#allocation4 + $0x224] sm:$0xf]
    %v2021 = vld [vmem:[#allocation4 + $0x228] sm:$0xf]
    %v2022 = vld [vmem:[#allocation4 + $0x22c] sm:$0xf]
    %v2023 = vld [vmem:[#allocation4 + $0x230] sm:$0xf]
    %v2024 = vld [vmem:[#allocation4 + $0x234] sm:$0xf]
    %v2025 = vld [vmem:[#allocation4 + $0x238] sm:$0xf]
    %v2026 = vld [vmem:[#allocation4 + $0x23c] sm:$0xf]
    %v2043 = vunpack.c.l.b16 %v2011
    %v2044 = vunpack.c.l.b16 %v2012
    %v2045 = vunpack.c.l.b16 %v2013
    %v2046 = vunpack.c.l.b16 %v2014
    %v2047 = vunpack.c.l.b16 %v2015
    %v2048 = vunpack.c.l.b16 %v2016
    %v2049 = vunpack.c.l.b16 %v2017
    %v2050 = vunpack.c.l.b16 %v2018
    %v2051 = vunpack.c.l.b16 %v2019
    %v2052 = vunpack.c.l.b16 %v2020
    %v2053 = vunpack.c.l.b16 %v2021
    %v2054 = vunpack.c.l.b16 %v2022
    %v2055 = vunpack.c.l.b16 %v2023
    %v2056 = vunpack.c.l.b16 %v2024
    %v2057 = vunpack.c.l.b16 %v2025
    %v2058 = vunpack.c.l.b16 %v2026
    %v2059 = vpack.c.b16 %v2044, %v2043
    %v2060 = vpack.c.b16 %v2046, %v2045
    %v2061 = vpack.c.b16 %v2048, %v2047
    %v2062 = vpack.c.b16 %v2050, %v2049
    %v2063 = vpack.c.b16 %v2052, %v2051
    %v2064 = vpack.c.b16 %v2054, %v2053
    %v2065 = vpack.c.b16 %v2056, %v2055
    %v2066 = vpack.c.b16 %v2058, %v2057
    %2067 = vrot.lane.b32.xlu0 %v2059, 120
    %v2068 = vpop.permute.xlu0 %2067
    %2069 = vrot.lane.b32.xlu0 %v2060, 120
    %v2070 = vpop.permute.xlu0 %2069
    %2071 = vrot.lane.b32.xlu0 %v2061, 120
    %v2072 = vpop.permute.xlu0 %2071
    %2073 = vrot.lane.b32.xlu0 %v2062, 120
    %v2074 = vpop.permute.xlu0 %2073
    %2075 = vrot.lane.b32.xlu0 %v2063, 120
    %v2076 = vpop.permute.xlu0 %2075
    %2077 = vrot.lane.b32.xlu0 %v2064, 120
    %v2078 = vpop.permute.xlu0 %2077
    %2079 = vrot.lane.b32.xlu0 %v2065, 120
    %v2080 = vpop.permute.xlu0 %2079
    %2081 = vrot.lane.b32.xlu0 %v2066, 120
    %v2082 = vpop.permute.xlu0 %2081
    %2091 = vmatprep.subr.bf16.mxu0 0
    %2092 = vmatpush1.bf16.msra.mxu0 %v2082
    %2093 = vmatprep.subr.bf16.mxu0 0
    %2094 = vmatpush1.bf16.msra.mxu0 %v2080
    %2095 = vmatprep.subr.bf16.mxu0 0
    %2096 = vmatpush1.bf16.msra.mxu0 %v2078
    %2097 = vmatprep.subr.bf16.mxu0 0
    %2098 = vmatpush1.bf16.msra.mxu0 %v2076
    %2099 = vmatprep.subr.bf16.mxu0 0
    %2100 = vmatpush1.bf16.msra.mxu0 %v2074
    %2101 = vmatprep.subr.bf16.mxu0 0
    %2102 = vmatpush1.bf16.msra.mxu0 %v2072
    %2103 = vmatprep.subr.bf16.mxu0 0
    %2104 = vmatpush1.bf16.msra.mxu0 %v2070
    %2105 = vmatprep.subr.bf16.mxu0 0
    %2106 = vmatpush1.bf16.msra.mxu0 %v2068
    %2107 = vmatprep.subr.bf16.mxu0 0
    %2108 = vmatpush2.bf16.msra.mxu0 0
    %2109 = vmatprep.subr.bf16.mxu0 0
    %2110 = vmatpush2.bf16.msra.mxu0 0
    %2111 = vmatprep.subr.bf16.mxu0 0
    %2112 = vmatpush2.bf16.msra.mxu0 0
    %2113 = vmatprep.subr.bf16.mxu0 0
    %2114 = vmatpush2.bf16.msra.mxu0 0
    %2115 = vmatprep.subr.bf16.mxu0 0
    %2116 = vmatpush2.bf16.msra.mxu0 0
    %2117 = vmatprep.subr.bf16.mxu0 0
    %2118 = vmatpush2.bf16.msra.mxu0 0
    %2119 = vmatprep.subr.bf16.mxu0 0
    %2120 = vmatpush2.bf16.msra.mxu0 0
    %2121 = vmatprep.subr.bf16.mxu0 0
    %2122 = vmatpush2.bf16.msra.mxu0 0
    %2123 = vmatprep.mubr.bf16.mxu0 0
    %2124 = vmatmul.mubr.bf16.gmra.mxu0 %v1968
    %v2125 = vpop.f32.mrf.mxu0
    %v2126 = vadd.f32 0.0, %v2125
    %v2127 = vpop.f32.mrf.mxu0
    %v2128 = vpop.f32.mrf.mxu0
    %v2129 = vadd.f32 0.0, %v2128
    %v2130 = vpop.f32.mrf.mxu0
    %2131 = vdwg.mxu0
    %2133 = vset.pattern.permute.xlu0 0
    %2134 = vperm.xlu0 %2133, %v2126
    %v2135 = vpop.permute.xlu0 %2134
    %2138 = vset.pattern.permute.xlu0 0
    %2139 = vperm.xlu0 %2138, %v2129
    %v2140 = vpop.permute.xlu0 %2139
    %v2142 = vlaneseq
    %v2143 = vshrl.u32 %v2142, 7
    %v2144 = vsub.s32 0, %v2143
    %v2145 = vrot.slane %v2006, %v2144
    %v2146 = vadd.f32 %v2135, %v2145
    %v2147 = vadd.f32 %v2140, %v2145
    %v2148 = vmul.f32 %v1962, %v836
    %v2149 = vmul.f32 %v1965, %v836
    %2150 = vset.pattern.permute.xlu0 1
    %2151 = vperm.xlu0 %2150, %v2126
    %v2152 = vpop.permute.xlu0 %2151
    %2154 = vset.pattern.permute.xlu0 1
    %2155 = vperm.xlu0 %2154, %v2129
    %v2156 = vpop.permute.xlu0 %2155
    %v2158 = vlaneseq
    %v2159 = vshrl.u32 %v2158, 7
    %v2160 = vsub.s32 1, %v2159
    %v2161 = vrot.slane %v2006, %v2160
    %v2162 = vadd.f32 %v2152, %v2161
    %v2163 = vadd.f32 %v2156, %v2161
    %v2164 = vmul.f32 %v1962, %v856
    %v2165 = vmul.f32 %v1965, %v856
    %2166 = vset.pattern.permute.xlu0 2
    %2167 = vperm.xlu0 %2166, %v2126
    %v2168 = vpop.permute.xlu0 %2167
    %2170 = vset.pattern.permute.xlu0 2
    %2171 = vperm.xlu0 %2170, %v2129
    %v2172 = vpop.permute.xlu0 %2171
    %v2174 = vlaneseq
    %v2175 = vshrl.u32 %v2174, 7
    %v2176 = vsub.s32 2, %v2175
    %v2177 = vrot.slane %v2006, %v2176
    %v2178 = vadd.f32 %v2168, %v2177
    %v2179 = vadd.f32 %v2172, %v2177
    %v2180 = vmul.f32 %v1962, %v876
    %v2181 = vmul.f32 %v1965, %v876
    %2182 = vset.pattern.permute.xlu0 3
    %2183 = vperm.xlu0 %2182, %v2126
    %v2184 = vpop.permute.xlu0 %2183
    %2186 = vset.pattern.permute.xlu0 3
    %2187 = vperm.xlu0 %2186, %v2129
    %v2188 = vpop.permute.xlu0 %2187
    %v2190 = vlaneseq
    %v2191 = vshrl.u32 %v2190, 7
    %v2192 = vsub.s32 3, %v2191
    %v2193 = vrot.slane %v2006, %v2192
    %v2194 = vadd.f32 %v2184, %v2193
    %v2195 = vadd.f32 %v2188, %v2193
    %v2196 = vmul.f32 %v1962, %v896
    %v2197 = vmul.f32 %v1965, %v896
    %v2198 = vpack.c.bf16 %v2149, %v2148
    %v2199 = vpack.c.bf16 %v2165, %v2164
    %v2200 = vpack.c.bf16 %v2181, %v2180
    %v2201 = vpack.c.bf16 %v2197, %v2196
    %v2202 = vmul.f32 %v2146, 0.2
    %v2203 = vmul.f32 %v2147, 0.2
    %v2204 = vmul.f32 %v2162, 0.2
    %v2205 = vmul.f32 %v2163, 0.2
    %v2206 = vmul.f32 %v2178, 0.2
    %v2207 = vmul.f32 %v2179, 0.2
    %v2208 = vmul.f32 %v2194, 0.2
    %v2209 = vmul.f32 %v2195, 0.2
    %v2210 = vmax.f32 %v2146, %v2202
    %v2211 = vmax.f32 %v2147, %v2203
    %v2212 = vmax.f32 %v2162, %v2204
    %v2213 = vmax.f32 %v2163, %v2205
    %v2214 = vmax.f32 %v2178, %v2206
    %v2215 = vmax.f32 %v2179, %v2207
    %v2216 = vmax.f32 %v2194, %v2208
    %v2217 = vmax.f32 %v2195, %v2209
    %v2218 = vadd.f32 %v2210, %v92
    %v2219 = vadd.f32 %v2211, %v93
    %v2220 = vadd.f32 %v2212, %v92
    %v2221 = vadd.f32 %v2213, %v93
    %v2222 = vadd.f32 %v2214, %v92
    %v2223 = vadd.f32 %v2215, %v93
    %v2224 = vadd.f32 %v2216, %v92
    %v2225 = vadd.f32 %v2217, %v93
    %v2226 = vsel %vm927, %v2218, -inf
    %2227 = vmax.xlane.f32.xlu0 %v2226
    %v2228 = vpop.xlane.xlu0 %2227
    %v2229 = vsel %vm927, %v2219, -inf
    %2230 = vmax.xlane.f32.xlu0 %v2229
    %v2231 = vpop.xlane.xlu0 %2230
    %v2232 = vsel %vm927, %v2220, -inf
    %2233 = vmax.xlane.f32.xlu0 %v2232
    %v2234 = vpop.xlane.xlu0 %2233
    %v2235 = vsel %vm927, %v2221, -inf
    %2236 = vmax.xlane.f32.xlu0 %v2235
    %v2237 = vpop.xlane.xlu0 %2236
    %v2238 = vsel %vm927, %v2222, -inf
    %2239 = vmax.xlane.f32.xlu0 %v2238
    %v2240 = vpop.xlane.xlu0 %2239
    %v2241 = vsel %vm927, %v2223, -inf
    %2242 = vmax.xlane.f32.xlu0 %v2241
    %v2243 = vpop.xlane.xlu0 %2242
    %v2244 = vsel %vm927, %v2224, -inf
    %2245 = vmax.xlane.f32.xlu0 %v2244
    %v2246 = vpop.xlane.xlu0 %2245
    %v2247 = vsel %vm927, %v2225, -inf
    %2248 = vmax.xlane.f32.xlu0 %v2247
    %v2249 = vpop.xlane.xlu0 %2248
    %v2250 = vsub.f32 %v2218, %v2228
    %v2251 = vsub.f32 %v2219, %v2231
    %v2252 = vsub.f32 %v2220, %v2234
    %v2253 = vsub.f32 %v2221, %v2237
    %v2254 = vsub.f32 %v2222, %v2240
    %v2255 = vsub.f32 %v2223, %v2243
    %v2256 = vsub.f32 %v2224, %v2246
    %v2257 = vsub.f32 %v2225, %v2249
    %v2258 = vmul.f32 %v2250, 1.442695
    %v2259 = vpow.pop %v2258
    %v2260 = vmul.f32 %v2251, 1.442695
    %v2261 = vpow.pop %v2260
    %v2262 = vmul.f32 %v2252, 1.442695
    %v2263 = vpow.pop %v2262
    %v2264 = vmul.f32 %v2253, 1.442695
    %v2265 = vpow.pop %v2264
    %v2266 = vmul.f32 %v2254, 1.442695
    %v2267 = vpow.pop %v2266
    %v2268 = vmul.f32 %v2255, 1.442695
    %v2269 = vpow.pop %v2268
    %v2270 = vmul.f32 %v2256, 1.442695
    %v2271 = vpow.pop %v2270
    %v2272 = vmul.f32 %v2257, 1.442695
    %v2273 = vpow.pop %v2272
    %v2274 = vsel %vm927, %v2259, 0.0
    %2275 = vadd.xlane.f32.xlu0 %v2274
    %v2276 = vpop.xlane.xlu0 %2275
    %v2277 = vsel %vm927, %v2261, 0.0
    %2278 = vadd.xlane.f32.xlu0 %v2277
    %v2279 = vpop.xlane.xlu0 %2278
    %v2280 = vsel %vm927, %v2263, 0.0
    %2281 = vadd.xlane.f32.xlu0 %v2280
    %v2282 = vpop.xlane.xlu0 %2281
    %v2283 = vsel %vm927, %v2265, 0.0
    %2284 = vadd.xlane.f32.xlu0 %v2283
    %v2285 = vpop.xlane.xlu0 %2284
    %v2286 = vsel %vm927, %v2267, 0.0
    %2287 = vadd.xlane.f32.xlu0 %v2286
    %v2288 = vpop.xlane.xlu0 %2287
    %v2289 = vsel %vm927, %v2269, 0.0
    %2290 = vadd.xlane.f32.xlu0 %v2289
    %v2291 = vpop.xlane.xlu0 %2290
    %v2292 = vsel %vm927, %v2271, 0.0
    %2293 = vadd.xlane.f32.xlu0 %v2292
    %v2294 = vpop.xlane.xlu0 %2293
    %v2295 = vsel %vm927, %v2273, 0.0
    %2296 = vadd.xlane.f32.xlu0 %v2295
    %v2297 = vpop.xlane.xlu0 %2296
    %v2298 = vrcp.pop %v2276
    %v2299 = vrcp.pop %v2279
    %v2300 = vrcp.pop %v2282
    %v2301 = vrcp.pop %v2285
    %v2302 = vrcp.pop %v2288
    %v2303 = vrcp.pop %v2291
    %v2304 = vrcp.pop %v2294
    %v2305 = vrcp.pop %v2297
    %v2306 = vmul.f32 %v2259, %v2298
    %v2307 = vmul.f32 %v2261, %v2299
    %v2308 = vmul.f32 %v2263, %v2300
    %v2309 = vmul.f32 %v2265, %v2301
    %v2310 = vmul.f32 %v2267, %v2302
    %v2311 = vmul.f32 %v2269, %v2303
    %v2312 = vmul.f32 %v2271, %v2304
    %v2313 = vmul.f32 %v2273, %v2305
    %v2314 = vpack.c.bf16 %v2307, %v2306
    %v2315 = vpack.c.bf16 %v2309, %v2308
    %v2316 = vpack.c.bf16 %v2311, %v2310
    %v2317 = vpack.c.bf16 %v2313, %v2312
    %v2319 = vsel %vm927, %v2314, 0
    %2321 = vmatprep.subr.bf16.mxu0 0
    %2322 = vmatpush1.bf16.msra.mxu0 0
    %2323 = vmatprep.subr.bf16.mxu0 0
    %2324 = vmatpush1.bf16.msra.mxu0 0
    %2325 = vmatprep.subr.bf16.mxu0 0
    %2326 = vmatpush1.bf16.msra.mxu0 0
    %2327 = vmatprep.subr.bf16.mxu0 0
    %2328 = vmatpush1.bf16.msra.mxu0 0
    %2329 = vmatprep.subr.bf16.mxu0 0
    %2330 = vmatpush1.bf16.msra.mxu0 0
    %2331 = vmatprep.subr.bf16.mxu0 0
    %2332 = vmatpush1.bf16.msra.mxu0 0
    %2333 = vmatprep.subr.bf16.mxu0 0
    %2334 = vmatpush1.bf16.msra.mxu0 0
    %2335 = vmatprep.subr.bf16.mxu0 0
    %2336 = vmatpush1.bf16.msra.mxu0 %v2198
    %2337 = vmatprep.subr.bf16.mxu0 0
    %2338 = vmatpush2.bf16.msra.mxu0 0
    %2339 = vmatprep.subr.bf16.mxu0 0
    %2340 = vmatpush2.bf16.msra.mxu0 0
    %2341 = vmatprep.subr.bf16.mxu0 0
    %2342 = vmatpush2.bf16.msra.mxu0 0
    %2343 = vmatprep.subr.bf16.mxu0 0
    %2344 = vmatpush2.bf16.msra.mxu0 0
    %2345 = vmatprep.subr.bf16.mxu0 0
    %2346 = vmatpush2.bf16.msra.mxu0 0
    %2347 = vmatprep.subr.bf16.mxu0 0
    %2348 = vmatpush2.bf16.msra.mxu0 0
    %2349 = vmatprep.subr.bf16.mxu0 0
    %2350 = vmatpush2.bf16.msra.mxu0 0
    %2351 = vmatprep.subr.bf16.mxu0 0
    %2352 = vmatpush2.bf16.msra.mxu0 0
    %2353 = vmatprep.mubr.bf16.mxu0 0
    %2354 = vmatmul.mubr.bf16.gmra.mxu0 %v2319
    %v2355 = vpop.f32.mrf.mxu0
    %v2356 = vadd.f32 0.0, %v2355
    %v2357 = vpop.f32.mrf.mxu0
    %v2358 = vpop.f32.mrf.mxu0
    %v2359 = vadd.f32 0.0, %v2358
    %v2360 = vpop.f32.mrf.mxu0
    %2361 = vdwg.mxu0
    %v2363 = vsel %vm927, %v2315, 0
    %2365 = vmatprep.subr.bf16.mxu0 0
    %2366 = vmatpush1.bf16.msra.mxu0 0
    %2367 = vmatprep.subr.bf16.mxu0 0
    %2368 = vmatpush1.bf16.msra.mxu0 0
    %2369 = vmatprep.subr.bf16.mxu0 0
    %2370 = vmatpush1.bf16.msra.mxu0 0
    %2371 = vmatprep.subr.bf16.mxu0 0
    %2372 = vmatpush1.bf16.msra.mxu0 0
    %2373 = vmatprep.subr.bf16.mxu0 0
    %2374 = vmatpush1.bf16.msra.mxu0 0
    %2375 = vmatprep.subr.bf16.mxu0 0
    %2376 = vmatpush1.bf16.msra.mxu0 0
    %2377 = vmatprep.subr.bf16.mxu0 0
    %2378 = vmatpush1.bf16.msra.mxu0 0
    %2379 = vmatprep.subr.bf16.mxu0 0
    %2380 = vmatpush1.bf16.msra.mxu0 %v2199
    %2381 = vmatprep.subr.bf16.mxu0 0
    %2382 = vmatpush2.bf16.msra.mxu0 0
    %2383 = vmatprep.subr.bf16.mxu0 0
    %2384 = vmatpush2.bf16.msra.mxu0 0
    %2385 = vmatprep.subr.bf16.mxu0 0
    %2386 = vmatpush2.bf16.msra.mxu0 0
    %2387 = vmatprep.subr.bf16.mxu0 0
    %2388 = vmatpush2.bf16.msra.mxu0 0
    %2389 = vmatprep.subr.bf16.mxu0 0
    %2390 = vmatpush2.bf16.msra.mxu0 0
    %2391 = vmatprep.subr.bf16.mxu0 0
    %2392 = vmatpush2.bf16.msra.mxu0 0
    %2393 = vmatprep.subr.bf16.mxu0 0
    %2394 = vmatpush2.bf16.msra.mxu0 0
    %2395 = vmatprep.subr.bf16.mxu0 0
    %2396 = vmatpush2.bf16.msra.mxu0 0
    %2397 = vmatprep.mubr.bf16.mxu0 0
    %2398 = vmatmul.mubr.bf16.gmra.mxu0 %v2363
    %v2399 = vpop.f32.mrf.mxu0
    %v2400 = vadd.f32 0.0, %v2399
    %v2401 = vpop.f32.mrf.mxu0
    %v2402 = vpop.f32.mrf.mxu0
    %v2403 = vadd.f32 0.0, %v2402
    %v2404 = vpop.f32.mrf.mxu0
    %2405 = vdwg.mxu0
    %v2407 = vsel %vm927, %v2316, 0
    %2409 = vmatprep.subr.bf16.mxu0 0
    %2410 = vmatpush1.bf16.msra.mxu0 0
    %2411 = vmatprep.subr.bf16.mxu0 0
    %2412 = vmatpush1.bf16.msra.mxu0 0
    %2413 = vmatprep.subr.bf16.mxu0 0
    %2414 = vmatpush1.bf16.msra.mxu0 0
    %2415 = vmatprep.subr.bf16.mxu0 0
    %2416 = vmatpush1.bf16.msra.mxu0 0
    %2417 = vmatprep.subr.bf16.mxu0 0
    %2418 = vmatpush1.bf16.msra.mxu0 0
    %2419 = vmatprep.subr.bf16.mxu0 0
    %2420 = vmatpush1.bf16.msra.mxu0 0
    %2421 = vmatprep.subr.bf16.mxu0 0
    %2422 = vmatpush1.bf16.msra.mxu0 0
    %2423 = vmatprep.subr.bf16.mxu0 0
    %2424 = vmatpush1.bf16.msra.mxu0 %v2200
    %2425 = vmatprep.subr.bf16.mxu0 0
    %2426 = vmatpush2.bf16.msra.mxu0 0
    %2427 = vmatprep.subr.bf16.mxu0 0
    %2428 = vmatpush2.bf16.msra.mxu0 0
    %2429 = vmatprep.subr.bf16.mxu0 0
    %2430 = vmatpush2.bf16.msra.mxu0 0
    %2431 = vmatprep.subr.bf16.mxu0 0
    %2432 = vmatpush2.bf16.msra.mxu0 0
    %2433 = vmatprep.subr.bf16.mxu0 0
    %2434 = vmatpush2.bf16.msra.mxu0 0
    %2435 = vmatprep.subr.bf16.mxu0 0
    %2436 = vmatpush2.bf16.msra.mxu0 0
    %2437 = vmatprep.subr.bf16.mxu0 0
    %2438 = vmatpush2.bf16.msra.mxu0 0
    %2439 = vmatprep.subr.bf16.mxu0 0
    %2440 = vmatpush2.bf16.msra.mxu0 0
    %2441 = vmatprep.mubr.bf16.mxu0 0
    %2442 = vmatmul.mubr.bf16.gmra.mxu0 %v2407
    %v2443 = vpop.f32.mrf.mxu0
    %v2444 = vadd.f32 0.0, %v2443
    %v2445 = vpop.f32.mrf.mxu0
    %v2446 = vpop.f32.mrf.mxu0
    %v2447 = vadd.f32 0.0, %v2446
    %v2448 = vpop.f32.mrf.mxu0
    %2449 = vdwg.mxu0
    %v2451 = vsel %vm927, %v2317, 0
    %2453 = vmatprep.subr.bf16.mxu0 0
    %2454 = vmatpush1.bf16.msra.mxu0 0
    %2455 = vmatprep.subr.bf16.mxu0 0
    %2456 = vmatpush1.bf16.msra.mxu0 0
    %2457 = vmatprep.subr.bf16.mxu0 0
    %2458 = vmatpush1.bf16.msra.mxu0 0
    %2459 = vmatprep.subr.bf16.mxu0 0
    %2460 = vmatpush1.bf16.msra.mxu0 0
    %2461 = vmatprep.subr.bf16.mxu0 0
    %2462 = vmatpush1.bf16.msra.mxu0 0
    %2463 = vmatprep.subr.bf16.mxu0 0
    %2464 = vmatpush1.bf16.msra.mxu0 0
    %2465 = vmatprep.subr.bf16.mxu0 0
    %2466 = vmatpush1.bf16.msra.mxu0 0
    %2467 = vmatprep.subr.bf16.mxu0 0
    %2468 = vmatpush1.bf16.msra.mxu0 %v2201
    %2469 = vmatprep.subr.bf16.mxu0 0
    %2470 = vmatpush2.bf16.msra.mxu0 0
    %2471 = vmatprep.subr.bf16.mxu0 0
    %2472 = vmatpush2.bf16.msra.mxu0 0
    %2473 = vmatprep.subr.bf16.mxu0 0
    %2474 = vmatpush2.bf16.msra.mxu0 0
    %2475 = vmatprep.subr.bf16.mxu0 0
    %2476 = vmatpush2.bf16.msra.mxu0 0
    %2477 = vmatprep.subr.bf16.mxu0 0
    %2478 = vmatpush2.bf16.msra.mxu0 0
    %2479 = vmatprep.subr.bf16.mxu0 0
    %2480 = vmatpush2.bf16.msra.mxu0 0
    %2481 = vmatprep.subr.bf16.mxu0 0
    %2482 = vmatpush2.bf16.msra.mxu0 0
    %2483 = vmatprep.subr.bf16.mxu0 0
    %2484 = vmatpush2.bf16.msra.mxu0 0
    %2485 = vmatprep.mubr.bf16.mxu0 0
    %2486 = vmatmul.mubr.bf16.gmra.mxu0 %v2451
    %v2487 = vpop.f32.mrf.mxu0
    %v2488 = vadd.f32 0.0, %v2487
    %v2489 = vpop.f32.mrf.mxu0
    %v2490 = vpop.f32.mrf.mxu0
    %v2491 = vadd.f32 0.0, %v2490
    %v2492 = vpop.f32.mrf.mxu0
    %2493 = vdwg.mxu0
    %v2494 = vadd.f32 %v2356, %v2400
    %v2495 = vadd.f32 %v2359, %v2403
    %v2496 = vadd.f32 %v2494, %v2444
    %v2497 = vadd.f32 %v2495, %v2447
    %v2498 = vadd.f32 %v2496, %v2488
    %v2499 = vadd.f32 %v2497, %v2491
    %v2500 = vld [vmem:[%s4 + $0x22] sm:$0x1]
    %v2501 = vlaneseq
    %v2502 = vshrl.u32 %v2501, 7
    %v2503 = vsub.s32 0, %v2502
    %v2504 = vrot.slane %v2500, %v2503
    %v2505 = vadd.f32 %v2498, %v2504
    %v2506 = vadd.f32 %v2499, %v2504
    %v2507 = vadd.f32 %v2505, %v1860
    %v2508 = vadd.f32 %v2506, %v1861
    %v2509 = vlaneseq
    %v2510 = vshrl.u32 %v2509, 7
    %v2511 = vsub.s32 0, %v2510
    %v2512 = vrot.slane %v448, %v2511
    %v2513 = vadd.f32 %v2512, %v2507
    %v2514 = vadd.f32 %v2512, %v2508
    %2515 = vadd.xlane.f32.xlu0 %v2513
    %v2516 = vpop.xlane.xlu0 %2515
    %2517 = vadd.xlane.f32.xlu0 %v2514
    %v2518 = vpop.xlane.xlu0 %2517
    %v2519 = vmul.f32 %v2516, %v227
    %v2520 = vmul.f32 %v2518, %v227
    %v2521 = vsub.f32 %v2513, %v2519
    %v2522 = vsub.f32 %v2514, %v2520
    %v2523 = vmul.f32 %v2521, %v2521
    %v2524 = vmul.f32 %v2522, %v2522
    %2525 = vadd.xlane.f32.xlu0 %v2523
    %v2526 = vpop.xlane.xlu0 %2525
    %2527 = vadd.xlane.f32.xlu0 %v2524
    %v2528 = vpop.xlane.xlu0 %2527
    %v2529 = vmul.f32 %v2526, %v227
    %v2530 = vmul.f32 %v2528, %v227
    %v2531 = vadd.f32 %v2529, 1e-05
    %v2532 = vadd.f32 %v2530, 1e-05
    %v2533 = vrsqrt.pop %v2531
    %v2534 = vrsqrt.pop %v2532
    %v2535 = vmul.f32 %v2521, %v2533
    %v2536 = vmul.f32 %v2522, %v2534
    %v2537 = vlaneseq
    %v2538 = vshrl.u32 %v2537, 7
    %v2539 = vsub.s32 0, %v2538
    %v2540 = vrot.slane %v112, %v2539
    %v2541 = vmul.f32 %v2535, %v2540
    %v2542 = vmul.f32 %v2536, %v2540
    %v2543 = vlaneseq
    %v2544 = vshrl.u32 %v2543, 7
    %v2545 = vsub.s32 0, %v2544
    %v2546 = vrot.slane %v113, %v2545
    %v2547 = vadd.f32 %v2541, %v2546
    %v2548 = vadd.f32 %v2542, %v2546
    %v2549 = vadd.f32 %v2507, %v2508
    %v2550 = vrot.slane %v2549, 4
    %v2551 = vadd.f32 %v2549, %v2550
    %v2552 = vrot.slane %v2551, 2
    %v2553 = vadd.f32 %v2551, %v2552
    %v2554 = vrot.slane %v2553, 1
    %v2555 = vadd.f32 %v2553, %v2554
    %v2556 = vrcp.pop 16.0
    %v2557 = vmul.f32 %v2555, %v2556
    %v2558 = vpack.c.bf16 %v2557, %v2557
    %2559 = vmatprep.subr.bf16.mxu0 0
    %2560 = vmatpush1.bf16.msra.mxu0 %v404
    %2561 = vmatprep.subr.bf16.mxu0 0
    %2562 = vmatpush1.bf16.msra.mxu0 %v403
    %2563 = vmatprep.subr.bf16.mxu0 0
    %2564 = vmatpush1.bf16.msra.mxu0 %v402
    %2565 = vmatprep.subr.bf16.mxu0 0
    %2566 = vmatpush1.bf16.msra.mxu0 %v401
    %2567 = vmatprep.subr.bf16.mxu0 0
    %2568 = vmatpush1.bf16.msra.mxu0 %v400
    %2569 = vmatprep.subr.bf16.mxu0 0
    %2570 = vmatpush1.bf16.msra.mxu0 %v399
    %2571 = vmatprep.subr.bf16.mxu0 0
    %2572 = vmatpush1.bf16.msra.mxu0 %v398
    %2573 = vmatprep.subr.bf16.mxu0 0
    %2574 = vmatpush1.bf16.msra.mxu0 %v397
    %2575 = vmatprep.subr.bf16.mxu0 0
    %2576 = vmatpush2.bf16.msra.mxu0 0
    %2577 = vmatprep.subr.bf16.mxu0 0
    %2578 = vmatpush2.bf16.msra.mxu0 0
    %2579 = vmatprep.subr.bf16.mxu0 0
    %2580 = vmatpush2.bf16.msra.mxu0 0
    %2581 = vmatprep.subr.bf16.mxu0 0
    %2582 = vmatpush2.bf16.msra.mxu0 0
    %2583 = vmatprep.subr.bf16.mxu0 0
    %2584 = vmatpush2.bf16.msra.mxu0 0
    %2585 = vmatprep.subr.bf16.mxu0 0
    %2586 = vmatpush2.bf16.msra.mxu0 0
    %2587 = vmatprep.subr.bf16.mxu0 0
    %2588 = vmatpush2.bf16.msra.mxu0 0
    %2589 = vmatprep.subr.bf16.mxu0 0
    %2590 = vmatpush2.bf16.msra.mxu0 0
    %2591 = vmatprep.mubr.bf16.mxu0 0
    %2592 = vmatmul.mubr.bf16.gmra.mxu0 %v2558
    %v2593 = vpop.f32.mrf.mxu0
    %v2594 = vadd.f32 %v110, %v2593
    %v2595 = vpop.f32.mrf.mxu0
    %v2596 = vpop.f32.mrf.mxu0
    %v2597 = vpop.f32.mrf.mxu0
    %2598 = vdwg.mxu0
    %v2599 = vlaneseq
    %v2600 = vshrl.u32 %v2599, 7
    %v2601 = vsub.s32 0, %v2600
    %v2602 = vrot.slane %v2594, %v2601
    %v2603 = vadd.f32 %v2602, %v2547
    %v2604 = vadd.f32 %v2602, %v2548
    %2605 = vadd.xlane.f32.xlu0 %v2603
    %v2606 = vpop.xlane.xlu0 %2605
    %2607 = vadd.xlane.f32.xlu0 %v2604
    %v2608 = vpop.xlane.xlu0 %2607
    %v2609 = vmul.f32 %v2606, %v227
    %v2610 = vmul.f32 %v2608, %v227
    %v2611 = vsub.f32 %v2603, %v2609
    %v2612 = vsub.f32 %v2604, %v2610
    %v2613 = vmul.f32 %v2611, %v2611
    %v2614 = vmul.f32 %v2612, %v2612
    %2615 = vadd.xlane.f32.xlu0 %v2613
    %v2616 = vpop.xlane.xlu0 %2615
    %2617 = vadd.xlane.f32.xlu0 %v2614
    %v2618 = vpop.xlane.xlu0 %2617
    %v2619 = vmul.f32 %v2616, %v227
    %v2620 = vmul.f32 %v2618, %v227
    %v2621 = vadd.f32 %v2619, 1e-05
    %v2622 = vadd.f32 %v2620, 1e-05
    %v2623 = vrsqrt.pop %v2621
    %v2624 = vrsqrt.pop %v2622
    %v2625 = vmul.f32 %v2611, %v2623
    %v2626 = vmul.f32 %v2612, %v2624
    %v2627 = vmul.f32 %v2625, %v2540
    %v2628 = vmul.f32 %v2626, %v2540
    %v2629 = vadd.f32 %v2627, %v2546
    %v2630 = vadd.f32 %v2628, %v2546
    %v2631 = vld [vmem:[#allocation4 + $0x1c0] sm:$0xf]
    %v2632 = vld [vmem:[#allocation4 + $0x1c4] sm:$0xf]
    %v2633 = vld [vmem:[#allocation4 + $0x1c8] sm:$0xf]
    %v2634 = vld [vmem:[#allocation4 + $0x1cc] sm:$0xf]
    %v2635 = vld [vmem:[#allocation4 + $0x1d0] sm:$0xf]
    %v2636 = vld [vmem:[#allocation4 + $0x1d4] sm:$0xf]
    %v2637 = vld [vmem:[#allocation4 + $0x1d8] sm:$0xf]
    %v2638 = vld [vmem:[#allocation4 + $0x1dc] sm:$0xf]
    %v2639 = vld [vmem:[#allocation4 + $0x1e0] sm:$0xf]
    %v2640 = vld [vmem:[#allocation4 + $0x1e4] sm:$0xf]
    %v2641 = vld [vmem:[#allocation4 + $0x1e8] sm:$0xf]
    %v2642 = vld [vmem:[#allocation4 + $0x1ec] sm:$0xf]
    %v2643 = vld [vmem:[#allocation4 + $0x1f0] sm:$0xf]
    %v2644 = vld [vmem:[#allocation4 + $0x1f4] sm:$0xf]
    %v2645 = vld [vmem:[#allocation4 + $0x1f8] sm:$0xf]
    %v2646 = vld [vmem:[#allocation4 + $0x1fc] sm:$0xf]
    %v2647 = vpack.c.bf16 %v2630, %v2629
    %v2648 = vld [vmem:[%s4 + $0x2d] sm:$0x1]
    %v2649 = vlaneseq
    %v2650 = vshrl.u32 %v2649, 7
    %v2651 = vsub.s32 0, %v2650
    %v2652 = vrot.slane %v2648, %v2651
    %v2669 = vunpack.c.l.b16 %v2631
    %v2670 = vunpack.c.l.b16 %v2632
    %v2671 = vunpack.c.l.b16 %v2633
    %v2672 = vunpack.c.l.b16 %v2634
    %v2673 = vunpack.c.l.b16 %v2635
    %v2674 = vunpack.c.l.b16 %v2636
    %v2675 = vunpack.c.l.b16 %v2637
    %v2676 = vunpack.c.l.b16 %v2638
    %v2677 = vunpack.c.l.b16 %v2639
    %v2678 = vunpack.c.l.b16 %v2640
    %v2679 = vunpack.c.l.b16 %v2641
    %v2680 = vunpack.c.l.b16 %v2642
    %v2681 = vunpack.c.l.b16 %v2643
    %v2682 = vunpack.c.l.b16 %v2644
    %v2683 = vunpack.c.l.b16 %v2645
    %v2684 = vunpack.c.l.b16 %v2646
    %v2685 = vpack.c.b16 %v2670, %v2669
    %v2686 = vpack.c.b16 %v2672, %v2671
    %v2687 = vpack.c.b16 %v2674, %v2673
    %v2688 = vpack.c.b16 %v2676, %v2675
    %v2689 = vpack.c.b16 %v2678, %v2677
    %v2690 = vpack.c.b16 %v2680, %v2679
    %v2691 = vpack.c.b16 %v2682, %v2681
    %v2692 = vpack.c.b16 %v2684, %v2683
    %2701 = vmatprep.subr.bf16.mxu0 0
    %2702 = vmatpush1.bf16.msra.mxu0 %v2692
    %2703 = vmatprep.subr.bf16.mxu0 0
    %2704 = vmatpush1.bf16.msra.mxu0 %v2691
    %2705 = vmatprep.subr.bf16.mxu0 0
    %2706 = vmatpush1.bf16.msra.mxu0 %v2690
    %2707 = vmatprep.subr.bf16.mxu0 0
    %2708 = vmatpush1.bf16.msra.mxu0 %v2689
    %2709 = vmatprep.subr.bf16.mxu0 0
    %2710 = vmatpush1.bf16.msra.mxu0 %v2688
    %2711 = vmatprep.subr.bf16.mxu0 0
    %2712 = vmatpush1.bf16.msra.mxu0 %v2687
    %2713 = vmatprep.subr.bf16.mxu0 0
    %2714 = vmatpush1.bf16.msra.mxu0 %v2686
    %2715 = vmatprep.subr.bf16.mxu0 0
    %2716 = vmatpush1.bf16.msra.mxu0 %v2685
    %2717 = vmatprep.subr.bf16.mxu0 0
    %2718 = vmatpush2.bf16.msra.mxu0 0
    %2719 = vmatprep.subr.bf16.mxu0 0
    %2720 = vmatpush2.bf16.msra.mxu0 0
    %2721 = vmatprep.subr.bf16.mxu0 0
    %2722 = vmatpush2.bf16.msra.mxu0 0
    %2723 = vmatprep.subr.bf16.mxu0 0
    %2724 = vmatpush2.bf16.msra.mxu0 0
    %2725 = vmatprep.subr.bf16.mxu0 0
    %2726 = vmatpush2.bf16.msra.mxu0 0
    %2727 = vmatprep.subr.bf16.mxu0 0
    %2728 = vmatpush2.bf16.msra.mxu0 0
    %2729 = vmatprep.subr.bf16.mxu0 0
    %2730 = vmatpush2.bf16.msra.mxu0 0
    %2731 = vmatprep.subr.bf16.mxu0 0
    %2732 = vmatpush2.bf16.msra.mxu0 0
    %2733 = vmatprep.mubr.bf16.mxu0 0
    %2734 = vmatmul.mubr.bf16.gmra.mxu0 %v2647
    %v2735 = vpop.f32.mrf.mxu0
    %v2736 = vadd.f32 %v2652, %v2735
    %v2737 = vpop.f32.mrf.mxu0
    %v2738 = vpop.f32.mrf.mxu0
    %v2739 = vadd.f32 %v2652, %v2738
    %v2740 = vpop.f32.mrf.mxu0
    %2741 = vdwg.mxu0
    %v2742 = vld [vmem:[%s5] sm:$0xf]
    %v2743 = vld [vmem:[%s5 + $0x4] sm:$0xf]
    %v2744 = vld [vmem:[%s5 + $0x8] sm:$0xf]
    %v2745 = vld [vmem:[%s5 + $0xc] sm:$0xf]
    %v2746 = vld [vmem:[%s5 + $0x10] sm:$0xf]
    %v2747 = vld [vmem:[%s5 + $0x14] sm:$0xf]
    %v2748 = vld [vmem:[%s5 + $0x18] sm:$0xf]
    %v2749 = vld [vmem:[%s5 + $0x1c] sm:$0xf]
    %v2750 = vld [vmem:[%s5 + $0x20] sm:$0xf]
    %v2751 = vld [vmem:[%s5 + $0x24] sm:$0xf]
    %v2752 = vld [vmem:[%s5 + $0x28] sm:$0xf]
    %v2753 = vld [vmem:[%s5 + $0x2c] sm:$0xf]
    %v2754 = vld [vmem:[%s5 + $0x30] sm:$0xf]
    %v2755 = vld [vmem:[%s5 + $0x34] sm:$0xf]
    %v2756 = vld [vmem:[%s5 + $0x38] sm:$0xf]
    %v2757 = vld [vmem:[%s5 + $0x3c] sm:$0xf]
    %v2758 = vld [vmem:[#allocation6] sm:$0xf]
    %v2759 = vld [vmem:[#allocation6 + $0x4] sm:$0xf]
    %v2760 = vld [vmem:[#allocation6 + $0x8] sm:$0xf]
    %v2761 = vld [vmem:[#allocation6 + $0xc] sm:$0xf]
    %v2762 = vld [vmem:[#allocation7] sm:$0xf]
    %v2763 = vld [vmem:[#allocation7 + $0x4] sm:$0xf]
    %v2764 = vld [vmem:[#allocation7 + $0x8] sm:$0xf]
    %v2765 = vld [vmem:[#allocation7 + $0xc] sm:$0xf]
    %v2766 = vpack.c.bf16 %v2739, %v2736
    %v2767 = vld [vmem:[%s8] sm:$0x1]
    %v2768 = vlaneseq
    %v2769 = vshrl.u32 %v2768, 7
    %v2770 = vsub.s32 0, %v2769
    %v2771 = vrot.slane %v2767, %v2770
    %v2788 = vunpack.c.l.b16 %v2742
    %v2789 = vunpack.c.l.b16 %v2743
    %v2790 = vunpack.c.l.b16 %v2744
    %v2791 = vunpack.c.l.b16 %v2745
    %v2792 = vunpack.c.l.b16 %v2746
    %v2793 = vunpack.c.l.b16 %v2747
    %v2794 = vunpack.c.l.b16 %v2748
    %v2795 = vunpack.c.l.b16 %v2749
    %v2796 = vunpack.c.l.b16 %v2750
    %v2797 = vunpack.c.l.b16 %v2751
    %v2798 = vunpack.c.l.b16 %v2752
    %v2799 = vunpack.c.l.b16 %v2753
    %v2800 = vunpack.c.l.b16 %v2754
    %v2801 = vunpack.c.l.b16 %v2755
    %v2802 = vunpack.c.l.b16 %v2756
    %v2803 = vunpack.c.l.b16 %v2757
    %v2804 = vpack.c.b16 %v2789, %v2788
    %v2805 = vpack.c.b16 %v2791, %v2790
    %v2806 = vpack.c.b16 %v2793, %v2792
    %v2807 = vpack.c.b16 %v2795, %v2794
    %v2808 = vpack.c.b16 %v2797, %v2796
    %v2809 = vpack.c.b16 %v2799, %v2798
    %v2810 = vpack.c.b16 %v2801, %v2800
    %v2811 = vpack.c.b16 %v2803, %v2802
    %2820 = vmatprep.subr.bf16.mxu0 0
    %2821 = vmatpush1.bf16.msra.mxu0 %v2811
    %2822 = vmatprep.subr.bf16.mxu0 0
    %2823 = vmatpush1.bf16.msra.mxu0 %v2810
    %2824 = vmatprep.subr.bf16.mxu0 0
    %2825 = vmatpush1.bf16.msra.mxu0 %v2809
    %2826 = vmatprep.subr.bf16.mxu0 0
    %2827 = vmatpush1.bf16.msra.mxu0 %v2808
    %2828 = vmatprep.subr.bf16.mxu0 0
    %2829 = vmatpush1.bf16.msra.mxu0 %v2807
    %2830 = vmatprep.subr.bf16.mxu0 0
    %2831 = vmatpush1.bf16.msra.mxu0 %v2806
    %2832 = vmatprep.subr.bf16.mxu0 0
    %2833 = vmatpush1.bf16.msra.mxu0 %v2805
    %2834 = vmatprep.subr.bf16.mxu0 0
    %2835 = vmatpush1.bf16.msra.mxu0 %v2804
    %2836 = vmatprep.subr.bf16.mxu0 0
    %2837 = vmatpush2.bf16.msra.mxu0 0
    %2838 = vmatprep.subr.bf16.mxu0 0
    %2839 = vmatpush2.bf16.msra.mxu0 0
    %2840 = vmatprep.subr.bf16.mxu0 0
    %2841 = vmatpush2.bf16.msra.mxu0 0
    %2842 = vmatprep.subr.bf16.mxu0 0
    %2843 = vmatpush2.bf16.msra.mxu0 0
    %2844 = vmatprep.subr.bf16.mxu0 0
    %2845 = vmatpush2.bf16.msra.mxu0 0
    %2846 = vmatprep.subr.bf16.mxu0 0
    %2847 = vmatpush2.bf16.msra.mxu0 0
    %2848 = vmatprep.subr.bf16.mxu0 0
    %2849 = vmatpush2.bf16.msra.mxu0 0
    %2850 = vmatprep.subr.bf16.mxu0 0
    %2851 = vmatpush2.bf16.msra.mxu0 0
    %2852 = vmatprep.mubr.bf16.mxu0 0
    %2853 = vmatmul.mubr.bf16.gmra.mxu0 %v2766
    %v2854 = vpop.f32.mrf.mxu0
    %v2855 = vadd.f32 %v2771, %v2854
    %v2856 = vpop.f32.mrf.mxu0
    %v2857 = vpop.f32.mrf.mxu0
    %v2858 = vadd.f32 %v2771, %v2857
    %v2859 = vpop.f32.mrf.mxu0
    %2860 = vdwg.mxu0
    %v2861 = vld [vmem:[%s8 + $0x1] sm:$0x1]
    %v2862 = vld [vmem:[%s8 + $0x2] sm:$0x1]
    %vm2863 = vcmask 261120
    %v2864 = vsel %vm2863, %v2855, 0.0
    %2865 = vadd.xlane.f32.xlu0 %v2864
    %v2866 = vpop.xlane.xlu0 %2865
    %v2867 = vsel %vm2863, %v2858, 0.0
    %2868 = vadd.xlane.f32.xlu0 %v2867
    %v2869 = vpop.xlane.xlu0 %2868
    %v2870 = vrcp.pop 32.0
    %v2871 = vmul.f32 %v2866, %v2870
    %v2872 = vmul.f32 %v2869, %v2870
    %v2873 = vsub.f32 %v2855, %v2871
    %v2874 = vsub.f32 %v2858, %v2872
    %v2875 = vmul.f32 %v2873, %v2873
    %v2876 = vmul.f32 %v2874, %v2874
    %v2877 = vsel %vm2863, %v2875, 0.0
    %2878 = vadd.xlane.f32.xlu0 %v2877
    %v2879 = vpop.xlane.xlu0 %2878
    %v2880 = vsel %vm2863, %v2876, 0.0
    %2881 = vadd.xlane.f32.xlu0 %v2880
    %v2882 = vpop.xlane.xlu0 %2881
    %v2883 = vmul.f32 %v2879, %v2870
    %v2884 = vmul.f32 %v2882, %v2870
    %v2885 = vadd.f32 %v2883, 1e-05
    %v2886 = vadd.f32 %v2884, 1e-05
    %v2887 = vrsqrt.pop %v2885
    %v2888 = vrsqrt.pop %v2886
    %v2889 = vmul.f32 %v2873, %v2887
    %v2890 = vmul.f32 %v2874, %v2888
    %v2891 = vlaneseq
    %v2892 = vshrl.u32 %v2891, 7
    %v2893 = vsub.s32 0, %v2892
    %v2894 = vrot.slane %v2861, %v2893
    %v2895 = vmul.f32 %v2889, %v2894
    %v2896 = vmul.f32 %v2890, %v2894
    %v2897 = vlaneseq
    %v2898 = vshrl.u32 %v2897, 7
    %v2899 = vsub.s32 0, %v2898
    %v2900 = vrot.slane %v2862, %v2899
    %v2901 = vadd.f32 %v2895, %v2900
    %v2902 = vadd.f32 %v2896, %v2900
    %v2903 = vmax.f32 %v2901, 0.0
    %v2904 = vmax.f32 %v2902, 0.0
    %v2905 = vpack.c.bf16 %v2904, %v2903
    %v2906 = vld [vmem:[%s8 + $0x3] sm:$0x1]
    %v2907 = vlaneseq
    %v2908 = vshrl.u32 %v2907, 7
    %v2909 = vsub.s32 0, %v2908
    %v2910 = vrot.slane %v2906, %v2909
    %v2915 = vunpack.c.l.b16 %v2758
    %v2916 = vunpack.c.l.b16 %v2759
    %v2917 = vunpack.c.l.b16 %v2760
    %v2918 = vunpack.c.l.b16 %v2761
    %v2919 = vpack.c.b16 %v2916, %v2915
    %v2920 = vpack.c.b16 %v2918, %v2917
    %v2924 = vsel %vm2863, %v2905, 0
    %2926 = vmatprep.subr.bf16.mxu0 0
    %2927 = vmatpush1.bf16.msra.mxu0 0
    %2928 = vmatprep.subr.bf16.mxu0 0
    %2929 = vmatpush1.bf16.msra.mxu0 0
    %2930 = vmatprep.subr.bf16.mxu0 0
    %2931 = vmatpush1.bf16.msra.mxu0 0
    %2932 = vmatprep.subr.bf16.mxu0 0
    %2933 = vmatpush1.bf16.msra.mxu0 0
    %2934 = vmatprep.subr.bf16.mxu0 0
    %2935 = vmatpush1.bf16.msra.mxu0 0
    %2936 = vmatprep.subr.bf16.mxu0 0
    %2937 = vmatpush1.bf16.msra.mxu0 0
    %2938 = vmatprep.subr.bf16.mxu0 0
    %2939 = vmatpush1.bf16.msra.mxu0 %v2920
    %2940 = vmatprep.subr.bf16.mxu0 0
    %2941 = vmatpush1.bf16.msra.mxu0 %v2919
    %2942 = vmatprep.subr.bf16.mxu0 0
    %2943 = vmatpush2.bf16.msra.mxu0 0
    %2944 = vmatprep.subr.bf16.mxu0 0
    %2945 = vmatpush2.bf16.msra.mxu0 0
    %2946 = vmatprep.subr.bf16.mxu0 0
    %2947 = vmatpush2.bf16.msra.mxu0 0
    %2948 = vmatprep.subr.bf16.mxu0 0
    %2949 = vmatpush2.bf16.msra.mxu0 0
    %2950 = vmatprep.subr.bf16.mxu0 0
    %2951 = vmatpush2.bf16.msra.mxu0 0
    %2952 = vmatprep.subr.bf16.mxu0 0
    %2953 = vmatpush2.bf16.msra.mxu0 0
    %2954 = vmatprep.subr.bf16.mxu0 0
    %2955 = vmatpush2.bf16.msra.mxu0 0
    %2956 = vmatprep.subr.bf16.mxu0 0
    %2957 = vmatpush2.bf16.msra.mxu0 0
    %2958 = vmatprep.mubr.bf16.mxu0 0
    %2959 = vmatmul.mubr.bf16.gmra.mxu0 %v2924
    %v2960 = vpop.f32.mrf.mxu0
    %v2961 = vadd.f32 %v2910, %v2960
    %v2962 = vpop.f32.mrf.mxu0
    %v2963 = vpop.f32.mrf.mxu0
    %v2964 = vadd.f32 %v2910, %v2963
    %v2965 = vpop.f32.mrf.mxu0
    %2966 = vdwg.mxu0
    %v2967 = vld [vmem:[%s8 + $0x4] sm:$0x1]
    %v2968 = vld [vmem:[%s8 + $0x5] sm:$0x1]
    %v2969 = vsel %vm2863, %v2961, 0.0
    %2970 = vadd.xlane.f32.xlu0 %v2969
    %v2971 = vpop.xlane.xlu0 %2970
    %v2972 = vsel %vm2863, %v2964, 0.0
    %2973 = vadd.xlane.f32.xlu0 %v2972
    %v2974 = vpop.xlane.xlu0 %2973
    %v2975 = vmul.f32 %v2971, %v2870
    %v2976 = vmul.f32 %v2974, %v2870
    %v2977 = vsub.f32 %v2961, %v2975
    %v2978 = vsub.f32 %v2964, %v2976
    %v2979 = vmul.f32 %v2977, %v2977
    %v2980 = vmul.f32 %v2978, %v2978
    %v2981 = vsel %vm2863, %v2979, 0.0
    %2982 = vadd.xlane.f32.xlu0 %v2981
    %v2983 = vpop.xlane.xlu0 %2982
    %v2984 = vsel %vm2863, %v2980, 0.0
    %2985 = vadd.xlane.f32.xlu0 %v2984
    %v2986 = vpop.xlane.xlu0 %2985
    %v2987 = vmul.f32 %v2983, %v2870
    %v2988 = vmul.f32 %v2986, %v2870
    %v2989 = vadd.f32 %v2987, 1e-05
    %v2990 = vadd.f32 %v2988, 1e-05
    %v2991 = vrsqrt.pop %v2989
    %v2992 = vrsqrt.pop %v2990
    %v2993 = vmul.f32 %v2977, %v2991
    %v2994 = vmul.f32 %v2978, %v2992
    %v2995 = vlaneseq
    %v2996 = vshrl.u32 %v2995, 7
    %v2997 = vsub.s32 0, %v2996
    %v2998 = vrot.slane %v2967, %v2997
    %v2999 = vmul.f32 %v2993, %v2998
    %v3000 = vmul.f32 %v2994, %v2998
    %v3001 = vlaneseq
    %v3002 = vshrl.u32 %v3001, 7
    %v3003 = vsub.s32 0, %v3002
    %v3004 = vrot.slane %v2968, %v3003
    %v3005 = vadd.f32 %v2999, %v3004
    %v3006 = vadd.f32 %v3000, %v3004
    %v3007 = vmax.f32 %v3005, 0.0
    %v3008 = vmax.f32 %v3006, 0.0
    %v3009 = vpack.c.bf16 %v3008, %v3007
    %v3010 = vld [vmem:[%s4 + $0x2e] sm:$0x1]
    %v3011 = vlaneseq
    %v3012 = vshrl.u32 %v3011, 7
    %v3013 = vsub.s32 0, %v3012
    %v3014 = vrot.slane %v3010, %v3013
    %v3019 = vunpack.c.l.b16 %v2762
    %v3020 = vunpack.c.l.b16 %v2763
    %v3021 = vunpack.c.l.b16 %v2764
    %v3022 = vunpack.c.l.b16 %v2765
    %v3023 = vpack.c.b16 %v3020, %v3019
    %v3024 = vpack.c.b16 %v3022, %v3021
    %v3028 = vsel %vm2863, %v3009, 0
    %3030 = vmatprep.subr.bf16.mxu0 0
    %3031 = vmatpush1.bf16.msra.mxu0 0
    %3032 = vmatprep.subr.bf16.mxu0 0
    %3033 = vmatpush1.bf16.msra.mxu0 0
    %3034 = vmatprep.subr.bf16.mxu0 0
    %3035 = vmatpush1.bf16.msra.mxu0 0
    %3036 = vmatprep.subr.bf16.mxu0 0
    %3037 = vmatpush1.bf16.msra.mxu0 0
    %3038 = vmatprep.subr.bf16.mxu0 0
    %3039 = vmatpush1.bf16.msra.mxu0 0
    %3040 = vmatprep.subr.bf16.mxu0 0
    %3041 = vmatpush1.bf16.msra.mxu0 0
    %3042 = vmatprep.subr.bf16.mxu0 0
    %3043 = vmatpush1.bf16.msra.mxu0 %v3024
    %3044 = vmatprep.subr.bf16.mxu0 0
    %3045 = vmatpush1.bf16.msra.mxu0 %v3023
    %3046 = vmatprep.subr.bf16.mxu0 0
    %3047 = vmatpush2.bf16.msra.mxu0 0
    %3048 = vmatprep.subr.bf16.mxu0 0
    %3049 = vmatpush2.bf16.msra.mxu0 0
    %3050 = vmatprep.subr.bf16.mxu0 0
    %3051 = vmatpush2.bf16.msra.mxu0 0
    %3052 = vmatprep.subr.bf16.mxu0 0
    %3053 = vmatpush2.bf16.msra.mxu0 0
    %3054 = vmatprep.subr.bf16.mxu0 0
    %3055 = vmatpush2.bf16.msra.mxu0 0
    %3056 = vmatprep.subr.bf16.mxu0 0
    %3057 = vmatpush2.bf16.msra.mxu0 0
    %3058 = vmatprep.subr.bf16.mxu0 0
    %3059 = vmatpush2.bf16.msra.mxu0 0
    %3060 = vmatprep.subr.bf16.mxu0 0
    %3061 = vmatpush2.bf16.msra.mxu0 0
    %3062 = vmatprep.mubr.bf16.mxu0 0
    %3063 = vmatmul.mubr.bf16.gmra.mxu0 %v3028
    %v3064 = vpop.f32.mrf.mxu0
    %v3065 = vadd.f32 %v3014, %v3064
    %v3066 = vpop.f32.mrf.mxu0
    %v3067 = vpop.f32.mrf.mxu0
    %v3068 = vadd.f32 %v3014, %v3067
    %v3069 = vpop.f32.mrf.mxu0
    %3070 = vdwg.mxu0
    %3071 = vst [vmem:[%s9] sm:$0xff] %v3065
    %3072 = vst [vmem:[%s9 + $0x8] sm:$0xff] %v3068
    %v3073 = vld [vmem:[%s4 + $0x30] sm:$0x1]
    %v3074 = vlaneseq
    %v3075 = vshrl.u32 %v3074, 7
    %v3076 = vsub.s32 0, %v3075
    %v3077 = vrot.slane %v3073, %v3076
    %v3078 = vmul.f32 %v3065, %v3077
    %v3079 = vmul.f32 %v3068, %v3077
    %v3080 = vadd.f32 %v90, %v3078
    %v3081 = vadd.f32 %v91, %v3079
    %v3082 = vld [vmem:[#allocation4 + $0x80] sm:$0xf]
    %v3083 = vld [vmem:[#allocation4 + $0x84] sm:$0xf]
    %v3084 = vld [vmem:[#allocation4 + $0x88] sm:$0xf]
    %v3085 = vld [vmem:[#allocation4 + $0x8c] sm:$0xf]
    %v3086 = vld [vmem:[#allocation4 + $0x90] sm:$0xf]
    %v3087 = vld [vmem:[#allocation4 + $0x94] sm:$0xf]
    %v3088 = vld [vmem:[#allocation4 + $0x98] sm:$0xf]
    %v3089 = vld [vmem:[#allocation4 + $0x9c] sm:$0xf]
    %v3090 = vld [vmem:[#allocation4 + $0xa0] sm:$0xf]
    %v3091 = vld [vmem:[#allocation4 + $0xa4] sm:$0xf]
    %v3092 = vld [vmem:[#allocation4 + $0xa8] sm:$0xf]
    %v3093 = vld [vmem:[#allocation4 + $0xac] sm:$0xf]
    %v3094 = vld [vmem:[#allocation4 + $0xb0] sm:$0xf]
    %v3095 = vld [vmem:[#allocation4 + $0xb4] sm:$0xf]
    %v3096 = vld [vmem:[#allocation4 + $0xb8] sm:$0xf]
    %v3097 = vld [vmem:[#allocation4 + $0xbc] sm:$0xf]
    %v3098 = vpack.c.bf16 %v3081, %v3080
    %v3099 = vld [vmem:[%s4 + $0x29] sm:$0x1]
    %v3100 = vlaneseq
    %v3101 = vshrl.u32 %v3100, 7
    %v3102 = vsub.s32 0, %v3101
    %v3103 = vrot.slane %v3099, %v3102
    %v3120 = vunpack.c.l.b16 %v3082
    %v3121 = vunpack.c.l.b16 %v3083
    %v3122 = vunpack.c.l.b16 %v3084
    %v3123 = vunpack.c.l.b16 %v3085
    %v3124 = vunpack.c.l.b16 %v3086
    %v3125 = vunpack.c.l.b16 %v3087
    %v3126 = vunpack.c.l.b16 %v3088
    %v3127 = vunpack.c.l.b16 %v3089
    %v3128 = vunpack.c.l.b16 %v3090
    %v3129 = vunpack.c.l.b16 %v3091
    %v3130 = vunpack.c.l.b16 %v3092
    %v3131 = vunpack.c.l.b16 %v3093
    %v3132 = vunpack.c.l.b16 %v3094
    %v3133 = vunpack.c.l.b16 %v3095
    %v3134 = vunpack.c.l.b16 %v3096
    %v3135 = vunpack.c.l.b16 %v3097
    %v3136 = vpack.c.b16 %v3121, %v3120
    %v3137 = vpack.c.b16 %v3123, %v3122
    %v3138 = vpack.c.b16 %v3125, %v3124
    %v3139 = vpack.c.b16 %v3127, %v3126
    %v3140 = vpack.c.b16 %v3129, %v3128
    %v3141 = vpack.c.b16 %v3131, %v3130
    %v3142 = vpack.c.b16 %v3133, %v3132
    %v3143 = vpack.c.b16 %v3135, %v3134
    %3152 = vmatprep.subr.bf16.mxu0 0
    %3153 = vmatpush1.bf16.msra.mxu0 %v3143
    %3154 = vmatprep.subr.bf16.mxu0 0
    %3155 = vmatpush1.bf16.msra.mxu0 %v3142
    %3156 = vmatprep.subr.bf16.mxu0 0
    %3157 = vmatpush1.bf16.msra.mxu0 %v3141
    %3158 = vmatprep.subr.bf16.mxu0 0
    %3159 = vmatpush1.bf16.msra.mxu0 %v3140
    %3160 = vmatprep.subr.bf16.mxu0 0
    %3161 = vmatpush1.bf16.msra.mxu0 %v3139
    %3162 = vmatprep.subr.bf16.mxu0 0
    %3163 = vmatpush1.bf16.msra.mxu0 %v3138
    %3164 = vmatprep.subr.bf16.mxu0 0
    %3165 = vmatpush1.bf16.msra.mxu0 %v3137
    %3166 = vmatprep.subr.bf16.mxu0 0
    %3167 = vmatpush1.bf16.msra.mxu0 %v3136
    %3168 = vmatprep.subr.bf16.mxu0 0
    %3169 = vmatpush2.bf16.msra.mxu0 0
    %3170 = vmatprep.subr.bf16.mxu0 0
    %3171 = vmatpush2.bf16.msra.mxu0 0
    %3172 = vmatprep.subr.bf16.mxu0 0
    %3173 = vmatpush2.bf16.msra.mxu0 0
    %3174 = vmatprep.subr.bf16.mxu0 0
    %3175 = vmatpush2.bf16.msra.mxu0 0
    %3176 = vmatprep.subr.bf16.mxu0 0
    %3177 = vmatpush2.bf16.msra.mxu0 0
    %3178 = vmatprep.subr.bf16.mxu0 0
    %3179 = vmatpush2.bf16.msra.mxu0 0
    %3180 = vmatprep.subr.bf16.mxu0 0
    %3181 = vmatpush2.bf16.msra.mxu0 0
    %3182 = vmatprep.subr.bf16.mxu0 0
    %3183 = vmatpush2.bf16.msra.mxu0 0
    %3184 = vmatprep.mubr.bf16.mxu0 0
    %3185 = vmatmul.mubr.bf16.gmra.mxu0 %v3098
    %v3186 = vpop.f32.mrf.mxu0
    %v3187 = vadd.f32 %v3103, %v3186
    %v3188 = vpop.f32.mrf.mxu0
    %v3189 = vpop.f32.mrf.mxu0
    %v3190 = vadd.f32 %v3103, %v3189
    %v3191 = vpop.f32.mrf.mxu0
    %3192 = vdwg.mxu0
    %v3193 = vld [vmem:[#allocation4 + $0xc0] sm:$0xf]
    %v3194 = vld [vmem:[#allocation4 + $0xc4] sm:$0xf]
    %v3195 = vld [vmem:[#allocation4 + $0xc8] sm:$0xf]
    %v3196 = vld [vmem:[#allocation4 + $0xcc] sm:$0xf]
    %v3197 = vld [vmem:[#allocation4 + $0xd0] sm:$0xf]
    %v3198 = vld [vmem:[#allocation4 + $0xd4] sm:$0xf]
    %v3199 = vld [vmem:[#allocation4 + $0xd8] sm:$0xf]
    %v3200 = vld [vmem:[#allocation4 + $0xdc] sm:$0xf]
    %v3201 = vld [vmem:[#allocation4 + $0xe0] sm:$0xf]
    %v3202 = vld [vmem:[#allocation4 + $0xe4] sm:$0xf]
    %v3203 = vld [vmem:[#allocation4 + $0xe8] sm:$0xf]
    %v3204 = vld [vmem:[#allocation4 + $0xec] sm:$0xf]
    %v3205 = vld [vmem:[#allocation4 + $0xf0] sm:$0xf]
    %v3206 = vld [vmem:[#allocation4 + $0xf4] sm:$0xf]
    %v3207 = vld [vmem:[#allocation4 + $0xf8] sm:$0xf]
    %v3208 = vld [vmem:[#allocation4 + $0xfc] sm:$0xf]
    %v3225 = vunpack.c.l.b16 %v3193
    %v3226 = vunpack.c.l.b16 %v3194
    %v3227 = vunpack.c.l.b16 %v3195
    %v3228 = vunpack.c.l.b16 %v3196
    %v3229 = vunpack.c.l.b16 %v3197
    %v3230 = vunpack.c.l.b16 %v3198
    %v3231 = vunpack.c.l.b16 %v3199
    %v3232 = vunpack.c.l.b16 %v3200
    %v3233 = vunpack.c.l.b16 %v3201
    %v3234 = vunpack.c.l.b16 %v3202
    %v3235 = vunpack.c.l.b16 %v3203
    %v3236 = vunpack.c.l.b16 %v3204
    %v3237 = vunpack.c.l.b16 %v3205
    %v3238 = vunpack.c.l.b16 %v3206
    %v3239 = vunpack.c.l.b16 %v3207
    %v3240 = vunpack.c.l.b16 %v3208
    %v3241 = vpack.c.b16 %v3226, %v3225
    %v3242 = vpack.c.b16 %v3228, %v3227
    %v3243 = vpack.c.b16 %v3230, %v3229
    %v3244 = vpack.c.b16 %v3232, %v3231
    %v3245 = vpack.c.b16 %v3234, %v3233
    %v3246 = vpack.c.b16 %v3236, %v3235
    %v3247 = vpack.c.b16 %v3238, %v3237
    %v3248 = vpack.c.b16 %v3240, %v3239
    %3257 = vmatprep.subr.bf16.mxu0 0
    %3258 = vmatpush1.bf16.msra.mxu0 %v3248
    %3259 = vmatprep.subr.bf16.mxu0 0
    %3260 = vmatpush1.bf16.msra.mxu0 %v3247
    %3261 = vmatprep.subr.bf16.mxu0 0
    %3262 = vmatpush1.bf16.msra.mxu0 %v3246
    %3263 = vmatprep.subr.bf16.mxu0 0
    %3264 = vmatpush1.bf16.msra.mxu0 %v3245
    %3265 = vmatprep.subr.bf16.mxu0 0
    %3266 = vmatpush1.bf16.msra.mxu0 %v3244
    %3267 = vmatprep.subr.bf16.mxu0 0
    %3268 = vmatpush1.bf16.msra.mxu0 %v3243
    %3269 = vmatprep.subr.bf16.mxu0 0
    %3270 = vmatpush1.bf16.msra.mxu0 %v3242
    %3271 = vmatprep.subr.bf16.mxu0 0
    %3272 = vmatpush1.bf16.msra.mxu0 %v3241
    %3273 = vmatprep.subr.bf16.mxu0 0
    %3274 = vmatpush2.bf16.msra.mxu0 0
    %3275 = vmatprep.subr.bf16.mxu0 0
    %3276 = vmatpush2.bf16.msra.mxu0 0
    %3277 = vmatprep.subr.bf16.mxu0 0
    %3278 = vmatpush2.bf16.msra.mxu0 0
    %3279 = vmatprep.subr.bf16.mxu0 0
    %3280 = vmatpush2.bf16.msra.mxu0 0
    %3281 = vmatprep.subr.bf16.mxu0 0
    %3282 = vmatpush2.bf16.msra.mxu0 0
    %3283 = vmatprep.subr.bf16.mxu0 0
    %3284 = vmatpush2.bf16.msra.mxu0 0
    %3285 = vmatprep.subr.bf16.mxu0 0
    %3286 = vmatpush2.bf16.msra.mxu0 0
    %3287 = vmatprep.subr.bf16.mxu0 0
    %3288 = vmatpush2.bf16.msra.mxu0 0
    %3289 = vmatprep.mubr.bf16.mxu0 0
    %3290 = vmatmul.mubr.bf16.gmra.mxu0 %v3098
    %v3291 = vpop.f32.mrf.mxu0
    %v3292 = vadd.f32 0.0, %v3291
    %v3293 = vpop.f32.mrf.mxu0
    %v3294 = vpop.f32.mrf.mxu0
    %v3295 = vadd.f32 0.0, %v3294
    %v3296 = vpop.f32.mrf.mxu0
    %3297 = vdwg.mxu0
    %v3298 = vpack.c.bf16 %v3295, %v3292
    %v3299 = vld [vmem:[%s4 + $0x8] sm:$0xf]
    %v3300 = vpack.c.bf16 %v3299, %v3299
    %3301 = vmatprep.subr.bf16.mxu0 0
    %3302 = vmatpush1.bf16.xpose.msra.mxu0 0
    %3303 = vmatprep.subr.bf16.mxu0 0
    %3304 = vmatpush1.bf16.xpose.msra.mxu0 0
    %3305 = vmatprep.subr.bf16.mxu0 0
    %3306 = vmatpush1.bf16.xpose.msra.mxu0 0
    %3307 = vmatprep.subr.bf16.mxu0 0
    %3308 = vmatpush1.bf16.xpose.msra.mxu0 0
    %3309 = vmatprep.subr.bf16.mxu0 0
    %3310 = vmatpush1.bf16.xpose.msra.mxu0 0
    %3311 = vmatprep.subr.bf16.mxu0 0
    %3312 = vmatpush1.bf16.xpose.msra.mxu0 0
    %3313 = vmatprep.subr.bf16.mxu0 0
    %3314 = vmatpush1.bf16.xpose.msra.mxu0 0
    %3315 = vmatprep.subr.bf16.mxu0 0
    %3316 = vmatpush1.bf16.xpose.msra.mxu0 %v3298
    %3317 = vmatprep.subr.bf16.mxu0 0
    %3318 = vmatpush2.bf16.xpose.msra.mxu0 0
    %3319 = vmatprep.subr.bf16.mxu0 0
    %3320 = vmatpush2.bf16.xpose.msra.mxu0 0
    %3321 = vmatprep.subr.bf16.mxu0 0
    %3322 = vmatpush2.bf16.xpose.msra.mxu0 0
    %3323 = vmatprep.subr.bf16.mxu0 0
    %3324 = vmatpush2.bf16.xpose.msra.mxu0 0
    %3325 = vmatprep.subr.bf16.mxu0 0
    %3326 = vmatpush2.bf16.xpose.msra.mxu0 0
    %3327 = vmatprep.subr.bf16.mxu0 0
    %3328 = vmatpush2.bf16.xpose.msra.mxu0 0
    %3329 = vmatprep.subr.bf16.mxu0 0
    %3330 = vmatpush2.bf16.xpose.msra.mxu0 0
    %3331 = vmatprep.subr.bf16.mxu0 0
    %3332 = vmatpush2.bf16.xpose.msra.mxu0 0
    %3333 = vmatprep.mubr.bf16.mxu0 0
    %3334 = vmatmul.mubr.bf16.gmra.mxu0 %v3300
    %v3335 = vpop.f32.mrf.mxu0
    %v3336 = vadd.f32 0.0, %v3335
    %v3337 = vpop.f32.mrf.mxu0
    %v3338 = vpop.f32.mrf.mxu0
    %v3339 = vpop.f32.mrf.mxu0
    %3340 = vdwg.mxu0
    %v3341 = vld [vmem:[#allocation4 + $0x200] sm:$0xf]
    %v3342 = vld [vmem:[#allocation4 + $0x204] sm:$0xf]
    %v3343 = vld [vmem:[#allocation4 + $0x208] sm:$0xf]
    %v3344 = vld [vmem:[#allocation4 + $0x20c] sm:$0xf]
    %v3345 = vld [vmem:[#allocation4 + $0x210] sm:$0xf]
    %v3346 = vld [vmem:[#allocation4 + $0x214] sm:$0xf]
    %v3347 = vld [vmem:[#allocation4 + $0x218] sm:$0xf]
    %v3348 = vld [vmem:[#allocation4 + $0x21c] sm:$0xf]
    %v3349 = vld [vmem:[#allocation4 + $0x220] sm:$0xf]
    %v3350 = vld [vmem:[#allocation4 + $0x224] sm:$0xf]
    %v3351 = vld [vmem:[#allocation4 + $0x228] sm:$0xf]
    %v3352 = vld [vmem:[#allocation4 + $0x22c] sm:$0xf]
    %v3353 = vld [vmem:[#allocation4 + $0x230] sm:$0xf]
    %v3354 = vld [vmem:[#allocation4 + $0x234] sm:$0xf]
    %v3355 = vld [vmem:[#allocation4 + $0x238] sm:$0xf]
    %v3356 = vld [vmem:[#allocation4 + $0x23c] sm:$0xf]
    %v3373 = vunpack.c.l.b16 %v3341
    %v3374 = vunpack.c.l.b16 %v3342
    %v3375 = vunpack.c.l.b16 %v3343
    %v3376 = vunpack.c.l.b16 %v3344
    %v3377 = vunpack.c.l.b16 %v3345
    %v3378 = vunpack.c.l.b16 %v3346
    %v3379 = vunpack.c.l.b16 %v3347
    %v3380 = vunpack.c.l.b16 %v3348
    %v3381 = vunpack.c.l.b16 %v3349
    %v3382 = vunpack.c.l.b16 %v3350
    %v3383 = vunpack.c.l.b16 %v3351
    %v3384 = vunpack.c.l.b16 %v3352
    %v3385 = vunpack.c.l.b16 %v3353
    %v3386 = vunpack.c.l.b16 %v3354
    %v3387 = vunpack.c.l.b16 %v3355
    %v3388 = vunpack.c.l.b16 %v3356
    %v3389 = vpack.c.b16 %v3374, %v3373
    %v3390 = vpack.c.b16 %v3376, %v3375
    %v3391 = vpack.c.b16 %v3378, %v3377
    %v3392 = vpack.c.b16 %v3380, %v3379
    %v3393 = vpack.c.b16 %v3382, %v3381
    %v3394 = vpack.c.b16 %v3384, %v3383
    %v3395 = vpack.c.b16 %v3386, %v3385
    %v3396 = vpack.c.b16 %v3388, %v3387
    %3405 = vmatprep.subr.bf16.mxu0 0
    %3406 = vmatpush1.bf16.msra.mxu0 %v3396
    %3407 = vmatprep.subr.bf16.mxu0 0
    %3408 = vmatpush1.bf16.msra.mxu0 %v3395
    %3409 = vmatprep.subr.bf16.mxu0 0
    %3410 = vmatpush1.bf16.msra.mxu0 %v3394
    %3411 = vmatprep.subr.bf16.mxu0 0
    %3412 = vmatpush1.bf16.msra.mxu0 %v3393
    %3413 = vmatprep.subr.bf16.mxu0 0
    %3414 = vmatpush1.bf16.msra.mxu0 %v3392
    %3415 = vmatprep.subr.bf16.mxu0 0
    %3416 = vmatpush1.bf16.msra.mxu0 %v3391
    %3417 = vmatprep.subr.bf16.mxu0 0
    %3418 = vmatpush1.bf16.msra.mxu0 %v3390
    %3419 = vmatprep.subr.bf16.mxu0 0
    %3420 = vmatpush1.bf16.msra.mxu0 %v3389
    %3421 = vmatprep.subr.bf16.mxu0 0
    %3422 = vmatpush2.bf16.msra.mxu0 0
    %3423 = vmatprep.subr.bf16.mxu0 0
    %3424 = vmatpush2.bf16.msra.mxu0 0
    %3425 = vmatprep.subr.bf16.mxu0 0
    %3426 = vmatpush2.bf16.msra.mxu0 0
    %3427 = vmatprep.subr.bf16.mxu0 0
    %3428 = vmatpush2.bf16.msra.mxu0 0
    %3429 = vmatprep.subr.bf16.mxu0 0
    %3430 = vmatpush2.bf16.msra.mxu0 0
    %3431 = vmatprep.subr.bf16.mxu0 0
    %3432 = vmatpush2.bf16.msra.mxu0 0
    %3433 = vmatprep.subr.bf16.mxu0 0
    %3434 = vmatpush2.bf16.msra.mxu0 0
    %3435 = vmatprep.subr.bf16.mxu0 0
    %3436 = vmatpush2.bf16.msra.mxu0 0
    %3437 = vmatprep.mubr.bf16.mxu0 0
    %3438 = vmatmul.mubr.bf16.gmra.mxu0 %v3298
    %v3439 = vpop.f32.mrf.mxu0
    %v3440 = vadd.f32 0.0, %v3439
    %v3441 = vpop.f32.mrf.mxu0
    %v3442 = vpop.f32.mrf.mxu0
    %v3443 = vadd.f32 0.0, %v3442
    %v3444 = vpop.f32.mrf.mxu0
    %3445 = vdwg.mxu0
    %3447 = vset.pattern.permute.xlu0 0
    %3448 = vperm.xlu0 %3447, %v3440
    %v3449 = vpop.permute.xlu0 %3448
    %3452 = vset.pattern.permute.xlu0 0
    %3453 = vperm.xlu0 %3452, %v3443
    %v3454 = vpop.permute.xlu0 %3453
    %v3456 = vlaneseq
    %v3457 = vshrl.u32 %v3456, 7
    %v3458 = vsub.s32 0, %v3457
    %v3459 = vrot.slane %v3336, %v3458
    %v3460 = vadd.f32 %v3449, %v3459
    %v3461 = vadd.f32 %v3454, %v3459
    %v3462 = vmul.f32 %v3292, %v836
    %v3463 = vmul.f32 %v3295, %v836
    %3464 = vset.pattern.permute.xlu0 1
    %3465 = vperm.xlu0 %3464, %v3440
    %v3466 = vpop.permute.xlu0 %3465
    %3468 = vset.pattern.permute.xlu0 1
    %3469 = vperm.xlu0 %3468, %v3443
    %v3470 = vpop.permute.xlu0 %3469
    %v3472 = vlaneseq
    %v3473 = vshrl.u32 %v3472, 7
    %v3474 = vsub.s32 1, %v3473
    %v3475 = vrot.slane %v3336, %v3474
    %v3476 = vadd.f32 %v3466, %v3475
    %v3477 = vadd.f32 %v3470, %v3475
    %v3478 = vmul.f32 %v3292, %v856
    %v3479 = vmul.f32 %v3295, %v856
    %3480 = vset.pattern.permute.xlu0 2
    %3481 = vperm.xlu0 %3480, %v3440
    %v3482 = vpop.permute.xlu0 %3481
    %3484 = vset.pattern.permute.xlu0 2
    %3485 = vperm.xlu0 %3484, %v3443
    %v3486 = vpop.permute.xlu0 %3485
    %v3488 = vlaneseq
    %v3489 = vshrl.u32 %v3488, 7
    %v3490 = vsub.s32 2, %v3489
    %v3491 = vrot.slane %v3336, %v3490
    %v3492 = vadd.f32 %v3482, %v3491
    %v3493 = vadd.f32 %v3486, %v3491
    %v3494 = vmul.f32 %v3292, %v876
    %v3495 = vmul.f32 %v3295, %v876
    %3496 = vset.pattern.permute.xlu0 3
    %3497 = vperm.xlu0 %3496, %v3440
    %v3498 = vpop.permute.xlu0 %3497
    %3500 = vset.pattern.permute.xlu0 3
    %3501 = vperm.xlu0 %3500, %v3443
    %v3502 = vpop.permute.xlu0 %3501
    %v3504 = vlaneseq
    %v3505 = vshrl.u32 %v3504, 7
    %v3506 = vsub.s32 3, %v3505
    %v3507 = vrot.slane %v3336, %v3506
    %v3508 = vadd.f32 %v3498, %v3507
    %v3509 = vadd.f32 %v3502, %v3507
    %v3510 = vmul.f32 %v3292, %v896
    %v3511 = vmul.f32 %v3295, %v896
    %v3512 = vpack.c.bf16 %v3463, %v3462
    %v3513 = vpack.c.bf16 %v3479, %v3478
    %v3514 = vpack.c.bf16 %v3495, %v3494
    %v3515 = vpack.c.bf16 %v3511, %v3510
    %v3516 = vmul.f32 %v3460, 0.2
    %v3517 = vmul.f32 %v3461, 0.2
    %v3518 = vmul.f32 %v3476, 0.2
    %v3519 = vmul.f32 %v3477, 0.2
    %v3520 = vmul.f32 %v3492, 0.2
    %v3521 = vmul.f32 %v3493, 0.2
    %v3522 = vmul.f32 %v3508, 0.2
    %v3523 = vmul.f32 %v3509, 0.2
    %v3524 = vmax.f32 %v3460, %v3516
    %v3525 = vmax.f32 %v3461, %v3517
    %v3526 = vmax.f32 %v3476, %v3518
    %v3527 = vmax.f32 %v3477, %v3519
    %v3528 = vmax.f32 %v3492, %v3520
    %v3529 = vmax.f32 %v3493, %v3521
    %v3530 = vmax.f32 %v3508, %v3522
    %v3531 = vmax.f32 %v3509, %v3523
    %v3532 = vadd.f32 %v3524, %v92
    %v3533 = vadd.f32 %v3525, %v93
    %v3534 = vadd.f32 %v3526, %v92
    %v3535 = vadd.f32 %v3527, %v93
    %v3536 = vadd.f32 %v3528, %v92
    %v3537 = vadd.f32 %v3529, %v93
    %v3538 = vadd.f32 %v3530, %v92
    %v3539 = vadd.f32 %v3531, %v93
    %v3540 = vsel %vm927, %v3532, -inf
    %3541 = vmax.xlane.f32.xlu0 %v3540
    %v3542 = vpop.xlane.xlu0 %3541
    %v3543 = vsel %vm927, %v3533, -inf
    %3544 = vmax.xlane.f32.xlu0 %v3543
    %v3545 = vpop.xlane.xlu0 %3544
    %v3546 = vsel %vm927, %v3534, -inf
    %3547 = vmax.xlane.f32.xlu0 %v3546
    %v3548 = vpop.xlane.xlu0 %3547
    %v3549 = vsel %vm927, %v3535, -inf
    %3550 = vmax.xlane.f32.xlu0 %v3549
    %v3551 = vpop.xlane.xlu0 %3550
    %v3552 = vsel %vm927, %v3536, -inf
    %3553 = vmax.xlane.f32.xlu0 %v3552
    %v3554 = vpop.xlane.xlu0 %3553
    %v3555 = vsel %vm927, %v3537, -inf
    %3556 = vmax.xlane.f32.xlu0 %v3555
    %v3557 = vpop.xlane.xlu0 %3556
    %v3558 = vsel %vm927, %v3538, -inf
    %3559 = vmax.xlane.f32.xlu0 %v3558
    %v3560 = vpop.xlane.xlu0 %3559
    %v3561 = vsel %vm927, %v3539, -inf
    %3562 = vmax.xlane.f32.xlu0 %v3561
    %v3563 = vpop.xlane.xlu0 %3562
    %v3564 = vsub.f32 %v3532, %v3542
    %v3565 = vsub.f32 %v3533, %v3545
    %v3566 = vsub.f32 %v3534, %v3548
    %v3567 = vsub.f32 %v3535, %v3551
    %v3568 = vsub.f32 %v3536, %v3554
    %v3569 = vsub.f32 %v3537, %v3557
    %v3570 = vsub.f32 %v3538, %v3560
    %v3571 = vsub.f32 %v3539, %v3563
    %v3572 = vmul.f32 %v3564, 1.442695
    %v3573 = vpow.pop %v3572
    %v3574 = vmul.f32 %v3565, 1.442695
    %v3575 = vpow.pop %v3574
    %v3576 = vmul.f32 %v3566, 1.442695
    %v3577 = vpow.pop %v3576
    %v3578 = vmul.f32 %v3567, 1.442695
    %v3579 = vpow.pop %v3578
    %v3580 = vmul.f32 %v3568, 1.442695
    %v3581 = vpow.pop %v3580
    %v3582 = vmul.f32 %v3569, 1.442695
    %v3583 = vpow.pop %v3582
    %v3584 = vmul.f32 %v3570, 1.442695
    %v3585 = vpow.pop %v3584
    %v3586 = vmul.f32 %v3571, 1.442695
    %v3587 = vpow.pop %v3586
    %v3588 = vsel %vm927, %v3573, 0.0
    %3589 = vadd.xlane.f32.xlu0 %v3588
    %v3590 = vpop.xlane.xlu0 %3589
    %v3591 = vsel %vm927, %v3575, 0.0
    %3592 = vadd.xlane.f32.xlu0 %v3591
    %v3593 = vpop.xlane.xlu0 %3592
    %v3594 = vsel %vm927, %v3577, 0.0
    %3595 = vadd.xlane.f32.xlu0 %v3594
    %v3596 = vpop.xlane.xlu0 %3595
    %v3597 = vsel %vm927, %v3579, 0.0
    %3598 = vadd.xlane.f32.xlu0 %v3597
    %v3599 = vpop.xlane.xlu0 %3598
    %v3600 = vsel %vm927, %v3581, 0.0
    %3601 = vadd.xlane.f32.xlu0 %v3600
    %v3602 = vpop.xlane.xlu0 %3601
    %v3603 = vsel %vm927, %v3583, 0.0
    %3604 = vadd.xlane.f32.xlu0 %v3603
    %v3605 = vpop.xlane.xlu0 %3604
    %v3606 = vsel %vm927, %v3585, 0.0
    %3607 = vadd.xlane.f32.xlu0 %v3606
    %v3608 = vpop.xlane.xlu0 %3607
    %v3609 = vsel %vm927, %v3587, 0.0
    %3610 = vadd.xlane.f32.xlu0 %v3609
    %v3611 = vpop.xlane.xlu0 %3610
    %v3612 = vrcp.pop %v3590
    %v3613 = vrcp.pop %v3593
    %v3614 = vrcp.pop %v3596
    %v3615 = vrcp.pop %v3599
    %v3616 = vrcp.pop %v3602
    %v3617 = vrcp.pop %v3605
    %v3618 = vrcp.pop %v3608
    %v3619 = vrcp.pop %v3611
    %v3620 = vmul.f32 %v3573, %v3612
    %v3621 = vmul.f32 %v3575, %v3613
    %v3622 = vmul.f32 %v3577, %v3614
    %v3623 = vmul.f32 %v3579, %v3615
    %v3624 = vmul.f32 %v3581, %v3616
    %v3625 = vmul.f32 %v3583, %v3617
    %v3626 = vmul.f32 %v3585, %v3618
    %v3627 = vmul.f32 %v3587, %v3619
    %v3628 = vpack.c.bf16 %v3621, %v3620
    %v3629 = vpack.c.bf16 %v3623, %v3622
    %v3630 = vpack.c.bf16 %v3625, %v3624
    %v3631 = vpack.c.bf16 %v3627, %v3626
    %v3633 = vsel %vm927, %v3628, 0
    %3635 = vmatprep.subr.bf16.mxu0 0
    %3636 = vmatpush1.bf16.msra.mxu0 0
    %3637 = vmatprep.subr.bf16.mxu0 0
    %3638 = vmatpush1.bf16.msra.mxu0 0
    %3639 = vmatprep.subr.bf16.mxu0 0
    %3640 = vmatpush1.bf16.msra.mxu0 0
    %3641 = vmatprep.subr.bf16.mxu0 0
    %3642 = vmatpush1.bf16.msra.mxu0 0
    %3643 = vmatprep.subr.bf16.mxu0 0
    %3644 = vmatpush1.bf16.msra.mxu0 0
    %3645 = vmatprep.subr.bf16.mxu0 0
    %3646 = vmatpush1.bf16.msra.mxu0 0
    %3647 = vmatprep.subr.bf16.mxu0 0
    %3648 = vmatpush1.bf16.msra.mxu0 0
    %3649 = vmatprep.subr.bf16.mxu0 0
    %3650 = vmatpush1.bf16.msra.mxu0 %v3512
    %3651 = vmatprep.subr.bf16.mxu0 0
    %3652 = vmatpush2.bf16.msra.mxu0 0
    %3653 = vmatprep.subr.bf16.mxu0 0
    %3654 = vmatpush2.bf16.msra.mxu0 0
    %3655 = vmatprep.subr.bf16.mxu0 0
    %3656 = vmatpush2.bf16.msra.mxu0 0
    %3657 = vmatprep.subr.bf16.mxu0 0
    %3658 = vmatpush2.bf16.msra.mxu0 0
    %3659 = vmatprep.subr.bf16.mxu0 0
    %3660 = vmatpush2.bf16.msra.mxu0 0
    %3661 = vmatprep.subr.bf16.mxu0 0
    %3662 = vmatpush2.bf16.msra.mxu0 0
    %3663 = vmatprep.subr.bf16.mxu0 0
    %3664 = vmatpush2.bf16.msra.mxu0 0
    %3665 = vmatprep.subr.bf16.mxu0 0
    %3666 = vmatpush2.bf16.msra.mxu0 0
    %3667 = vmatprep.mubr.bf16.mxu0 0
    %3668 = vmatmul.mubr.bf16.gmra.mxu0 %v3633
    %v3669 = vpop.f32.mrf.mxu0
    %v3670 = vadd.f32 0.0, %v3669
    %v3671 = vpop.f32.mrf.mxu0
    %v3672 = vpop.f32.mrf.mxu0
    %v3673 = vadd.f32 0.0, %v3672
    %v3674 = vpop.f32.mrf.mxu0
    %3675 = vdwg.mxu0
    %v3677 = vsel %vm927, %v3629, 0
    %3679 = vmatprep.subr.bf16.mxu0 0
    %3680 = vmatpush1.bf16.msra.mxu0 0
    %3681 = vmatprep.subr.bf16.mxu0 0
    %3682 = vmatpush1.bf16.msra.mxu0 0
    %3683 = vmatprep.subr.bf16.mxu0 0
    %3684 = vmatpush1.bf16.msra.mxu0 0
    %3685 = vmatprep.subr.bf16.mxu0 0
    %3686 = vmatpush1.bf16.msra.mxu0 0
    %3687 = vmatprep.subr.bf16.mxu0 0
    %3688 = vmatpush1.bf16.msra.mxu0 0
    %3689 = vmatprep.subr.bf16.mxu0 0
    %3690 = vmatpush1.bf16.msra.mxu0 0
    %3691 = vmatprep.subr.bf16.mxu0 0
    %3692 = vmatpush1.bf16.msra.mxu0 0
    %3693 = vmatprep.subr.bf16.mxu0 0
    %3694 = vmatpush1.bf16.msra.mxu0 %v3513
    %3695 = vmatprep.subr.bf16.mxu0 0
    %3696 = vmatpush2.bf16.msra.mxu0 0
    %3697 = vmatprep.subr.bf16.mxu0 0
    %3698 = vmatpush2.bf16.msra.mxu0 0
    %3699 = vmatprep.subr.bf16.mxu0 0
    %3700 = vmatpush2.bf16.msra.mxu0 0
    %3701 = vmatprep.subr.bf16.mxu0 0
    %3702 = vmatpush2.bf16.msra.mxu0 0
    %3703 = vmatprep.subr.bf16.mxu0 0
    %3704 = vmatpush2.bf16.msra.mxu0 0
    %3705 = vmatprep.subr.bf16.mxu0 0
    %3706 = vmatpush2.bf16.msra.mxu0 0
    %3707 = vmatprep.subr.bf16.mxu0 0
    %3708 = vmatpush2.bf16.msra.mxu0 0
    %3709 = vmatprep.subr.bf16.mxu0 0
    %3710 = vmatpush2.bf16.msra.mxu0 0
    %3711 = vmatprep.mubr.bf16.mxu0 0
    %3712 = vmatmul.mubr.bf16.gmra.mxu0 %v3677
    %v3713 = vpop.f32.mrf.mxu0
    %v3714 = vadd.f32 0.0, %v3713
    %v3715 = vpop.f32.mrf.mxu0
    %v3716 = vpop.f32.mrf.mxu0
    %v3717 = vadd.f32 0.0, %v3716
    %v3718 = vpop.f32.mrf.mxu0
    %3719 = vdwg.mxu0
    %v3721 = vsel %vm927, %v3630, 0
    %3723 = vmatprep.subr.bf16.mxu0 0
    %3724 = vmatpush1.bf16.msra.mxu0 0
    %3725 = vmatprep.subr.bf16.mxu0 0
    %3726 = vmatpush1.bf16.msra.mxu0 0
    %3727 = vmatprep.subr.bf16.mxu0 0
    %3728 = vmatpush1.bf16.msra.mxu0 0
    %3729 = vmatprep.subr.bf16.mxu0 0
    %3730 = vmatpush1.bf16.msra.mxu0 0
    %3731 = vmatprep.subr.bf16.mxu0 0
    %3732 = vmatpush1.bf16.msra.mxu0 0
    %3733 = vmatprep.subr.bf16.mxu0 0
    %3734 = vmatpush1.bf16.msra.mxu0 0
    %3735 = vmatprep.subr.bf16.mxu0 0
    %3736 = vmatpush1.bf16.msra.mxu0 0
    %3737 = vmatprep.subr.bf16.mxu0 0
    %3738 = vmatpush1.bf16.msra.mxu0 %v3514
    %3739 = vmatprep.subr.bf16.mxu0 0
    %3740 = vmatpush2.bf16.msra.mxu0 0
    %3741 = vmatprep.subr.bf16.mxu0 0
    %3742 = vmatpush2.bf16.msra.mxu0 0
    %3743 = vmatprep.subr.bf16.mxu0 0
    %3744 = vmatpush2.bf16.msra.mxu0 0
    %3745 = vmatprep.subr.bf16.mxu0 0
    %3746 = vmatpush2.bf16.msra.mxu0 0
    %3747 = vmatprep.subr.bf16.mxu0 0
    %3748 = vmatpush2.bf16.msra.mxu0 0
    %3749 = vmatprep.subr.bf16.mxu0 0
    %3750 = vmatpush2.bf16.msra.mxu0 0
    %3751 = vmatprep.subr.bf16.mxu0 0
    %3752 = vmatpush2.bf16.msra.mxu0 0
    %3753 = vmatprep.subr.bf16.mxu0 0
    %3754 = vmatpush2.bf16.msra.mxu0 0
    %3755 = vmatprep.mubr.bf16.mxu0 0
    %3756 = vmatmul.mubr.bf16.gmra.mxu0 %v3721
    %v3757 = vpop.f32.mrf.mxu0
    %v3758 = vadd.f32 0.0, %v3757
    %v3759 = vpop.f32.mrf.mxu0
    %v3760 = vpop.f32.mrf.mxu0
    %v3761 = vadd.f32 0.0, %v3760
    %v3762 = vpop.f32.mrf.mxu0
    %3763 = vdwg.mxu0
    %v3765 = vsel %vm927, %v3631, 0
    %3767 = vmatprep.subr.bf16.mxu0 0
    %3768 = vmatpush1.bf16.msra.mxu0 0
    %3769 = vmatprep.subr.bf16.mxu0 0
    %3770 = vmatpush1.bf16.msra.mxu0 0
    %3771 = vmatprep.subr.bf16.mxu0 0
    %3772 = vmatpush1.bf16.msra.mxu0 0
    %3773 = vmatprep.subr.bf16.mxu0 0
    %3774 = vmatpush1.bf16.msra.mxu0 0
    %3775 = vmatprep.subr.bf16.mxu0 0
    %3776 = vmatpush1.bf16.msra.mxu0 0
    %3777 = vmatprep.subr.bf16.mxu0 0
    %3778 = vmatpush1.bf16.msra.mxu0 0
    %3779 = vmatprep.subr.bf16.mxu0 0
    %3780 = vmatpush1.bf16.msra.mxu0 0
    %3781 = vmatprep.subr.bf16.mxu0 0
    %3782 = vmatpush1.bf16.msra.mxu0 %v3515
    %3783 = vmatprep.subr.bf16.mxu0 0
    %3784 = vmatpush2.bf16.msra.mxu0 0
    %3785 = vmatprep.subr.bf16.mxu0 0
    %3786 = vmatpush2.bf16.msra.mxu0 0
    %3787 = vmatprep.subr.bf16.mxu0 0
    %3788 = vmatpush2.bf16.msra.mxu0 0
    %3789 = vmatprep.subr.bf16.mxu0 0
    %3790 = vmatpush2.bf16.msra.mxu0 0
    %3791 = vmatprep.subr.bf16.mxu0 0
    %3792 = vmatpush2.bf16.msra.mxu0 0
    %3793 = vmatprep.subr.bf16.mxu0 0
    %3794 = vmatpush2.bf16.msra.mxu0 0
    %3795 = vmatprep.subr.bf16.mxu0 0
    %3796 = vmatpush2.bf16.msra.mxu0 0
    %3797 = vmatprep.subr.bf16.mxu0 0
    %3798 = vmatpush2.bf16.msra.mxu0 0
    %3799 = vmatprep.mubr.bf16.mxu0 0
    %3800 = vmatmul.mubr.bf16.gmra.mxu0 %v3765
    %v3801 = vpop.f32.mrf.mxu0
    %v3802 = vadd.f32 0.0, %v3801
    %v3803 = vpop.f32.mrf.mxu0
    %v3804 = vpop.f32.mrf.mxu0
    %v3805 = vadd.f32 0.0, %v3804
    %v3806 = vpop.f32.mrf.mxu0
    %3807 = vdwg.mxu0
    %v3808 = vadd.f32 %v3670, %v3714
    %v3809 = vadd.f32 %v3673, %v3717
    %v3810 = vadd.f32 %v3808, %v3758
    %v3811 = vadd.f32 %v3809, %v3761
    %v3812 = vadd.f32 %v3810, %v3802
    %v3813 = vadd.f32 %v3811, %v3805
    %v3814 = vld [vmem:[%s4 + $0x20] sm:$0x1]
    %v3815 = vlaneseq
    %v3816 = vshrl.u32 %v3815, 7
    %v3817 = vsub.s32 0, %v3816
    %v3818 = vrot.slane %v3814, %v3817
    %v3819 = vadd.f32 %v3812, %v3818
    %v3820 = vadd.f32 %v3813, %v3818
    %v3821 = vmax.f32 %v3819, 0.0
    %v3822 = vmax.f32 %v3820, 0.0
    %v3823 = vadd.f32 %v3821, %v3187
    %v3824 = vadd.f32 %v3822, %v3190
    %v3825 = vld [vmem:[#allocation4 + $0x100] sm:$0xf]
    %v3826 = vld [vmem:[#allocation4 + $0x104] sm:$0xf]
    %v3827 = vld [vmem:[#allocation4 + $0x108] sm:$0xf]
    %v3828 = vld [vmem:[#allocation4 + $0x10c] sm:$0xf]
    %v3829 = vld [vmem:[#allocation4 + $0x110] sm:$0xf]
    %v3830 = vld [vmem:[#allocation4 + $0x114] sm:$0xf]
    %v3831 = vld [vmem:[#allocation4 + $0x118] sm:$0xf]
    %v3832 = vld [vmem:[#allocation4 + $0x11c] sm:$0xf]
    %v3833 = vld [vmem:[#allocation4 + $0x120] sm:$0xf]
    %v3834 = vld [vmem:[#allocation4 + $0x124] sm:$0xf]
    %v3835 = vld [vmem:[#allocation4 + $0x128] sm:$0xf]
    %v3836 = vld [vmem:[#allocation4 + $0x12c] sm:$0xf]
    %v3837 = vld [vmem:[#allocation4 + $0x130] sm:$0xf]
    %v3838 = vld [vmem:[#allocation4 + $0x134] sm:$0xf]
    %v3839 = vld [vmem:[#allocation4 + $0x138] sm:$0xf]
    %v3840 = vld [vmem:[#allocation4 + $0x13c] sm:$0xf]
    %v3841 = vpack.c.bf16 %v3824, %v3823
    %v3858 = vunpack.c.l.b16 %v3825
    %v3859 = vunpack.c.l.b16 %v3826
    %v3860 = vunpack.c.l.b16 %v3827
    %v3861 = vunpack.c.l.b16 %v3828
    %v3862 = vunpack.c.l.b16 %v3829
    %v3863 = vunpack.c.l.b16 %v3830
    %v3864 = vunpack.c.l.b16 %v3831
    %v3865 = vunpack.c.l.b16 %v3832
    %v3866 = vunpack.c.l.b16 %v3833
    %v3867 = vunpack.c.l.b16 %v3834
    %v3868 = vunpack.c.l.b16 %v3835
    %v3869 = vunpack.c.l.b16 %v3836
    %v3870 = vunpack.c.l.b16 %v3837
    %v3871 = vunpack.c.l.b16 %v3838
    %v3872 = vunpack.c.l.b16 %v3839
    %v3873 = vunpack.c.l.b16 %v3840
    %v3874 = vpack.c.b16 %v3859, %v3858
    %v3875 = vpack.c.b16 %v3861, %v3860
    %v3876 = vpack.c.b16 %v3863, %v3862
    %v3877 = vpack.c.b16 %v3865, %v3864
    %v3878 = vpack.c.b16 %v3867, %v3866
    %v3879 = vpack.c.b16 %v3869, %v3868
    %v3880 = vpack.c.b16 %v3871, %v3870
    %v3881 = vpack.c.b16 %v3873, %v3872
    %3890 = vmatprep.subr.bf16.mxu0 0
    %3891 = vmatpush1.bf16.msra.mxu0 %v3881
    %3892 = vmatprep.subr.bf16.mxu0 0
    %3893 = vmatpush1.bf16.msra.mxu0 %v3880
    %3894 = vmatprep.subr.bf16.mxu0 0
    %3895 = vmatpush1.bf16.msra.mxu0 %v3879
    %3896 = vmatprep.subr.bf16.mxu0 0
    %3897 = vmatpush1.bf16.msra.mxu0 %v3878
    %3898 = vmatprep.subr.bf16.mxu0 0
    %3899 = vmatpush1.bf16.msra.mxu0 %v3877
    %3900 = vmatprep.subr.bf16.mxu0 0
    %3901 = vmatpush1.bf16.msra.mxu0 %v3876
    %3902 = vmatprep.subr.bf16.mxu0 0
    %3903 = vmatpush1.bf16.msra.mxu0 %v3875
    %3904 = vmatprep.subr.bf16.mxu0 0
    %3905 = vmatpush1.bf16.msra.mxu0 %v3874
    %3906 = vmatprep.subr.bf16.mxu0 0
    %3907 = vmatpush2.bf16.msra.mxu0 0
    %3908 = vmatprep.subr.bf16.mxu0 0
    %3909 = vmatpush2.bf16.msra.mxu0 0
    %3910 = vmatprep.subr.bf16.mxu0 0
    %3911 = vmatpush2.bf16.msra.mxu0 0
    %3912 = vmatprep.subr.bf16.mxu0 0
    %3913 = vmatpush2.bf16.msra.mxu0 0
    %3914 = vmatprep.subr.bf16.mxu0 0
    %3915 = vmatpush2.bf16.msra.mxu0 0
    %3916 = vmatprep.subr.bf16.mxu0 0
    %3917 = vmatpush2.bf16.msra.mxu0 0
    %3918 = vmatprep.subr.bf16.mxu0 0
    %3919 = vmatpush2.bf16.msra.mxu0 0
    %3920 = vmatprep.subr.bf16.mxu0 0
    %3921 = vmatpush2.bf16.msra.mxu0 0
    %3922 = vmatprep.mubr.bf16.mxu0 0
    %3923 = vmatmul.mubr.bf16.gmra.mxu0 %v3841
    %v3924 = vpop.f32.mrf.mxu0
    %v3925 = vadd.f32 0.0, %v3924
    %v3926 = vpop.f32.mrf.mxu0
    %v3927 = vpop.f32.mrf.mxu0
    %v3928 = vadd.f32 0.0, %v3927
    %v3929 = vpop.f32.mrf.mxu0
    %3930 = vdwg.mxu0
    %v3931 = vpack.c.bf16 %v3928, %v3925
    %v3932 = vld [vmem:[%s4 + $0x10] sm:$0xf]
    %v3933 = vpack.c.bf16 %v3932, %v3932
    %3934 = vmatprep.subr.bf16.mxu0 0
    %3935 = vmatpush1.bf16.xpose.msra.mxu0 0
    %3936 = vmatprep.subr.bf16.mxu0 0
    %3937 = vmatpush1.bf16.xpose.msra.mxu0 0
    %3938 = vmatprep.subr.bf16.mxu0 0
    %3939 = vmatpush1.bf16.xpose.msra.mxu0 0
    %3940 = vmatprep.subr.bf16.mxu0 0
    %3941 = vmatpush1.bf16.xpose.msra.mxu0 0
    %3942 = vmatprep.subr.bf16.mxu0 0
    %3943 = vmatpush1.bf16.xpose.msra.mxu0 0
    %3944 = vmatprep.subr.bf16.mxu0 0
    %3945 = vmatpush1.bf16.xpose.msra.mxu0 0
    %3946 = vmatprep.subr.bf16.mxu0 0
    %3947 = vmatpush1.bf16.xpose.msra.mxu0 0
    %3948 = vmatprep.subr.bf16.mxu0 0
    %3949 = vmatpush1.bf16.xpose.msra.mxu0 %v3931
    %3950 = vmatprep.subr.bf16.mxu0 0
    %3951 = vmatpush2.bf16.xpose.msra.mxu0 0
    %3952 = vmatprep.subr.bf16.mxu0 0
    %3953 = vmatpush2.bf16.xpose.msra.mxu0 0
    %3954 = vmatprep.subr.bf16.mxu0 0
    %3955 = vmatpush2.bf16.xpose.msra.mxu0 0
    %3956 = vmatprep.subr.bf16.mxu0 0
    %3957 = vmatpush2.bf16.xpose.msra.mxu0 0
    %3958 = vmatprep.subr.bf16.mxu0 0
    %3959 = vmatpush2.bf16.xpose.msra.mxu0 0
    %3960 = vmatprep.subr.bf16.mxu0 0
    %3961 = vmatpush2.bf16.xpose.msra.mxu0 0
    %3962 = vmatprep.subr.bf16.mxu0 0
    %3963 = vmatpush2.bf16.xpose.msra.mxu0 0
    %3964 = vmatprep.subr.bf16.mxu0 0
    %3965 = vmatpush2.bf16.xpose.msra.mxu0 0
    %3966 = vmatprep.mubr.bf16.mxu0 0
    %3967 = vmatmul.mubr.bf16.gmra.mxu0 %v3933
    %v3968 = vpop.f32.mrf.mxu0
    %v3969 = vadd.f32 0.0, %v3968
    %v3970 = vpop.f32.mrf.mxu0
    %v3971 = vpop.f32.mrf.mxu0
    %v3972 = vpop.f32.mrf.mxu0
    %3973 = vdwg.mxu0
    %v3974 = vld [vmem:[#allocation4 + $0x200] sm:$0xf]
    %v3975 = vld [vmem:[#allocation4 + $0x204] sm:$0xf]
    %v3976 = vld [vmem:[#allocation4 + $0x208] sm:$0xf]
    %v3977 = vld [vmem:[#allocation4 + $0x20c] sm:$0xf]
    %v3978 = vld [vmem:[#allocation4 + $0x210] sm:$0xf]
    %v3979 = vld [vmem:[#allocation4 + $0x214] sm:$0xf]
    %v3980 = vld [vmem:[#allocation4 + $0x218] sm:$0xf]
    %v3981 = vld [vmem:[#allocation4 + $0x21c] sm:$0xf]
    %v3982 = vld [vmem:[#allocation4 + $0x220] sm:$0xf]
    %v3983 = vld [vmem:[#allocation4 + $0x224] sm:$0xf]
    %v3984 = vld [vmem:[#allocation4 + $0x228] sm:$0xf]
    %v3985 = vld [vmem:[#allocation4 + $0x22c] sm:$0xf]
    %v3986 = vld [vmem:[#allocation4 + $0x230] sm:$0xf]
    %v3987 = vld [vmem:[#allocation4 + $0x234] sm:$0xf]
    %v3988 = vld [vmem:[#allocation4 + $0x238] sm:$0xf]
    %v3989 = vld [vmem:[#allocation4 + $0x23c] sm:$0xf]
    %v4006 = vunpack.c.l.b16 %v3974
    %v4007 = vunpack.c.l.b16 %v3975
    %v4008 = vunpack.c.l.b16 %v3976
    %v4009 = vunpack.c.l.b16 %v3977
    %v4010 = vunpack.c.l.b16 %v3978
    %v4011 = vunpack.c.l.b16 %v3979
    %v4012 = vunpack.c.l.b16 %v3980
    %v4013 = vunpack.c.l.b16 %v3981
    %v4014 = vunpack.c.l.b16 %v3982
    %v4015 = vunpack.c.l.b16 %v3983
    %v4016 = vunpack.c.l.b16 %v3984
    %v4017 = vunpack.c.l.b16 %v3985
    %v4018 = vunpack.c.l.b16 %v3986
    %v4019 = vunpack.c.l.b16 %v3987
    %v4020 = vunpack.c.l.b16 %v3988
    %v4021 = vunpack.c.l.b16 %v3989
    %v4022 = vpack.c.b16 %v4007, %v4006
    %v4023 = vpack.c.b16 %v4009, %v4008
    %v4024 = vpack.c.b16 %v4011, %v4010
    %v4025 = vpack.c.b16 %v4013, %v4012
    %v4026 = vpack.c.b16 %v4015, %v4014
    %v4027 = vpack.c.b16 %v4017, %v4016
    %v4028 = vpack.c.b16 %v4019, %v4018
    %v4029 = vpack.c.b16 %v4021, %v4020
    %4030 = vrot.lane.b32.xlu0 %v4022, 124
    %v4031 = vpop.permute.xlu0 %4030
    %4032 = vrot.lane.b32.xlu0 %v4023, 124
    %v4033 = vpop.permute.xlu0 %4032
    %4034 = vrot.lane.b32.xlu0 %v4024, 124
    %v4035 = vpop.permute.xlu0 %4034
    %4036 = vrot.lane.b32.xlu0 %v4025, 124
    %v4037 = vpop.permute.xlu0 %4036
    %4038 = vrot.lane.b32.xlu0 %v4026, 124
    %v4039 = vpop.permute.xlu0 %4038
    %4040 = vrot.lane.b32.xlu0 %v4027, 124
    %v4041 = vpop.permute.xlu0 %4040
    %4042 = vrot.lane.b32.xlu0 %v4028, 124
    %v4043 = vpop.permute.xlu0 %4042
    %4044 = vrot.lane.b32.xlu0 %v4029, 124
    %v4045 = vpop.permute.xlu0 %4044
    %4054 = vmatprep.subr.bf16.mxu0 0
    %4055 = vmatpush1.bf16.msra.mxu0 %v4045
    %4056 = vmatprep.subr.bf16.mxu0 0
    %4057 = vmatpush1.bf16.msra.mxu0 %v4043
    %4058 = vmatprep.subr.bf16.mxu0 0
    %4059 = vmatpush1.bf16.msra.mxu0 %v4041
    %4060 = vmatprep.subr.bf16.mxu0 0
    %4061 = vmatpush1.bf16.msra.mxu0 %v4039
    %4062 = vmatprep.subr.bf16.mxu0 0
    %4063 = vmatpush1.bf16.msra.mxu0 %v4037
    %4064 = vmatprep.subr.bf16.mxu0 0
    %4065 = vmatpush1.bf16.msra.mxu0 %v4035
    %4066 = vmatprep.subr.bf16.mxu0 0
    %4067 = vmatpush1.bf16.msra.mxu0 %v4033
    %4068 = vmatprep.subr.bf16.mxu0 0
    %4069 = vmatpush1.bf16.msra.mxu0 %v4031
    %4070 = vmatprep.subr.bf16.mxu0 0
    %4071 = vmatpush2.bf16.msra.mxu0 0
    %4072 = vmatprep.subr.bf16.mxu0 0
    %4073 = vmatpush2.bf16.msra.mxu0 0
    %4074 = vmatprep.subr.bf16.mxu0 0
    %4075 = vmatpush2.bf16.msra.mxu0 0
    %4076 = vmatprep.subr.bf16.mxu0 0
    %4077 = vmatpush2.bf16.msra.mxu0 0
    %4078 = vmatprep.subr.bf16.mxu0 0
    %4079 = vmatpush2.bf16.msra.mxu0 0
    %4080 = vmatprep.subr.bf16.mxu0 0
    %4081 = vmatpush2.bf16.msra.mxu0 0
    %4082 = vmatprep.subr.bf16.mxu0 0
    %4083 = vmatpush2.bf16.msra.mxu0 0
    %4084 = vmatprep.subr.bf16.mxu0 0
    %4085 = vmatpush2.bf16.msra.mxu0 0
    %4086 = vmatprep.mubr.bf16.mxu0 0
    %4087 = vmatmul.mubr.bf16.gmra.mxu0 %v3931
    %v4088 = vpop.f32.mrf.mxu0
    %v4089 = vadd.f32 0.0, %v4088
    %v4090 = vpop.f32.mrf.mxu0
    %v4091 = vpop.f32.mrf.mxu0
    %v4092 = vadd.f32 0.0, %v4091
    %v4093 = vpop.f32.mrf.mxu0
    %4094 = vdwg.mxu0
    %4096 = vset.pattern.permute.xlu0 0
    %4097 = vperm.xlu0 %4096, %v4089
    %v4098 = vpop.permute.xlu0 %4097
    %4101 = vset.pattern.permute.xlu0 0
    %4102 = vperm.xlu0 %4101, %v4092
    %v4103 = vpop.permute.xlu0 %4102
    %v4105 = vlaneseq
    %v4106 = vshrl.u32 %v4105, 7
    %v4107 = vsub.s32 0, %v4106
    %v4108 = vrot.slane %v3969, %v4107
    %v4109 = vadd.f32 %v4098, %v4108
    %v4110 = vadd.f32 %v4103, %v4108
    %v4111 = vmul.f32 %v3925, %v836
    %v4112 = vmul.f32 %v3928, %v836
    %4113 = vset.pattern.permute.xlu0 1
    %4114 = vperm.xlu0 %4113, %v4089
    %v4115 = vpop.permute.xlu0 %4114
    %4117 = vset.pattern.permute.xlu0 1
    %4118 = vperm.xlu0 %4117, %v4092
    %v4119 = vpop.permute.xlu0 %4118
    %v4121 = vlaneseq
    %v4122 = vshrl.u32 %v4121, 7
    %v4123 = vsub.s32 1, %v4122
    %v4124 = vrot.slane %v3969, %v4123
    %v4125 = vadd.f32 %v4115, %v4124
    %v4126 = vadd.f32 %v4119, %v4124
    %v4127 = vmul.f32 %v3925, %v856
    %v4128 = vmul.f32 %v3928, %v856
    %4129 = vset.pattern.permute.xlu0 2
    %4130 = vperm.xlu0 %4129, %v4089
    %v4131 = vpop.permute.xlu0 %4130
    %4133 = vset.pattern.permute.xlu0 2
    %4134 = vperm.xlu0 %4133, %v4092
    %v4135 = vpop.permute.xlu0 %4134
    %v4137 = vlaneseq
    %v4138 = vshrl.u32 %v4137, 7
    %v4139 = vsub.s32 2, %v4138
    %v4140 = vrot.slane %v3969, %v4139
    %v4141 = vadd.f32 %v4131, %v4140
    %v4142 = vadd.f32 %v4135, %v4140
    %v4143 = vmul.f32 %v3925, %v876
    %v4144 = vmul.f32 %v3928, %v876
    %4145 = vset.pattern.permute.xlu0 3
    %4146 = vperm.xlu0 %4145, %v4089
    %v4147 = vpop.permute.xlu0 %4146
    %4149 = vset.pattern.permute.xlu0 3
    %4150 = vperm.xlu0 %4149, %v4092
    %v4151 = vpop.permute.xlu0 %4150
    %v4153 = vlaneseq
    %v4154 = vshrl.u32 %v4153, 7
    %v4155 = vsub.s32 3, %v4154
    %v4156 = vrot.slane %v3969, %v4155
    %v4157 = vadd.f32 %v4147, %v4156
    %v4158 = vadd.f32 %v4151, %v4156
    %v4159 = vmul.f32 %v3925, %v896
    %v4160 = vmul.f32 %v3928, %v896
    %v4161 = vpack.c.bf16 %v4112, %v4111
    %v4162 = vpack.c.bf16 %v4128, %v4127
    %v4163 = vpack.c.bf16 %v4144, %v4143
    %v4164 = vpack.c.bf16 %v4160, %v4159
    %v4165 = vmul.f32 %v4109, 0.2
    %v4166 = vmul.f32 %v4110, 0.2
    %v4167 = vmul.f32 %v4125, 0.2
    %v4168 = vmul.f32 %v4126, 0.2
    %v4169 = vmul.f32 %v4141, 0.2
    %v4170 = vmul.f32 %v4142, 0.2
    %v4171 = vmul.f32 %v4157, 0.2
    %v4172 = vmul.f32 %v4158, 0.2
    %v4173 = vmax.f32 %v4109, %v4165
    %v4174 = vmax.f32 %v4110, %v4166
    %v4175 = vmax.f32 %v4125, %v4167
    %v4176 = vmax.f32 %v4126, %v4168
    %v4177 = vmax.f32 %v4141, %v4169
    %v4178 = vmax.f32 %v4142, %v4170
    %v4179 = vmax.f32 %v4157, %v4171
    %v4180 = vmax.f32 %v4158, %v4172
    %v4181 = vadd.f32 %v4173, %v92
    %v4182 = vadd.f32 %v4174, %v93
    %v4183 = vadd.f32 %v4175, %v92
    %v4184 = vadd.f32 %v4176, %v93
    %v4185 = vadd.f32 %v4177, %v92
    %v4186 = vadd.f32 %v4178, %v93
    %v4187 = vadd.f32 %v4179, %v92
    %v4188 = vadd.f32 %v4180, %v93
    %v4189 = vsel %vm927, %v4181, -inf
    %4190 = vmax.xlane.f32.xlu0 %v4189
    %v4191 = vpop.xlane.xlu0 %4190
    %v4192 = vsel %vm927, %v4182, -inf
    %4193 = vmax.xlane.f32.xlu0 %v4192
    %v4194 = vpop.xlane.xlu0 %4193
    %v4195 = vsel %vm927, %v4183, -inf
    %4196 = vmax.xlane.f32.xlu0 %v4195
    %v4197 = vpop.xlane.xlu0 %4196
    %v4198 = vsel %vm927, %v4184, -inf
    %4199 = vmax.xlane.f32.xlu0 %v4198
    %v4200 = vpop.xlane.xlu0 %4199
    %v4201 = vsel %vm927, %v4185, -inf
    %4202 = vmax.xlane.f32.xlu0 %v4201
    %v4203 = vpop.xlane.xlu0 %4202
    %v4204 = vsel %vm927, %v4186, -inf
    %4205 = vmax.xlane.f32.xlu0 %v4204
    %v4206 = vpop.xlane.xlu0 %4205
    %v4207 = vsel %vm927, %v4187, -inf
    %4208 = vmax.xlane.f32.xlu0 %v4207
    %v4209 = vpop.xlane.xlu0 %4208
    %v4210 = vsel %vm927, %v4188, -inf
    %4211 = vmax.xlane.f32.xlu0 %v4210
    %v4212 = vpop.xlane.xlu0 %4211
    %v4213 = vsub.f32 %v4181, %v4191
    %v4214 = vsub.f32 %v4182, %v4194
    %v4215 = vsub.f32 %v4183, %v4197
    %v4216 = vsub.f32 %v4184, %v4200
    %v4217 = vsub.f32 %v4185, %v4203
    %v4218 = vsub.f32 %v4186, %v4206
    %v4219 = vsub.f32 %v4187, %v4209
    %v4220 = vsub.f32 %v4188, %v4212
    %v4221 = vmul.f32 %v4213, 1.442695
    %v4222 = vpow.pop %v4221
    %v4223 = vmul.f32 %v4214, 1.442695
    %v4224 = vpow.pop %v4223
    %v4225 = vmul.f32 %v4215, 1.442695
    %v4226 = vpow.pop %v4225
    %v4227 = vmul.f32 %v4216, 1.442695
    %v4228 = vpow.pop %v4227
    %v4229 = vmul.f32 %v4217, 1.442695
    %v4230 = vpow.pop %v4229
    %v4231 = vmul.f32 %v4218, 1.442695
    %v4232 = vpow.pop %v4231
    %v4233 = vmul.f32 %v4219, 1.442695
    %v4234 = vpow.pop %v4233
    %v4235 = vmul.f32 %v4220, 1.442695
    %v4236 = vpow.pop %v4235
    %v4237 = vsel %vm927, %v4222, 0.0
    %4238 = vadd.xlane.f32.xlu0 %v4237
    %v4239 = vpop.xlane.xlu0 %4238
    %v4240 = vsel %vm927, %v4224, 0.0
    %4241 = vadd.xlane.f32.xlu0 %v4240
    %v4242 = vpop.xlane.xlu0 %4241
    %v4243 = vsel %vm927, %v4226, 0.0
    %4244 = vadd.xlane.f32.xlu0 %v4243
    %v4245 = vpop.xlane.xlu0 %4244
    %v4246 = vsel %vm927, %v4228, 0.0
    %4247 = vadd.xlane.f32.xlu0 %v4246
    %v4248 = vpop.xlane.xlu0 %4247
    %v4249 = vsel %vm927, %v4230, 0.0
    %4250 = vadd.xlane.f32.xlu0 %v4249
    %v4251 = vpop.xlane.xlu0 %4250
    %v4252 = vsel %vm927, %v4232, 0.0
    %4253 = vadd.xlane.f32.xlu0 %v4252
    %v4254 = vpop.xlane.xlu0 %4253
    %v4255 = vsel %vm927, %v4234, 0.0
    %4256 = vadd.xlane.f32.xlu0 %v4255
    %v4257 = vpop.xlane.xlu0 %4256
    %v4258 = vsel %vm927, %v4236, 0.0
    %4259 = vadd.xlane.f32.xlu0 %v4258
    %v4260 = vpop.xlane.xlu0 %4259
    %v4261 = vrcp.pop %v4239
    %v4262 = vrcp.pop %v4242
    %v4263 = vrcp.pop %v4245
    %v4264 = vrcp.pop %v4248
    %v4265 = vrcp.pop %v4251
    %v4266 = vrcp.pop %v4254
    %v4267 = vrcp.pop %v4257
    %v4268 = vrcp.pop %v4260
    %v4269 = vmul.f32 %v4222, %v4261
    %v4270 = vmul.f32 %v4224, %v4262
    %v4271 = vmul.f32 %v4226, %v4263
    %v4272 = vmul.f32 %v4228, %v4264
    %v4273 = vmul.f32 %v4230, %v4265
    %v4274 = vmul.f32 %v4232, %v4266
    %v4275 = vmul.f32 %v4234, %v4267
    %v4276 = vmul.f32 %v4236, %v4268
    %v4277 = vpack.c.bf16 %v4270, %v4269
    %v4278 = vpack.c.bf16 %v4272, %v4271
    %v4279 = vpack.c.bf16 %v4274, %v4273
    %v4280 = vpack.c.bf16 %v4276, %v4275
    %v4282 = vsel %vm927, %v4277, 0
    %4284 = vmatprep.subr.bf16.mxu0 0
    %4285 = vmatpush1.bf16.msra.mxu0 0
    %4286 = vmatprep.subr.bf16.mxu0 0
    %4287 = vmatpush1.bf16.msra.mxu0 0
    %4288 = vmatprep.subr.bf16.mxu0 0
    %4289 = vmatpush1.bf16.msra.mxu0 0
    %4290 = vmatprep.subr.bf16.mxu0 0
    %4291 = vmatpush1.bf16.msra.mxu0 0
    %4292 = vmatprep.subr.bf16.mxu0 0
    %4293 = vmatpush1.bf16.msra.mxu0 0
    %4294 = vmatprep.subr.bf16.mxu0 0
    %4295 = vmatpush1.bf16.msra.mxu0 0
    %4296 = vmatprep.subr.bf16.mxu0 0
    %4297 = vmatpush1.bf16.msra.mxu0 0
    %4298 = vmatprep.subr.bf16.mxu0 0
    %4299 = vmatpush1.bf16.msra.mxu0 %v4161
    %4300 = vmatprep.subr.bf16.mxu0 0
    %4301 = vmatpush2.bf16.msra.mxu0 0
    %4302 = vmatprep.subr.bf16.mxu0 0
    %4303 = vmatpush2.bf16.msra.mxu0 0
    %4304 = vmatprep.subr.bf16.mxu0 0
    %4305 = vmatpush2.bf16.msra.mxu0 0
    %4306 = vmatprep.subr.bf16.mxu0 0
    %4307 = vmatpush2.bf16.msra.mxu0 0
    %4308 = vmatprep.subr.bf16.mxu0 0
    %4309 = vmatpush2.bf16.msra.mxu0 0
    %4310 = vmatprep.subr.bf16.mxu0 0
    %4311 = vmatpush2.bf16.msra.mxu0 0
    %4312 = vmatprep.subr.bf16.mxu0 0
    %4313 = vmatpush2.bf16.msra.mxu0 0
    %4314 = vmatprep.subr.bf16.mxu0 0
    %4315 = vmatpush2.bf16.msra.mxu0 0
    %4316 = vmatprep.mubr.bf16.mxu0 0
    %4317 = vmatmul.mubr.bf16.gmra.mxu0 %v4282
    %v4318 = vpop.f32.mrf.mxu0
    %v4319 = vadd.f32 0.0, %v4318
    %v4320 = vpop.f32.mrf.mxu0
    %v4321 = vpop.f32.mrf.mxu0
    %v4322 = vadd.f32 0.0, %v4321
    %v4323 = vpop.f32.mrf.mxu0
    %4324 = vdwg.mxu0
    %v4326 = vsel %vm927, %v4278, 0
    %4328 = vmatprep.subr.bf16.mxu0 0
    %4329 = vmatpush1.bf16.msra.mxu0 0
    %4330 = vmatprep.subr.bf16.mxu0 0
    %4331 = vmatpush1.bf16.msra.mxu0 0
    %4332 = vmatprep.subr.bf16.mxu0 0
    %4333 = vmatpush1.bf16.msra.mxu0 0
    %4334 = vmatprep.subr.bf16.mxu0 0
    %4335 = vmatpush1.bf16.msra.mxu0 0
    %4336 = vmatprep.subr.bf16.mxu0 0
    %4337 = vmatpush1.bf16.msra.mxu0 0
    %4338 = vmatprep.subr.bf16.mxu0 0
    %4339 = vmatpush1.bf16.msra.mxu0 0
    %4340 = vmatprep.subr.bf16.mxu0 0
    %4341 = vmatpush1.bf16.msra.mxu0 0
    %4342 = vmatprep.subr.bf16.mxu0 0
    %4343 = vmatpush1.bf16.msra.mxu0 %v4162
    %4344 = vmatprep.subr.bf16.mxu0 0
    %4345 = vmatpush2.bf16.msra.mxu0 0
    %4346 = vmatprep.subr.bf16.mxu0 0
    %4347 = vmatpush2.bf16.msra.mxu0 0
    %4348 = vmatprep.subr.bf16.mxu0 0
    %4349 = vmatpush2.bf16.msra.mxu0 0
    %4350 = vmatprep.subr.bf16.mxu0 0
    %4351 = vmatpush2.bf16.msra.mxu0 0
    %4352 = vmatprep.subr.bf16.mxu0 0
    %4353 = vmatpush2.bf16.msra.mxu0 0
    %4354 = vmatprep.subr.bf16.mxu0 0
    %4355 = vmatpush2.bf16.msra.mxu0 0
    %4356 = vmatprep.subr.bf16.mxu0 0
    %4357 = vmatpush2.bf16.msra.mxu0 0
    %4358 = vmatprep.subr.bf16.mxu0 0
    %4359 = vmatpush2.bf16.msra.mxu0 0
    %4360 = vmatprep.mubr.bf16.mxu0 0
    %4361 = vmatmul.mubr.bf16.gmra.mxu0 %v4326
    %v4362 = vpop.f32.mrf.mxu0
    %v4363 = vadd.f32 0.0, %v4362
    %v4364 = vpop.f32.mrf.mxu0
    %v4365 = vpop.f32.mrf.mxu0
    %v4366 = vadd.f32 0.0, %v4365
    %v4367 = vpop.f32.mrf.mxu0
    %4368 = vdwg.mxu0
    %v4370 = vsel %vm927, %v4279, 0
    %4372 = vmatprep.subr.bf16.mxu0 0
    %4373 = vmatpush1.bf16.msra.mxu0 0
    %4374 = vmatprep.subr.bf16.mxu0 0
    %4375 = vmatpush1.bf16.msra.mxu0 0
    %4376 = vmatprep.subr.bf16.mxu0 0
    %4377 = vmatpush1.bf16.msra.mxu0 0
    %4378 = vmatprep.subr.bf16.mxu0 0
    %4379 = vmatpush1.bf16.msra.mxu0 0
    %4380 = vmatprep.subr.bf16.mxu0 0
    %4381 = vmatpush1.bf16.msra.mxu0 0
    %4382 = vmatprep.subr.bf16.mxu0 0
    %4383 = vmatpush1.bf16.msra.mxu0 0
    %4384 = vmatprep.subr.bf16.mxu0 0
    %4385 = vmatpush1.bf16.msra.mxu0 0
    %4386 = vmatprep.subr.bf16.mxu0 0
    %4387 = vmatpush1.bf16.msra.mxu0 %v4163
    %4388 = vmatprep.subr.bf16.mxu0 0
    %4389 = vmatpush2.bf16.msra.mxu0 0
    %4390 = vmatprep.subr.bf16.mxu0 0
    %4391 = vmatpush2.bf16.msra.mxu0 0
    %4392 = vmatprep.subr.bf16.mxu0 0
    %4393 = vmatpush2.bf16.msra.mxu0 0
    %4394 = vmatprep.subr.bf16.mxu0 0
    %4395 = vmatpush2.bf16.msra.mxu0 0
    %4396 = vmatprep.subr.bf16.mxu0 0
    %4397 = vmatpush2.bf16.msra.mxu0 0
    %4398 = vmatprep.subr.bf16.mxu0 0
    %4399 = vmatpush2.bf16.msra.mxu0 0
    %4400 = vmatprep.subr.bf16.mxu0 0
    %4401 = vmatpush2.bf16.msra.mxu0 0
    %4402 = vmatprep.subr.bf16.mxu0 0
    %4403 = vmatpush2.bf16.msra.mxu0 0
    %4404 = vmatprep.mubr.bf16.mxu0 0
    %4405 = vmatmul.mubr.bf16.gmra.mxu0 %v4370
    %v4406 = vpop.f32.mrf.mxu0
    %v4407 = vadd.f32 0.0, %v4406
    %v4408 = vpop.f32.mrf.mxu0
    %v4409 = vpop.f32.mrf.mxu0
    %v4410 = vadd.f32 0.0, %v4409
    %v4411 = vpop.f32.mrf.mxu0
    %4412 = vdwg.mxu0
    %v4414 = vsel %vm927, %v4280, 0
    %4416 = vmatprep.subr.bf16.mxu0 0
    %4417 = vmatpush1.bf16.msra.mxu0 0
    %4418 = vmatprep.subr.bf16.mxu0 0
    %4419 = vmatpush1.bf16.msra.mxu0 0
    %4420 = vmatprep.subr.bf16.mxu0 0
    %4421 = vmatpush1.bf16.msra.mxu0 0
    %4422 = vmatprep.subr.bf16.mxu0 0
    %4423 = vmatpush1.bf16.msra.mxu0 0
    %4424 = vmatprep.subr.bf16.mxu0 0
    %4425 = vmatpush1.bf16.msra.mxu0 0
    %4426 = vmatprep.subr.bf16.mxu0 0
    %4427 = vmatpush1.bf16.msra.mxu0 0
    %4428 = vmatprep.subr.bf16.mxu0 0
    %4429 = vmatpush1.bf16.msra.mxu0 0
    %4430 = vmatprep.subr.bf16.mxu0 0
    %4431 = vmatpush1.bf16.msra.mxu0 %v4164
    %4432 = vmatprep.subr.bf16.mxu0 0
    %4433 = vmatpush2.bf16.msra.mxu0 0
    %4434 = vmatprep.subr.bf16.mxu0 0
    %4435 = vmatpush2.bf16.msra.mxu0 0
    %4436 = vmatprep.subr.bf16.mxu0 0
    %4437 = vmatpush2.bf16.msra.mxu0 0
    %4438 = vmatprep.subr.bf16.mxu0 0
    %4439 = vmatpush2.bf16.msra.mxu0 0
    %4440 = vmatprep.subr.bf16.mxu0 0
    %4441 = vmatpush2.bf16.msra.mxu0 0
    %4442 = vmatprep.subr.bf16.mxu0 0
    %4443 = vmatpush2.bf16.msra.mxu0 0
    %4444 = vmatprep.subr.bf16.mxu0 0
    %4445 = vmatpush2.bf16.msra.mxu0 0
    %4446 = vmatprep.subr.bf16.mxu0 0
    %4447 = vmatpush2.bf16.msra.mxu0 0
    %4448 = vmatprep.mubr.bf16.mxu0 0
    %4449 = vmatmul.mubr.bf16.gmra.mxu0 %v4414
    %v4450 = vpop.f32.mrf.mxu0
    %v4451 = vadd.f32 0.0, %v4450
    %v4452 = vpop.f32.mrf.mxu0
    %v4453 = vpop.f32.mrf.mxu0
    %v4454 = vadd.f32 0.0, %v4453
    %v4455 = vpop.f32.mrf.mxu0
    %4456 = vdwg.mxu0
    %v4457 = vadd.f32 %v4319, %v4363
    %v4458 = vadd.f32 %v4322, %v4366
    %v4459 = vadd.f32 %v4457, %v4407
    %v4460 = vadd.f32 %v4458, %v4410
    %v4461 = vadd.f32 %v4459, %v4451
    %v4462 = vadd.f32 %v4460, %v4454
    %v4463 = vld [vmem:[%s4 + $0x21] sm:$0x1]
    %v4464 = vlaneseq
    %v4465 = vshrl.u32 %v4464, 7
    %v4466 = vsub.s32 0, %v4465
    %v4467 = vrot.slane %v4463, %v4466
    %v4468 = vadd.f32 %v4461, %v4467
    %v4469 = vadd.f32 %v4462, %v4467
    %v4470 = vmax.f32 %v4468, 0.0
    %v4471 = vmax.f32 %v4469, 0.0
    %v4472 = vadd.f32 %v4470, %v3823
    %v4473 = vadd.f32 %v4471, %v3824
    %v4474 = vld [vmem:[#allocation4 + $0x140] sm:$0xf]
    %v4475 = vld [vmem:[#allocation4 + $0x144] sm:$0xf]
    %v4476 = vld [vmem:[#allocation4 + $0x148] sm:$0xf]
    %v4477 = vld [vmem:[#allocation4 + $0x14c] sm:$0xf]
    %v4478 = vld [vmem:[#allocation4 + $0x150] sm:$0xf]
    %v4479 = vld [vmem:[#allocation4 + $0x154] sm:$0xf]
    %v4480 = vld [vmem:[#allocation4 + $0x158] sm:$0xf]
    %v4481 = vld [vmem:[#allocation4 + $0x15c] sm:$0xf]
    %v4482 = vld [vmem:[#allocation4 + $0x160] sm:$0xf]
    %v4483 = vld [vmem:[#allocation4 + $0x164] sm:$0xf]
    %v4484 = vld [vmem:[#allocation4 + $0x168] sm:$0xf]
    %v4485 = vld [vmem:[#allocation4 + $0x16c] sm:$0xf]
    %v4486 = vld [vmem:[#allocation4 + $0x170] sm:$0xf]
    %v4487 = vld [vmem:[#allocation4 + $0x174] sm:$0xf]
    %v4488 = vld [vmem:[#allocation4 + $0x178] sm:$0xf]
    %v4489 = vld [vmem:[#allocation4 + $0x17c] sm:$0xf]
    %v4490 = vpack.c.bf16 %v4473, %v4472
    %v4507 = vunpack.c.l.b16 %v4474
    %v4508 = vunpack.c.l.b16 %v4475
    %v4509 = vunpack.c.l.b16 %v4476
    %v4510 = vunpack.c.l.b16 %v4477
    %v4511 = vunpack.c.l.b16 %v4478
    %v4512 = vunpack.c.l.b16 %v4479
    %v4513 = vunpack.c.l.b16 %v4480
    %v4514 = vunpack.c.l.b16 %v4481
    %v4515 = vunpack.c.l.b16 %v4482
    %v4516 = vunpack.c.l.b16 %v4483
    %v4517 = vunpack.c.l.b16 %v4484
    %v4518 = vunpack.c.l.b16 %v4485
    %v4519 = vunpack.c.l.b16 %v4486
    %v4520 = vunpack.c.l.b16 %v4487
    %v4521 = vunpack.c.l.b16 %v4488
    %v4522 = vunpack.c.l.b16 %v4489
    %v4523 = vpack.c.b16 %v4508, %v4507
    %v4524 = vpack.c.b16 %v4510, %v4509
    %v4525 = vpack.c.b16 %v4512, %v4511
    %v4526 = vpack.c.b16 %v4514, %v4513
    %v4527 = vpack.c.b16 %v4516, %v4515
    %v4528 = vpack.c.b16 %v4518, %v4517
    %v4529 = vpack.c.b16 %v4520, %v4519
    %v4530 = vpack.c.b16 %v4522, %v4521
    %4539 = vmatprep.subr.bf16.mxu0 0
    %4540 = vmatpush1.bf16.msra.mxu0 %v4530
    %4541 = vmatprep.subr.bf16.mxu0 0
    %4542 = vmatpush1.bf16.msra.mxu0 %v4529
    %4543 = vmatprep.subr.bf16.mxu0 0
    %4544 = vmatpush1.bf16.msra.mxu0 %v4528
    %4545 = vmatprep.subr.bf16.mxu0 0
    %4546 = vmatpush1.bf16.msra.mxu0 %v4527
    %4547 = vmatprep.subr.bf16.mxu0 0
    %4548 = vmatpush1.bf16.msra.mxu0 %v4526
    %4549 = vmatprep.subr.bf16.mxu0 0
    %4550 = vmatpush1.bf16.msra.mxu0 %v4525
    %4551 = vmatprep.subr.bf16.mxu0 0
    %4552 = vmatpush1.bf16.msra.mxu0 %v4524
    %4553 = vmatprep.subr.bf16.mxu0 0
    %4554 = vmatpush1.bf16.msra.mxu0 %v4523
    %4555 = vmatprep.subr.bf16.mxu0 0
    %4556 = vmatpush2.bf16.msra.mxu0 0
    %4557 = vmatprep.subr.bf16.mxu0 0
    %4558 = vmatpush2.bf16.msra.mxu0 0
    %4559 = vmatprep.subr.bf16.mxu0 0
    %4560 = vmatpush2.bf16.msra.mxu0 0
    %4561 = vmatprep.subr.bf16.mxu0 0
    %4562 = vmatpush2.bf16.msra.mxu0 0
    %4563 = vmatprep.subr.bf16.mxu0 0
    %4564 = vmatpush2.bf16.msra.mxu0 0
    %4565 = vmatprep.subr.bf16.mxu0 0
    %4566 = vmatpush2.bf16.msra.mxu0 0
    %4567 = vmatprep.subr.bf16.mxu0 0
    %4568 = vmatpush2.bf16.msra.mxu0 0
    %4569 = vmatprep.subr.bf16.mxu0 0
    %4570 = vmatpush2.bf16.msra.mxu0 0
    %4571 = vmatprep.mubr.bf16.mxu0 0
    %4572 = vmatmul.mubr.bf16.gmra.mxu0 %v4490
    %v4573 = vpop.f32.mrf.mxu0
    %v4574 = vadd.f32 0.0, %v4573
    %v4575 = vpop.f32.mrf.mxu0
    %v4576 = vpop.f32.mrf.mxu0
    %v4577 = vadd.f32 0.0, %v4576
    %v4578 = vpop.f32.mrf.mxu0
    %4579 = vdwg.mxu0
    %v4580 = vpack.c.bf16 %v4577, %v4574
    %v4581 = vld [vmem:[%s4 + $0x18] sm:$0xf]
    %v4582 = vpack.c.bf16 %v4581, %v4581
    %4583 = vmatprep.subr.bf16.mxu0 0
    %4584 = vmatpush1.bf16.xpose.msra.mxu0 0
    %4585 = vmatprep.subr.bf16.mxu0 0
    %4586 = vmatpush1.bf16.xpose.msra.mxu0 0
    %4587 = vmatprep.subr.bf16.mxu0 0
    %4588 = vmatpush1.bf16.xpose.msra.mxu0 0
    %4589 = vmatprep.subr.bf16.mxu0 0
    %4590 = vmatpush1.bf16.xpose.msra.mxu0 0
    %4591 = vmatprep.subr.bf16.mxu0 0
    %4592 = vmatpush1.bf16.xpose.msra.mxu0 0
    %4593 = vmatprep.subr.bf16.mxu0 0
    %4594 = vmatpush1.bf16.xpose.msra.mxu0 0
    %4595 = vmatprep.subr.bf16.mxu0 0
    %4596 = vmatpush1.bf16.xpose.msra.mxu0 0
    %4597 = vmatprep.subr.bf16.mxu0 0
    %4598 = vmatpush1.bf16.xpose.msra.mxu0 %v4580
    %4599 = vmatprep.subr.bf16.mxu0 0
    %4600 = vmatpush2.bf16.xpose.msra.mxu0 0
    %4601 = vmatprep.subr.bf16.mxu0 0
    %4602 = vmatpush2.bf16.xpose.msra.mxu0 0
    %4603 = vmatprep.subr.bf16.mxu0 0
    %4604 = vmatpush2.bf16.xpose.msra.mxu0 0
    %4605 = vmatprep.subr.bf16.mxu0 0
    %4606 = vmatpush2.bf16.xpose.msra.mxu0 0
    %4607 = vmatprep.subr.bf16.mxu0 0
    %4608 = vmatpush2.bf16.xpose.msra.mxu0 0
    %4609 = vmatprep.subr.bf16.mxu0 0
    %4610 = vmatpush2.bf16.xpose.msra.mxu0 0
    %4611 = vmatprep.subr.bf16.mxu0 0
    %4612 = vmatpush2.bf16.xpose.msra.mxu0 0
    %4613 = vmatprep.subr.bf16.mxu0 0
    %4614 = vmatpush2.bf16.xpose.msra.mxu0 0
    %4615 = vmatprep.mubr.bf16.mxu0 0
    %4616 = vmatmul.mubr.bf16.gmra.mxu0 %v4582
    %v4617 = vpop.f32.mrf.mxu0
    %v4618 = vadd.f32 0.0, %v4617
    %v4619 = vpop.f32.mrf.mxu0
    %v4620 = vpop.f32.mrf.mxu0
    %v4621 = vpop.f32.mrf.mxu0
    %4622 = vdwg.mxu0
    %v4623 = vld [vmem:[#allocation4 + $0x200] sm:$0xf]
    %v4624 = vld [vmem:[#allocation4 + $0x204] sm:$0xf]
    %v4625 = vld [vmem:[#allocation4 + $0x208] sm:$0xf]
    %v4626 = vld [vmem:[#allocation4 + $0x20c] sm:$0xf]
    %v4627 = vld [vmem:[#allocation4 + $0x210] sm:$0xf]
    %v4628 = vld [vmem:[#allocation4 + $0x214] sm:$0xf]
    %v4629 = vld [vmem:[#allocation4 + $0x218] sm:$0xf]
    %v4630 = vld [vmem:[#allocation4 + $0x21c] sm:$0xf]
    %v4631 = vld [vmem:[#allocation4 + $0x220] sm:$0xf]
    %v4632 = vld [vmem:[#allocation4 + $0x224] sm:$0xf]
    %v4633 = vld [vmem:[#allocation4 + $0x228] sm:$0xf]
    %v4634 = vld [vmem:[#allocation4 + $0x22c] sm:$0xf]
    %v4635 = vld [vmem:[#allocation4 + $0x230] sm:$0xf]
    %v4636 = vld [vmem:[#allocation4 + $0x234] sm:$0xf]
    %v4637 = vld [vmem:[#allocation4 + $0x238] sm:$0xf]
    %v4638 = vld [vmem:[#allocation4 + $0x23c] sm:$0xf]
    %v4655 = vunpack.c.l.b16 %v4623
    %v4656 = vunpack.c.l.b16 %v4624
    %v4657 = vunpack.c.l.b16 %v4625
    %v4658 = vunpack.c.l.b16 %v4626
    %v4659 = vunpack.c.l.b16 %v4627
    %v4660 = vunpack.c.l.b16 %v4628
    %v4661 = vunpack.c.l.b16 %v4629
    %v4662 = vunpack.c.l.b16 %v4630
    %v4663 = vunpack.c.l.b16 %v4631
    %v4664 = vunpack.c.l.b16 %v4632
    %v4665 = vunpack.c.l.b16 %v4633
    %v4666 = vunpack.c.l.b16 %v4634
    %v4667 = vunpack.c.l.b16 %v4635
    %v4668 = vunpack.c.l.b16 %v4636
    %v4669 = vunpack.c.l.b16 %v4637
    %v4670 = vunpack.c.l.b16 %v4638
    %v4671 = vpack.c.b16 %v4656, %v4655
    %v4672 = vpack.c.b16 %v4658, %v4657
    %v4673 = vpack.c.b16 %v4660, %v4659
    %v4674 = vpack.c.b16 %v4662, %v4661
    %v4675 = vpack.c.b16 %v4664, %v4663
    %v4676 = vpack.c.b16 %v4666, %v4665
    %v4677 = vpack.c.b16 %v4668, %v4667
    %v4678 = vpack.c.b16 %v4670, %v4669
    %4679 = vrot.lane.b32.xlu0 %v4671, 120
    %v4680 = vpop.permute.xlu0 %4679
    %4681 = vrot.lane.b32.xlu0 %v4672, 120
    %v4682 = vpop.permute.xlu0 %4681
    %4683 = vrot.lane.b32.xlu0 %v4673, 120
    %v4684 = vpop.permute.xlu0 %4683
    %4685 = vrot.lane.b32.xlu0 %v4674, 120
    %v4686 = vpop.permute.xlu0 %4685
    %4687 = vrot.lane.b32.xlu0 %v4675, 120
    %v4688 = vpop.permute.xlu0 %4687
    %4689 = vrot.lane.b32.xlu0 %v4676, 120
    %v4690 = vpop.permute.xlu0 %4689
    %4691 = vrot.lane.b32.xlu0 %v4677, 120
    %v4692 = vpop.permute.xlu0 %4691
    %4693 = vrot.lane.b32.xlu0 %v4678, 120
    %v4694 = vpop.permute.xlu0 %4693
    %4703 = vmatprep.subr.bf16.mxu0 0
    %4704 = vmatpush1.bf16.msra.mxu0 %v4694
    %4705 = vmatprep.subr.bf16.mxu0 0
    %4706 = vmatpush1.bf16.msra.mxu0 %v4692
    %4707 = vmatprep.subr.bf16.mxu0 0
    %4708 = vmatpush1.bf16.msra.mxu0 %v4690
    %4709 = vmatprep.subr.bf16.mxu0 0
    %4710 = vmatpush1.bf16.msra.mxu0 %v4688
    %4711 = vmatprep.subr.bf16.mxu0 0
    %4712 = vmatpush1.bf16.msra.mxu0 %v4686
    %4713 = vmatprep.subr.bf16.mxu0 0
    %4714 = vmatpush1.bf16.msra.mxu0 %v4684
    %4715 = vmatprep.subr.bf16.mxu0 0
    %4716 = vmatpush1.bf16.msra.mxu0 %v4682
    %4717 = vmatprep.subr.bf16.mxu0 0
    %4718 = vmatpush1.bf16.msra.mxu0 %v4680
    %4719 = vmatprep.subr.bf16.mxu0 0
    %4720 = vmatpush2.bf16.msra.mxu0 0
    %4721 = vmatprep.subr.bf16.mxu0 0
    %4722 = vmatpush2.bf16.msra.mxu0 0
    %4723 = vmatprep.subr.bf16.mxu0 0
    %4724 = vmatpush2.bf16.msra.mxu0 0
    %4725 = vmatprep.subr.bf16.mxu0 0
    %4726 = vmatpush2.bf16.msra.mxu0 0
    %4727 = vmatprep.subr.bf16.mxu0 0
    %4728 = vmatpush2.bf16.msra.mxu0 0
    %4729 = vmatprep.subr.bf16.mxu0 0
    %4730 = vmatpush2.bf16.msra.mxu0 0
    %4731 = vmatprep.subr.bf16.mxu0 0
    %4732 = vmatpush2.bf16.msra.mxu0 0
    %4733 = vmatprep.subr.bf16.mxu0 0
    %4734 = vmatpush2.bf16.msra.mxu0 0
    %4735 = vmatprep.mubr.bf16.mxu0 0
    %4736 = vmatmul.mubr.bf16.gmra.mxu0 %v4580
    %v4737 = vpop.f32.mrf.mxu0
    %v4738 = vadd.f32 0.0, %v4737
    %v4739 = vpop.f32.mrf.mxu0
    %v4740 = vpop.f32.mrf.mxu0
    %v4741 = vadd.f32 0.0, %v4740
    %v4742 = vpop.f32.mrf.mxu0
    %4743 = vdwg.mxu0
    %4745 = vset.pattern.permute.xlu0 0
    %4746 = vperm.xlu0 %4745, %v4738
    %v4747 = vpop.permute.xlu0 %4746
    %4750 = vset.pattern.permute.xlu0 0
    %4751 = vperm.xlu0 %4750, %v4741
    %v4752 = vpop.permute.xlu0 %4751
    %v4754 = vlaneseq
    %v4755 = vshrl.u32 %v4754, 7
    %v4756 = vsub.s32 0, %v4755
    %v4757 = vrot.slane %v4618, %v4756
    %v4758 = vadd.f32 %v4747, %v4757
    %v4759 = vadd.f32 %v4752, %v4757
    %v4760 = vmul.f32 %v4574, %v836
    %v4761 = vmul.f32 %v4577, %v836
    %4762 = vset.pattern.permute.xlu0 1
    %4763 = vperm.xlu0 %4762, %v4738
    %v4764 = vpop.permute.xlu0 %4763
    %4766 = vset.pattern.permute.xlu0 1
    %4767 = vperm.xlu0 %4766, %v4741
    %v4768 = vpop.permute.xlu0 %4767
    %v4770 = vlaneseq
    %v4771 = vshrl.u32 %v4770, 7
    %v4772 = vsub.s32 1, %v4771
    %v4773 = vrot.slane %v4618, %v4772
    %v4774 = vadd.f32 %v4764, %v4773
    %v4775 = vadd.f32 %v4768, %v4773
    %v4776 = vmul.f32 %v4574, %v856
    %v4777 = vmul.f32 %v4577, %v856
    %4778 = vset.pattern.permute.xlu0 2
    %4779 = vperm.xlu0 %4778, %v4738
    %v4780 = vpop.permute.xlu0 %4779
    %4782 = vset.pattern.permute.xlu0 2
    %4783 = vperm.xlu0 %4782, %v4741
    %v4784 = vpop.permute.xlu0 %4783
    %v4786 = vlaneseq
    %v4787 = vshrl.u32 %v4786, 7
    %v4788 = vsub.s32 2, %v4787
    %v4789 = vrot.slane %v4618, %v4788
    %v4790 = vadd.f32 %v4780, %v4789
    %v4791 = vadd.f32 %v4784, %v4789
    %v4792 = vmul.f32 %v4574, %v876
    %v4793 = vmul.f32 %v4577, %v876
    %4794 = vset.pattern.permute.xlu0 3
    %4795 = vperm.xlu0 %4794, %v4738
    %v4796 = vpop.permute.xlu0 %4795
    %4798 = vset.pattern.permute.xlu0 3
    %4799 = vperm.xlu0 %4798, %v4741
    %v4800 = vpop.permute.xlu0 %4799
    %v4802 = vlaneseq
    %v4803 = vshrl.u32 %v4802, 7
    %v4804 = vsub.s32 3, %v4803
    %v4805 = vrot.slane %v4618, %v4804
    %v4806 = vadd.f32 %v4796, %v4805
    %v4807 = vadd.f32 %v4800, %v4805
    %v4808 = vmul.f32 %v4574, %v896
    %v4809 = vmul.f32 %v4577, %v896
    %v4810 = vpack.c.bf16 %v4761, %v4760
    %v4811 = vpack.c.bf16 %v4777, %v4776
    %v4812 = vpack.c.bf16 %v4793, %v4792
    %v4813 = vpack.c.bf16 %v4809, %v4808
    %v4814 = vmul.f32 %v4758, 0.2
    %v4815 = vmul.f32 %v4759, 0.2
    %v4816 = vmul.f32 %v4774, 0.2
    %v4817 = vmul.f32 %v4775, 0.2
    %v4818 = vmul.f32 %v4790, 0.2
    %v4819 = vmul.f32 %v4791, 0.2
    %v4820 = vmul.f32 %v4806, 0.2
    %v4821 = vmul.f32 %v4807, 0.2
    %v4822 = vmax.f32 %v4758, %v4814
    %v4823 = vmax.f32 %v4759, %v4815
    %v4824 = vmax.f32 %v4774, %v4816
    %v4825 = vmax.f32 %v4775, %v4817
    %v4826 = vmax.f32 %v4790, %v4818
    %v4827 = vmax.f32 %v4791, %v4819
    %v4828 = vmax.f32 %v4806, %v4820
    %v4829 = vmax.f32 %v4807, %v4821
    %v4830 = vadd.f32 %v4822, %v92
    %v4831 = vadd.f32 %v4823, %v93
    %v4832 = vadd.f32 %v4824, %v92
    %v4833 = vadd.f32 %v4825, %v93
    %v4834 = vadd.f32 %v4826, %v92
    %v4835 = vadd.f32 %v4827, %v93
    %v4836 = vadd.f32 %v4828, %v92
    %v4837 = vadd.f32 %v4829, %v93
    %v4838 = vsel %vm927, %v4830, -inf
    %4839 = vmax.xlane.f32.xlu0 %v4838
    %v4840 = vpop.xlane.xlu0 %4839
    %v4841 = vsel %vm927, %v4831, -inf
    %4842 = vmax.xlane.f32.xlu0 %v4841
    %v4843 = vpop.xlane.xlu0 %4842
    %v4844 = vsel %vm927, %v4832, -inf
    %4845 = vmax.xlane.f32.xlu0 %v4844
    %v4846 = vpop.xlane.xlu0 %4845
    %v4847 = vsel %vm927, %v4833, -inf
    %4848 = vmax.xlane.f32.xlu0 %v4847
    %v4849 = vpop.xlane.xlu0 %4848
    %v4850 = vsel %vm927, %v4834, -inf
    %4851 = vmax.xlane.f32.xlu0 %v4850
    %v4852 = vpop.xlane.xlu0 %4851
    %v4853 = vsel %vm927, %v4835, -inf
    %4854 = vmax.xlane.f32.xlu0 %v4853
    %v4855 = vpop.xlane.xlu0 %4854
    %v4856 = vsel %vm927, %v4836, -inf
    %4857 = vmax.xlane.f32.xlu0 %v4856
    %v4858 = vpop.xlane.xlu0 %4857
    %v4859 = vsel %vm927, %v4837, -inf
    %4860 = vmax.xlane.f32.xlu0 %v4859
    %v4861 = vpop.xlane.xlu0 %4860
    %v4862 = vsub.f32 %v4830, %v4840
    %v4863 = vsub.f32 %v4831, %v4843
    %v4864 = vsub.f32 %v4832, %v4846
    %v4865 = vsub.f32 %v4833, %v4849
    %v4866 = vsub.f32 %v4834, %v4852
    %v4867 = vsub.f32 %v4835, %v4855
    %v4868 = vsub.f32 %v4836, %v4858
    %v4869 = vsub.f32 %v4837, %v4861
    %v4870 = vmul.f32 %v4862, 1.442695
    %v4871 = vpow.pop %v4870
    %v4872 = vmul.f32 %v4863, 1.442695
    %v4873 = vpow.pop %v4872
    %v4874 = vmul.f32 %v4864, 1.442695
    %v4875 = vpow.pop %v4874
    %v4876 = vmul.f32 %v4865, 1.442695
    %v4877 = vpow.pop %v4876
    %v4878 = vmul.f32 %v4866, 1.442695
    %v4879 = vpow.pop %v4878
    %v4880 = vmul.f32 %v4867, 1.442695
    %v4881 = vpow.pop %v4880
    %v4882 = vmul.f32 %v4868, 1.442695
    %v4883 = vpow.pop %v4882
    %v4884 = vmul.f32 %v4869, 1.442695
    %v4885 = vpow.pop %v4884
    %v4886 = vsel %vm927, %v4871, 0.0
    %4887 = vadd.xlane.f32.xlu0 %v4886
    %v4888 = vpop.xlane.xlu0 %4887
    %v4889 = vsel %vm927, %v4873, 0.0
    %4890 = vadd.xlane.f32.xlu0 %v4889
    %v4891 = vpop.xlane.xlu0 %4890
    %v4892 = vsel %vm927, %v4875, 0.0
    %4893 = vadd.xlane.f32.xlu0 %v4892
    %v4894 = vpop.xlane.xlu0 %4893
    %v4895 = vsel %vm927, %v4877, 0.0
    %4896 = vadd.xlane.f32.xlu0 %v4895
    %v4897 = vpop.xlane.xlu0 %4896
    %v4898 = vsel %vm927, %v4879, 0.0
    %4899 = vadd.xlane.f32.xlu0 %v4898
    %v4900 = vpop.xlane.xlu0 %4899
    %v4901 = vsel %vm927, %v4881, 0.0
    %4902 = vadd.xlane.f32.xlu0 %v4901
    %v4903 = vpop.xlane.xlu0 %4902
    %v4904 = vsel %vm927, %v4883, 0.0
    %4905 = vadd.xlane.f32.xlu0 %v4904
    %v4906 = vpop.xlane.xlu0 %4905
    %v4907 = vsel %vm927, %v4885, 0.0
    %4908 = vadd.xlane.f32.xlu0 %v4907
    %v4909 = vpop.xlane.xlu0 %4908
    %v4910 = vrcp.pop %v4888
    %v4911 = vrcp.pop %v4891
    %v4912 = vrcp.pop %v4894
    %v4913 = vrcp.pop %v4897
    %v4914 = vrcp.pop %v4900
    %v4915 = vrcp.pop %v4903
    %v4916 = vrcp.pop %v4906
    %v4917 = vrcp.pop %v4909
    %v4918 = vmul.f32 %v4871, %v4910
    %v4919 = vmul.f32 %v4873, %v4911
    %v4920 = vmul.f32 %v4875, %v4912
    %v4921 = vmul.f32 %v4877, %v4913
    %v4922 = vmul.f32 %v4879, %v4914
    %v4923 = vmul.f32 %v4881, %v4915
    %v4924 = vmul.f32 %v4883, %v4916
    %v4925 = vmul.f32 %v4885, %v4917
    %v4926 = vpack.c.bf16 %v4919, %v4918
    %v4927 = vpack.c.bf16 %v4921, %v4920
    %v4928 = vpack.c.bf16 %v4923, %v4922
    %v4929 = vpack.c.bf16 %v4925, %v4924
    %v4931 = vsel %vm927, %v4926, 0
    %4933 = vmatprep.subr.bf16.mxu0 0
    %4934 = vmatpush1.bf16.msra.mxu0 0
    %4935 = vmatprep.subr.bf16.mxu0 0
    %4936 = vmatpush1.bf16.msra.mxu0 0
    %4937 = vmatprep.subr.bf16.mxu0 0
    %4938 = vmatpush1.bf16.msra.mxu0 0
    %4939 = vmatprep.subr.bf16.mxu0 0
    %4940 = vmatpush1.bf16.msra.mxu0 0
    %4941 = vmatprep.subr.bf16.mxu0 0
    %4942 = vmatpush1.bf16.msra.mxu0 0
    %4943 = vmatprep.subr.bf16.mxu0 0
    %4944 = vmatpush1.bf16.msra.mxu0 0
    %4945 = vmatprep.subr.bf16.mxu0 0
    %4946 = vmatpush1.bf16.msra.mxu0 0
    %4947 = vmatprep.subr.bf16.mxu0 0
    %4948 = vmatpush1.bf16.msra.mxu0 %v4810
    %4949 = vmatprep.subr.bf16.mxu0 0
    %4950 = vmatpush2.bf16.msra.mxu0 0
    %4951 = vmatprep.subr.bf16.mxu0 0
    %4952 = vmatpush2.bf16.msra.mxu0 0
    %4953 = vmatprep.subr.bf16.mxu0 0
    %4954 = vmatpush2.bf16.msra.mxu0 0
    %4955 = vmatprep.subr.bf16.mxu0 0
    %4956 = vmatpush2.bf16.msra.mxu0 0
    %4957 = vmatprep.subr.bf16.mxu0 0
    %4958 = vmatpush2.bf16.msra.mxu0 0
    %4959 = vmatprep.subr.bf16.mxu0 0
    %4960 = vmatpush2.bf16.msra.mxu0 0
    %4961 = vmatprep.subr.bf16.mxu0 0
    %4962 = vmatpush2.bf16.msra.mxu0 0
    %4963 = vmatprep.subr.bf16.mxu0 0
    %4964 = vmatpush2.bf16.msra.mxu0 0
    %4965 = vmatprep.mubr.bf16.mxu0 0
    %4966 = vmatmul.mubr.bf16.gmra.mxu0 %v4931
    %v4967 = vpop.f32.mrf.mxu0
    %v4968 = vadd.f32 0.0, %v4967
    %v4969 = vpop.f32.mrf.mxu0
    %v4970 = vpop.f32.mrf.mxu0
    %v4971 = vadd.f32 0.0, %v4970
    %v4972 = vpop.f32.mrf.mxu0
    %4973 = vdwg.mxu0
    %v4975 = vsel %vm927, %v4927, 0
    %4977 = vmatprep.subr.bf16.mxu0 0
    %4978 = vmatpush1.bf16.msra.mxu0 0
    %4979 = vmatprep.subr.bf16.mxu0 0
    %4980 = vmatpush1.bf16.msra.mxu0 0
    %4981 = vmatprep.subr.bf16.mxu0 0
    %4982 = vmatpush1.bf16.msra.mxu0 0
    %4983 = vmatprep.subr.bf16.mxu0 0
    %4984 = vmatpush1.bf16.msra.mxu0 0
    %4985 = vmatprep.subr.bf16.mxu0 0
    %4986 = vmatpush1.bf16.msra.mxu0 0
    %4987 = vmatprep.subr.bf16.mxu0 0
    %4988 = vmatpush1.bf16.msra.mxu0 0
    %4989 = vmatprep.subr.bf16.mxu0 0
    %4990 = vmatpush1.bf16.msra.mxu0 0
    %4991 = vmatprep.subr.bf16.mxu0 0
    %4992 = vmatpush1.bf16.msra.mxu0 %v4811
    %4993 = vmatprep.subr.bf16.mxu0 0
    %4994 = vmatpush2.bf16.msra.mxu0 0
    %4995 = vmatprep.subr.bf16.mxu0 0
    %4996 = vmatpush2.bf16.msra.mxu0 0
    %4997 = vmatprep.subr.bf16.mxu0 0
    %4998 = vmatpush2.bf16.msra.mxu0 0
    %4999 = vmatprep.subr.bf16.mxu0 0
    %5000 = vmatpush2.bf16.msra.mxu0 0
    %5001 = vmatprep.subr.bf16.mxu0 0
    %5002 = vmatpush2.bf16.msra.mxu0 0
    %5003 = vmatprep.subr.bf16.mxu0 0
    %5004 = vmatpush2.bf16.msra.mxu0 0
    %5005 = vmatprep.subr.bf16.mxu0 0
    %5006 = vmatpush2.bf16.msra.mxu0 0
    %5007 = vmatprep.subr.bf16.mxu0 0
    %5008 = vmatpush2.bf16.msra.mxu0 0
    %5009 = vmatprep.mubr.bf16.mxu0 0
    %5010 = vmatmul.mubr.bf16.gmra.mxu0 %v4975
    %v5011 = vpop.f32.mrf.mxu0
    %v5012 = vadd.f32 0.0, %v5011
    %v5013 = vpop.f32.mrf.mxu0
    %v5014 = vpop.f32.mrf.mxu0
    %v5015 = vadd.f32 0.0, %v5014
    %v5016 = vpop.f32.mrf.mxu0
    %5017 = vdwg.mxu0
    %v5019 = vsel %vm927, %v4928, 0
    %5021 = vmatprep.subr.bf16.mxu0 0
    %5022 = vmatpush1.bf16.msra.mxu0 0
    %5023 = vmatprep.subr.bf16.mxu0 0
    %5024 = vmatpush1.bf16.msra.mxu0 0
    %5025 = vmatprep.subr.bf16.mxu0 0
    %5026 = vmatpush1.bf16.msra.mxu0 0
    %5027 = vmatprep.subr.bf16.mxu0 0
    %5028 = vmatpush1.bf16.msra.mxu0 0
    %5029 = vmatprep.subr.bf16.mxu0 0
    %5030 = vmatpush1.bf16.msra.mxu0 0
    %5031 = vmatprep.subr.bf16.mxu0 0
    %5032 = vmatpush1.bf16.msra.mxu0 0
    %5033 = vmatprep.subr.bf16.mxu0 0
    %5034 = vmatpush1.bf16.msra.mxu0 0
    %5035 = vmatprep.subr.bf16.mxu0 0
    %5036 = vmatpush1.bf16.msra.mxu0 %v4812
    %5037 = vmatprep.subr.bf16.mxu0 0
    %5038 = vmatpush2.bf16.msra.mxu0 0
    %5039 = vmatprep.subr.bf16.mxu0 0
    %5040 = vmatpush2.bf16.msra.mxu0 0
    %5041 = vmatprep.subr.bf16.mxu0 0
    %5042 = vmatpush2.bf16.msra.mxu0 0
    %5043 = vmatprep.subr.bf16.mxu0 0
    %5044 = vmatpush2.bf16.msra.mxu0 0
    %5045 = vmatprep.subr.bf16.mxu0 0
    %5046 = vmatpush2.bf16.msra.mxu0 0
    %5047 = vmatprep.subr.bf16.mxu0 0
    %5048 = vmatpush2.bf16.msra.mxu0 0
    %5049 = vmatprep.subr.bf16.mxu0 0
    %5050 = vmatpush2.bf16.msra.mxu0 0
    %5051 = vmatprep.subr.bf16.mxu0 0
    %5052 = vmatpush2.bf16.msra.mxu0 0
    %5053 = vmatprep.mubr.bf16.mxu0 0
    %5054 = vmatmul.mubr.bf16.gmra.mxu0 %v5019
    %v5055 = vpop.f32.mrf.mxu0
    %v5056 = vadd.f32 0.0, %v5055
    %v5057 = vpop.f32.mrf.mxu0
    %v5058 = vpop.f32.mrf.mxu0
    %v5059 = vadd.f32 0.0, %v5058
    %v5060 = vpop.f32.mrf.mxu0
    %5061 = vdwg.mxu0
    %v5063 = vsel %vm927, %v4929, 0
    %5065 = vmatprep.subr.bf16.mxu0 0
    %5066 = vmatpush1.bf16.msra.mxu0 0
    %5067 = vmatprep.subr.bf16.mxu0 0
    %5068 = vmatpush1.bf16.msra.mxu0 0
    %5069 = vmatprep.subr.bf16.mxu0 0
    %5070 = vmatpush1.bf16.msra.mxu0 0
    %5071 = vmatprep.subr.bf16.mxu0 0
    %5072 = vmatpush1.bf16.msra.mxu0 0
    %5073 = vmatprep.subr.bf16.mxu0 0
    %5074 = vmatpush1.bf16.msra.mxu0 0
    %5075 = vmatprep.subr.bf16.mxu0 0
    %5076 = vmatpush1.bf16.msra.mxu0 0
    %5077 = vmatprep.subr.bf16.mxu0 0
    %5078 = vmatpush1.bf16.msra.mxu0 0
    %5079 = vmatprep.subr.bf16.mxu0 0
    %5080 = vmatpush1.bf16.msra.mxu0 %v4813
    %5081 = vmatprep.subr.bf16.mxu0 0
    %5082 = vmatpush2.bf16.msra.mxu0 0
    %5083 = vmatprep.subr.bf16.mxu0 0
    %5084 = vmatpush2.bf16.msra.mxu0 0
    %5085 = vmatprep.subr.bf16.mxu0 0
    %5086 = vmatpush2.bf16.msra.mxu0 0
    %5087 = vmatprep.subr.bf16.mxu0 0
    %5088 = vmatpush2.bf16.msra.mxu0 0
    %5089 = vmatprep.subr.bf16.mxu0 0
    %5090 = vmatpush2.bf16.msra.mxu0 0
    %5091 = vmatprep.subr.bf16.mxu0 0
    %5092 = vmatpush2.bf16.msra.mxu0 0
    %5093 = vmatprep.subr.bf16.mxu0 0
    %5094 = vmatpush2.bf16.msra.mxu0 0
    %5095 = vmatprep.subr.bf16.mxu0 0
    %5096 = vmatpush2.bf16.msra.mxu0 0
    %5097 = vmatprep.mubr.bf16.mxu0 0
    %5098 = vmatmul.mubr.bf16.gmra.mxu0 %v5063
    %v5099 = vpop.f32.mrf.mxu0
    %v5100 = vadd.f32 0.0, %v5099
    %v5101 = vpop.f32.mrf.mxu0
    %v5102 = vpop.f32.mrf.mxu0
    %v5103 = vadd.f32 0.0, %v5102
    %v5104 = vpop.f32.mrf.mxu0
    %5105 = vdwg.mxu0
    %v5106 = vadd.f32 %v4968, %v5012
    %v5107 = vadd.f32 %v4971, %v5015
    %v5108 = vadd.f32 %v5106, %v5056
    %v5109 = vadd.f32 %v5107, %v5059
    %v5110 = vadd.f32 %v5108, %v5100
    %v5111 = vadd.f32 %v5109, %v5103
    %v5112 = vld [vmem:[%s4 + $0x22] sm:$0x1]
    %v5113 = vlaneseq
    %v5114 = vshrl.u32 %v5113, 7
    %v5115 = vsub.s32 0, %v5114
    %v5116 = vrot.slane %v5112, %v5115
    %v5117 = vadd.f32 %v5110, %v5116
    %v5118 = vadd.f32 %v5111, %v5116
    %v5119 = vadd.f32 %v5117, %v4472
    %v5120 = vadd.f32 %v5118, %v4473
    %v5121 = vadd.f32 %v2512, %v5119
    %v5122 = vadd.f32 %v2512, %v5120
    %5123 = vadd.xlane.f32.xlu0 %v5121
    %v5124 = vpop.xlane.xlu0 %5123
    %5125 = vadd.xlane.f32.xlu0 %v5122
    %v5126 = vpop.xlane.xlu0 %5125
    %v5127 = vmul.f32 %v5124, %v227
    %v5128 = vmul.f32 %v5126, %v227
    %v5129 = vsub.f32 %v5121, %v5127
    %v5130 = vsub.f32 %v5122, %v5128
    %v5131 = vmul.f32 %v5129, %v5129
    %v5132 = vmul.f32 %v5130, %v5130
    %5133 = vadd.xlane.f32.xlu0 %v5131
    %v5134 = vpop.xlane.xlu0 %5133
    %5135 = vadd.xlane.f32.xlu0 %v5132
    %v5136 = vpop.xlane.xlu0 %5135
    %v5137 = vmul.f32 %v5134, %v227
    %v5138 = vmul.f32 %v5136, %v227
    %v5139 = vadd.f32 %v5137, 1e-05
    %v5140 = vadd.f32 %v5138, 1e-05
    %v5141 = vrsqrt.pop %v5139
    %v5142 = vrsqrt.pop %v5140
    %v5143 = vmul.f32 %v5129, %v5141
    %v5144 = vmul.f32 %v5130, %v5142
    %v5145 = vmul.f32 %v5143, %v2540
    %v5146 = vmul.f32 %v5144, %v2540
    %v5147 = vadd.f32 %v5145, %v2546
    %v5148 = vadd.f32 %v5146, %v2546
    %v5149 = vadd.f32 %v5119, %v5120
    %v5150 = vrot.slane %v5149, 4
    %v5151 = vadd.f32 %v5149, %v5150
    %v5152 = vrot.slane %v5151, 2
    %v5153 = vadd.f32 %v5151, %v5152
    %v5154 = vrot.slane %v5153, 1
    %v5155 = vadd.f32 %v5153, %v5154
    %v5156 = vmul.f32 %v5155, %v2556
    %v5157 = vpack.c.bf16 %v5156, %v5156
    %5158 = vmatprep.subr.bf16.mxu0 0
    %5159 = vmatpush1.bf16.msra.mxu0 %v404
    %5160 = vmatprep.subr.bf16.mxu0 0
    %5161 = vmatpush1.bf16.msra.mxu0 %v403
    %5162 = vmatprep.subr.bf16.mxu0 0
    %5163 = vmatpush1.bf16.msra.mxu0 %v402
    %5164 = vmatprep.subr.bf16.mxu0 0
    %5165 = vmatpush1.bf16.msra.mxu0 %v401
    %5166 = vmatprep.subr.bf16.mxu0 0
    %5167 = vmatpush1.bf16.msra.mxu0 %v400
    %5168 = vmatprep.subr.bf16.mxu0 0
    %5169 = vmatpush1.bf16.msra.mxu0 %v399
    %5170 = vmatprep.subr.bf16.mxu0 0
    %5171 = vmatpush1.bf16.msra.mxu0 %v398
    %5172 = vmatprep.subr.bf16.mxu0 0
    %5173 = vmatpush1.bf16.msra.mxu0 %v397
    %5174 = vmatprep.subr.bf16.mxu0 0
    %5175 = vmatpush2.bf16.msra.mxu0 0
    %5176 = vmatprep.subr.bf16.mxu0 0
    %5177 = vmatpush2.bf16.msra.mxu0 0
    %5178 = vmatprep.subr.bf16.mxu0 0
    %5179 = vmatpush2.bf16.msra.mxu0 0
    %5180 = vmatprep.subr.bf16.mxu0 0
    %5181 = vmatpush2.bf16.msra.mxu0 0
    %5182 = vmatprep.subr.bf16.mxu0 0
    %5183 = vmatpush2.bf16.msra.mxu0 0
    %5184 = vmatprep.subr.bf16.mxu0 0
    %5185 = vmatpush2.bf16.msra.mxu0 0
    %5186 = vmatprep.subr.bf16.mxu0 0
    %5187 = vmatpush2.bf16.msra.mxu0 0
    %5188 = vmatprep.subr.bf16.mxu0 0
    %5189 = vmatpush2.bf16.msra.mxu0 0
    %5190 = vmatprep.mubr.bf16.mxu0 0
    %5191 = vmatmul.mubr.bf16.gmra.mxu0 %v5157
    %v5192 = vpop.f32.mrf.mxu0
    %v5193 = vadd.f32 %v110, %v5192
    %v5194 = vpop.f32.mrf.mxu0
    %v5195 = vpop.f32.mrf.mxu0
    %v5196 = vpop.f32.mrf.mxu0
    %5197 = vdwg.mxu0
    %v5198 = vlaneseq
    %v5199 = vshrl.u32 %v5198, 7
    %v5200 = vsub.s32 0, %v5199
    %v5201 = vrot.slane %v5193, %v5200
    %v5202 = vadd.f32 %v5201, %v5147
    %v5203 = vadd.f32 %v5201, %v5148
    %5204 = vadd.xlane.f32.xlu0 %v5202
    %v5205 = vpop.xlane.xlu0 %5204
    %5206 = vadd.xlane.f32.xlu0 %v5203
    %v5207 = vpop.xlane.xlu0 %5206
    %v5208 = vmul.f32 %v5205, %v227
    %v5209 = vmul.f32 %v5207, %v227
    %v5210 = vsub.f32 %v5202, %v5208
    %v5211 = vsub.f32 %v5203, %v5209
    %v5212 = vmul.f32 %v5210, %v5210
    %v5213 = vmul.f32 %v5211, %v5211
    %5214 = vadd.xlane.f32.xlu0 %v5212
    %v5215 = vpop.xlane.xlu0 %5214
    %5216 = vadd.xlane.f32.xlu0 %v5213
    %v5217 = vpop.xlane.xlu0 %5216
    %v5218 = vmul.f32 %v5215, %v227
    %v5219 = vmul.f32 %v5217, %v227
    %v5220 = vadd.f32 %v5218, 1e-05
    %v5221 = vadd.f32 %v5219, 1e-05
    %v5222 = vrsqrt.pop %v5220
    %v5223 = vrsqrt.pop %v5221
    %v5224 = vmul.f32 %v5210, %v5222
    %v5225 = vmul.f32 %v5211, %v5223
    %v5226 = vmul.f32 %v5224, %v2540
    %v5227 = vmul.f32 %v5225, %v2540
    %v5228 = vadd.f32 %v5226, %v2546
    %v5229 = vadd.f32 %v5227, %v2546
    %v5230 = vld [vmem:[#allocation4 + $0x1c0] sm:$0xf]
    %v5231 = vld [vmem:[#allocation4 + $0x1c4] sm:$0xf]
    %v5232 = vld [vmem:[#allocation4 + $0x1c8] sm:$0xf]
    %v5233 = vld [vmem:[#allocation4 + $0x1cc] sm:$0xf]
    %v5234 = vld [vmem:[#allocation4 + $0x1d0] sm:$0xf]
    %v5235 = vld [vmem:[#allocation4 + $0x1d4] sm:$0xf]
    %v5236 = vld [vmem:[#allocation4 + $0x1d8] sm:$0xf]
    %v5237 = vld [vmem:[#allocation4 + $0x1dc] sm:$0xf]
    %v5238 = vld [vmem:[#allocation4 + $0x1e0] sm:$0xf]
    %v5239 = vld [vmem:[#allocation4 + $0x1e4] sm:$0xf]
    %v5240 = vld [vmem:[#allocation4 + $0x1e8] sm:$0xf]
    %v5241 = vld [vmem:[#allocation4 + $0x1ec] sm:$0xf]
    %v5242 = vld [vmem:[#allocation4 + $0x1f0] sm:$0xf]
    %v5243 = vld [vmem:[#allocation4 + $0x1f4] sm:$0xf]
    %v5244 = vld [vmem:[#allocation4 + $0x1f8] sm:$0xf]
    %v5245 = vld [vmem:[#allocation4 + $0x1fc] sm:$0xf]
    %v5246 = vpack.c.bf16 %v5229, %v5228
    %v5247 = vld [vmem:[%s4 + $0x2d] sm:$0x1]
    %v5248 = vlaneseq
    %v5249 = vshrl.u32 %v5248, 7
    %v5250 = vsub.s32 0, %v5249
    %v5251 = vrot.slane %v5247, %v5250
    %v5268 = vunpack.c.l.b16 %v5230
    %v5269 = vunpack.c.l.b16 %v5231
    %v5270 = vunpack.c.l.b16 %v5232
    %v5271 = vunpack.c.l.b16 %v5233
    %v5272 = vunpack.c.l.b16 %v5234
    %v5273 = vunpack.c.l.b16 %v5235
    %v5274 = vunpack.c.l.b16 %v5236
    %v5275 = vunpack.c.l.b16 %v5237
    %v5276 = vunpack.c.l.b16 %v5238
    %v5277 = vunpack.c.l.b16 %v5239
    %v5278 = vunpack.c.l.b16 %v5240
    %v5279 = vunpack.c.l.b16 %v5241
    %v5280 = vunpack.c.l.b16 %v5242
    %v5281 = vunpack.c.l.b16 %v5243
    %v5282 = vunpack.c.l.b16 %v5244
    %v5283 = vunpack.c.l.b16 %v5245
    %v5284 = vpack.c.b16 %v5269, %v5268
    %v5285 = vpack.c.b16 %v5271, %v5270
    %v5286 = vpack.c.b16 %v5273, %v5272
    %v5287 = vpack.c.b16 %v5275, %v5274
    %v5288 = vpack.c.b16 %v5277, %v5276
    %v5289 = vpack.c.b16 %v5279, %v5278
    %v5290 = vpack.c.b16 %v5281, %v5280
    %v5291 = vpack.c.b16 %v5283, %v5282
    %5300 = vmatprep.subr.bf16.mxu0 0
    %5301 = vmatpush1.bf16.msra.mxu0 %v5291
    %5302 = vmatprep.subr.bf16.mxu0 0
    %5303 = vmatpush1.bf16.msra.mxu0 %v5290
    %5304 = vmatprep.subr.bf16.mxu0 0
    %5305 = vmatpush1.bf16.msra.mxu0 %v5289
    %5306 = vmatprep.subr.bf16.mxu0 0
    %5307 = vmatpush1.bf16.msra.mxu0 %v5288
    %5308 = vmatprep.subr.bf16.mxu0 0
    %5309 = vmatpush1.bf16.msra.mxu0 %v5287
    %5310 = vmatprep.subr.bf16.mxu0 0
    %5311 = vmatpush1.bf16.msra.mxu0 %v5286
    %5312 = vmatprep.subr.bf16.mxu0 0
    %5313 = vmatpush1.bf16.msra.mxu0 %v5285
    %5314 = vmatprep.subr.bf16.mxu0 0
    %5315 = vmatpush1.bf16.msra.mxu0 %v5284
    %5316 = vmatprep.subr.bf16.mxu0 0
    %5317 = vmatpush2.bf16.msra.mxu0 0
    %5318 = vmatprep.subr.bf16.mxu0 0
    %5319 = vmatpush2.bf16.msra.mxu0 0
    %5320 = vmatprep.subr.bf16.mxu0 0
    %5321 = vmatpush2.bf16.msra.mxu0 0
    %5322 = vmatprep.subr.bf16.mxu0 0
    %5323 = vmatpush2.bf16.msra.mxu0 0
    %5324 = vmatprep.subr.bf16.mxu0 0
    %5325 = vmatpush2.bf16.msra.mxu0 0
    %5326 = vmatprep.subr.bf16.mxu0 0
    %5327 = vmatpush2.bf16.msra.mxu0 0
    %5328 = vmatprep.subr.bf16.mxu0 0
    %5329 = vmatpush2.bf16.msra.mxu0 0
    %5330 = vmatprep.subr.bf16.mxu0 0
    %5331 = vmatpush2.bf16.msra.mxu0 0
    %5332 = vmatprep.mubr.bf16.mxu0 0
    %5333 = vmatmul.mubr.bf16.gmra.mxu0 %v5246
    %v5334 = vpop.f32.mrf.mxu0
    %v5335 = vadd.f32 %v5251, %v5334
    %v5336 = vpop.f32.mrf.mxu0
    %v5337 = vpop.f32.mrf.mxu0
    %v5338 = vadd.f32 %v5251, %v5337
    %v5339 = vpop.f32.mrf.mxu0
    %5340 = vdwg.mxu0
    %v5341 = vld [vmem:[%s5 + $0x40] sm:$0xf]
    %v5342 = vld [vmem:[%s5 + $0x44] sm:$0xf]
    %v5343 = vld [vmem:[%s5 + $0x48] sm:$0xf]
    %v5344 = vld [vmem:[%s5 + $0x4c] sm:$0xf]
    %v5345 = vld [vmem:[%s5 + $0x50] sm:$0xf]
    %v5346 = vld [vmem:[%s5 + $0x54] sm:$0xf]
    %v5347 = vld [vmem:[%s5 + $0x58] sm:$0xf]
    %v5348 = vld [vmem:[%s5 + $0x5c] sm:$0xf]
    %v5349 = vld [vmem:[%s5 + $0x60] sm:$0xf]
    %v5350 = vld [vmem:[%s5 + $0x64] sm:$0xf]
    %v5351 = vld [vmem:[%s5 + $0x68] sm:$0xf]
    %v5352 = vld [vmem:[%s5 + $0x6c] sm:$0xf]
    %v5353 = vld [vmem:[%s5 + $0x70] sm:$0xf]
    %v5354 = vld [vmem:[%s5 + $0x74] sm:$0xf]
    %v5355 = vld [vmem:[%s5 + $0x78] sm:$0xf]
    %v5356 = vld [vmem:[%s5 + $0x7c] sm:$0xf]
    %v5357 = vld [vmem:[#allocation6 + $0x10] sm:$0xf]
    %v5358 = vld [vmem:[#allocation6 + $0x14] sm:$0xf]
    %v5359 = vld [vmem:[#allocation6 + $0x18] sm:$0xf]
    %v5360 = vld [vmem:[#allocation6 + $0x1c] sm:$0xf]
    %v5361 = vld [vmem:[#allocation7 + $0x10] sm:$0xf]
    %v5362 = vld [vmem:[#allocation7 + $0x14] sm:$0xf]
    %v5363 = vld [vmem:[#allocation7 + $0x18] sm:$0xf]
    %v5364 = vld [vmem:[#allocation7 + $0x1c] sm:$0xf]
    %v5365 = vpack.c.bf16 %v5338, %v5335
    %v5366 = vld [vmem:[%s8 + $0x6] sm:$0x1]
    %v5367 = vlaneseq
    %v5368 = vshrl.u32 %v5367, 7
    %v5369 = vsub.s32 0, %v5368
    %v5370 = vrot.slane %v5366, %v5369
    %v5387 = vunpack.c.l.b16 %v5341
    %v5388 = vunpack.c.l.b16 %v5342
    %v5389 = vunpack.c.l.b16 %v5343
    %v5390 = vunpack.c.l.b16 %v5344
    %v5391 = vunpack.c.l.b16 %v5345
    %v5392 = vunpack.c.l.b16 %v5346
    %v5393 = vunpack.c.l.b16 %v5347
    %v5394 = vunpack.c.l.b16 %v5348
    %v5395 = vunpack.c.l.b16 %v5349
    %v5396 = vunpack.c.l.b16 %v5350
    %v5397 = vunpack.c.l.b16 %v5351
    %v5398 = vunpack.c.l.b16 %v5352
    %v5399 = vunpack.c.l.b16 %v5353
    %v5400 = vunpack.c.l.b16 %v5354
    %v5401 = vunpack.c.l.b16 %v5355
    %v5402 = vunpack.c.l.b16 %v5356
    %v5403 = vpack.c.b16 %v5388, %v5387
    %v5404 = vpack.c.b16 %v5390, %v5389
    %v5405 = vpack.c.b16 %v5392, %v5391
    %v5406 = vpack.c.b16 %v5394, %v5393
    %v5407 = vpack.c.b16 %v5396, %v5395
    %v5408 = vpack.c.b16 %v5398, %v5397
    %v5409 = vpack.c.b16 %v5400, %v5399
    %v5410 = vpack.c.b16 %v5402, %v5401
    %5419 = vmatprep.subr.bf16.mxu0 0
    %5420 = vmatpush1.bf16.msra.mxu0 %v5410
    %5421 = vmatprep.subr.bf16.mxu0 0
    %5422 = vmatpush1.bf16.msra.mxu0 %v5409
    %5423 = vmatprep.subr.bf16.mxu0 0
    %5424 = vmatpush1.bf16.msra.mxu0 %v5408
    %5425 = vmatprep.subr.bf16.mxu0 0
    %5426 = vmatpush1.bf16.msra.mxu0 %v5407
    %5427 = vmatprep.subr.bf16.mxu0 0
    %5428 = vmatpush1.bf16.msra.mxu0 %v5406
    %5429 = vmatprep.subr.bf16.mxu0 0
    %5430 = vmatpush1.bf16.msra.mxu0 %v5405
    %5431 = vmatprep.subr.bf16.mxu0 0
    %5432 = vmatpush1.bf16.msra.mxu0 %v5404
    %5433 = vmatprep.subr.bf16.mxu0 0
    %5434 = vmatpush1.bf16.msra.mxu0 %v5403
    %5435 = vmatprep.subr.bf16.mxu0 0
    %5436 = vmatpush2.bf16.msra.mxu0 0
    %5437 = vmatprep.subr.bf16.mxu0 0
    %5438 = vmatpush2.bf16.msra.mxu0 0
    %5439 = vmatprep.subr.bf16.mxu0 0
    %5440 = vmatpush2.bf16.msra.mxu0 0
    %5441 = vmatprep.subr.bf16.mxu0 0
    %5442 = vmatpush2.bf16.msra.mxu0 0
    %5443 = vmatprep.subr.bf16.mxu0 0
    %5444 = vmatpush2.bf16.msra.mxu0 0
    %5445 = vmatprep.subr.bf16.mxu0 0
    %5446 = vmatpush2.bf16.msra.mxu0 0
    %5447 = vmatprep.subr.bf16.mxu0 0
    %5448 = vmatpush2.bf16.msra.mxu0 0
    %5449 = vmatprep.subr.bf16.mxu0 0
    %5450 = vmatpush2.bf16.msra.mxu0 0
    %5451 = vmatprep.mubr.bf16.mxu0 0
    %5452 = vmatmul.mubr.bf16.gmra.mxu0 %v5365
    %v5453 = vpop.f32.mrf.mxu0
    %v5454 = vadd.f32 %v5370, %v5453
    %v5455 = vpop.f32.mrf.mxu0
    %v5456 = vpop.f32.mrf.mxu0
    %v5457 = vadd.f32 %v5370, %v5456
    %v5458 = vpop.f32.mrf.mxu0
    %5459 = vdwg.mxu0
    %v5460 = vld [vmem:[%s8 + $0x7] sm:$0x1]
    %v5461 = vld [vmem:[%s8 + $0x8] sm:$0x1]
    %v5462 = vsel %vm2863, %v5454, 0.0
    %5463 = vadd.xlane.f32.xlu0 %v5462
    %v5464 = vpop.xlane.xlu0 %5463
    %v5465 = vsel %vm2863, %v5457, 0.0
    %5466 = vadd.xlane.f32.xlu0 %v5465
    %v5467 = vpop.xlane.xlu0 %5466
    %v5468 = vmul.f32 %v5464, %v2870
    %v5469 = vmul.f32 %v5467, %v2870
    %v5470 = vsub.f32 %v5454, %v5468
    %v5471 = vsub.f32 %v5457, %v5469
    %v5472 = vmul.f32 %v5470, %v5470
    %v5473 = vmul.f32 %v5471, %v5471
    %v5474 = vsel %vm2863, %v5472, 0.0
    %5475 = vadd.xlane.f32.xlu0 %v5474
    %v5476 = vpop.xlane.xlu0 %5475
    %v5477 = vsel %vm2863, %v5473, 0.0
    %5478 = vadd.xlane.f32.xlu0 %v5477
    %v5479 = vpop.xlane.xlu0 %5478
    %v5480 = vmul.f32 %v5476, %v2870
    %v5481 = vmul.f32 %v5479, %v2870
    %v5482 = vadd.f32 %v5480, 1e-05
    %v5483 = vadd.f32 %v5481, 1e-05
    %v5484 = vrsqrt.pop %v5482
    %v5485 = vrsqrt.pop %v5483
    %v5486 = vmul.f32 %v5470, %v5484
    %v5487 = vmul.f32 %v5471, %v5485
    %v5488 = vlaneseq
    %v5489 = vshrl.u32 %v5488, 7
    %v5490 = vsub.s32 0, %v5489
    %v5491 = vrot.slane %v5460, %v5490
    %v5492 = vmul.f32 %v5486, %v5491
    %v5493 = vmul.f32 %v5487, %v5491
    %v5494 = vlaneseq
    %v5495 = vshrl.u32 %v5494, 7
    %v5496 = vsub.s32 0, %v5495
    %v5497 = vrot.slane %v5461, %v5496
    %v5498 = vadd.f32 %v5492, %v5497
    %v5499 = vadd.f32 %v5493, %v5497
    %v5500 = vmax.f32 %v5498, 0.0
    %v5501 = vmax.f32 %v5499, 0.0
    %v5502 = vpack.c.bf16 %v5501, %v5500
    %v5503 = vld [vmem:[%s8 + $0x9] sm:$0x1]
    %v5504 = vlaneseq
    %v5505 = vshrl.u32 %v5504, 7
    %v5506 = vsub.s32 0, %v5505
    %v5507 = vrot.slane %v5503, %v5506
    %v5512 = vunpack.c.l.b16 %v5357
    %v5513 = vunpack.c.l.b16 %v5358
    %v5514 = vunpack.c.l.b16 %v5359
    %v5515 = vunpack.c.l.b16 %v5360
    %v5516 = vpack.c.b16 %v5513, %v5512
    %v5517 = vpack.c.b16 %v5515, %v5514
    %v5521 = vsel %vm2863, %v5502, 0
    %5523 = vmatprep.subr.bf16.mxu0 0
    %5524 = vmatpush1.bf16.msra.mxu0 0
    %5525 = vmatprep.subr.bf16.mxu0 0
    %5526 = vmatpush1.bf16.msra.mxu0 0
    %5527 = vmatprep.subr.bf16.mxu0 0
    %5528 = vmatpush1.bf16.msra.mxu0 0
    %5529 = vmatprep.subr.bf16.mxu0 0
    %5530 = vmatpush1.bf16.msra.mxu0 0
    %5531 = vmatprep.subr.bf16.mxu0 0
    %5532 = vmatpush1.bf16.msra.mxu0 0
    %5533 = vmatprep.subr.bf16.mxu0 0
    %5534 = vmatpush1.bf16.msra.mxu0 0
    %5535 = vmatprep.subr.bf16.mxu0 0
    %5536 = vmatpush1.bf16.msra.mxu0 %v5517
    %5537 = vmatprep.subr.bf16.mxu0 0
    %5538 = vmatpush1.bf16.msra.mxu0 %v5516
    %5539 = vmatprep.subr.bf16.mxu0 0
    %5540 = vmatpush2.bf16.msra.mxu0 0
    %5541 = vmatprep.subr.bf16.mxu0 0
    %5542 = vmatpush2.bf16.msra.mxu0 0
    %5543 = vmatprep.subr.bf16.mxu0 0
    %5544 = vmatpush2.bf16.msra.mxu0 0
    %5545 = vmatprep.subr.bf16.mxu0 0
    %5546 = vmatpush2.bf16.msra.mxu0 0
    %5547 = vmatprep.subr.bf16.mxu0 0
    %5548 = vmatpush2.bf16.msra.mxu0 0
    %5549 = vmatprep.subr.bf16.mxu0 0
    %5550 = vmatpush2.bf16.msra.mxu0 0
    %5551 = vmatprep.subr.bf16.mxu0 0
    %5552 = vmatpush2.bf16.msra.mxu0 0
    %5553 = vmatprep.subr.bf16.mxu0 0
    %5554 = vmatpush2.bf16.msra.mxu0 0
    %5555 = vmatprep.mubr.bf16.mxu0 0
    %5556 = vmatmul.mubr.bf16.gmra.mxu0 %v5521
    %v5557 = vpop.f32.mrf.mxu0
    %v5558 = vadd.f32 %v5507, %v5557
    %v5559 = vpop.f32.mrf.mxu0
    %v5560 = vpop.f32.mrf.mxu0
    %v5561 = vadd.f32 %v5507, %v5560
    %v5562 = vpop.f32.mrf.mxu0
    %5563 = vdwg.mxu0
    %v5564 = vld [vmem:[%s8 + $0xa] sm:$0x1]
    %v5565 = vld [vmem:[%s8 + $0xb] sm:$0x1]
    %v5566 = vsel %vm2863, %v5558, 0.0
    %5567 = vadd.xlane.f32.xlu0 %v5566
    %v5568 = vpop.xlane.xlu0 %5567
    %v5569 = vsel %vm2863, %v5561, 0.0
    %5570 = vadd.xlane.f32.xlu0 %v5569
    %v5571 = vpop.xlane.xlu0 %5570
    %v5572 = vmul.f32 %v5568, %v2870
    %v5573 = vmul.f32 %v5571, %v2870
    %v5574 = vsub.f32 %v5558, %v5572
    %v5575 = vsub.f32 %v5561, %v5573
    %v5576 = vmul.f32 %v5574, %v5574
    %v5577 = vmul.f32 %v5575, %v5575
    %v5578 = vsel %vm2863, %v5576, 0.0
    %5579 = vadd.xlane.f32.xlu0 %v5578
    %v5580 = vpop.xlane.xlu0 %5579
    %v5581 = vsel %vm2863, %v5577, 0.0
    %5582 = vadd.xlane.f32.xlu0 %v5581
    %v5583 = vpop.xlane.xlu0 %5582
    %v5584 = vmul.f32 %v5580, %v2870
    %v5585 = vmul.f32 %v5583, %v2870
    %v5586 = vadd.f32 %v5584, 1e-05
    %v5587 = vadd.f32 %v5585, 1e-05
    %v5588 = vrsqrt.pop %v5586
    %v5589 = vrsqrt.pop %v5587
    %v5590 = vmul.f32 %v5574, %v5588
    %v5591 = vmul.f32 %v5575, %v5589
    %v5592 = vlaneseq
    %v5593 = vshrl.u32 %v5592, 7
    %v5594 = vsub.s32 0, %v5593
    %v5595 = vrot.slane %v5564, %v5594
    %v5596 = vmul.f32 %v5590, %v5595
    %v5597 = vmul.f32 %v5591, %v5595
    %v5598 = vlaneseq
    %v5599 = vshrl.u32 %v5598, 7
    %v5600 = vsub.s32 0, %v5599
    %v5601 = vrot.slane %v5565, %v5600
    %v5602 = vadd.f32 %v5596, %v5601
    %v5603 = vadd.f32 %v5597, %v5601
    %v5604 = vmax.f32 %v5602, 0.0
    %v5605 = vmax.f32 %v5603, 0.0
    %v5606 = vpack.c.bf16 %v5605, %v5604
    %v5607 = vld [vmem:[%s4 + $0x2f] sm:$0x1]
    %v5608 = vlaneseq
    %v5609 = vshrl.u32 %v5608, 7
    %v5610 = vsub.s32 0, %v5609
    %v5611 = vrot.slane %v5607, %v5610
    %v5616 = vunpack.c.l.b16 %v5361
    %v5617 = vunpack.c.l.b16 %v5362
    %v5618 = vunpack.c.l.b16 %v5363
    %v5619 = vunpack.c.l.b16 %v5364
    %v5620 = vpack.c.b16 %v5617, %v5616
    %v5621 = vpack.c.b16 %v5619, %v5618
    %v5625 = vsel %vm2863, %v5606, 0
    %5627 = vmatprep.subr.bf16.mxu0 0
    %5628 = vmatpush1.bf16.msra.mxu0 0
    %5629 = vmatprep.subr.bf16.mxu0 0
    %5630 = vmatpush1.bf16.msra.mxu0 0
    %5631 = vmatprep.subr.bf16.mxu0 0
    %5632 = vmatpush1.bf16.msra.mxu0 0
    %5633 = vmatprep.subr.bf16.mxu0 0
    %5634 = vmatpush1.bf16.msra.mxu0 0
    %5635 = vmatprep.subr.bf16.mxu0 0
    %5636 = vmatpush1.bf16.msra.mxu0 0
    %5637 = vmatprep.subr.bf16.mxu0 0
    %5638 = vmatpush1.bf16.msra.mxu0 0
    %5639 = vmatprep.subr.bf16.mxu0 0
    %5640 = vmatpush1.bf16.msra.mxu0 %v5621
    %5641 = vmatprep.subr.bf16.mxu0 0
    %5642 = vmatpush1.bf16.msra.mxu0 %v5620
    %5643 = vmatprep.subr.bf16.mxu0 0
    %5644 = vmatpush2.bf16.msra.mxu0 0
    %5645 = vmatprep.subr.bf16.mxu0 0
    %5646 = vmatpush2.bf16.msra.mxu0 0
    %5647 = vmatprep.subr.bf16.mxu0 0
    %5648 = vmatpush2.bf16.msra.mxu0 0
    %5649 = vmatprep.subr.bf16.mxu0 0
    %5650 = vmatpush2.bf16.msra.mxu0 0
    %5651 = vmatprep.subr.bf16.mxu0 0
    %5652 = vmatpush2.bf16.msra.mxu0 0
    %5653 = vmatprep.subr.bf16.mxu0 0
    %5654 = vmatpush2.bf16.msra.mxu0 0
    %5655 = vmatprep.subr.bf16.mxu0 0
    %5656 = vmatpush2.bf16.msra.mxu0 0
    %5657 = vmatprep.subr.bf16.mxu0 0
    %5658 = vmatpush2.bf16.msra.mxu0 0
    %5659 = vmatprep.mubr.bf16.mxu0 0
    %5660 = vmatmul.mubr.bf16.gmra.mxu0 %v5625
    %v5661 = vpop.f32.mrf.mxu0
    %v5662 = vadd.f32 %v5611, %v5661
    %v5663 = vpop.f32.mrf.mxu0
    %v5664 = vpop.f32.mrf.mxu0
    %v5665 = vadd.f32 %v5611, %v5664
    %v5666 = vpop.f32.mrf.mxu0
    %5667 = vdwg.mxu0
    %5668 = vst [vmem:[%s10] sm:$0xff] %v5662
    %5669 = vst [vmem:[%s10 + $0x8] sm:$0xff] %v5665
    // Predicated region
    $region54: #{_lambda_.1} parent=1 // pred_check
      _
    $region55: #{_lambda_.1} parent=1 // pred_check_branch
      %5671 = sbr.rel (0) target = $region57
    $region56: #{_lambda_.1} parent=1 // pred_region
      _
    $region57: #{_lambda_.1} parent=1 // pred_fallthru
      _
    // Predicated region
    $region58: #{_lambda_.1} parent=1 // pred_check
      _
    $region59: #{_lambda_.1} parent=1 // pred_check_branch
      %5673 = sbr.rel (0) target = $region61
    $region60: #{_lambda_.1} parent=1 // pred_region
      _
    $region61: #{_lambda_.1} parent=1 // pred_fallthru
      _
    // Predicated region
    $region62: #{_lambda_.1} parent=1 // pred_check
      _
    $region63: #{_lambda_.1} parent=1 // pred_check_branch
      %5675 = sbr.rel (0) target = $region65
    $region64: #{_lambda_.1} parent=1 // pred_region
      _
    $region65: #{_lambda_.1} parent=1 // pred_fallthru
      _
    // Predicated region
    $region66: #{_lambda_.1} parent=1 // pred_check
      _
    $region67: #{_lambda_.1} parent=1 // pred_check_branch
      %5677 = sbr.rel (0) target = $region69
    $region68: #{_lambda_.1} parent=1 // pred_region
      _
    $region69: #{_lambda_.1} parent=1 // pred_fallthru
      _
    %5678 = vsyncpa [#allocation3], 1
    %5679 = vsyncpa [#allocation5], 1
    %5680 = vsyncpa [#allocation8], 1

</llo_original>
